<compile_context>
chip_gen: v7x
topology: tpu7x:2x2x1
jax: 0.10.0
libtpu: 0.0.40
codegen_flags: <defaults>
</compile_context>

<pallas_src>
import functools

import jax
import jax.numpy as jnp
import numpy as np
from jax.experimental import pallas as pl
from jax.experimental.pallas import tpu as pltpu

HIDDEN = 128
NUM_LAYERS = 2


# ----------------------------- fused kernel --------------------------------
def fused_gru_model_kernel(x_ref, wih0_ref, whh0_ref, bgi0_ref, bhhn0_ref,
                           wih1_hbm, whh1_hbm, bgi1_ref, bhhn1_ref,
                           w1h_hbm, b1h_ref, w2h_hbm, b2h_ref,
                           out_ref,
                           wih1_s, whh1_s, w1h_s, w2h_s, y0_s, sem,
                           *, seq_len, batch, hidden):
    """Whole model forward in one kernel invocation (no grid).

    VMEM inputs (auto-staged, needed immediately):
      x_ref:   (T*B, D)  time-major flattened input, bf16, B padded to 8.
      wih0:    (D, 6H)   layer-0 combined input->gates weights (bf16).
      whh0:    (2H, 6H)  layer-0 combined hidden->gates weights (bf16).
      bgi{l}:  (1, 6H)   b_ih (+ b_hh folded for r,z gates) input-side bias (f32).
      bhhn{l}: (1, 2H)   b_hn, applied inside r * (W_hn h + b_hn) (f32).
      b1h:     (1, 5H)   fused head layer-1 bias (f32).
      b2h:     (1, 128)  fused head layer-2 bias, lane-padded (f32).
    HBM inputs (manually DMA'd into scratch, overlapped with layer-0 compute):
      wih1 (2H,6H), whh1 (2H,6H), w1h (2H,5H), w2h (5H,128)  -- all bf16.
    Output:
      out_ref: (B, 128) f32 slab; cols 0:4 = fc head (no final ReLU here),
               cols 4:8 = classifier head pre final-ReLU. One lane-dense store.
    Gate layout along 6H: [r1 r2 z1 z2 n1 n2]; hidden layout along 2H:
    [:, :H] = gru1 stack, [:, H:] = gru2 stack.
    """
    T, B, H = seq_len, batch, hidden
    H2 = 2 * H
    f32 = jnp.float32
    bf16 = jnp.bfloat16

    # ---- kick off layer-1 / head weight DMAs; hide them behind layer-0 ----
    cp_wih1 = pltpu.make_async_copy(wih1_hbm, wih1_s, sem.at[0])
    cp_whh1 = pltpu.make_async_copy(whh1_hbm, whh1_s, sem.at[1])
    cp_w1h = pltpu.make_async_copy(w1h_hbm, w1h_s, sem.at[2])
    cp_w2h = pltpu.make_async_copy(w2h_hbm, w2h_s, sem.at[3])
    cp_wih1.start()
    cp_whh1.start()
    cp_w1h.start()
    cp_w2h.start()

    def gru_layer(gi_all, whh_ref_, bhhn_ref_, store_seq):
        # gi_all: (T*B, 6H) f32 input-side gate pre-activations, biases folded.
        bhh_n = jnp.broadcast_to(bhhn_ref_[...], (B, H2)).astype(f32)  # hoisted
        h = jnp.zeros((B, H2), f32)
        # Static unroll over T; each step's h lands directly in the aligned
        # bf16 scratch, so no long-lived f32 list / concat temp exists.
        # TODO(synk): the two stacked layers could be software-pipelined by one
        # timestep (and whh held in the MXU via matmul_push_rhs/acc_lhs/pop) to
        # further shorten the serial dependency chain; kept two-phase here to
        # preserve the large DMA-overlap window for the layer-1/head weights.
        for t in range(T):
            gi = gi_all[t * B:(t + 1) * B, :]
            gh = jnp.dot(h.astype(bf16), whh_ref_[...],
                         preferred_element_type=f32)
            r = jax.nn.sigmoid(gi[:, 0:H2] + gh[:, 0:H2])
            z = jax.nn.sigmoid(gi[:, H2:2 * H2] + gh[:, H2:2 * H2])
            n = jnp.tanh(gi[:, 2 * H2:3 * H2] + r * (gh[:, 2 * H2:3 * H2] + bhh_n))
            h = (1.0 - z) * n + z * h
            if store_seq:
                y0_s[pl.ds(t * B, B), :] = h.astype(bf16)
        return h

    # ---- combined layer 0 (gru1.l0 + gru2.l0): hoisted input GEMM + recurrence
    gi0 = jnp.dot(x_ref[...], wih0_ref[...],
                  preferred_element_type=f32) + bgi0_ref[...]          # (T*B, 6H)
    gru_layer(gi0, whh0_ref, bhhn0_ref, store_seq=True)

    # ---- combined layer 1: wait for its weights, hoisted GEMM on y0, recurrence
    cp_wih1.wait()
    cp_whh1.wait()
    gi1 = jnp.dot(y0_s[...], wih1_s[...],
                  preferred_element_type=f32) + bgi1_ref[...]          # (T*B, 6H)
    h1 = gru_layer(gi1, whh1_s, bhhn1_ref, store_seq=False)            # (B, 2H)

    # ---- fused MLP heads (fc on gru1 half | classifier on gru2 half) ----
    cp_w1h.wait()
    cp_w2h.wait()
    hc = jnp.maximum(h1, 0.0)                    # ReLU on GRU outputs (last step)
    z1 = jnp.dot(hc.astype(bf16), w1h_s[...],
                 preferred_element_type=f32) + b1h_ref[...]
    z1 = jnp.maximum(z1, 0.0)
    z2 = jnp.dot(z1.astype(bf16), w2h_s[...],
                 preferred_element_type=f32) + b2h_ref[...]            # (B, 128)
    # Dropout(p=0.2) layers are identity (eval-mode forward).
    # Single lane-dense store; fc / classifier split + classifier's final ReLU
    # happen in the JAX wrapper.
    out_ref[...] = z2.astype(out_ref.dtype)


def fused_forward(x2d, fp, *, seq_len, batch, hidden):
    H, H2 = hidden, 2 * hidden
    kernel = functools.partial(fused_gru_model_kernel,
                               seq_len=seq_len, batch=batch, hidden=hidden)
    vmem = functools.partial(pl.BlockSpec, memory_space=pltpu.MemorySpace.VMEM)
    hbm = functools.partial(pl.BlockSpec, memory_space=pl.ANY)
    return pl.pallas_call(
        kernel,
        out_shape=jax.ShapeDtypeStruct((batch, 128), jnp.float32),
        in_specs=[vmem(), vmem(), vmem(), vmem(), vmem(),  # x, wih0, whh0, bgi0, bhhn0
                  hbm(), hbm(), vmem(), vmem(),            # wih1, whh1 (HBM), bgi1, bhhn1
                  hbm(), vmem(), hbm(), vmem()],           # w1h (HBM), b1h, w2h (HBM), b2h
        out_specs=vmem(),
        scratch_shapes=[
            pltpu.VMEM((H2, 6 * H), jnp.bfloat16),            # staged wih1
            pltpu.VMEM((H2, 6 * H), jnp.bfloat16),            # staged whh1
            pltpu.VMEM((H2, 5 * H), jnp.bfloat16),            # staged w1h
            pltpu.VMEM((5 * H, 128), jnp.bfloat16),           # staged w2h (lane-padded)
            pltpu.VMEM((seq_len * batch, H2), jnp.bfloat16),  # layer-0 output sequence
            pltpu.SemaphoreType.DMA((4,)),
        ],
    )(x2d,
      fp["wih0"], fp["whh0"], fp["bgi0"], fp["bhhn0"],
      fp["wih1"], fp["whh1"], fp["bgi1"], fp["bhhn1"],
      fp["w1h"], fp["b1h"], fp["w2h"], fp["b2h"])


# ----------------------------- parameter setup ------------------------------
def init_params(key, enc_in, hidden=HIDDEN, num_layers=NUM_LAYERS):
    def uniform(key, shape, bound):
        return jax.random.uniform(key, shape, jnp.float32, -bound, bound)

    params = {"gru1": [], "gru2": []}
    k_gru = 1.0 / jnp.sqrt(hidden)
    for name in ("gru1", "gru2"):
        for layer in range(num_layers):
            d_in = enc_in if layer == 0 else hidden
            key, k1, k2, k3, k4 = jax.random.split(key, 5)
            params[name].append({
                # stored transposed: (D, 3H) / (H, 3H); gate column order [r, z, n]
                "w_ih_t": uniform(k1, (d_in, 3 * hidden), k_gru),
                "w_hh_t": uniform(k2, (hidden, 3 * hidden), k_gru),
                "b_ih": uniform(k3, (1, 3 * hidden), k_gru),
                "b_hh": uniform(k4, (1, 3 * hidden), k_gru),
            })

    # classifier: Linear(H, 3H) -> ReLU -> Linear(3H, 4) -> ReLU -> Dropout
    key, k1, k2, k3, k4 = jax.random.split(key, 5)
    params["cls"] = {
        "w1": uniform(k1, (hidden, 3 * hidden), 1.0 / jnp.sqrt(hidden)),
        "b1": uniform(k2, (1, 3 * hidden), 1.0 / jnp.sqrt(hidden)),
        "w2": uniform(k3, (3 * hidden, 4), 1.0 / jnp.sqrt(3 * hidden)),
        "b2": uniform(k4, (1, 4), 1.0 / jnp.sqrt(3 * hidden)),
    }
    # fc: Linear(H, 2H) -> ReLU -> Dropout -> Linear(2H, 4)
    key, k1, k2, k3, k4 = jax.random.split(key, 5)
    params["fc"] = {
        "w1": uniform(k1, (hidden, 2 * hidden), 1.0 / jnp.sqrt(hidden)),
        "b1": uniform(k2, (1, 2 * hidden), 1.0 / jnp.sqrt(hidden)),
        "w2": uniform(k3, (2 * hidden, 4), 1.0 / jnp.sqrt(2 * hidden)),
        "b2": uniform(k4, (1, 4), 1.0 / jnp.sqrt(2 * hidden)),
    }
    return params


def prepare_fused_params(params, hidden=HIDDEN):
    """Pack the two independent GRU stacks and the two MLP heads into
    block-structured fused weights (gate layout [r1 r2 z1 z2 n1 n2])."""
    H = hidden
    stacks = (params["gru1"], params["gru2"])   # stack 0 -> fc/out, stack 1 -> classifier/state

    def gate_cols(s, g):   # stack s in {0,1}, gate g in {0:r, 1:z, 2:n}
        return slice((2 * g + s) * H, (2 * g + s + 1) * H)

    fused = {}
    for layer in range(NUM_LAYERS):
        d_in0 = stacks[0][layer]["w_ih_t"].shape[0]
        wih = jnp.zeros((d_in0 if layer == 0 else 2 * H, 6 * H), jnp.float32)
        whh = jnp.zeros((2 * H, 6 * H), jnp.float32)
        bih = jnp.zeros((1, 6 * H), jnp.float32)
        bhh = jnp.zeros((1, 6 * H), jnp.float32)
        for s, stack in enumerate(stacks):
            lp = stack[layer]
            for g in range(3):
                cols = gate_cols(s, g)
                src = slice(g * H, (g + 1) * H)
                if layer == 0:
                    wih = wih.at[:, cols].set(lp["w_ih_t"][:, src])
                else:   # layer-1 input is [h_stack0 | h_stack1] -> block structured
                    wih = wih.at[s * H:(s + 1) * H, cols].set(lp["w_ih_t"][:, src])
                whh = whh.at[s * H:(s + 1) * H, cols].set(lp["w_hh_t"][:, src])
                bih = bih.at[:, cols].set(lp["b_ih"][:, src])
                bhh = bhh.at[:, cols].set(lp["b_hh"][:, src])
        # fold b_hh into the hoisted input-side bias for r,z gates; keep b_hn separate
        bgi = jnp.concatenate([bih[:, :4 * H] + bhh[:, :4 * H], bih[:, 4 * H:]], axis=1)
        fused[f"wih{layer}"] = wih.astype(jnp.bfloat16)
        fused[f"whh{layer}"] = whh.astype(jnp.bfloat16)
        fused[f"bgi{layer}"] = bgi
        fused[f"bhhn{layer}"] = bhh[:, 4 * H:]

    # fused MLP heads: columns [fc (2H) | classifier (3H)], block-diagonal;
    # head-2 output lane-padded to 128 so the kernel's final store is lane-dense.
    cls, fc = params["cls"], params["fc"]
    w1 = jnp.zeros((2 * H, 5 * H), jnp.float32)
    w1 = w1.at[0:H, 0:2 * H].set(fc["w1"])
    w1 = w1.at[H:2 * H, 2 * H:5 * H].set(cls["w1"])
    b1 = jnp.concatenate([fc["b1"], cls["b1"]], axis=1)
    w2 = jnp.zeros((5 * H, 128), jnp.float32)
    w2 = w2.at[0:2 * H, 0:4].set(fc["w2"])
    w2 = w2.at[2 * H:5 * H, 4:8].set(cls["w2"])
    b2 = jnp.zeros((1, 128), jnp.float32)
    b2 = b2.at[:, 0:4].set(fc["b2"])
    b2 = b2.at[:, 4:8].set(cls["b2"])
    fused["w1h"] = w1.astype(jnp.bfloat16)
    fused["b1h"] = b1
    fused["w2h"] = w2.astype(jnp.bfloat16)
    fused["b2h"] = b2
    return fused


# ----------------------------- model forward --------------------------------
@jax.jit
def model_forward(fused, x_enc, x_mark_enc, x_dec, x_mark_dec):
    # x_enc: (B, T, enc_in), batch_first like the PyTorch module.
    B, T, D = x_enc.shape
    hidden = fused["whh0"].shape[0] // 2
    # Pad batch to the 8-sublane tile so every per-step slice / store inside the
    # kernel is (8,128)-tile aligned; padded rows are sliced away afterwards.
    B_pad = max(8, -(-B // 8) * 8)
    x_p = jnp.pad(x_enc, ((0, B_pad - B), (0, 0), (0, 0))) if B_pad != B else x_enc
    x2d = jnp.transpose(x_p, (1, 0, 2)).reshape(T * B_pad, D).astype(jnp.bfloat16)
    z2 = fused_forward(x2d, fused, seq_len=T, batch=B_pad, hidden=hidden)
    out = z2[:B, 0:4]                        # fc head: no final ReLU
    state = jnp.maximum(z2[:B, 4:8], 0.0)    # classifier head: final ReLU
    return out[:, None, :], state[:, None, :]    # each (B, 1, 4)


# ----------------------------- pure-JAX reference ---------------------------
def reference_forward(params, x_enc):
    def gru_stack(x_tbd, layers):
        h_seq = x_tbd
        for lyr in layers:
            w_ih, w_hh, b_ih, b_hh = (lyr["w_ih_t"], lyr["w_hh_t"],
                                      lyr["b_ih"], lyr["b_hh"])
            H = w_hh.shape[0]
            T, B, _ = h_seq.shape
            h = jnp.zeros((B, H), jnp.float32)
            outs = []
            for t in range(T):
                gi = h_seq[t] @ w_ih + b_ih
                gh = h @ w_hh + b_hh
                r = jax.nn.sigmoid(gi[:, :H] + gh[:, :H])
                z = jax.nn.sigmoid(gi[:, H:2 * H] + gh[:, H:2 * H])
                n = jnp.tanh(gi[:, 2 * H:] + r * gh[:, 2 * H:])
                h = (1.0 - z) * n + z * h
                outs.append(h)
            h_seq = jnp.stack(outs, axis=0)
        return h_seq

    x_tbd = jnp.transpose(x_enc, (1, 0, 2)).astype(jnp.float32)
    out_last = gru_stack(x_tbd, params["gru1"])[-1]
    state_last = gru_stack(x_tbd, params["gru2"])[-1]
    cls, fc = params["cls"], params["fc"]
    s = jnp.maximum(state_last, 0.0)
    s = jnp.maximum(s @ cls["w1"] + cls["b1"], 0.0)
    s = jnp.maximum(s @ cls["w2"] + cls["b2"], 0.0)
    o = jnp.maximum(out_last, 0.0)
    o = jnp.maximum(o @ fc["w1"] + fc["b1"], 0.0)
    o = o @ fc["w2"] + fc["b2"]
    return o[:, None, :], s[:, None, :]


if __name__ == "__main__":
    B, T, ENC_IN = 2, 8, 4

    key = jax.random.PRNGKey(0)
    key, kx, kp = jax.random.split(key, 3)
    params = init_params(kp, ENC_IN)
    fused = prepare_fused_params(params)

    x_enc = jax.random.normal(kx, (B, T, ENC_IN), jnp.float32)
    x_mark_enc = jnp.zeros((B, T, 4), jnp.float32)   # unused by forward
    x_dec = jnp.zeros((B, T, ENC_IN), jnp.float32)   # unused by forward
    x_mark_dec = jnp.zeros((B, T, 4), jnp.float32)   # unused by forward

    out, state = model_forward(fused, x_enc, x_mark_enc, x_dec, x_mark_dec)
    jax.block_until_ready((out, state))
    assert out.shape == (B, 1, 4) and state.shape == (B, 1, 4)

    # loose tolerance: kernel uses bf16 weights / matmul operands with f32 accumulation
    ref_out, ref_state = reference_forward(params, x_enc)
    np.testing.assert_allclose(np.asarray(out), np.asarray(ref_out), rtol=0.1, atol=0.05)
    np.testing.assert_allclose(np.asarray(state), np.asarray(ref_state), rtol=0.1, atol=0.05)

    print("KERNEL_OK")
</pallas_src>

<mosaic_0001>
module attributes {stable_mosaic.version = 11 : i64} {
  func.func @fused_gru_model_kernel(%arg0: memref<64x4xbf16, #tpu.memory_space<vmem>>, %arg1: memref<4x768xbf16, #tpu.memory_space<vmem>>, %arg2: memref<256x768xbf16, #tpu.memory_space<vmem>>, %arg3: memref<1x768xf32, #tpu.memory_space<vmem>>, %arg4: memref<1x256xf32, #tpu.memory_space<vmem>>, %arg5: memref<256x768xbf16, #tpu.memory_space<any>>, %arg6: memref<256x768xbf16, #tpu.memory_space<any>>, %arg7: memref<1x768xf32, #tpu.memory_space<vmem>>, %arg8: memref<1x256xf32, #tpu.memory_space<vmem>>, %arg9: memref<256x640xbf16, #tpu.memory_space<any>>, %arg10: memref<1x640xf32, #tpu.memory_space<vmem>>, %arg11: memref<640x128xbf16, #tpu.memory_space<any>>, %arg12: memref<1x128xf32, #tpu.memory_space<vmem>>, %arg13: memref<8x128xf32, #tpu.memory_space<vmem>>, %arg14: memref<256x768xbf16, #tpu.memory_space<vmem>>, %arg15: memref<256x768xbf16, #tpu.memory_space<vmem>>, %arg16: memref<256x640xbf16, #tpu.memory_space<vmem>>, %arg17: memref<640x128xbf16, #tpu.memory_space<vmem>>, %arg18: memref<64x256xbf16, #tpu.memory_space<vmem>>, %arg19: memref<4x!tpu.dma_semaphore, #tpu.memory_space<semaphore_mem>>) attributes {dimension_semantics = [], scalar_prefetch = 0 : i64, scratch_operands = 6 : i64, tpu.core_type = #tpu.core_type<tc>} {
    %c0_i32 = arith.constant 0 : i32
    %0 = tpu.memref_slice %arg19[%c0_i32] : memref<4x!tpu.dma_semaphore, #tpu.memory_space<semaphore_mem>> -> memref<1x!tpu.dma_semaphore, #tpu.memory_space<semaphore_mem>>
    %1 = tpu.memref_squeeze %0 : memref<1x!tpu.dma_semaphore, #tpu.memory_space<semaphore_mem>> -> memref<!tpu.dma_semaphore, #tpu.memory_space<semaphore_mem>>
    tpu.enqueue_dma source(%arg5 : memref<256x768xbf16, #tpu.memory_space<any>>) target(%arg14 : memref<256x768xbf16, #tpu.memory_space<vmem>>) target_semaphore(%1 : memref<!tpu.dma_semaphore, #tpu.memory_space<semaphore_mem>>)
    %c1_i32 = arith.constant 1 : i32
    %2 = tpu.memref_slice %arg19[%c1_i32] : memref<4x!tpu.dma_semaphore, #tpu.memory_space<semaphore_mem>> -> memref<1x!tpu.dma_semaphore, #tpu.memory_space<semaphore_mem>>
    %3 = tpu.memref_squeeze %2 : memref<1x!tpu.dma_semaphore, #tpu.memory_space<semaphore_mem>> -> memref<!tpu.dma_semaphore, #tpu.memory_space<semaphore_mem>>
    tpu.enqueue_dma source(%arg6 : memref<256x768xbf16, #tpu.memory_space<any>>) target(%arg15 : memref<256x768xbf16, #tpu.memory_space<vmem>>) target_semaphore(%3 : memref<!tpu.dma_semaphore, #tpu.memory_space<semaphore_mem>>)
    %c2_i32 = arith.constant 2 : i32
    %4 = tpu.memref_slice %arg19[%c2_i32] : memref<4x!tpu.dma_semaphore, #tpu.memory_space<semaphore_mem>> -> memref<1x!tpu.dma_semaphore, #tpu.memory_space<semaphore_mem>>
    %5 = tpu.memref_squeeze %4 : memref<1x!tpu.dma_semaphore, #tpu.memory_space<semaphore_mem>> -> memref<!tpu.dma_semaphore, #tpu.memory_space<semaphore_mem>>
    tpu.enqueue_dma source(%arg9 : memref<256x640xbf16, #tpu.memory_space<any>>) target(%arg16 : memref<256x640xbf16, #tpu.memory_space<vmem>>) target_semaphore(%5 : memref<!tpu.dma_semaphore, #tpu.memory_space<semaphore_mem>>)
    %c3_i32 = arith.constant 3 : i32
    %6 = tpu.memref_slice %arg19[%c3_i32] : memref<4x!tpu.dma_semaphore, #tpu.memory_space<semaphore_mem>> -> memref<1x!tpu.dma_semaphore, #tpu.memory_space<semaphore_mem>>
    %7 = tpu.memref_squeeze %6 : memref<1x!tpu.dma_semaphore, #tpu.memory_space<semaphore_mem>> -> memref<!tpu.dma_semaphore, #tpu.memory_space<semaphore_mem>>
    tpu.enqueue_dma source(%arg11 : memref<640x128xbf16, #tpu.memory_space<any>>) target(%arg17 : memref<640x128xbf16, #tpu.memory_space<vmem>>) target_semaphore(%7 : memref<!tpu.dma_semaphore, #tpu.memory_space<semaphore_mem>>)
    %c0 = arith.constant 0 : index
    %c0_0 = arith.constant 0 : index
    %8 = vector.load %arg0[%c0, %c0_0] : memref<64x4xbf16, #tpu.memory_space<vmem>>, vector<64x4xbf16>
    %c0_1 = arith.constant 0 : index
    %c0_2 = arith.constant 0 : index
    %9 = vector.load %arg1[%c0_1, %c0_2] : memref<4x768xbf16, #tpu.memory_space<vmem>>, vector<4x768xbf16>
    %cst = arith.constant dense<0.000000e+00> : vector<64x768xf32>
    %10 = tpu.matmul %8, %9, %cst {dimension_numbers = #tpu.dot_dimension_numbers<[1], [0], [0], [1], [0, 0, 1, 1], [], []>} : vector<64x4xbf16>, vector<4x768xbf16>, vector<64x768xf32> -> vector<64x768xf32>
    %c0_3 = arith.constant 0 : index
    %c0_4 = arith.constant 0 : index
    %11 = vector.load %arg3[%c0_3, %c0_4] : memref<1x768xf32, #tpu.memory_space<vmem>>, vector<1x768xf32>
    %12 = vector.broadcast %11 : vector<1x768xf32> to vector<64x768xf32>
    %13 = arith.addf %10, %12 : vector<64x768xf32>
    %c0_5 = arith.constant 0 : index
    %c0_6 = arith.constant 0 : index
    %14 = vector.load %arg4[%c0_5, %c0_6] : memref<1x256xf32, #tpu.memory_space<vmem>>, vector<1x256xf32>
    %15 = vector.shape_cast %14 : vector<1x256xf32> to vector<1x256xf32>
    %16 = vector.broadcast %15 : vector<1x256xf32> to vector<8x256xf32>
    %cst_7 = arith.constant 0.000000e+00 : f32
    %17 = vector.broadcast %cst_7 : f32 to vector<8x256xf32>
    %18 = vector.extract_strided_slice %13 {offsets = [0, 0], sizes = [8, 768], strides = [1, 1]} : vector<64x768xf32> to vector<8x768xf32>
    %19 = arith.truncf %17 : vector<8x256xf32> to vector<8x256xbf16>
    %c0_8 = arith.constant 0 : index
    %c0_9 = arith.constant 0 : index
    %20 = vector.load %arg2[%c0_8, %c0_9] : memref<256x768xbf16, #tpu.memory_space<vmem>>, vector<256x768xbf16>
    %cst_10 = arith.constant dense<0.000000e+00> : vector<8x768xf32>
    %21 = tpu.matmul %19, %20, %cst_10 {dimension_numbers = #tpu.dot_dimension_numbers<[1], [0], [0], [1], [0, 0, 1, 1], [], []>} : vector<8x256xbf16>, vector<256x768xbf16>, vector<8x768xf32> -> vector<8x768xf32>
    %22 = vector.extract_strided_slice %18 {offsets = [0, 0], sizes = [8, 256], strides = [1, 1]} : vector<8x768xf32> to vector<8x256xf32>
    %23 = vector.extract_strided_slice %21 {offsets = [0, 0], sizes = [8, 256], strides = [1, 1]} : vector<8x768xf32> to vector<8x256xf32>
    %24 = arith.addf %22, %23 : vector<8x256xf32>
    %25 = arith.negf %24 : vector<8x256xf32>
    %26 = math.exp %25 : vector<8x256xf32>
    %cst_11 = arith.constant 1.000000e+00 : f32
    %27 = vector.broadcast %cst_11 : f32 to vector<8x256xf32>
    %28 = arith.addf %27, %26 : vector<8x256xf32>
    %29 = arith.divf %27, %28 : vector<8x256xf32>
    %30 = vector.extract_strided_slice %18 {offsets = [0, 256], sizes = [8, 256], strides = [1, 1]} : vector<8x768xf32> to vector<8x256xf32>
    %31 = vector.extract_strided_slice %21 {offsets = [0, 256], sizes = [8, 256], strides = [1, 1]} : vector<8x768xf32> to vector<8x256xf32>
    %32 = arith.addf %30, %31 : vector<8x256xf32>
    %33 = arith.negf %32 : vector<8x256xf32>
    %34 = math.exp %33 : vector<8x256xf32>
    %cst_12 = arith.constant 1.000000e+00 : f32
    %35 = vector.broadcast %cst_12 : f32 to vector<8x256xf32>
    %36 = arith.addf %35, %34 : vector<8x256xf32>
    %37 = arith.divf %35, %36 : vector<8x256xf32>
    %38 = vector.extract_strided_slice %18 {offsets = [0, 512], sizes = [8, 256], strides = [1, 1]} : vector<8x768xf32> to vector<8x256xf32>
    %39 = vector.extract_strided_slice %21 {offsets = [0, 512], sizes = [8, 256], strides = [1, 1]} : vector<8x768xf32> to vector<8x256xf32>
    %40 = arith.addf %39, %16 : vector<8x256xf32>
    %41 = arith.mulf %29, %40 : vector<8x256xf32>
    %42 = arith.addf %38, %41 : vector<8x256xf32>
    %43 = math.tanh %42 : vector<8x256xf32>
    %cst_13 = arith.constant 1.000000e+00 : f32
    %44 = vector.broadcast %cst_13 : f32 to vector<8x256xf32>
    %45 = arith.subf %44, %37 : vector<8x256xf32>
    %46 = arith.mulf %45, %43 : vector<8x256xf32>
    %47 = arith.mulf %37, %17 : vector<8x256xf32>
    %48 = arith.addf %46, %47 : vector<8x256xf32>
    %49 = arith.truncf %48 : vector<8x256xf32> to vector<8x256xbf16>
    %c0_14 = arith.constant 0 : index
    %c0_15 = arith.constant 0 : index
    %50 = vector.load %arg18[%c0_14, %c0_15] : memref<64x256xbf16, #tpu.memory_space<vmem>>, vector<8x256xbf16>
    tpu.vector_store %arg18[%c0_14, %c0_15], %49 {strides = array<i32>} : memref<64x256xbf16, #tpu.memory_space<vmem>>, vector<8x256xbf16>,
    %51 = vector.extract_strided_slice %13 {offsets = [8, 0], sizes = [8, 768], strides = [1, 1]} : vector<64x768xf32> to vector<8x768xf32>
    %52 = arith.truncf %48 : vector<8x256xf32> to vector<8x256xbf16>
    %c0_16 = arith.constant 0 : index
    %c0_17 = arith.constant 0 : index
    %53 = vector.load %arg2[%c0_16, %c0_17] : memref<256x768xbf16, #tpu.memory_space<vmem>>, vector<256x768xbf16>
    %cst_18 = arith.constant dense<0.000000e+00> : vector<8x768xf32>
    %54 = tpu.matmul %52, %53, %cst_18 {dimension_numbers = #tpu.dot_dimension_numbers<[1], [0], [0], [1], [0, 0, 1, 1], [], []>} : vector<8x256xbf16>, vector<256x768xbf16>, vector<8x768xf32> -> vector<8x768xf32>
    %55 = vector.extract_strided_slice %51 {offsets = [0, 0], sizes = [8, 256], strides = [1, 1]} : vector<8x768xf32> to vector<8x256xf32>
    %56 = vector.extract_strided_slice %54 {offsets = [0, 0], sizes = [8, 256], strides = [1, 1]} : vector<8x768xf32> to vector<8x256xf32>
    %57 = arith.addf %55, %56 : vector<8x256xf32>
    %58 = arith.negf %57 : vector<8x256xf32>
    %59 = math.exp %58 : vector<8x256xf32>
    %cst_19 = arith.constant 1.000000e+00 : f32
    %60 = vector.broadcast %cst_19 : f32 to vector<8x256xf32>
    %61 = arith.addf %60, %59 : vector<8x256xf32>
    %62 = arith.divf %60, %61 : vector<8x256xf32>
    %63 = vector.extract_strided_slice %51 {offsets = [0, 256], sizes = [8, 256], strides = [1, 1]} : vector<8x768xf32> to vector<8x256xf32>
    %64 = vector.extract_strided_slice %54 {offsets = [0, 256], sizes = [8, 256], strides = [1, 1]} : vector<8x768xf32> to vector<8x256xf32>
    %65 = arith.addf %63, %64 : vector<8x256xf32>
    %66 = arith.negf %65 : vector<8x256xf32>
    %67 = math.exp %66 : vector<8x256xf32>
    %cst_20 = arith.constant 1.000000e+00 : f32
    %68 = vector.broadcast %cst_20 : f32 to vector<8x256xf32>
    %69 = arith.addf %68, %67 : vector<8x256xf32>
    %70 = arith.divf %68, %69 : vector<8x256xf32>
    %71 = vector.extract_strided_slice %51 {offsets = [0, 512], sizes = [8, 256], strides = [1, 1]} : vector<8x768xf32> to vector<8x256xf32>
    %72 = vector.extract_strided_slice %54 {offsets = [0, 512], sizes = [8, 256], strides = [1, 1]} : vector<8x768xf32> to vector<8x256xf32>
    %73 = arith.addf %72, %16 : vector<8x256xf32>
    %74 = arith.mulf %62, %73 : vector<8x256xf32>
    %75 = arith.addf %71, %74 : vector<8x256xf32>
    %76 = math.tanh %75 : vector<8x256xf32>
    %cst_21 = arith.constant 1.000000e+00 : f32
    %77 = vector.broadcast %cst_21 : f32 to vector<8x256xf32>
    %78 = arith.subf %77, %70 : vector<8x256xf32>
    %79 = arith.mulf %78, %76 : vector<8x256xf32>
    %80 = arith.mulf %70, %48 : vector<8x256xf32>
    %81 = arith.addf %79, %80 : vector<8x256xf32>
    %82 = arith.truncf %81 : vector<8x256xf32> to vector<8x256xbf16>
    %c8 = arith.constant 8 : index
    %c0_22 = arith.constant 0 : index
    %83 = vector.load %arg18[%c8, %c0_22] : memref<64x256xbf16, #tpu.memory_space<vmem>>, vector<8x256xbf16>
    tpu.vector_store %arg18[%c8, %c0_22], %82 {strides = array<i32>} : memref<64x256xbf16, #tpu.memory_space<vmem>>, vector<8x256xbf16>,
    %84 = vector.extract_strided_slice %13 {offsets = [16, 0], sizes = [8, 768], strides = [1, 1]} : vector<64x768xf32> to vector<8x768xf32>
    %85 = arith.truncf %81 : vector<8x256xf32> to vector<8x256xbf16>
    %c0_23 = arith.constant 0 : index
    %c0_24 = arith.constant 0 : index
    %86 = vector.load %arg2[%c0_23, %c0_24] : memref<256x768xbf16, #tpu.memory_space<vmem>>, vector<256x768xbf16>
    %cst_25 = arith.constant dense<0.000000e+00> : vector<8x768xf32>
    %87 = tpu.matmul %85, %86, %cst_25 {dimension_numbers = #tpu.dot_dimension_numbers<[1], [0], [0], [1], [0, 0, 1, 1], [], []>} : vector<8x256xbf16>, vector<256x768xbf16>, vector<8x768xf32> -> vector<8x768xf32>
    %88 = vector.extract_strided_slice %84 {offsets = [0, 0], sizes = [8, 256], strides = [1, 1]} : vector<8x768xf32> to vector<8x256xf32>
    %89 = vector.extract_strided_slice %87 {offsets = [0, 0], sizes = [8, 256], strides = [1, 1]} : vector<8x768xf32> to vector<8x256xf32>
    %90 = arith.addf %88, %89 : vector<8x256xf32>
    %91 = arith.negf %90 : vector<8x256xf32>
    %92 = math.exp %91 : vector<8x256xf32>
    %cst_26 = arith.constant 1.000000e+00 : f32
    %93 = vector.broadcast %cst_26 : f32 to vector<8x256xf32>
    %94 = arith.addf %93, %92 : vector<8x256xf32>
    %95 = arith.divf %93, %94 : vector<8x256xf32>
    %96 = vector.extract_strided_slice %84 {offsets = [0, 256], sizes = [8, 256], strides = [1, 1]} : vector<8x768xf32> to vector<8x256xf32>
    %97 = vector.extract_strided_slice %87 {offsets = [0, 256], sizes = [8, 256], strides = [1, 1]} : vector<8x768xf32> to vector<8x256xf32>
    %98 = arith.addf %96, %97 : vector<8x256xf32>
    %99 = arith.negf %98 : vector<8x256xf32>
    %100 = math.exp %99 : vector<8x256xf32>
    %cst_27 = arith.constant 1.000000e+00 : f32
    %101 = vector.broadcast %cst_27 : f32 to vector<8x256xf32>
    %102 = arith.addf %101, %100 : vector<8x256xf32>
    %103 = arith.divf %101, %102 : vector<8x256xf32>
    %104 = vector.extract_strided_slice %84 {offsets = [0, 512], sizes = [8, 256], strides = [1, 1]} : vector<8x768xf32> to vector<8x256xf32>
    %105 = vector.extract_strided_slice %87 {offsets = [0, 512], sizes = [8, 256], strides = [1, 1]} : vector<8x768xf32> to vector<8x256xf32>
    %106 = arith.addf %105, %16 : vector<8x256xf32>
    %107 = arith.mulf %95, %106 : vector<8x256xf32>
    %108 = arith.addf %104, %107 : vector<8x256xf32>
    %109 = math.tanh %108 : vector<8x256xf32>
    %cst_28 = arith.constant 1.000000e+00 : f32
    %110 = vector.broadcast %cst_28 : f32 to vector<8x256xf32>
    %111 = arith.subf %110, %103 : vector<8x256xf32>
    %112 = arith.mulf %111, %109 : vector<8x256xf32>
    %113 = arith.mulf %103, %81 : vector<8x256xf32>
    %114 = arith.addf %112, %113 : vector<8x256xf32>
    %115 = arith.truncf %114 : vector<8x256xf32> to vector<8x256xbf16>
    %c16 = arith.constant 16 : index
    %c0_29 = arith.constant 0 : index
    %116 = vector.load %arg18[%c16, %c0_29] : memref<64x256xbf16, #tpu.memory_space<vmem>>, vector<8x256xbf16>
    tpu.vector_store %arg18[%c16, %c0_29], %115 {strides = array<i32>} : memref<64x256xbf16, #tpu.memory_space<vmem>>, vector<8x256xbf16>,
    %117 = vector.extract_strided_slice %13 {offsets = [24, 0], sizes = [8, 768], strides = [1, 1]} : vector<64x768xf32> to vector<8x768xf32>
    %118 = arith.truncf %114 : vector<8x256xf32> to vector<8x256xbf16>
    %c0_30 = arith.constant 0 : index
    %c0_31 = arith.constant 0 : index
    %119 = vector.load %arg2[%c0_30, %c0_31] : memref<256x768xbf16, #tpu.memory_space<vmem>>, vector<256x768xbf16>
    %cst_32 = arith.constant dense<0.000000e+00> : vector<8x768xf32>
    %120 = tpu.matmul %118, %119, %cst_32 {dimension_numbers = #tpu.dot_dimension_numbers<[1], [0], [0], [1], [0, 0, 1, 1], [], []>} : vector<8x256xbf16>, vector<256x768xbf16>, vector<8x768xf32> -> vector<8x768xf32>
    %121 = vector.extract_strided_slice %117 {offsets = [0, 0], sizes = [8, 256], strides = [1, 1]} : vector<8x768xf32> to vector<8x256xf32>
    %122 = vector.extract_strided_slice %120 {offsets = [0, 0], sizes = [8, 256], strides = [1, 1]} : vector<8x768xf32> to vector<8x256xf32>
    %123 = arith.addf %121, %122 : vector<8x256xf32>
    %124 = arith.negf %123 : vector<8x256xf32>
    %125 = math.exp %124 : vector<8x256xf32>
    %cst_33 = arith.constant 1.000000e+00 : f32
    %126 = vector.broadcast %cst_33 : f32 to vector<8x256xf32>
    %127 = arith.addf %126, %125 : vector<8x256xf32>
    %128 = arith.divf %126, %127 : vector<8x256xf32>
    %129 = vector.extract_strided_slice %117 {offsets = [0, 256], sizes = [8, 256], strides = [1, 1]} : vector<8x768xf32> to vector<8x256xf32>
    %130 = vector.extract_strided_slice %120 {offsets = [0, 256], sizes = [8, 256], strides = [1, 1]} : vector<8x768xf32> to vector<8x256xf32>
    %131 = arith.addf %129, %130 : vector<8x256xf32>
    %132 = arith.negf %131 : vector<8x256xf32>
    %133 = math.exp %132 : vector<8x256xf32>
    %cst_34 = arith.constant 1.000000e+00 : f32
    %134 = vector.broadcast %cst_34 : f32 to vector<8x256xf32>
    %135 = arith.addf %134, %133 : vector<8x256xf32>
    %136 = arith.divf %134, %135 : vector<8x256xf32>
    %137 = vector.extract_strided_slice %117 {offsets = [0, 512], sizes = [8, 256], strides = [1, 1]} : vector<8x768xf32> to vector<8x256xf32>
    %138 = vector.extract_strided_slice %120 {offsets = [0, 512], sizes = [8, 256], strides = [1, 1]} : vector<8x768xf32> to vector<8x256xf32>
    %139 = arith.addf %138, %16 : vector<8x256xf32>
    %140 = arith.mulf %128, %139 : vector<8x256xf32>
    %141 = arith.addf %137, %140 : vector<8x256xf32>
    %142 = math.tanh %141 : vector<8x256xf32>
    %cst_35 = arith.constant 1.000000e+00 : f32
    %143 = vector.broadcast %cst_35 : f32 to vector<8x256xf32>
    %144 = arith.subf %143, %136 : vector<8x256xf32>
    %145 = arith.mulf %144, %142 : vector<8x256xf32>
    %146 = arith.mulf %136, %114 : vector<8x256xf32>
    %147 = arith.addf %145, %146 : vector<8x256xf32>
    %148 = arith.truncf %147 : vector<8x256xf32> to vector<8x256xbf16>
    %c24 = arith.constant 24 : index
    %c0_36 = arith.constant 0 : index
    %149 = vector.load %arg18[%c24, %c0_36] : memref<64x256xbf16, #tpu.memory_space<vmem>>, vector<8x256xbf16>
    tpu.vector_store %arg18[%c24, %c0_36], %148 {strides = array<i32>} : memref<64x256xbf16, #tpu.memory_space<vmem>>, vector<8x256xbf16>,
    %150 = vector.extract_strided_slice %13 {offsets = [32, 0], sizes = [8, 768], strides = [1, 1]} : vector<64x768xf32> to vector<8x768xf32>
    %151 = arith.truncf %147 : vector<8x256xf32> to vector<8x256xbf16>
    %c0_37 = arith.constant 0 : index
    %c0_38 = arith.constant 0 : index
    %152 = vector.load %arg2[%c0_37, %c0_38] : memref<256x768xbf16, #tpu.memory_space<vmem>>, vector<256x768xbf16>
    %cst_39 = arith.constant dense<0.000000e+00> : vector<8x768xf32>
    %153 = tpu.matmul %151, %152, %cst_39 {dimension_numbers = #tpu.dot_dimension_numbers<[1], [0], [0], [1], [0, 0, 1, 1], [], []>} : vector<8x256xbf16>, vector<256x768xbf16>, vector<8x768xf32> -> vector<8x768xf32>
    %154 = vector.extract_strided_slice %150 {offsets = [0, 0], sizes = [8, 256], strides = [1, 1]} : vector<8x768xf32> to vector<8x256xf32>
    %155 = vector.extract_strided_slice %153 {offsets = [0, 0], sizes = [8, 256], strides = [1, 1]} : vector<8x768xf32> to vector<8x256xf32>
    %156 = arith.addf %154, %155 : vector<8x256xf32>
    %157 = arith.negf %156 : vector<8x256xf32>
    %158 = math.exp %157 : vector<8x256xf32>
    %cst_40 = arith.constant 1.000000e+00 : f32
    %159 = vector.broadcast %cst_40 : f32 to vector<8x256xf32>
    %160 = arith.addf %159, %158 : vector<8x256xf32>
    %161 = arith.divf %159, %160 : vector<8x256xf32>
    %162 = vector.extract_strided_slice %150 {offsets = [0, 256], sizes = [8, 256], strides = [1, 1]} : vector<8x768xf32> to vector<8x256xf32>
    %163 = vector.extract_strided_slice %153 {offsets = [0, 256], sizes = [8, 256], strides = [1, 1]} : vector<8x768xf32> to vector<8x256xf32>
    %164 = arith.addf %162, %163 : vector<8x256xf32>
    %165 = arith.negf %164 : vector<8x256xf32>
    %166 = math.exp %165 : vector<8x256xf32>
    %cst_41 = arith.constant 1.000000e+00 : f32
    %167 = vector.broadcast %cst_41 : f32 to vector<8x256xf32>
    %168 = arith.addf %167, %166 : vector<8x256xf32>
    %169 = arith.divf %167, %168 : vector<8x256xf32>
    %170 = vector.extract_strided_slice %150 {offsets = [0, 512], sizes = [8, 256], strides = [1, 1]} : vector<8x768xf32> to vector<8x256xf32>
    %171 = vector.extract_strided_slice %153 {offsets = [0, 512], sizes = [8, 256], strides = [1, 1]} : vector<8x768xf32> to vector<8x256xf32>
    %172 = arith.addf %171, %16 : vector<8x256xf32>
    %173 = arith.mulf %161, %172 : vector<8x256xf32>
    %174 = arith.addf %170, %173 : vector<8x256xf32>
    %175 = math.tanh %174 : vector<8x256xf32>
    %cst_42 = arith.constant 1.000000e+00 : f32
    %176 = vector.broadcast %cst_42 : f32 to vector<8x256xf32>
    %177 = arith.subf %176, %169 : vector<8x256xf32>
    %178 = arith.mulf %177, %175 : vector<8x256xf32>
    %179 = arith.mulf %169, %147 : vector<8x256xf32>
    %180 = arith.addf %178, %179 : vector<8x256xf32>
    %181 = arith.truncf %180 : vector<8x256xf32> to vector<8x256xbf16>
    %c32 = arith.constant 32 : index
    %c0_43 = arith.constant 0 : index
    %182 = vector.load %arg18[%c32, %c0_43] : memref<64x256xbf16, #tpu.memory_space<vmem>>, vector<8x256xbf16>
    tpu.vector_store %arg18[%c32, %c0_43], %181 {strides = array<i32>} : memref<64x256xbf16, #tpu.memory_space<vmem>>, vector<8x256xbf16>,
    %183 = vector.extract_strided_slice %13 {offsets = [40, 0], sizes = [8, 768], strides = [1, 1]} : vector<64x768xf32> to vector<8x768xf32>
    %184 = arith.truncf %180 : vector<8x256xf32> to vector<8x256xbf16>
    %c0_44 = arith.constant 0 : index
    %c0_45 = arith.constant 0 : index
    %185 = vector.load %arg2[%c0_44, %c0_45] : memref<256x768xbf16, #tpu.memory_space<vmem>>, vector<256x768xbf16>
    %cst_46 = arith.constant dense<0.000000e+00> : vector<8x768xf32>
    %186 = tpu.matmul %184, %185, %cst_46 {dimension_numbers = #tpu.dot_dimension_numbers<[1], [0], [0], [1], [0, 0, 1, 1], [], []>} : vector<8x256xbf16>, vector<256x768xbf16>, vector<8x768xf32> -> vector<8x768xf32>
    %187 = vector.extract_strided_slice %183 {offsets = [0, 0], sizes = [8, 256], strides = [1, 1]} : vector<8x768xf32> to vector<8x256xf32>
    %188 = vector.extract_strided_slice %186 {offsets = [0, 0], sizes = [8, 256], strides = [1, 1]} : vector<8x768xf32> to vector<8x256xf32>
    %189 = arith.addf %187, %188 : vector<8x256xf32>
    %190 = arith.negf %189 : vector<8x256xf32>
    %191 = math.exp %190 : vector<8x256xf32>
    %cst_47 = arith.constant 1.000000e+00 : f32
    %192 = vector.broadcast %cst_47 : f32 to vector<8x256xf32>
    %193 = arith.addf %192, %191 : vector<8x256xf32>
    %194 = arith.divf %192, %193 : vector<8x256xf32>
    %195 = vector.extract_strided_slice %183 {offsets = [0, 256], sizes = [8, 256], strides = [1, 1]} : vector<8x768xf32> to vector<8x256xf32>
    %196 = vector.extract_strided_slice %186 {offsets = [0, 256], sizes = [8, 256], strides = [1, 1]} : vector<8x768xf32> to vector<8x256xf32>
    %197 = arith.addf %195, %196 : vector<8x256xf32>
    %198 = arith.negf %197 : vector<8x256xf32>
    %199 = math.exp %198 : vector<8x256xf32>
    %cst_48 = arith.constant 1.000000e+00 : f32
    %200 = vector.broadcast %cst_48 : f32 to vector<8x256xf32>
    %201 = arith.addf %200, %199 : vector<8x256xf32>
    %202 = arith.divf %200, %201 : vector<8x256xf32>
    %203 = vector.extract_strided_slice %183 {offsets = [0, 512], sizes = [8, 256], strides = [1, 1]} : vector<8x768xf32> to vector<8x256xf32>
    %204 = vector.extract_strided_slice %186 {offsets = [0, 512], sizes = [8, 256], strides = [1, 1]} : vector<8x768xf32> to vector<8x256xf32>
    %205 = arith.addf %204, %16 : vector<8x256xf32>
    %206 = arith.mulf %194, %205 : vector<8x256xf32>
    %207 = arith.addf %203, %206 : vector<8x256xf32>
    %208 = math.tanh %207 : vector<8x256xf32>
    %cst_49 = arith.constant 1.000000e+00 : f32
    %209 = vector.broadcast %cst_49 : f32 to vector<8x256xf32>
    %210 = arith.subf %209, %202 : vector<8x256xf32>
    %211 = arith.mulf %210, %208 : vector<8x256xf32>
    %212 = arith.mulf %202, %180 : vector<8x256xf32>
    %213 = arith.addf %211, %212 : vector<8x256xf32>
    %214 = arith.truncf %213 : vector<8x256xf32> to vector<8x256xbf16>
    %c40 = arith.constant 40 : index
    %c0_50 = arith.constant 0 : index
    %215 = vector.load %arg18[%c40, %c0_50] : memref<64x256xbf16, #tpu.memory_space<vmem>>, vector<8x256xbf16>
    tpu.vector_store %arg18[%c40, %c0_50], %214 {strides = array<i32>} : memref<64x256xbf16, #tpu.memory_space<vmem>>, vector<8x256xbf16>,
    %216 = vector.extract_strided_slice %13 {offsets = [48, 0], sizes = [8, 768], strides = [1, 1]} : vector<64x768xf32> to vector<8x768xf32>
    %217 = arith.truncf %213 : vector<8x256xf32> to vector<8x256xbf16>
    %c0_51 = arith.constant 0 : index
    %c0_52 = arith.constant 0 : index
    %218 = vector.load %arg2[%c0_51, %c0_52] : memref<256x768xbf16, #tpu.memory_space<vmem>>, vector<256x768xbf16>
    %cst_53 = arith.constant dense<0.000000e+00> : vector<8x768xf32>
    %219 = tpu.matmul %217, %218, %cst_53 {dimension_numbers = #tpu.dot_dimension_numbers<[1], [0], [0], [1], [0, 0, 1, 1], [], []>} : vector<8x256xbf16>, vector<256x768xbf16>, vector<8x768xf32> -> vector<8x768xf32>
    %220 = vector.extract_strided_slice %216 {offsets = [0, 0], sizes = [8, 256], strides = [1, 1]} : vector<8x768xf32> to vector<8x256xf32>
    %221 = vector.extract_strided_slice %219 {offsets = [0, 0], sizes = [8, 256], strides = [1, 1]} : vector<8x768xf32> to vector<8x256xf32>
    %222 = arith.addf %220, %221 : vector<8x256xf32>
    %223 = arith.negf %222 : vector<8x256xf32>
    %224 = math.exp %223 : vector<8x256xf32>
    %cst_54 = arith.constant 1.000000e+00 : f32
    %225 = vector.broadcast %cst_54 : f32 to vector<8x256xf32>
    %226 = arith.addf %225, %224 : vector<8x256xf32>
    %227 = arith.divf %225, %226 : vector<8x256xf32>
    %228 = vector.extract_strided_slice %216 {offsets = [0, 256], sizes = [8, 256], strides = [1, 1]} : vector<8x768xf32> to vector<8x256xf32>
    %229 = vector.extract_strided_slice %219 {offsets = [0, 256], sizes = [8, 256], strides = [1, 1]} : vector<8x768xf32> to vector<8x256xf32>
    %230 = arith.addf %228, %229 : vector<8x256xf32>
    %231 = arith.negf %230 : vector<8x256xf32>
    %232 = math.exp %231 : vector<8x256xf32>
    %cst_55 = arith.constant 1.000000e+00 : f32
    %233 = vector.broadcast %cst_55 : f32 to vector<8x256xf32>
    %234 = arith.addf %233, %232 : vector<8x256xf32>
    %235 = arith.divf %233, %234 : vector<8x256xf32>
    %236 = vector.extract_strided_slice %216 {offsets = [0, 512], sizes = [8, 256], strides = [1, 1]} : vector<8x768xf32> to vector<8x256xf32>
    %237 = vector.extract_strided_slice %219 {offsets = [0, 512], sizes = [8, 256], strides = [1, 1]} : vector<8x768xf32> to vector<8x256xf32>
    %238 = arith.addf %237, %16 : vector<8x256xf32>
    %239 = arith.mulf %227, %238 : vector<8x256xf32>
    %240 = arith.addf %236, %239 : vector<8x256xf32>
    %241 = math.tanh %240 : vector<8x256xf32>
    %cst_56 = arith.constant 1.000000e+00 : f32
    %242 = vector.broadcast %cst_56 : f32 to vector<8x256xf32>
    %243 = arith.subf %242, %235 : vector<8x256xf32>
    %244 = arith.mulf %243, %241 : vector<8x256xf32>
    %245 = arith.mulf %235, %213 : vector<8x256xf32>
    %246 = arith.addf %244, %245 : vector<8x256xf32>
    %247 = arith.truncf %246 : vector<8x256xf32> to vector<8x256xbf16>
    %c48 = arith.constant 48 : index
    %c0_57 = arith.constant 0 : index
    %248 = vector.load %arg18[%c48, %c0_57] : memref<64x256xbf16, #tpu.memory_space<vmem>>, vector<8x256xbf16>
    tpu.vector_store %arg18[%c48, %c0_57], %247 {strides = array<i32>} : memref<64x256xbf16, #tpu.memory_space<vmem>>, vector<8x256xbf16>,
    %249 = vector.extract_strided_slice %13 {offsets = [56, 0], sizes = [8, 768], strides = [1, 1]} : vector<64x768xf32> to vector<8x768xf32>
    %250 = arith.truncf %246 : vector<8x256xf32> to vector<8x256xbf16>
    %c0_58 = arith.constant 0 : index
    %c0_59 = arith.constant 0 : index
    %251 = vector.load %arg2[%c0_58, %c0_59] : memref<256x768xbf16, #tpu.memory_space<vmem>>, vector<256x768xbf16>
    %cst_60 = arith.constant dense<0.000000e+00> : vector<8x768xf32>
    %252 = tpu.matmul %250, %251, %cst_60 {dimension_numbers = #tpu.dot_dimension_numbers<[1], [0], [0], [1], [0, 0, 1, 1], [], []>} : vector<8x256xbf16>, vector<256x768xbf16>, vector<8x768xf32> -> vector<8x768xf32>
    %253 = vector.extract_strided_slice %249 {offsets = [0, 0], sizes = [8, 256], strides = [1, 1]} : vector<8x768xf32> to vector<8x256xf32>
    %254 = vector.extract_strided_slice %252 {offsets = [0, 0], sizes = [8, 256], strides = [1, 1]} : vector<8x768xf32> to vector<8x256xf32>
    %255 = arith.addf %253, %254 : vector<8x256xf32>
    %256 = arith.negf %255 : vector<8x256xf32>
    %257 = math.exp %256 : vector<8x256xf32>
    %cst_61 = arith.constant 1.000000e+00 : f32
    %258 = vector.broadcast %cst_61 : f32 to vector<8x256xf32>
    %259 = arith.addf %258, %257 : vector<8x256xf32>
    %260 = arith.divf %258, %259 : vector<8x256xf32>
    %261 = vector.extract_strided_slice %249 {offsets = [0, 256], sizes = [8, 256], strides = [1, 1]} : vector<8x768xf32> to vector<8x256xf32>
    %262 = vector.extract_strided_slice %252 {offsets = [0, 256], sizes = [8, 256], strides = [1, 1]} : vector<8x768xf32> to vector<8x256xf32>
    %263 = arith.addf %261, %262 : vector<8x256xf32>
    %264 = arith.negf %263 : vector<8x256xf32>
    %265 = math.exp %264 : vector<8x256xf32>
    %cst_62 = arith.constant 1.000000e+00 : f32
    %266 = vector.broadcast %cst_62 : f32 to vector<8x256xf32>
    %267 = arith.addf %266, %265 : vector<8x256xf32>
    %268 = arith.divf %266, %267 : vector<8x256xf32>
    %269 = vector.extract_strided_slice %249 {offsets = [0, 512], sizes = [8, 256], strides = [1, 1]} : vector<8x768xf32> to vector<8x256xf32>
    %270 = vector.extract_strided_slice %252 {offsets = [0, 512], sizes = [8, 256], strides = [1, 1]} : vector<8x768xf32> to vector<8x256xf32>
    %271 = arith.addf %270, %16 : vector<8x256xf32>
    %272 = arith.mulf %260, %271 : vector<8x256xf32>
    %273 = arith.addf %269, %272 : vector<8x256xf32>
    %274 = math.tanh %273 : vector<8x256xf32>
    %cst_63 = arith.constant 1.000000e+00 : f32
    %275 = vector.broadcast %cst_63 : f32 to vector<8x256xf32>
    %276 = arith.subf %275, %268 : vector<8x256xf32>
    %277 = arith.mulf %276, %274 : vector<8x256xf32>
    %278 = arith.mulf %268, %246 : vector<8x256xf32>
    %279 = arith.addf %277, %278 : vector<8x256xf32>
    %280 = arith.truncf %279 : vector<8x256xf32> to vector<8x256xbf16>
    %c56 = arith.constant 56 : index
    %c0_64 = arith.constant 0 : index
    %281 = vector.load %arg18[%c56, %c0_64] : memref<64x256xbf16, #tpu.memory_space<vmem>>, vector<8x256xbf16>
    tpu.vector_store %arg18[%c56, %c0_64], %280 {strides = array<i32>} : memref<64x256xbf16, #tpu.memory_space<vmem>>, vector<8x256xbf16>,
    %c0_i32_65 = arith.constant 0 : i32
    %282 = tpu.memref_slice %arg19[%c0_i32_65] : memref<4x!tpu.dma_semaphore, #tpu.memory_space<semaphore_mem>> -> memref<1x!tpu.dma_semaphore, #tpu.memory_space<semaphore_mem>>
    %283 = tpu.memref_squeeze %282 : memref<1x!tpu.dma_semaphore, #tpu.memory_space<semaphore_mem>> -> memref<!tpu.dma_semaphore, #tpu.memory_space<semaphore_mem>>
    tpu.wait_dma2 semaphore(%283 : memref<!tpu.dma_semaphore, #tpu.memory_space<semaphore_mem>>) src(%arg5 : memref<256x768xbf16, #tpu.memory_space<any>>) dst(%arg14 : memref<256x768xbf16, #tpu.memory_space<vmem>>)
    %c1_i32_66 = arith.constant 1 : i32
    %284 = tpu.memref_slice %arg19[%c1_i32_66] : memref<4x!tpu.dma_semaphore, #tpu.memory_space<semaphore_mem>> -> memref<1x!tpu.dma_semaphore, #tpu.memory_space<semaphore_mem>>
    %285 = tpu.memref_squeeze %284 : memref<1x!tpu.dma_semaphore, #tpu.memory_space<semaphore_mem>> -> memref<!tpu.dma_semaphore, #tpu.memory_space<semaphore_mem>>
    tpu.wait_dma2 semaphore(%285 : memref<!tpu.dma_semaphore, #tpu.memory_space<semaphore_mem>>) src(%arg6 : memref<256x768xbf16, #tpu.memory_space<any>>) dst(%arg15 : memref<256x768xbf16, #tpu.memory_space<vmem>>)
    %c0_67 = arith.constant 0 : index
    %c0_68 = arith.constant 0 : index
    %286 = vector.load %arg18[%c0_67, %c0_68] : memref<64x256xbf16, #tpu.memory_space<vmem>>, vector<64x256xbf16>
    %c0_69 = arith.constant 0 : index
    %c0_70 = arith.constant 0 : index
    %287 = vector.load %arg14[%c0_69, %c0_70] : memref<256x768xbf16, #tpu.memory_space<vmem>>, vector<256x768xbf16>
    %cst_71 = arith.constant dense<0.000000e+00> : vector<64x768xf32>
    %288 = tpu.matmul %286, %287, %cst_71 {dimension_numbers = #tpu.dot_dimension_numbers<[1], [0], [0], [1], [0, 0, 1, 1], [], []>} : vector<64x256xbf16>, vector<256x768xbf16>, vector<64x768xf32> -> vector<64x768xf32>
    %c0_72 = arith.constant 0 : index
    %c0_73 = arith.constant 0 : index
    %289 = vector.load %arg7[%c0_72, %c0_73] : memref<1x768xf32, #tpu.memory_space<vmem>>, vector<1x768xf32>
    %290 = vector.broadcast %289 : vector<1x768xf32> to vector<64x768xf32>
    %291 = arith.addf %288, %290 : vector<64x768xf32>
    %c0_74 = arith.constant 0 : index
    %c0_75 = arith.constant 0 : index
    %292 = vector.load %arg8[%c0_74, %c0_75] : memref<1x256xf32, #tpu.memory_space<vmem>>, vector<1x256xf32>
    %293 = vector.shape_cast %292 : vector<1x256xf32> to vector<1x256xf32>
    %294 = vector.broadcast %293 : vector<1x256xf32> to vector<8x256xf32>
    %cst_76 = arith.constant 0.000000e+00 : f32
    %295 = vector.broadcast %cst_76 : f32 to vector<8x256xf32>
    %296 = vector.extract_strided_slice %291 {offsets = [0, 0], sizes = [8, 768], strides = [1, 1]} : vector<64x768xf32> to vector<8x768xf32>
    %297 = arith.truncf %295 : vector<8x256xf32> to vector<8x256xbf16>
    %c0_77 = arith.constant 0 : index
    %c0_78 = arith.constant 0 : index
    %298 = vector.load %arg15[%c0_77, %c0_78] : memref<256x768xbf16, #tpu.memory_space<vmem>>, vector<256x768xbf16>
    %cst_79 = arith.constant dense<0.000000e+00> : vector<8x768xf32>
    %299 = tpu.matmul %297, %298, %cst_79 {dimension_numbers = #tpu.dot_dimension_numbers<[1], [0], [0], [1], [0, 0, 1, 1], [], []>} : vector<8x256xbf16>, vector<256x768xbf16>, vector<8x768xf32> -> vector<8x768xf32>
    %300 = vector.extract_strided_slice %296 {offsets = [0, 0], sizes = [8, 256], strides = [1, 1]} : vector<8x768xf32> to vector<8x256xf32>
    %301 = vector.extract_strided_slice %299 {offsets = [0, 0], sizes = [8, 256], strides = [1, 1]} : vector<8x768xf32> to vector<8x256xf32>
    %302 = arith.addf %300, %301 : vector<8x256xf32>
    %303 = arith.negf %302 : vector<8x256xf32>
    %304 = math.exp %303 : vector<8x256xf32>
    %cst_80 = arith.constant 1.000000e+00 : f32
    %305 = vector.broadcast %cst_80 : f32 to vector<8x256xf32>
    %306 = arith.addf %305, %304 : vector<8x256xf32>
    %307 = arith.divf %305, %306 : vector<8x256xf32>
    %308 = vector.extract_strided_slice %296 {offsets = [0, 256], sizes = [8, 256], strides = [1, 1]} : vector<8x768xf32> to vector<8x256xf32>
    %309 = vector.extract_strided_slice %299 {offsets = [0, 256], sizes = [8, 256], strides = [1, 1]} : vector<8x768xf32> to vector<8x256xf32>
    %310 = arith.addf %308, %309 : vector<8x256xf32>
    %311 = arith.negf %310 : vector<8x256xf32>
    %312 = math.exp %311 : vector<8x256xf32>
    %cst_81 = arith.constant 1.000000e+00 : f32
    %313 = vector.broadcast %cst_81 : f32 to vector<8x256xf32>
    %314 = arith.addf %313, %312 : vector<8x256xf32>
    %315 = arith.divf %313, %314 : vector<8x256xf32>
    %316 = vector.extract_strided_slice %296 {offsets = [0, 512], sizes = [8, 256], strides = [1, 1]} : vector<8x768xf32> to vector<8x256xf32>
    %317 = vector.extract_strided_slice %299 {offsets = [0, 512], sizes = [8, 256], strides = [1, 1]} : vector<8x768xf32> to vector<8x256xf32>
    %318 = arith.addf %317, %294 : vector<8x256xf32>
    %319 = arith.mulf %307, %318 : vector<8x256xf32>
    %320 = arith.addf %316, %319 : vector<8x256xf32>
    %321 = math.tanh %320 : vector<8x256xf32>
    %cst_82 = arith.constant 1.000000e+00 : f32
    %322 = vector.broadcast %cst_82 : f32 to vector<8x256xf32>
    %323 = arith.subf %322, %315 : vector<8x256xf32>
    %324 = arith.mulf %323, %321 : vector<8x256xf32>
    %325 = arith.mulf %315, %295 : vector<8x256xf32>
    %326 = arith.addf %324, %325 : vector<8x256xf32>
    %327 = vector.extract_strided_slice %291 {offsets = [8, 0], sizes = [8, 768], strides = [1, 1]} : vector<64x768xf32> to vector<8x768xf32>
    %328 = arith.truncf %326 : vector<8x256xf32> to vector<8x256xbf16>
    %c0_83 = arith.constant 0 : index
    %c0_84 = arith.constant 0 : index
    %329 = vector.load %arg15[%c0_83, %c0_84] : memref<256x768xbf16, #tpu.memory_space<vmem>>, vector<256x768xbf16>
    %cst_85 = arith.constant dense<0.000000e+00> : vector<8x768xf32>
    %330 = tpu.matmul %328, %329, %cst_85 {dimension_numbers = #tpu.dot_dimension_numbers<[1], [0], [0], [1], [0, 0, 1, 1], [], []>} : vector<8x256xbf16>, vector<256x768xbf16>, vector<8x768xf32> -> vector<8x768xf32>
    %331 = vector.extract_strided_slice %327 {offsets = [0, 0], sizes = [8, 256], strides = [1, 1]} : vector<8x768xf32> to vector<8x256xf32>
    %332 = vector.extract_strided_slice %330 {offsets = [0, 0], sizes = [8, 256], strides = [1, 1]} : vector<8x768xf32> to vector<8x256xf32>
    %333 = arith.addf %331, %332 : vector<8x256xf32>
    %334 = arith.negf %333 : vector<8x256xf32>
    %335 = math.exp %334 : vector<8x256xf32>
    %cst_86 = arith.constant 1.000000e+00 : f32
    %336 = vector.broadcast %cst_86 : f32 to vector<8x256xf32>
    %337 = arith.addf %336, %335 : vector<8x256xf32>
    %338 = arith.divf %336, %337 : vector<8x256xf32>
    %339 = vector.extract_strided_slice %327 {offsets = [0, 256], sizes = [8, 256], strides = [1, 1]} : vector<8x768xf32> to vector<8x256xf32>
    %340 = vector.extract_strided_slice %330 {offsets = [0, 256], sizes = [8, 256], strides = [1, 1]} : vector<8x768xf32> to vector<8x256xf32>
    %341 = arith.addf %339, %340 : vector<8x256xf32>
    %342 = arith.negf %341 : vector<8x256xf32>
    %343 = math.exp %342 : vector<8x256xf32>
    %cst_87 = arith.constant 1.000000e+00 : f32
    %344 = vector.broadcast %cst_87 : f32 to vector<8x256xf32>
    %345 = arith.addf %344, %343 : vector<8x256xf32>
    %346 = arith.divf %344, %345 : vector<8x256xf32>
    %347 = vector.extract_strided_slice %327 {offsets = [0, 512], sizes = [8, 256], strides = [1, 1]} : vector<8x768xf32> to vector<8x256xf32>
    %348 = vector.extract_strided_slice %330 {offsets = [0, 512], sizes = [8, 256], strides = [1, 1]} : vector<8x768xf32> to vector<8x256xf32>
    %349 = arith.addf %348, %294 : vector<8x256xf32>
    %350 = arith.mulf %338, %349 : vector<8x256xf32>
    %351 = arith.addf %347, %350 : vector<8x256xf32>
    %352 = math.tanh %351 : vector<8x256xf32>
    %cst_88 = arith.constant 1.000000e+00 : f32
    %353 = vector.broadcast %cst_88 : f32 to vector<8x256xf32>
    %354 = arith.subf %353, %346 : vector<8x256xf32>
    %355 = arith.mulf %354, %352 : vector<8x256xf32>
    %356 = arith.mulf %346, %326 : vector<8x256xf32>
    %357 = arith.addf %355, %356 : vector<8x256xf32>
    %358 = vector.extract_strided_slice %291 {offsets = [16, 0], sizes = [8, 768], strides = [1, 1]} : vector<64x768xf32> to vector<8x768xf32>
    %359 = arith.truncf %357 : vector<8x256xf32> to vector<8x256xbf16>
    %c0_89 = arith.constant 0 : index
    %c0_90 = arith.constant 0 : index
    %360 = vector.load %arg15[%c0_89, %c0_90] : memref<256x768xbf16, #tpu.memory_space<vmem>>, vector<256x768xbf16>
    %cst_91 = arith.constant dense<0.000000e+00> : vector<8x768xf32>
    %361 = tpu.matmul %359, %360, %cst_91 {dimension_numbers = #tpu.dot_dimension_numbers<[1], [0], [0], [1], [0, 0, 1, 1], [], []>} : vector<8x256xbf16>, vector<256x768xbf16>, vector<8x768xf32> -> vector<8x768xf32>
    %362 = vector.extract_strided_slice %358 {offsets = [0, 0], sizes = [8, 256], strides = [1, 1]} : vector<8x768xf32> to vector<8x256xf32>
    %363 = vector.extract_strided_slice %361 {offsets = [0, 0], sizes = [8, 256], strides = [1, 1]} : vector<8x768xf32> to vector<8x256xf32>
    %364 = arith.addf %362, %363 : vector<8x256xf32>
    %365 = arith.negf %364 : vector<8x256xf32>
    %366 = math.exp %365 : vector<8x256xf32>
    %cst_92 = arith.constant 1.000000e+00 : f32
    %367 = vector.broadcast %cst_92 : f32 to vector<8x256xf32>
    %368 = arith.addf %367, %366 : vector<8x256xf32>
    %369 = arith.divf %367, %368 : vector<8x256xf32>
    %370 = vector.extract_strided_slice %358 {offsets = [0, 256], sizes = [8, 256], strides = [1, 1]} : vector<8x768xf32> to vector<8x256xf32>
    %371 = vector.extract_strided_slice %361 {offsets = [0, 256], sizes = [8, 256], strides = [1, 1]} : vector<8x768xf32> to vector<8x256xf32>
    %372 = arith.addf %370, %371 : vector<8x256xf32>
    %373 = arith.negf %372 : vector<8x256xf32>
    %374 = math.exp %373 : vector<8x256xf32>
    %cst_93 = arith.constant 1.000000e+00 : f32
    %375 = vector.broadcast %cst_93 : f32 to vector<8x256xf32>
    %376 = arith.addf %375, %374 : vector<8x256xf32>
    %377 = arith.divf %375, %376 : vector<8x256xf32>
    %378 = vector.extract_strided_slice %358 {offsets = [0, 512], sizes = [8, 256], strides = [1, 1]} : vector<8x768xf32> to vector<8x256xf32>
    %379 = vector.extract_strided_slice %361 {offsets = [0, 512], sizes = [8, 256], strides = [1, 1]} : vector<8x768xf32> to vector<8x256xf32>
    %380 = arith.addf %379, %294 : vector<8x256xf32>
    %381 = arith.mulf %369, %380 : vector<8x256xf32>
    %382 = arith.addf %378, %381 : vector<8x256xf32>
    %383 = math.tanh %382 : vector<8x256xf32>
    %cst_94 = arith.constant 1.000000e+00 : f32
    %384 = vector.broadcast %cst_94 : f32 to vector<8x256xf32>
    %385 = arith.subf %384, %377 : vector<8x256xf32>
    %386 = arith.mulf %385, %383 : vector<8x256xf32>
    %387 = arith.mulf %377, %357 : vector<8x256xf32>
    %388 = arith.addf %386, %387 : vector<8x256xf32>
    %389 = vector.extract_strided_slice %291 {offsets = [24, 0], sizes = [8, 768], strides = [1, 1]} : vector<64x768xf32> to vector<8x768xf32>
    %390 = arith.truncf %388 : vector<8x256xf32> to vector<8x256xbf16>
    %c0_95 = arith.constant 0 : index
    %c0_96 = arith.constant 0 : index
    %391 = vector.load %arg15[%c0_95, %c0_96] : memref<256x768xbf16, #tpu.memory_space<vmem>>, vector<256x768xbf16>
    %cst_97 = arith.constant dense<0.000000e+00> : vector<8x768xf32>
    %392 = tpu.matmul %390, %391, %cst_97 {dimension_numbers = #tpu.dot_dimension_numbers<[1], [0], [0], [1], [0, 0, 1, 1], [], []>} : vector<8x256xbf16>, vector<256x768xbf16>, vector<8x768xf32> -> vector<8x768xf32>
    %393 = vector.extract_strided_slice %389 {offsets = [0, 0], sizes = [8, 256], strides = [1, 1]} : vector<8x768xf32> to vector<8x256xf32>
    %394 = vector.extract_strided_slice %392 {offsets = [0, 0], sizes = [8, 256], strides = [1, 1]} : vector<8x768xf32> to vector<8x256xf32>
    %395 = arith.addf %393, %394 : vector<8x256xf32>
    %396 = arith.negf %395 : vector<8x256xf32>
    %397 = math.exp %396 : vector<8x256xf32>
    %cst_98 = arith.constant 1.000000e+00 : f32
    %398 = vector.broadcast %cst_98 : f32 to vector<8x256xf32>
    %399 = arith.addf %398, %397 : vector<8x256xf32>
    %400 = arith.divf %398, %399 : vector<8x256xf32>
    %401 = vector.extract_strided_slice %389 {offsets = [0, 256], sizes = [8, 256], strides = [1, 1]} : vector<8x768xf32> to vector<8x256xf32>
    %402 = vector.extract_strided_slice %392 {offsets = [0, 256], sizes = [8, 256], strides = [1, 1]} : vector<8x768xf32> to vector<8x256xf32>
    %403 = arith.addf %401, %402 : vector<8x256xf32>
    %404 = arith.negf %403 : vector<8x256xf32>
    %405 = math.exp %404 : vector<8x256xf32>
    %cst_99 = arith.constant 1.000000e+00 : f32
    %406 = vector.broadcast %cst_99 : f32 to vector<8x256xf32>
    %407 = arith.addf %406, %405 : vector<8x256xf32>
    %408 = arith.divf %406, %407 : vector<8x256xf32>
    %409 = vector.extract_strided_slice %389 {offsets = [0, 512], sizes = [8, 256], strides = [1, 1]} : vector<8x768xf32> to vector<8x256xf32>
    %410 = vector.extract_strided_slice %392 {offsets = [0, 512], sizes = [8, 256], strides = [1, 1]} : vector<8x768xf32> to vector<8x256xf32>
    %411 = arith.addf %410, %294 : vector<8x256xf32>
    %412 = arith.mulf %400, %411 : vector<8x256xf32>
    %413 = arith.addf %409, %412 : vector<8x256xf32>
    %414 = math.tanh %413 : vector<8x256xf32>
    %cst_100 = arith.constant 1.000000e+00 : f32
    %415 = vector.broadcast %cst_100 : f32 to vector<8x256xf32>
    %416 = arith.subf %415, %408 : vector<8x256xf32>
    %417 = arith.mulf %416, %414 : vector<8x256xf32>
    %418 = arith.mulf %408, %388 : vector<8x256xf32>
    %419 = arith.addf %417, %418 : vector<8x256xf32>
    %420 = vector.extract_strided_slice %291 {offsets = [32, 0], sizes = [8, 768], strides = [1, 1]} : vector<64x768xf32> to vector<8x768xf32>
    %421 = arith.truncf %419 : vector<8x256xf32> to vector<8x256xbf16>
    %c0_101 = arith.constant 0 : index
    %c0_102 = arith.constant 0 : index
    %422 = vector.load %arg15[%c0_101, %c0_102] : memref<256x768xbf16, #tpu.memory_space<vmem>>, vector<256x768xbf16>
    %cst_103 = arith.constant dense<0.000000e+00> : vector<8x768xf32>
    %423 = tpu.matmul %421, %422, %cst_103 {dimension_numbers = #tpu.dot_dimension_numbers<[1], [0], [0], [1], [0, 0, 1, 1], [], []>} : vector<8x256xbf16>, vector<256x768xbf16>, vector<8x768xf32> -> vector<8x768xf32>
    %424 = vector.extract_strided_slice %420 {offsets = [0, 0], sizes = [8, 256], strides = [1, 1]} : vector<8x768xf32> to vector<8x256xf32>
    %425 = vector.extract_strided_slice %423 {offsets = [0, 0], sizes = [8, 256], strides = [1, 1]} : vector<8x768xf32> to vector<8x256xf32>
    %426 = arith.addf %424, %425 : vector<8x256xf32>
    %427 = arith.negf %426 : vector<8x256xf32>
    %428 = math.exp %427 : vector<8x256xf32>
    %cst_104 = arith.constant 1.000000e+00 : f32
    %429 = vector.broadcast %cst_104 : f32 to vector<8x256xf32>
    %430 = arith.addf %429, %428 : vector<8x256xf32>
    %431 = arith.divf %429, %430 : vector<8x256xf32>
    %432 = vector.extract_strided_slice %420 {offsets = [0, 256], sizes = [8, 256], strides = [1, 1]} : vector<8x768xf32> to vector<8x256xf32>
    %433 = vector.extract_strided_slice %423 {offsets = [0, 256], sizes = [8, 256], strides = [1, 1]} : vector<8x768xf32> to vector<8x256xf32>
    %434 = arith.addf %432, %433 : vector<8x256xf32>
    %435 = arith.negf %434 : vector<8x256xf32>
    %436 = math.exp %435 : vector<8x256xf32>
    %cst_105 = arith.constant 1.000000e+00 : f32
    %437 = vector.broadcast %cst_105 : f32 to vector<8x256xf32>
    %438 = arith.addf %437, %436 : vector<8x256xf32>
    %439 = arith.divf %437, %438 : vector<8x256xf32>
    %440 = vector.extract_strided_slice %420 {offsets = [0, 512], sizes = [8, 256], strides = [1, 1]} : vector<8x768xf32> to vector<8x256xf32>
    %441 = vector.extract_strided_slice %423 {offsets = [0, 512], sizes = [8, 256], strides = [1, 1]} : vector<8x768xf32> to vector<8x256xf32>
    %442 = arith.addf %441, %294 : vector<8x256xf32>
    %443 = arith.mulf %431, %442 : vector<8x256xf32>
    %444 = arith.addf %440, %443 : vector<8x256xf32>
    %445 = math.tanh %444 : vector<8x256xf32>
    %cst_106 = arith.constant 1.000000e+00 : f32
    %446 = vector.broadcast %cst_106 : f32 to vector<8x256xf32>
    %447 = arith.subf %446, %439 : vector<8x256xf32>
    %448 = arith.mulf %447, %445 : vector<8x256xf32>
    %449 = arith.mulf %439, %419 : vector<8x256xf32>
    %450 = arith.addf %448, %449 : vector<8x256xf32>
    %451 = vector.extract_strided_slice %291 {offsets = [40, 0], sizes = [8, 768], strides = [1, 1]} : vector<64x768xf32> to vector<8x768xf32>
    %452 = arith.truncf %450 : vector<8x256xf32> to vector<8x256xbf16>
    %c0_107 = arith.constant 0 : index
    %c0_108 = arith.constant 0 : index
    %453 = vector.load %arg15[%c0_107, %c0_108] : memref<256x768xbf16, #tpu.memory_space<vmem>>, vector<256x768xbf16>
    %cst_109 = arith.constant dense<0.000000e+00> : vector<8x768xf32>
    %454 = tpu.matmul %452, %453, %cst_109 {dimension_numbers = #tpu.dot_dimension_numbers<[1], [0], [0], [1], [0, 0, 1, 1], [], []>} : vector<8x256xbf16>, vector<256x768xbf16>, vector<8x768xf32> -> vector<8x768xf32>
    %455 = vector.extract_strided_slice %451 {offsets = [0, 0], sizes = [8, 256], strides = [1, 1]} : vector<8x768xf32> to vector<8x256xf32>
    %456 = vector.extract_strided_slice %454 {offsets = [0, 0], sizes = [8, 256], strides = [1, 1]} : vector<8x768xf32> to vector<8x256xf32>
    %457 = arith.addf %455, %456 : vector<8x256xf32>
    %458 = arith.negf %457 : vector<8x256xf32>
    %459 = math.exp %458 : vector<8x256xf32>
    %cst_110 = arith.constant 1.000000e+00 : f32
    %460 = vector.broadcast %cst_110 : f32 to vector<8x256xf32>
    %461 = arith.addf %460, %459 : vector<8x256xf32>
    %462 = arith.divf %460, %461 : vector<8x256xf32>
    %463 = vector.extract_strided_slice %451 {offsets = [0, 256], sizes = [8, 256], strides = [1, 1]} : vector<8x768xf32> to vector<8x256xf32>
    %464 = vector.extract_strided_slice %454 {offsets = [0, 256], sizes = [8, 256], strides = [1, 1]} : vector<8x768xf32> to vector<8x256xf32>
    %465 = arith.addf %463, %464 : vector<8x256xf32>
    %466 = arith.negf %465 : vector<8x256xf32>
    %467 = math.exp %466 : vector<8x256xf32>
    %cst_111 = arith.constant 1.000000e+00 : f32
    %468 = vector.broadcast %cst_111 : f32 to vector<8x256xf32>
    %469 = arith.addf %468, %467 : vector<8x256xf32>
    %470 = arith.divf %468, %469 : vector<8x256xf32>
    %471 = vector.extract_strided_slice %451 {offsets = [0, 512], sizes = [8, 256], strides = [1, 1]} : vector<8x768xf32> to vector<8x256xf32>
    %472 = vector.extract_strided_slice %454 {offsets = [0, 512], sizes = [8, 256], strides = [1, 1]} : vector<8x768xf32> to vector<8x256xf32>
    %473 = arith.addf %472, %294 : vector<8x256xf32>
    %474 = arith.mulf %462, %473 : vector<8x256xf32>
    %475 = arith.addf %471, %474 : vector<8x256xf32>
    %476 = math.tanh %475 : vector<8x256xf32>
    %cst_112 = arith.constant 1.000000e+00 : f32
    %477 = vector.broadcast %cst_112 : f32 to vector<8x256xf32>
    %478 = arith.subf %477, %470 : vector<8x256xf32>
    %479 = arith.mulf %478, %476 : vector<8x256xf32>
    %480 = arith.mulf %470, %450 : vector<8x256xf32>
    %481 = arith.addf %479, %480 : vector<8x256xf32>
    %482 = vector.extract_strided_slice %291 {offsets = [48, 0], sizes = [8, 768], strides = [1, 1]} : vector<64x768xf32> to vector<8x768xf32>
    %483 = arith.truncf %481 : vector<8x256xf32> to vector<8x256xbf16>
    %c0_113 = arith.constant 0 : index
    %c0_114 = arith.constant 0 : index
    %484 = vector.load %arg15[%c0_113, %c0_114] : memref<256x768xbf16, #tpu.memory_space<vmem>>, vector<256x768xbf16>
    %cst_115 = arith.constant dense<0.000000e+00> : vector<8x768xf32>
    %485 = tpu.matmul %483, %484, %cst_115 {dimension_numbers = #tpu.dot_dimension_numbers<[1], [0], [0], [1], [0, 0, 1, 1], [], []>} : vector<8x256xbf16>, vector<256x768xbf16>, vector<8x768xf32> -> vector<8x768xf32>
    %486 = vector.extract_strided_slice %482 {offsets = [0, 0], sizes = [8, 256], strides = [1, 1]} : vector<8x768xf32> to vector<8x256xf32>
    %487 = vector.extract_strided_slice %485 {offsets = [0, 0], sizes = [8, 256], strides = [1, 1]} : vector<8x768xf32> to vector<8x256xf32>
    %488 = arith.addf %486, %487 : vector<8x256xf32>
    %489 = arith.negf %488 : vector<8x256xf32>
    %490 = math.exp %489 : vector<8x256xf32>
    %cst_116 = arith.constant 1.000000e+00 : f32
    %491 = vector.broadcast %cst_116 : f32 to vector<8x256xf32>
    %492 = arith.addf %491, %490 : vector<8x256xf32>
    %493 = arith.divf %491, %492 : vector<8x256xf32>
    %494 = vector.extract_strided_slice %482 {offsets = [0, 256], sizes = [8, 256], strides = [1, 1]} : vector<8x768xf32> to vector<8x256xf32>
    %495 = vector.extract_strided_slice %485 {offsets = [0, 256], sizes = [8, 256], strides = [1, 1]} : vector<8x768xf32> to vector<8x256xf32>
    %496 = arith.addf %494, %495 : vector<8x256xf32>
    %497 = arith.negf %496 : vector<8x256xf32>
    %498 = math.exp %497 : vector<8x256xf32>
    %cst_117 = arith.constant 1.000000e+00 : f32
    %499 = vector.broadcast %cst_117 : f32 to vector<8x256xf32>
    %500 = arith.addf %499, %498 : vector<8x256xf32>
    %501 = arith.divf %499, %500 : vector<8x256xf32>
    %502 = vector.extract_strided_slice %482 {offsets = [0, 512], sizes = [8, 256], strides = [1, 1]} : vector<8x768xf32> to vector<8x256xf32>
    %503 = vector.extract_strided_slice %485 {offsets = [0, 512], sizes = [8, 256], strides = [1, 1]} : vector<8x768xf32> to vector<8x256xf32>
    %504 = arith.addf %503, %294 : vector<8x256xf32>
    %505 = arith.mulf %493, %504 : vector<8x256xf32>
    %506 = arith.addf %502, %505 : vector<8x256xf32>
    %507 = math.tanh %506 : vector<8x256xf32>
    %cst_118 = arith.constant 1.000000e+00 : f32
    %508 = vector.broadcast %cst_118 : f32 to vector<8x256xf32>
    %509 = arith.subf %508, %501 : vector<8x256xf32>
    %510 = arith.mulf %509, %507 : vector<8x256xf32>
    %511 = arith.mulf %501, %481 : vector<8x256xf32>
    %512 = arith.addf %510, %511 : vector<8x256xf32>
    %513 = vector.extract_strided_slice %291 {offsets = [56, 0], sizes = [8, 768], strides = [1, 1]} : vector<64x768xf32> to vector<8x768xf32>
    %514 = arith.truncf %512 : vector<8x256xf32> to vector<8x256xbf16>
    %c0_119 = arith.constant 0 : index
    %c0_120 = arith.constant 0 : index
    %515 = vector.load %arg15[%c0_119, %c0_120] : memref<256x768xbf16, #tpu.memory_space<vmem>>, vector<256x768xbf16>
    %cst_121 = arith.constant dense<0.000000e+00> : vector<8x768xf32>
    %516 = tpu.matmul %514, %515, %cst_121 {dimension_numbers = #tpu.dot_dimension_numbers<[1], [0], [0], [1], [0, 0, 1, 1], [], []>} : vector<8x256xbf16>, vector<256x768xbf16>, vector<8x768xf32> -> vector<8x768xf32>
    %517 = vector.extract_strided_slice %513 {offsets = [0, 0], sizes = [8, 256], strides = [1, 1]} : vector<8x768xf32> to vector<8x256xf32>
    %518 = vector.extract_strided_slice %516 {offsets = [0, 0], sizes = [8, 256], strides = [1, 1]} : vector<8x768xf32> to vector<8x256xf32>
    %519 = arith.addf %517, %518 : vector<8x256xf32>
    %520 = arith.negf %519 : vector<8x256xf32>
    %521 = math.exp %520 : vector<8x256xf32>
    %cst_122 = arith.constant 1.000000e+00 : f32
    %522 = vector.broadcast %cst_122 : f32 to vector<8x256xf32>
    %523 = arith.addf %522, %521 : vector<8x256xf32>
    %524 = arith.divf %522, %523 : vector<8x256xf32>
    %525 = vector.extract_strided_slice %513 {offsets = [0, 256], sizes = [8, 256], strides = [1, 1]} : vector<8x768xf32> to vector<8x256xf32>
    %526 = vector.extract_strided_slice %516 {offsets = [0, 256], sizes = [8, 256], strides = [1, 1]} : vector<8x768xf32> to vector<8x256xf32>
    %527 = arith.addf %525, %526 : vector<8x256xf32>
    %528 = arith.negf %527 : vector<8x256xf32>
    %529 = math.exp %528 : vector<8x256xf32>
    %cst_123 = arith.constant 1.000000e+00 : f32
    %530 = vector.broadcast %cst_123 : f32 to vector<8x256xf32>
    %531 = arith.addf %530, %529 : vector<8x256xf32>
    %532 = arith.divf %530, %531 : vector<8x256xf32>
    %533 = vector.extract_strided_slice %513 {offsets = [0, 512], sizes = [8, 256], strides = [1, 1]} : vector<8x768xf32> to vector<8x256xf32>
    %534 = vector.extract_strided_slice %516 {offsets = [0, 512], sizes = [8, 256], strides = [1, 1]} : vector<8x768xf32> to vector<8x256xf32>
    %535 = arith.addf %534, %294 : vector<8x256xf32>
    %536 = arith.mulf %524, %535 : vector<8x256xf32>
    %537 = arith.addf %533, %536 : vector<8x256xf32>
    %538 = math.tanh %537 : vector<8x256xf32>
    %cst_124 = arith.constant 1.000000e+00 : f32
    %539 = vector.broadcast %cst_124 : f32 to vector<8x256xf32>
    %540 = arith.subf %539, %532 : vector<8x256xf32>
    %541 = arith.mulf %540, %538 : vector<8x256xf32>
    %542 = arith.mulf %532, %512 : vector<8x256xf32>
    %543 = arith.addf %541, %542 : vector<8x256xf32>
    %c2_i32_125 = arith.constant 2 : i32
    %544 = tpu.memref_slice %arg19[%c2_i32_125] : memref<4x!tpu.dma_semaphore, #tpu.memory_space<semaphore_mem>> -> memref<1x!tpu.dma_semaphore, #tpu.memory_space<semaphore_mem>>
    %545 = tpu.memref_squeeze %544 : memref<1x!tpu.dma_semaphore, #tpu.memory_space<semaphore_mem>> -> memref<!tpu.dma_semaphore, #tpu.memory_space<semaphore_mem>>
    tpu.wait_dma2 semaphore(%545 : memref<!tpu.dma_semaphore, #tpu.memory_space<semaphore_mem>>) src(%arg9 : memref<256x640xbf16, #tpu.memory_space<any>>) dst(%arg16 : memref<256x640xbf16, #tpu.memory_space<vmem>>)
    %c3_i32_126 = arith.constant 3 : i32
    %546 = tpu.memref_slice %arg19[%c3_i32_126] : memref<4x!tpu.dma_semaphore, #tpu.memory_space<semaphore_mem>> -> memref<1x!tpu.dma_semaphore, #tpu.memory_space<semaphore_mem>>
    %547 = tpu.memref_squeeze %546 : memref<1x!tpu.dma_semaphore, #tpu.memory_space<semaphore_mem>> -> memref<!tpu.dma_semaphore, #tpu.memory_space<semaphore_mem>>
    tpu.wait_dma2 semaphore(%547 : memref<!tpu.dma_semaphore, #tpu.memory_space<semaphore_mem>>) src(%arg11 : memref<640x128xbf16, #tpu.memory_space<any>>) dst(%arg17 : memref<640x128xbf16, #tpu.memory_space<vmem>>)
    %cst_127 = arith.constant 0.000000e+00 : f32
    %548 = vector.broadcast %cst_127 : f32 to vector<8x256xf32>
    %549 = arith.maximumf %543, %548 : vector<8x256xf32>
    %550 = arith.truncf %549 : vector<8x256xf32> to vector<8x256xbf16>
    %c0_128 = arith.constant 0 : index
    %c0_129 = arith.constant 0 : index
    %551 = vector.load %arg16[%c0_128, %c0_129] : memref<256x640xbf16, #tpu.memory_space<vmem>>, vector<256x640xbf16>
    %cst_130 = arith.constant dense<0.000000e+00> : vector<8x640xf32>
    %552 = tpu.matmul %550, %551, %cst_130 {dimension_numbers = #tpu.dot_dimension_numbers<[1], [0], [0], [1], [0, 0, 1, 1], [], []>} : vector<8x256xbf16>, vector<256x640xbf16>, vector<8x640xf32> -> vector<8x640xf32>
    %c0_131 = arith.constant 0 : index
    %c0_132 = arith.constant 0 : index
    %553 = vector.load %arg10[%c0_131, %c0_132] : memref<1x640xf32, #tpu.memory_space<vmem>>, vector<1x640xf32>
    %554 = vector.broadcast %553 : vector<1x640xf32> to vector<8x640xf32>
    %555 = arith.addf %552, %554 : vector<8x640xf32>
    %cst_133 = arith.constant 0.000000e+00 : f32
    %556 = vector.broadcast %cst_133 : f32 to vector<8x640xf32>
    %557 = arith.maximumf %555, %556 : vector<8x640xf32>
    %558 = arith.truncf %557 : vector<8x640xf32> to vector<8x640xbf16>
    %c0_134 = arith.constant 0 : index
    %c0_135 = arith.constant 0 : index
    %559 = vector.load %arg17[%c0_134, %c0_135] : memref<640x128xbf16, #tpu.memory_space<vmem>>, vector<640x128xbf16>
    %cst_136 = arith.constant dense<0.000000e+00> : vector<8x128xf32>
    %560 = tpu.matmul %558, %559, %cst_136 {dimension_numbers = #tpu.dot_dimension_numbers<[1], [0], [0], [1], [0, 0, 1, 1], [], []>} : vector<8x640xbf16>, vector<640x128xbf16>, vector<8x128xf32> -> vector<8x128xf32>
    %c0_137 = arith.constant 0 : index
    %c0_138 = arith.constant 0 : index
    %561 = vector.load %arg12[%c0_137, %c0_138] : memref<1x128xf32, #tpu.memory_space<vmem>>, vector<1x128xf32>
    %562 = vector.broadcast %561 : vector<1x128xf32> to vector<8x128xf32>
    %563 = arith.addf %560, %562 : vector<8x128xf32>
    %c0_139 = arith.constant 0 : index
    %c0_140 = arith.constant 0 : index
    %564 = vector.load %arg13[%c0_139, %c0_140] : memref<8x128xf32, #tpu.memory_space<vmem>>, vector<8x128xf32>
    tpu.vector_store %arg13[%c0_139, %c0_140], %563 {strides = array<i32>} : memref<8x128xf32, #tpu.memory_space<vmem>>, vector<8x128xf32>,
    return
  }
}

</mosaic_0001>

<llo_original>
// kernel: model_forward.1
$region0: #{model_forward.1}
  #allocation0 [shape = 'u32[]', space=smem, size = 0x4, offset = 0x4, fixed_abs, tag = 'smem constant byte address 0x4 - core index']
  #allocation1 [shape = 'u32[144,128]{1,0:T(1,128)}', space=vmem, size = 0x12000, scoped, tag = 'internal scratch']
  #allocation2 [shape = 'bf16[256,768]{1,0:T(16,128)(2,1)}', space=vmem, size = 0x60000, scoped, tag = 'scratch operand']
  #allocation3 [shape = 'bf16[256,768]{1,0:T(16,128)(2,1)}', space=vmem, size = 0x60000, scoped, tag = 'scratch operand']
  #allocation4 [shape = 'bf16[256,640]{1,0:T(16,128)(2,1)}', space=vmem, size = 0x50000, scoped, tag = 'scratch operand']
  #allocation5 [shape = 'bf16[640,128]{1,0:T(16,128)(2,1)}', space=vmem, size = 0x28000, scoped, tag = 'scratch operand']
  #allocation6 [shape = 'bf16[64,256]{1,0:T(16,128)(2,1)}', space=vmem, size = 0x8000, scoped, tag = 'scratch operand']
  #allocation7 [shape = 's32[4]{0}', space=sflag, size = 0x10, scoped, tag = 'scratch operand']
  #allocation10 [shape = 's32[]', space=sflag, size = 0x4, offset = 0, fixed_abs, tag = 'sflag constant byte address 0x0 - dummy sync flag']
  #allocation12 [shape = 's32[]', space=sflag, size = 0x4, offset = 0, fixed_abs, tag = 'sflag constant byte address 0x0 - dummy sync flag']
  #allocation14 [shape = 's32[]', space=sflag, size = 0x4, offset = 0, fixed_abs, tag = 'sflag constant byte address 0x0 - dummy sync flag']
  #allocation16 [shape = 's32[]', space=sflag, size = 0x4, offset = 0, fixed_abs, tag = 'sflag constant byte address 0x0 - dummy sync flag']
  #allocation17 [shape = 's32[]', space=sflag, size = 0x4, offset = 0, fixed_abs, tag = 'sflag constant byte address 0x0 - dummy sync flag']
  #allocation18 [shape = 'u32[]', space=smem, size = 0x4, offset = 0x44, fixed_abs, tag = 'smem constant byte address 0x44 - assertion arg 0']
  #allocation19 [shape = 'u32[]', space=smem, size = 0x4, offset = 0x48, fixed_abs, tag = 'smem constant byte address 0x48 - assertion arg 1']
  %s0 = inlined_call_operand.vmem [shape: bf16[64,4], index: 0, kind: input, shape index: {}]
  %s1 = inlined_call_operand.vmem [shape: bf16[4,768], index: 1, kind: input, shape index: {}]
  %s2 = inlined_call_operand.hbm [shape: bf16[256,768], index: 2, kind: input, shape index: {}]
  %s3 = inlined_call_operand.vmem [shape: f32[1,768], index: 3, kind: input, shape index: {}]
  %s4 = inlined_call_operand.vmem [shape: f32[1,256], index: 4, kind: input, shape index: {}]
  %s5 = inlined_call_operand.hbm [shape: bf16[256,768], index: 5, kind: input, shape index: {}]
  %s6 = inlined_call_operand.hbm [shape: bf16[256,768], index: 6, kind: input, shape index: {}]
  %s7 = inlined_call_operand.vmem [shape: f32[1,768], index: 7, kind: input, shape index: {}]
  %s8 = inlined_call_operand.vmem [shape: f32[1,256], index: 8, kind: input, shape index: {}]
  %s9 = inlined_call_operand.hbm [shape: bf16[256,640], index: 9, kind: input, shape index: {}]
  %s10 = inlined_call_operand.vmem [shape: f32[1,640], index: 10, kind: input, shape index: {}]
  %s11 = inlined_call_operand.hbm [shape: bf16[640,128], index: 11, kind: input, shape index: {}]
  %s12 = inlined_call_operand.vmem [shape: f32[1,128], index: 12, kind: input, shape index: {}]
  %s13 = inlined_call_operand.vmem [shape: f32[8,128], index: 13, kind: output, shape index: {}]
  %s14 = sld [smem:[#allocation0]]
  $region54: #{model_forward.1} parent=0
    _
  %s16 = ssub.s32 1, %s14
  %s17 = scalar_select 0, %s16, %s14
  $region1: #{model_forward.1} parent=0
    #allocation8 [shape = 'u8[393216]{0}', space=vmem, size = 0x60000, scoped, tag = 'input window, operand 2, single buffered']
    #allocation9 [shape = 's32[1]{0}', space=sflag, size = 0x4, scoped, tag = 'scoped memory for model_forward.1']
    #allocation11 [shape = 'u32[9]{0}', space=smem, size = 0x24, scoped, tag = 'DMA stride descriptor']
    #allocation13 [shape = 'u32[9]{0}', space=smem, size = 0x24, scoped, tag = 'DMA stride descriptor']
    #allocation15 [shape = 'u32[9]{0}', space=smem, size = 0x24, scoped, tag = 'DMA stride descriptor']
    %18 = vsyncpa [#allocation9], 0
    // Predicated region
    $region2: #{model_forward.1} parent=1 // pred_check
      _
    $region3: #{model_forward.1} parent=1 // pred_check_branch
      %20 = sbr.rel (0) target = $region5
    $region4: #{model_forward.1} parent=1 // pred_region
      _
    $region5: #{model_forward.1} parent=1 // pred_fallthru
      _
    // Predicated region
    $region6: #{model_forward.1} parent=1 // pred_check
      _
    $region7: #{model_forward.1} parent=1 // pred_check_branch
      %22 = sbr.rel (0) target = $region9
    $region8: #{model_forward.1} parent=1 // pred_region
      _
    $region9: #{model_forward.1} parent=1 // pred_fallthru
      _
    // Predicated region
    $region10: #{model_forward.1} parent=1 // pred_check
      _
    $region11: #{model_forward.1} parent=1 // pred_check_branch
      %24 = sbr.rel (0) target = $region13
    $region12: #{model_forward.1} parent=1 // pred_region
      %s26 = ssub.s32 12288, 12288
      %27 = vsyncadd [#allocation9], %s26
      %s28 = sshll.u32 [#allocation8], 4
      %s29 = int_to_ptr.vmem [resolvable:$true] %s28
      %34 = dma.hbm_to_vmem [thread:$0]  %s2, 12288, %s29, [#allocation9], 384, 384, 24
    $region13: #{model_forward.1} parent=1 // pred_fallthru
      _
    // Predicated region
    $region14: #{model_forward.1} parent=1 // pred_check
      _
    $region15: #{model_forward.1} parent=1 // pred_check_branch
      %36 = sbr.rel (0) target = $region17
    $region16: #{model_forward.1} parent=1 // pred_region
      _
    $region17: #{model_forward.1} parent=1 // pred_fallthru
      _
    // Predicated region
    $region18: #{model_forward.1} parent=1 // pred_check
      _
    $region19: #{model_forward.1} parent=1 // pred_check_branch
      %38 = sbr.rel (0) target = $region21
    $region20: #{model_forward.1} parent=1 // pred_region
      _
    $region21: #{model_forward.1} parent=1 // pred_fallthru
      _
    // Predicated region
    $region22: #{model_forward.1} parent=1 // pred_check
      _
    $region23: #{model_forward.1} parent=1 // pred_check_branch
      %40 = sbr.rel (0) target = $region25
    $region24: #{model_forward.1} parent=1 // pred_region
      _
    $region25: #{model_forward.1} parent=1 // pred_fallthru
      _
    // Predicated region
    $region26: #{model_forward.1} parent=1 // pred_check
      _
    $region27: #{model_forward.1} parent=1 // pred_check_branch
      %42 = sbr.rel (0) target = $region29
    $region28: #{model_forward.1} parent=1 // pred_region
      _
    $region29: #{model_forward.1} parent=1 // pred_fallthru
      _
    // Predicated region
    $region30: #{model_forward.1} parent=1 // pred_check
      _
    $region31: #{model_forward.1} parent=1 // pred_check_branch
      %44 = sbr.rel (0) target = $region33
    $region32: #{model_forward.1} parent=1 // pred_region
      _
    $region33: #{model_forward.1} parent=1 // pred_fallthru
      _
    // Predicated region
    $region34: #{model_forward.1} parent=1 // pred_check
      _
    $region35: #{model_forward.1} parent=1 // pred_check_branch
      %46 = sbr.rel (0) target = $region37
    $region36: #{model_forward.1} parent=1 // pred_region
      _
    $region37: #{model_forward.1} parent=1 // pred_fallthru
      _
    // Predicated region
    $region38: #{model_forward.1} parent=1 // pred_check
      _
    $region39: #{model_forward.1} parent=1 // pred_check_branch
      %48 = sbr.rel (0) target = $region41
    $region40: #{model_forward.1} parent=1 // pred_region
      %49 = dma.done [#allocation9], 12288
    $region41: #{model_forward.1} parent=1 // pred_fallthru
      _
    %s52 = sshll.u32 1, 14
    %s53 = sxor.u32 4294967295, %s52
    %s55 = sld [smem:[#allocation0]]
    %s56 = sadd.s32 2, %s55
    %s58 = sshll.u32 7, 26
    %s59 = sxor.u32 4294967295, %s58
    %s60 = sand.u32 0, %s59
    %s61 = sshll.u32 %s56, 26
    %s62 = sor.u32 %s60, %s61
    %s63 = sshll.u32 [#allocation2], 4
    %s64 = int_to_ptr.vmem [resolvable:$true] %s63
    %67 = sst [smem:[#allocation11]] 768
    %s68 = scalar_lea.smem [#allocation11], 1
    %69 = sst [smem:[%s68]] 768
    %s70 = scalar_lea.smem [#allocation11], 2
    %71 = sst [smem:[%s70]] 6
    %s72 = scalar_lea.smem [#allocation11], 3
    %73 = sst [smem:[%s72]] 64
    %s74 = scalar_lea.smem [#allocation11], 4
    %75 = sst [smem:[%s74]] 128
    %s76 = scalar_lea.smem [#allocation11], 5
    %77 = sst [smem:[%s76]] 2
    %s78 = scalar_lea.smem [#allocation11], 6
    %79 = sst [smem:[%s78]] 384
    %s80 = scalar_lea.smem [#allocation11], 7
    %81 = sst [smem:[%s80]] 64
    %s82 = scalar_lea.smem [#allocation11], 8
    %83 = sst [smem:[%s82]] 4
    %85 = dma.general %s5, 12288, %s64, [#allocation7], [#allocation10], [#allocation11], %s62, 0
    %s86 = scalar_lea.sflag [#allocation7], 1
    %s88 = sshll.u32 1, 14
    %s89 = sxor.u32 4294967295, %s88
    %s91 = sadd.s32 2, %s55
    %s93 = sshll.u32 7, 26
    %s94 = sxor.u32 4294967295, %s93
    %s95 = sand.u32 0, %s94
    %s96 = sshll.u32 %s91, 26
    %s97 = sor.u32 %s95, %s96
    %s98 = sshll.u32 [#allocation3], 4
    %s99 = int_to_ptr.vmem [resolvable:$true] %s98
    %102 = sst [smem:[#allocation13]] 768
    %s103 = scalar_lea.smem [#allocation13], 1
    %104 = sst [smem:[%s103]] 768
    %s105 = scalar_lea.smem [#allocation13], 2
    %106 = sst [smem:[%s105]] 6
    %s107 = scalar_lea.smem [#allocation13], 3
    %108 = sst [smem:[%s107]] 64
    %s109 = scalar_lea.smem [#allocation13], 4
    %110 = sst [smem:[%s109]] 128
    %s111 = scalar_lea.smem [#allocation13], 5
    %112 = sst [smem:[%s111]] 2
    %s113 = scalar_lea.smem [#allocation13], 6
    %114 = sst [smem:[%s113]] 384
    %s115 = scalar_lea.smem [#allocation13], 7
    %116 = sst [smem:[%s115]] 64
    %s117 = scalar_lea.smem [#allocation13], 8
    %118 = sst [smem:[%s117]] 4
    %120 = dma.general %s6, 12288, %s99, %s86, [#allocation12], [#allocation13], %s97, 0
    %s121 = scalar_lea.sflag [#allocation7], 2
    %s123 = sshll.u32 1, 14
    %s124 = sxor.u32 4294967295, %s123
    %s126 = sadd.s32 2, %s55
    %s128 = sshll.u32 7, 26
    %s129 = sxor.u32 4294967295, %s128
    %s130 = sand.u32 0, %s129
    %s131 = sshll.u32 %s126, 26
    %s132 = sor.u32 %s130, %s131
    %s133 = sshll.u32 [#allocation4], 4
    %s134 = int_to_ptr.vmem [resolvable:$true] %s133
    %137 = sst [smem:[#allocation15]] 640
    %s138 = scalar_lea.smem [#allocation15], 1
    %139 = sst [smem:[%s138]] 640
    %s140 = scalar_lea.smem [#allocation15], 2
    %141 = sst [smem:[%s140]] 5
    %s142 = scalar_lea.smem [#allocation15], 3
    %143 = sst [smem:[%s142]] 64
    %s144 = scalar_lea.smem [#allocation15], 4
    %145 = sst [smem:[%s144]] 128
    %s146 = scalar_lea.smem [#allocation15], 5
    %147 = sst [smem:[%s146]] 2
    %s148 = scalar_lea.smem [#allocation15], 6
    %149 = sst [smem:[%s148]] 320
    %s150 = scalar_lea.smem [#allocation15], 7
    %151 = sst [smem:[%s150]] 64
    %s152 = scalar_lea.smem [#allocation15], 8
    %153 = sst [smem:[%s152]] 4
    %155 = dma.general %s9, 10240, %s134, %s121, [#allocation14], [#allocation15], %s132, 0
    %s156 = scalar_lea.sflag [#allocation7], 3
    // Predicated region
    $region42: #{model_forward.1} parent=1 // pred_check
      _
    $region43: #{model_forward.1} parent=1 // pred_check_branch
      %158 = sbr.rel target = $region45
    $region44: #{model_forward.1} parent=1 // pred_region
      %159 = sst [smem:[#allocation18]] [#allocation17]
      %160 = sst [smem:[#allocation19]] [#allocation16]
    $region45: #{model_forward.1} parent=1 // pred_fallthru
      _
    %162 = shalt.err (0)
    %s164 = sshll.u32 [#allocation5], 4
    %s165 = int_to_ptr.vmem [resolvable:$true] %s164
    %167 = dma.hbm_to_vmem [thread:$0]  %s11, 5120, %s165, %s156
    %v168 = vld [vmem:[%s0] sm:$0xf]
    %v169 = vld [vmem:[%s0 + $0x4] sm:$0xf]
    %v170 = vld [vmem:[%s0 + $0x8] sm:$0xf]
    %v171 = vld [vmem:[%s0 + $0xc] sm:$0xf]
    %v172 = vld [vmem:[%s0 + $0x10] sm:$0xf]
    %v173 = vld [vmem:[%s0 + $0x14] sm:$0xf]
    %v174 = vld [vmem:[%s0 + $0x18] sm:$0xf]
    %v175 = vld [vmem:[%s0 + $0x1c] sm:$0xf]
    %v176 = vld [vmem:[%s1] sm:$0xff]
    %v177 = vld [vmem:[%s1 + $0x8] sm:$0xf]
    %v178 = vld [vmem:[%s3] sm:$0x3f]
    %v180 = vlaneseq
    %v181 = vshrl.u32 %v180, 7
    %v182 = vsub.s32 0, %v181
    %v183 = vrot.slane %v178, %v182
    %v184 = vlaneseq
    %v185 = vshrl.u32 %v184, 7
    %v186 = vsub.s32 1, %v185
    %v187 = vrot.slane %v178, %v186
    %v188 = vlaneseq
    %v189 = vshrl.u32 %v188, 7
    %v190 = vsub.s32 2, %v189
    %v191 = vrot.slane %v178, %v190
    %v192 = vlaneseq
    %v193 = vshrl.u32 %v192, 7
    %v194 = vsub.s32 3, %v193
    %v195 = vrot.slane %v178, %v194
    %v196 = vlaneseq
    %v197 = vshrl.u32 %v196, 7
    %v198 = vsub.s32 4, %v197
    %v199 = vrot.slane %v178, %v198
    %v200 = vlaneseq
    %v201 = vshrl.u32 %v200, 7
    %v202 = vsub.s32 5, %v201
    %v203 = vrot.slane %v178, %v202
    %v218 = vunpack.c.l.b16 %v168
    %v219 = vunpack.c.l.b16 %v169
    %v220 = vunpack.c.l.b16 %v170
    %v221 = vunpack.c.l.b16 %v171
    %v222 = vunpack.c.l.b16 %v172
    %v223 = vunpack.c.l.b16 %v173
    %v224 = vunpack.c.l.b16 %v174
    %v225 = vunpack.c.l.b16 %v175
    %v226 = vpack.c.b16 %v219, %v218
    %v227 = vpack.c.b16 %v221, %v220
    %v228 = vpack.c.b16 %v223, %v222
    %v229 = vpack.c.b16 %v225, %v224
    %v232 = vcombine.high %v176, %v176
    %v234 = vunpack.c.l.s4 1983009808
    %v235 = vunpack.c.0.s8 %v234
    %v236 = vlaneseq
    %v237 = vshrl.u32 %v236, 7
    %v238 = vsub.s32 %v235, %v237
    %v239 = vrot.slane %v176, %v238
    %v241 = vunpack.c.l.s4 1983009808
    %v242 = vunpack.c.0.s8 %v241
    %v243 = vlaneseq
    %v244 = vshrl.u32 %v243, 7
    %v245 = vsub.s32 %v242, %v244
    %v246 = vrot.slane %v232, %v245
    %v247 = vcombine.high %v239, %v239
    %v248 = vcombine.high %v246, %v246
    %v250 = vunpack.c.l.s4 1983009808
    %v251 = vunpack.c.0.s8 %v250
    %v252 = vlaneseq
    %v253 = vshrl.u32 %v252, 7
    %v254 = vsub.s32 %v251, %v253
    %v255 = vrot.slane %v177, %v254
    %v256 = vcombine.high %v255, %v255
    %vm257 = vcmask 31744
    %v259 = vsel %vm257, %v226, 0
    %v262 = vsel %vm257, %v227, 0
    %v265 = vsel %vm257, %v228, 0
    %v268 = vsel %vm257, %v229, 0
    %vm270 = vcmask 1041408
    %v272 = vsel %vm270, %v239, 0
    %v275 = vsel %vm270, %v247, 0
    %v278 = vsel %vm270, %v246, 0
    %v281 = vsel %vm270, %v248, 0
    %v284 = vsel %vm270, %v255, 0
    %v287 = vsel %vm270, %v256, 0
    %289 = vmatprep.subr.bf16.mxu0 %v275
    %290 = vmatpush1.bf16.msra.mxu0 %v272
    %291 = vmatprep.subr.bf16.mxu0 0
    %292 = vmatpush1.bf16.msra.mxu0 0
    %293 = vmatprep.subr.bf16.mxu0 0
    %294 = vmatpush1.bf16.msra.mxu0 0
    %295 = vmatprep.subr.bf16.mxu0 0
    %296 = vmatpush1.bf16.msra.mxu0 0
    %297 = vmatprep.subr.bf16.mxu0 0
    %298 = vmatpush1.bf16.msra.mxu0 0
    %299 = vmatprep.subr.bf16.mxu0 0
    %300 = vmatpush1.bf16.msra.mxu0 0
    %301 = vmatprep.subr.bf16.mxu0 0
    %302 = vmatpush1.bf16.msra.mxu0 0
    %303 = vmatprep.subr.bf16.mxu0 0
    %304 = vmatpush1.bf16.msra.mxu0 0
    %305 = vmatprep.subr.bf16.mxu0 0
    %306 = vmatpush1.bf16.msra.mxu0 0
    %307 = vmatprep.subr.bf16.mxu0 0
    %308 = vmatpush1.bf16.msra.mxu0 0
    %309 = vmatprep.subr.bf16.mxu0 0
    %310 = vmatpush1.bf16.msra.mxu0 0
    %311 = vmatprep.subr.bf16.mxu0 0
    %312 = vmatpush1.bf16.msra.mxu0 0
    %313 = vmatprep.subr.bf16.mxu0 0
    %314 = vmatpush1.bf16.msra.mxu0 0
    %315 = vmatprep.subr.bf16.mxu0 0
    %316 = vmatpush1.bf16.msra.mxu0 0
    %317 = vmatprep.subr.bf16.mxu0 0
    %318 = vmatpush1.bf16.msra.mxu0 0
    %319 = vmatprep.subr.bf16.mxu0 0
    %320 = vmatpush1.bf16.msra.mxu0 0
    %321 = vmatprep.mubr.bf16.mxu0 0
    %322 = vmatmul.mubr.bf16.gmra.mrb[0].mxu0 %v259
    %v323 = vpop.f32.mrb[0].mxu0
    %v324 = vadd.f32 %v183, %v323
    %v325 = vpop.f32.mrb[0].mxu0
    %v326 = vadd.f32 %v187, %v325
    %v327 = vpop.f32.mrb[0].mxu0
    %v328 = vadd.f32 %v183, %v327
    %v329 = vpop.f32.mrb[0].mxu0
    %v330 = vadd.f32 %v187, %v329
    %331 = vmatprep.mubr.bf16.mxu0 0
    %332 = vmatmul.mubr.bf16.gmra.mrb[0].mxu0 %v262
    %v333 = vpop.f32.mrb[0].mxu0
    %v334 = vadd.f32 %v183, %v333
    %v335 = vpop.f32.mrb[0].mxu0
    %v336 = vadd.f32 %v187, %v335
    %v337 = vpop.f32.mrb[0].mxu0
    %v338 = vadd.f32 %v183, %v337
    %v339 = vpop.f32.mrb[0].mxu0
    %v340 = vadd.f32 %v187, %v339
    %341 = vmatprep.mubr.bf16.mxu0 0
    %342 = vmatmul.mubr.bf16.gmra.mrb[0].mxu0 %v265
    %v343 = vpop.f32.mrb[0].mxu0
    %v344 = vadd.f32 %v183, %v343
    %v345 = vpop.f32.mrb[0].mxu0
    %v346 = vadd.f32 %v187, %v345
    %v347 = vpop.f32.mrb[0].mxu0
    %v348 = vadd.f32 %v183, %v347
    %v349 = vpop.f32.mrb[0].mxu0
    %v350 = vadd.f32 %v187, %v349
    %351 = vmatprep.mubr.bf16.mxu0 0
    %352 = vmatmul.mubr.bf16.gmra.mrb[0].mxu0 %v268
    %v353 = vpop.f32.mrb[0].mxu0
    %v354 = vadd.f32 %v183, %v353
    %v355 = vpop.f32.mrb[0].mxu0
    %v356 = vadd.f32 %v187, %v355
    %v357 = vpop.f32.mrb[0].mxu0
    %v358 = vadd.f32 %v183, %v357
    %v359 = vpop.f32.mrb[0].mxu0
    %v360 = vadd.f32 %v187, %v359
    %361 = vdwg.mxu0
    %362 = vmatprep.subr.bf16.mxu0 %v281
    %363 = vmatpush1.bf16.msra.mxu0 %v278
    %364 = vmatprep.subr.bf16.mxu0 0
    %365 = vmatpush1.bf16.msra.mxu0 0
    %366 = vmatprep.subr.bf16.mxu0 0
    %367 = vmatpush1.bf16.msra.mxu0 0
    %368 = vmatprep.subr.bf16.mxu0 0
    %369 = vmatpush1.bf16.msra.mxu0 0
    %370 = vmatprep.subr.bf16.mxu0 0
    %371 = vmatpush1.bf16.msra.mxu0 0
    %372 = vmatprep.subr.bf16.mxu0 0
    %373 = vmatpush1.bf16.msra.mxu0 0
    %374 = vmatprep.subr.bf16.mxu0 0
    %375 = vmatpush1.bf16.msra.mxu0 0
    %376 = vmatprep.subr.bf16.mxu0 0
    %377 = vmatpush1.bf16.msra.mxu0 0
    %378 = vmatprep.subr.bf16.mxu0 0
    %379 = vmatpush1.bf16.msra.mxu0 0
    %380 = vmatprep.subr.bf16.mxu0 0
    %381 = vmatpush1.bf16.msra.mxu0 0
    %382 = vmatprep.subr.bf16.mxu0 0
    %383 = vmatpush1.bf16.msra.mxu0 0
    %384 = vmatprep.subr.bf16.mxu0 0
    %385 = vmatpush1.bf16.msra.mxu0 0
    %386 = vmatprep.subr.bf16.mxu0 0
    %387 = vmatpush1.bf16.msra.mxu0 0
    %388 = vmatprep.subr.bf16.mxu0 0
    %389 = vmatpush1.bf16.msra.mxu0 0
    %390 = vmatprep.subr.bf16.mxu0 0
    %391 = vmatpush1.bf16.msra.mxu0 0
    %392 = vmatprep.subr.bf16.mxu0 0
    %393 = vmatpush1.bf16.msra.mxu0 0
    %394 = vmatprep.mubr.bf16.mxu0 0
    %395 = vmatmul.mubr.bf16.gmra.mrb[0].mxu0 %v259
    %v396 = vpop.f32.mrb[0].mxu0
    %v397 = vadd.f32 %v191, %v396
    %v398 = vpop.f32.mrb[0].mxu0
    %v399 = vadd.f32 %v195, %v398
    %v400 = vpop.f32.mrb[0].mxu0
    %v401 = vadd.f32 %v191, %v400
    %v402 = vpop.f32.mrb[0].mxu0
    %v403 = vadd.f32 %v195, %v402
    %404 = vmatprep.mubr.bf16.mxu0 0
    %405 = vmatmul.mubr.bf16.gmra.mrb[0].mxu0 %v262
    %v406 = vpop.f32.mrb[0].mxu0
    %v407 = vadd.f32 %v191, %v406
    %v408 = vpop.f32.mrb[0].mxu0
    %v409 = vadd.f32 %v195, %v408
    %v410 = vpop.f32.mrb[0].mxu0
    %v411 = vadd.f32 %v191, %v410
    %v412 = vpop.f32.mrb[0].mxu0
    %v413 = vadd.f32 %v195, %v412
    %414 = vmatprep.mubr.bf16.mxu0 0
    %415 = vmatmul.mubr.bf16.gmra.mrb[0].mxu0 %v265
    %v416 = vpop.f32.mrb[0].mxu0
    %v417 = vadd.f32 %v191, %v416
    %v418 = vpop.f32.mrb[0].mxu0
    %v419 = vadd.f32 %v195, %v418
    %v420 = vpop.f32.mrb[0].mxu0
    %v421 = vadd.f32 %v191, %v420
    %v422 = vpop.f32.mrb[0].mxu0
    %v423 = vadd.f32 %v195, %v422
    %424 = vmatprep.mubr.bf16.mxu0 0
    %425 = vmatmul.mubr.bf16.gmra.mrb[0].mxu0 %v268
    %v426 = vpop.f32.mrb[0].mxu0
    %v427 = vadd.f32 %v191, %v426
    %v428 = vpop.f32.mrb[0].mxu0
    %v429 = vadd.f32 %v195, %v428
    %v430 = vpop.f32.mrb[0].mxu0
    %v431 = vadd.f32 %v191, %v430
    %v432 = vpop.f32.mrb[0].mxu0
    %v433 = vadd.f32 %v195, %v432
    %434 = vdwg.mxu0
    %435 = vmatprep.subr.bf16.mxu0 %v287
    %436 = vmatpush1.bf16.msra.mxu0 %v284
    %437 = vmatprep.subr.bf16.mxu0 0
    %438 = vmatpush1.bf16.msra.mxu0 0
    %439 = vmatprep.subr.bf16.mxu0 0
    %440 = vmatpush1.bf16.msra.mxu0 0
    %441 = vmatprep.subr.bf16.mxu0 0
    %442 = vmatpush1.bf16.msra.mxu0 0
    %443 = vmatprep.subr.bf16.mxu0 0
    %444 = vmatpush1.bf16.msra.mxu0 0
    %445 = vmatprep.subr.bf16.mxu0 0
    %446 = vmatpush1.bf16.msra.mxu0 0
    %447 = vmatprep.subr.bf16.mxu0 0
    %448 = vmatpush1.bf16.msra.mxu0 0
    %449 = vmatprep.subr.bf16.mxu0 0
    %450 = vmatpush1.bf16.msra.mxu0 0
    %451 = vmatprep.subr.bf16.mxu0 0
    %452 = vmatpush1.bf16.msra.mxu0 0
    %453 = vmatprep.subr.bf16.mxu0 0
    %454 = vmatpush1.bf16.msra.mxu0 0
    %455 = vmatprep.subr.bf16.mxu0 0
    %456 = vmatpush1.bf16.msra.mxu0 0
    %457 = vmatprep.subr.bf16.mxu0 0
    %458 = vmatpush1.bf16.msra.mxu0 0
    %459 = vmatprep.subr.bf16.mxu0 0
    %460 = vmatpush1.bf16.msra.mxu0 0
    %461 = vmatprep.subr.bf16.mxu0 0
    %462 = vmatpush1.bf16.msra.mxu0 0
    %463 = vmatprep.subr.bf16.mxu0 0
    %464 = vmatpush1.bf16.msra.mxu0 0
    %465 = vmatprep.subr.bf16.mxu0 0
    %466 = vmatpush1.bf16.msra.mxu0 0
    %467 = vmatprep.mubr.bf16.mxu0 0
    %468 = vmatmul.mubr.bf16.gmra.mrb[0].mxu0 %v259
    %v469 = vpop.f32.mrb[0].mxu0
    %v470 = vadd.f32 %v199, %v469
    %v471 = vpop.f32.mrb[0].mxu0
    %v472 = vadd.f32 %v203, %v471
    %v473 = vpop.f32.mrb[0].mxu0
    %v474 = vadd.f32 %v199, %v473
    %v475 = vpop.f32.mrb[0].mxu0
    %v476 = vadd.f32 %v203, %v475
    %477 = vmatprep.mubr.bf16.mxu0 0
    %478 = vmatmul.mubr.bf16.gmra.mrb[0].mxu0 %v262
    %v479 = vpop.f32.mrb[0].mxu0
    %v480 = vadd.f32 %v199, %v479
    %v481 = vpop.f32.mrb[0].mxu0
    %v482 = vadd.f32 %v203, %v481
    %v483 = vpop.f32.mrb[0].mxu0
    %v484 = vadd.f32 %v199, %v483
    %v485 = vpop.f32.mrb[0].mxu0
    %v486 = vadd.f32 %v203, %v485
    %487 = vmatprep.mubr.bf16.mxu0 0
    %488 = vmatmul.mubr.bf16.gmra.mrb[0].mxu0 %v265
    %v489 = vpop.f32.mrb[0].mxu0
    %v490 = vadd.f32 %v199, %v489
    %v491 = vpop.f32.mrb[0].mxu0
    %v492 = vadd.f32 %v203, %v491
    %v493 = vpop.f32.mrb[0].mxu0
    %v494 = vadd.f32 %v199, %v493
    %v495 = vpop.f32.mrb[0].mxu0
    %v496 = vadd.f32 %v203, %v495
    %497 = vmatprep.mubr.bf16.mxu0 0
    %498 = vmatmul.mubr.bf16.gmra.mrb[0].mxu0 %v268
    %v499 = vpop.f32.mrb[0].mxu0
    %v500 = vadd.f32 %v199, %v499
    %v501 = vpop.f32.mrb[0].mxu0
    %v502 = vadd.f32 %v203, %v501
    %v503 = vpop.f32.mrb[0].mxu0
    %v504 = vadd.f32 %v199, %v503
    %v505 = vpop.f32.mrb[0].mxu0
    %v506 = vadd.f32 %v203, %v505
    %507 = vdwg.mxu0
    %v508 = vld [vmem:[%s4] sm:$0x3]
    %v510 = vlaneseq
    %v511 = vshrl.u32 %v510, 7
    %v512 = vsub.s32 0, %v511
    %v513 = vrot.slane %v508, %v512
    %v514 = vlaneseq
    %v515 = vshrl.u32 %v514, 7
    %v516 = vsub.s32 1, %v515
    %v517 = vrot.slane %v508, %v516
    %v520 = vld [vmem:[#allocation8] sm:$0xff]
    %v521 = vld [vmem:[#allocation8 + $0x8] sm:$0xff]
    %v522 = vld [vmem:[#allocation8 + $0x10] sm:$0xff]
    %v523 = vld [vmem:[#allocation8 + $0x18] sm:$0xff]
    %v524 = vld [vmem:[#allocation8 + $0x20] sm:$0xff]
    %v525 = vld [vmem:[#allocation8 + $0x28] sm:$0xff]
    %v526 = vld [vmem:[#allocation8 + $0x30] sm:$0xff]
    %v527 = vld [vmem:[#allocation8 + $0x38] sm:$0xff]
    %v528 = vld [vmem:[#allocation8 + $0x40] sm:$0xff]
    %v529 = vld [vmem:[#allocation8 + $0x48] sm:$0xff]
    %v530 = vld [vmem:[#allocation8 + $0x50] sm:$0xff]
    %v531 = vld [vmem:[#allocation8 + $0x58] sm:$0xff]
    %v532 = vld [vmem:[#allocation8 + $0x60] sm:$0xff]
    %v533 = vld [vmem:[#allocation8 + $0x68] sm:$0xff]
    %v534 = vld [vmem:[#allocation8 + $0x70] sm:$0xff]
    %v535 = vld [vmem:[#allocation8 + $0x78] sm:$0xff]
    %v536 = vld [vmem:[#allocation8 + $0x80] sm:$0xff]
    %v537 = vld [vmem:[#allocation8 + $0x88] sm:$0xff]
    %v538 = vld [vmem:[#allocation8 + $0x90] sm:$0xff]
    %v539 = vld [vmem:[#allocation8 + $0x98] sm:$0xff]
    %v540 = vld [vmem:[#allocation8 + $0xa0] sm:$0xff]
    %v541 = vld [vmem:[#allocation8 + $0xa8] sm:$0xff]
    %v542 = vld [vmem:[#allocation8 + $0xb0] sm:$0xff]
    %v543 = vld [vmem:[#allocation8 + $0xb8] sm:$0xff]
    %v544 = vld [vmem:[#allocation8 + $0xc0] sm:$0xff]
    %v545 = vld [vmem:[#allocation8 + $0xc8] sm:$0xff]
    %v546 = vld [vmem:[#allocation8 + $0xd0] sm:$0xff]
    %v547 = vld [vmem:[#allocation8 + $0xd8] sm:$0xff]
    %v548 = vld [vmem:[#allocation8 + $0xe0] sm:$0xff]
    %v549 = vld [vmem:[#allocation8 + $0xe8] sm:$0xff]
    %v550 = vld [vmem:[#allocation8 + $0xf0] sm:$0xff]
    %v551 = vld [vmem:[#allocation8 + $0xf8] sm:$0xff]
    %v552 = vld [vmem:[#allocation8 + $0x100] sm:$0xff]
    %v553 = vld [vmem:[#allocation8 + $0x108] sm:$0xff]
    %v554 = vld [vmem:[#allocation8 + $0x110] sm:$0xff]
    %v555 = vld [vmem:[#allocation8 + $0x118] sm:$0xff]
    %v556 = vld [vmem:[#allocation8 + $0x120] sm:$0xff]
    %v557 = vld [vmem:[#allocation8 + $0x128] sm:$0xff]
    %v558 = vld [vmem:[#allocation8 + $0x130] sm:$0xff]
    %v559 = vld [vmem:[#allocation8 + $0x138] sm:$0xff]
    %v560 = vld [vmem:[#allocation8 + $0x140] sm:$0xff]
    %v561 = vld [vmem:[#allocation8 + $0x148] sm:$0xff]
    %v562 = vld [vmem:[#allocation8 + $0x150] sm:$0xff]
    %v563 = vld [vmem:[#allocation8 + $0x158] sm:$0xff]
    %v564 = vld [vmem:[#allocation8 + $0x160] sm:$0xff]
    %v565 = vld [vmem:[#allocation8 + $0x168] sm:$0xff]
    %v566 = vld [vmem:[#allocation8 + $0x170] sm:$0xff]
    %v567 = vld [vmem:[#allocation8 + $0x178] sm:$0xff]
    %v568 = vld [vmem:[#allocation8 + $0x180] sm:$0xff]
    %v569 = vld [vmem:[#allocation8 + $0x188] sm:$0xff]
    %v570 = vld [vmem:[#allocation8 + $0x190] sm:$0xff]
    %v571 = vld [vmem:[#allocation8 + $0x198] sm:$0xff]
    %v572 = vld [vmem:[#allocation8 + $0x1a0] sm:$0xff]
    %v573 = vld [vmem:[#allocation8 + $0x1a8] sm:$0xff]
    %v574 = vld [vmem:[#allocation8 + $0x1b0] sm:$0xff]
    %v575 = vld [vmem:[#allocation8 + $0x1b8] sm:$0xff]
    %v576 = vld [vmem:[#allocation8 + $0x1c0] sm:$0xff]
    %v577 = vld [vmem:[#allocation8 + $0x1c8] sm:$0xff]
    %v578 = vld [vmem:[#allocation8 + $0x1d0] sm:$0xff]
    %v579 = vld [vmem:[#allocation8 + $0x1d8] sm:$0xff]
    %v580 = vld [vmem:[#allocation8 + $0x1e0] sm:$0xff]
    %v581 = vld [vmem:[#allocation8 + $0x1e8] sm:$0xff]
    %v582 = vld [vmem:[#allocation8 + $0x1f0] sm:$0xff]
    %v583 = vld [vmem:[#allocation8 + $0x1f8] sm:$0xff]
    %v584 = vld [vmem:[#allocation8 + $0x200] sm:$0xff]
    %v585 = vld [vmem:[#allocation8 + $0x208] sm:$0xff]
    %v586 = vld [vmem:[#allocation8 + $0x210] sm:$0xff]
    %v587 = vld [vmem:[#allocation8 + $0x218] sm:$0xff]
    %v588 = vld [vmem:[#allocation8 + $0x220] sm:$0xff]
    %v589 = vld [vmem:[#allocation8 + $0x228] sm:$0xff]
    %v590 = vld [vmem:[#allocation8 + $0x230] sm:$0xff]
    %v591 = vld [vmem:[#allocation8 + $0x238] sm:$0xff]
    %v592 = vld [vmem:[#allocation8 + $0x240] sm:$0xff]
    %v593 = vld [vmem:[#allocation8 + $0x248] sm:$0xff]
    %v594 = vld [vmem:[#allocation8 + $0x250] sm:$0xff]
    %v595 = vld [vmem:[#allocation8 + $0x258] sm:$0xff]
    %v596 = vld [vmem:[#allocation8 + $0x260] sm:$0xff]
    %v597 = vld [vmem:[#allocation8 + $0x268] sm:$0xff]
    %v598 = vld [vmem:[#allocation8 + $0x270] sm:$0xff]
    %v599 = vld [vmem:[#allocation8 + $0x278] sm:$0xff]
    %v600 = vld [vmem:[#allocation8 + $0x280] sm:$0xff]
    %v601 = vld [vmem:[#allocation8 + $0x288] sm:$0xff]
    %v602 = vld [vmem:[#allocation8 + $0x290] sm:$0xff]
    %v603 = vld [vmem:[#allocation8 + $0x298] sm:$0xff]
    %v604 = vld [vmem:[#allocation8 + $0x2a0] sm:$0xff]
    %v605 = vld [vmem:[#allocation8 + $0x2a8] sm:$0xff]
    %v606 = vld [vmem:[#allocation8 + $0x2b0] sm:$0xff]
    %v607 = vld [vmem:[#allocation8 + $0x2b8] sm:$0xff]
    %v608 = vld [vmem:[#allocation8 + $0x2c0] sm:$0xff]
    %v609 = vld [vmem:[#allocation8 + $0x2c8] sm:$0xff]
    %v610 = vld [vmem:[#allocation8 + $0x2d0] sm:$0xff]
    %v611 = vld [vmem:[#allocation8 + $0x2d8] sm:$0xff]
    %v612 = vld [vmem:[#allocation8 + $0x2e0] sm:$0xff]
    %v613 = vld [vmem:[#allocation8 + $0x2e8] sm:$0xff]
    %v614 = vld [vmem:[#allocation8 + $0x2f0] sm:$0xff]
    %v615 = vld [vmem:[#allocation8 + $0x2f8] sm:$0xff]
    %v712 = vunpack.c.l.b16 %v520
    %v713 = vunpack.c.h.b16 %v520
    %v714 = vunpack.c.l.b16 %v521
    %v715 = vunpack.c.h.b16 %v521
    %v716 = vunpack.c.l.b16 %v522
    %v717 = vunpack.c.h.b16 %v522
    %v718 = vunpack.c.l.b16 %v523
    %v719 = vunpack.c.h.b16 %v523
    %v720 = vunpack.c.l.b16 %v524
    %v721 = vunpack.c.h.b16 %v524
    %v722 = vunpack.c.l.b16 %v525
    %v723 = vunpack.c.h.b16 %v525
    %v724 = vunpack.c.l.b16 %v526
    %v725 = vunpack.c.h.b16 %v526
    %v726 = vunpack.c.l.b16 %v527
    %v727 = vunpack.c.h.b16 %v527
    %v728 = vunpack.c.l.b16 %v528
    %v729 = vunpack.c.h.b16 %v528
    %v730 = vunpack.c.l.b16 %v529
    %v731 = vunpack.c.h.b16 %v529
    %v732 = vunpack.c.l.b16 %v530
    %v733 = vunpack.c.h.b16 %v530
    %v734 = vunpack.c.l.b16 %v531
    %v735 = vunpack.c.h.b16 %v531
    %v736 = vunpack.c.l.b16 %v532
    %v737 = vunpack.c.h.b16 %v532
    %v738 = vunpack.c.l.b16 %v533
    %v739 = vunpack.c.h.b16 %v533
    %v740 = vunpack.c.l.b16 %v534
    %v741 = vunpack.c.h.b16 %v534
    %v742 = vunpack.c.l.b16 %v535
    %v743 = vunpack.c.h.b16 %v535
    %v744 = vunpack.c.l.b16 %v536
    %v745 = vunpack.c.h.b16 %v536
    %v746 = vunpack.c.l.b16 %v537
    %v747 = vunpack.c.h.b16 %v537
    %v748 = vunpack.c.l.b16 %v538
    %v749 = vunpack.c.h.b16 %v538
    %v750 = vunpack.c.l.b16 %v539
    %v751 = vunpack.c.h.b16 %v539
    %v752 = vunpack.c.l.b16 %v540
    %v753 = vunpack.c.h.b16 %v540
    %v754 = vunpack.c.l.b16 %v541
    %v755 = vunpack.c.h.b16 %v541
    %v756 = vunpack.c.l.b16 %v542
    %v757 = vunpack.c.h.b16 %v542
    %v758 = vunpack.c.l.b16 %v543
    %v759 = vunpack.c.h.b16 %v543
    %v760 = vunpack.c.l.b16 %v544
    %v761 = vunpack.c.h.b16 %v544
    %v762 = vunpack.c.l.b16 %v545
    %v763 = vunpack.c.h.b16 %v545
    %v764 = vunpack.c.l.b16 %v546
    %v765 = vunpack.c.h.b16 %v546
    %v766 = vunpack.c.l.b16 %v547
    %v767 = vunpack.c.h.b16 %v547
    %v768 = vunpack.c.l.b16 %v548
    %v769 = vunpack.c.h.b16 %v548
    %v770 = vunpack.c.l.b16 %v549
    %v771 = vunpack.c.h.b16 %v549
    %v772 = vunpack.c.l.b16 %v550
    %v773 = vunpack.c.h.b16 %v550
    %v774 = vunpack.c.l.b16 %v551
    %v775 = vunpack.c.h.b16 %v551
    %v776 = vunpack.c.l.b16 %v552
    %v777 = vunpack.c.h.b16 %v552
    %v778 = vunpack.c.l.b16 %v553
    %v779 = vunpack.c.h.b16 %v553
    %v780 = vunpack.c.l.b16 %v554
    %v781 = vunpack.c.h.b16 %v554
    %v782 = vunpack.c.l.b16 %v555
    %v783 = vunpack.c.h.b16 %v555
    %v784 = vunpack.c.l.b16 %v556
    %v785 = vunpack.c.h.b16 %v556
    %v786 = vunpack.c.l.b16 %v557
    %v787 = vunpack.c.h.b16 %v557
    %v788 = vunpack.c.l.b16 %v558
    %v789 = vunpack.c.h.b16 %v558
    %v790 = vunpack.c.l.b16 %v559
    %v791 = vunpack.c.h.b16 %v559
    %v792 = vunpack.c.l.b16 %v560
    %v793 = vunpack.c.h.b16 %v560
    %v794 = vunpack.c.l.b16 %v561
    %v795 = vunpack.c.h.b16 %v561
    %v796 = vunpack.c.l.b16 %v562
    %v797 = vunpack.c.h.b16 %v562
    %v798 = vunpack.c.l.b16 %v563
    %v799 = vunpack.c.h.b16 %v563
    %v800 = vunpack.c.l.b16 %v564
    %v801 = vunpack.c.h.b16 %v564
    %v802 = vunpack.c.l.b16 %v565
    %v803 = vunpack.c.h.b16 %v565
    %v804 = vunpack.c.l.b16 %v566
    %v805 = vunpack.c.h.b16 %v566
    %v806 = vunpack.c.l.b16 %v567
    %v807 = vunpack.c.h.b16 %v567
    %v808 = vunpack.c.l.b16 %v568
    %v809 = vunpack.c.h.b16 %v568
    %v810 = vunpack.c.l.b16 %v569
    %v811 = vunpack.c.h.b16 %v569
    %v812 = vunpack.c.l.b16 %v570
    %v813 = vunpack.c.h.b16 %v570
    %v814 = vunpack.c.l.b16 %v571
    %v815 = vunpack.c.h.b16 %v571
    %v816 = vunpack.c.l.b16 %v572
    %v817 = vunpack.c.h.b16 %v572
    %v818 = vunpack.c.l.b16 %v573
    %v819 = vunpack.c.h.b16 %v573
    %v820 = vunpack.c.l.b16 %v574
    %v821 = vunpack.c.h.b16 %v574
    %v822 = vunpack.c.l.b16 %v575
    %v823 = vunpack.c.h.b16 %v575
    %v824 = vunpack.c.l.b16 %v576
    %v825 = vunpack.c.h.b16 %v576
    %v826 = vunpack.c.l.b16 %v577
    %v827 = vunpack.c.h.b16 %v577
    %v828 = vunpack.c.l.b16 %v578
    %v829 = vunpack.c.h.b16 %v578
    %v830 = vunpack.c.l.b16 %v579
    %v831 = vunpack.c.h.b16 %v579
    %v832 = vunpack.c.l.b16 %v580
    %v833 = vunpack.c.h.b16 %v580
    %v834 = vunpack.c.l.b16 %v581
    %v835 = vunpack.c.h.b16 %v581
    %v836 = vunpack.c.l.b16 %v582
    %v837 = vunpack.c.h.b16 %v582
    %v838 = vunpack.c.l.b16 %v583
    %v839 = vunpack.c.h.b16 %v583
    %v840 = vunpack.c.l.b16 %v584
    %v841 = vunpack.c.h.b16 %v584
    %v842 = vunpack.c.l.b16 %v585
    %v843 = vunpack.c.h.b16 %v585
    %v844 = vunpack.c.l.b16 %v586
    %v845 = vunpack.c.h.b16 %v586
    %v846 = vunpack.c.l.b16 %v587
    %v847 = vunpack.c.h.b16 %v587
    %v848 = vunpack.c.l.b16 %v588
    %v849 = vunpack.c.h.b16 %v588
    %v850 = vunpack.c.l.b16 %v589
    %v851 = vunpack.c.h.b16 %v589
    %v852 = vunpack.c.l.b16 %v590
    %v853 = vunpack.c.h.b16 %v590
    %v854 = vunpack.c.l.b16 %v591
    %v855 = vunpack.c.h.b16 %v591
    %v856 = vunpack.c.l.b16 %v592
    %v857 = vunpack.c.h.b16 %v592
    %v858 = vunpack.c.l.b16 %v593
    %v859 = vunpack.c.h.b16 %v593
    %v860 = vunpack.c.l.b16 %v594
    %v861 = vunpack.c.h.b16 %v594
    %v862 = vunpack.c.l.b16 %v595
    %v863 = vunpack.c.h.b16 %v595
    %v864 = vunpack.c.l.b16 %v596
    %v865 = vunpack.c.h.b16 %v596
    %v866 = vunpack.c.l.b16 %v597
    %v867 = vunpack.c.h.b16 %v597
    %v868 = vunpack.c.l.b16 %v598
    %v869 = vunpack.c.h.b16 %v598
    %v870 = vunpack.c.l.b16 %v599
    %v871 = vunpack.c.h.b16 %v599
    %v872 = vunpack.c.l.b16 %v600
    %v873 = vunpack.c.h.b16 %v600
    %v874 = vunpack.c.l.b16 %v601
    %v875 = vunpack.c.h.b16 %v601
    %v876 = vunpack.c.l.b16 %v602
    %v877 = vunpack.c.h.b16 %v602
    %v878 = vunpack.c.l.b16 %v603
    %v879 = vunpack.c.h.b16 %v603
    %v880 = vunpack.c.l.b16 %v604
    %v881 = vunpack.c.h.b16 %v604
    %v882 = vunpack.c.l.b16 %v605
    %v883 = vunpack.c.h.b16 %v605
    %v884 = vunpack.c.l.b16 %v606
    %v885 = vunpack.c.h.b16 %v606
    %v886 = vunpack.c.l.b16 %v607
    %v887 = vunpack.c.h.b16 %v607
    %v888 = vunpack.c.l.b16 %v608
    %v889 = vunpack.c.h.b16 %v608
    %v890 = vunpack.c.l.b16 %v609
    %v891 = vunpack.c.h.b16 %v609
    %v892 = vunpack.c.l.b16 %v610
    %v893 = vunpack.c.h.b16 %v610
    %v894 = vunpack.c.l.b16 %v611
    %v895 = vunpack.c.h.b16 %v611
    %v896 = vunpack.c.l.b16 %v612
    %v897 = vunpack.c.h.b16 %v612
    %v898 = vunpack.c.l.b16 %v613
    %v899 = vunpack.c.h.b16 %v613
    %v900 = vunpack.c.l.b16 %v614
    %v901 = vunpack.c.h.b16 %v614
    %v902 = vunpack.c.l.b16 %v615
    %v903 = vunpack.c.h.b16 %v615
    %v904 = vpack.c.b16 %v718, %v712
    %v905 = vpack.c.b16 %v719, %v713
    %v906 = vpack.c.b16 %v720, %v714
    %v907 = vpack.c.b16 %v721, %v715
    %v908 = vpack.c.b16 %v722, %v716
    %v909 = vpack.c.b16 %v723, %v717
    %v910 = vpack.c.b16 %v730, %v724
    %v911 = vpack.c.b16 %v731, %v725
    %v912 = vpack.c.b16 %v732, %v726
    %v913 = vpack.c.b16 %v733, %v727
    %v914 = vpack.c.b16 %v734, %v728
    %v915 = vpack.c.b16 %v735, %v729
    %v916 = vpack.c.b16 %v742, %v736
    %v917 = vpack.c.b16 %v743, %v737
    %v918 = vpack.c.b16 %v744, %v738
    %v919 = vpack.c.b16 %v745, %v739
    %v920 = vpack.c.b16 %v746, %v740
    %v921 = vpack.c.b16 %v747, %v741
    %v922 = vpack.c.b16 %v754, %v748
    %v923 = vpack.c.b16 %v755, %v749
    %v924 = vpack.c.b16 %v756, %v750
    %v925 = vpack.c.b16 %v757, %v751
    %v926 = vpack.c.b16 %v758, %v752
    %v927 = vpack.c.b16 %v759, %v753
    %v928 = vpack.c.b16 %v766, %v760
    %v929 = vpack.c.b16 %v767, %v761
    %v930 = vpack.c.b16 %v768, %v762
    %v931 = vpack.c.b16 %v769, %v763
    %v932 = vpack.c.b16 %v770, %v764
    %v933 = vpack.c.b16 %v771, %v765
    %v934 = vpack.c.b16 %v778, %v772
    %v935 = vpack.c.b16 %v779, %v773
    %v936 = vpack.c.b16 %v780, %v774
    %v937 = vpack.c.b16 %v781, %v775
    %v938 = vpack.c.b16 %v782, %v776
    %v939 = vpack.c.b16 %v783, %v777
    %v940 = vpack.c.b16 %v790, %v784
    %v941 = vpack.c.b16 %v791, %v785
    %v942 = vpack.c.b16 %v792, %v786
    %v943 = vpack.c.b16 %v793, %v787
    %v944 = vpack.c.b16 %v794, %v788
    %v945 = vpack.c.b16 %v795, %v789
    %v946 = vpack.c.b16 %v802, %v796
    %v947 = vpack.c.b16 %v803, %v797
    %v948 = vpack.c.b16 %v804, %v798
    %v949 = vpack.c.b16 %v805, %v799
    %v950 = vpack.c.b16 %v806, %v800
    %v951 = vpack.c.b16 %v807, %v801
    %v952 = vpack.c.b16 %v814, %v808
    %v953 = vpack.c.b16 %v815, %v809
    %v954 = vpack.c.b16 %v816, %v810
    %v955 = vpack.c.b16 %v817, %v811
    %v956 = vpack.c.b16 %v818, %v812
    %v957 = vpack.c.b16 %v819, %v813
    %v958 = vpack.c.b16 %v826, %v820
    %v959 = vpack.c.b16 %v827, %v821
    %v960 = vpack.c.b16 %v828, %v822
    %v961 = vpack.c.b16 %v829, %v823
    %v962 = vpack.c.b16 %v830, %v824
    %v963 = vpack.c.b16 %v831, %v825
    %v964 = vpack.c.b16 %v838, %v832
    %v965 = vpack.c.b16 %v839, %v833
    %v966 = vpack.c.b16 %v840, %v834
    %v967 = vpack.c.b16 %v841, %v835
    %v968 = vpack.c.b16 %v842, %v836
    %v969 = vpack.c.b16 %v843, %v837
    %v970 = vpack.c.b16 %v850, %v844
    %v971 = vpack.c.b16 %v851, %v845
    %v972 = vpack.c.b16 %v852, %v846
    %v973 = vpack.c.b16 %v853, %v847
    %v974 = vpack.c.b16 %v854, %v848
    %v975 = vpack.c.b16 %v855, %v849
    %v976 = vpack.c.b16 %v862, %v856
    %v977 = vpack.c.b16 %v863, %v857
    %v978 = vpack.c.b16 %v864, %v858
    %v979 = vpack.c.b16 %v865, %v859
    %v980 = vpack.c.b16 %v866, %v860
    %v981 = vpack.c.b16 %v867, %v861
    %v982 = vpack.c.b16 %v874, %v868
    %v983 = vpack.c.b16 %v875, %v869
    %v984 = vpack.c.b16 %v876, %v870
    %v985 = vpack.c.b16 %v877, %v871
    %v986 = vpack.c.b16 %v878, %v872
    %v987 = vpack.c.b16 %v879, %v873
    %v988 = vpack.c.b16 %v886, %v880
    %v989 = vpack.c.b16 %v887, %v881
    %v990 = vpack.c.b16 %v888, %v882
    %v991 = vpack.c.b16 %v889, %v883
    %v992 = vpack.c.b16 %v890, %v884
    %v993 = vpack.c.b16 %v891, %v885
    %v994 = vpack.c.b16 %v898, %v892
    %v995 = vpack.c.b16 %v899, %v893
    %v996 = vpack.c.b16 %v900, %v894
    %v997 = vpack.c.b16 %v901, %v895
    %v998 = vpack.c.b16 %v902, %v896
    %v999 = vpack.c.b16 %v903, %v897
    %1096 = vmatprep.subr.bf16.mxu0 %v905
    %1097 = vmatpush1.bf16.msra.mxu0 %v904
    %1098 = vmatprep.subr.bf16.mxu0 %v911
    %1099 = vmatpush1.bf16.msra.mxu0 %v910
    %1100 = vmatprep.subr.bf16.mxu0 %v917
    %1101 = vmatpush1.bf16.msra.mxu0 %v916
    %1102 = vmatprep.subr.bf16.mxu0 %v923
    %1103 = vmatpush1.bf16.msra.mxu0 %v922
    %1104 = vmatprep.subr.bf16.mxu0 %v929
    %1105 = vmatpush1.bf16.msra.mxu0 %v928
    %1106 = vmatprep.subr.bf16.mxu0 %v935
    %1107 = vmatpush1.bf16.msra.mxu0 %v934
    %1108 = vmatprep.subr.bf16.mxu0 %v941
    %1109 = vmatpush1.bf16.msra.mxu0 %v940
    %1110 = vmatprep.subr.bf16.mxu0 %v947
    %1111 = vmatpush1.bf16.msra.mxu0 %v946
    %1112 = vmatprep.subr.bf16.mxu0 %v953
    %1113 = vmatpush1.bf16.msra.mxu0 %v952
    %1114 = vmatprep.subr.bf16.mxu0 %v959
    %1115 = vmatpush1.bf16.msra.mxu0 %v958
    %1116 = vmatprep.subr.bf16.mxu0 %v965
    %1117 = vmatpush1.bf16.msra.mxu0 %v964
    %1118 = vmatprep.subr.bf16.mxu0 %v971
    %1119 = vmatpush1.bf16.msra.mxu0 %v970
    %1120 = vmatprep.subr.bf16.mxu0 %v977
    %1121 = vmatpush1.bf16.msra.mxu0 %v976
    %1122 = vmatprep.subr.bf16.mxu0 %v983
    %1123 = vmatpush1.bf16.msra.mxu0 %v982
    %1124 = vmatprep.subr.bf16.mxu0 %v989
    %1125 = vmatpush1.bf16.msra.mxu0 %v988
    %1126 = vmatprep.subr.bf16.mxu0 %v995
    %1127 = vmatpush1.bf16.msra.mxu0 %v994
    %1128 = vmatprep.mubr.bf16.mxu0 0
    %1129 = vmatmul.mubr.bf16.gmra.mrb[0].mxu0 0
    %v1130 = vpop.f32.mrb[0].mxu0
    %v1131 = vadd.f32 0.0, %v1130
    %v1132 = vpop.f32.mrb[0].mxu0
    %v1133 = vadd.f32 0.0, %v1132
    %v1134 = vpop.f32.mrb[0].mxu0
    %v1135 = vpop.f32.mrb[0].mxu0
    %1136 = vdwg.mxu0
    %1137 = vmatprep.subr.bf16.mxu0 %v907
    %1138 = vmatpush1.bf16.msra.mxu0 %v906
    %1139 = vmatprep.subr.bf16.mxu0 %v913
    %1140 = vmatpush1.bf16.msra.mxu0 %v912
    %1141 = vmatprep.subr.bf16.mxu0 %v919
    %1142 = vmatpush1.bf16.msra.mxu0 %v918
    %1143 = vmatprep.subr.bf16.mxu0 %v925
    %1144 = vmatpush1.bf16.msra.mxu0 %v924
    %1145 = vmatprep.subr.bf16.mxu0 %v931
    %1146 = vmatpush1.bf16.msra.mxu0 %v930
    %1147 = vmatprep.subr.bf16.mxu0 %v937
    %1148 = vmatpush1.bf16.msra.mxu0 %v936
    %1149 = vmatprep.subr.bf16.mxu0 %v943
    %1150 = vmatpush1.bf16.msra.mxu0 %v942
    %1151 = vmatprep.subr.bf16.mxu0 %v949
    %1152 = vmatpush1.bf16.msra.mxu0 %v948
    %1153 = vmatprep.subr.bf16.mxu0 %v955
    %1154 = vmatpush1.bf16.msra.mxu0 %v954
    %1155 = vmatprep.subr.bf16.mxu0 %v961
    %1156 = vmatpush1.bf16.msra.mxu0 %v960
    %1157 = vmatprep.subr.bf16.mxu0 %v967
    %1158 = vmatpush1.bf16.msra.mxu0 %v966
    %1159 = vmatprep.subr.bf16.mxu0 %v973
    %1160 = vmatpush1.bf16.msra.mxu0 %v972
    %1161 = vmatprep.subr.bf16.mxu0 %v979
    %1162 = vmatpush1.bf16.msra.mxu0 %v978
    %1163 = vmatprep.subr.bf16.mxu0 %v985
    %1164 = vmatpush1.bf16.msra.mxu0 %v984
    %1165 = vmatprep.subr.bf16.mxu0 %v991
    %1166 = vmatpush1.bf16.msra.mxu0 %v990
    %1167 = vmatprep.subr.bf16.mxu0 %v997
    %1168 = vmatpush1.bf16.msra.mxu0 %v996
    %1169 = vmatprep.mubr.bf16.mxu0 0
    %1170 = vmatmul.mubr.bf16.gmra.mrb[0].mxu0 0
    %v1171 = vpop.f32.mrb[0].mxu0
    %v1172 = vadd.f32 0.0, %v1171
    %v1173 = vpop.f32.mrb[0].mxu0
    %v1174 = vadd.f32 0.0, %v1173
    %v1175 = vpop.f32.mrb[0].mxu0
    %v1176 = vpop.f32.mrb[0].mxu0
    %1177 = vdwg.mxu0
    %1178 = vmatprep.subr.bf16.mxu0 %v909
    %1179 = vmatpush1.bf16.msra.mxu0 %v908
    %1180 = vmatprep.subr.bf16.mxu0 %v915
    %1181 = vmatpush1.bf16.msra.mxu0 %v914
    %1182 = vmatprep.subr.bf16.mxu0 %v921
    %1183 = vmatpush1.bf16.msra.mxu0 %v920
    %1184 = vmatprep.subr.bf16.mxu0 %v927
    %1185 = vmatpush1.bf16.msra.mxu0 %v926
    %1186 = vmatprep.subr.bf16.mxu0 %v933
    %1187 = vmatpush1.bf16.msra.mxu0 %v932
    %1188 = vmatprep.subr.bf16.mxu0 %v939
    %1189 = vmatpush1.bf16.msra.mxu0 %v938
    %1190 = vmatprep.subr.bf16.mxu0 %v945
    %1191 = vmatpush1.bf16.msra.mxu0 %v944
    %1192 = vmatprep.subr.bf16.mxu0 %v951
    %1193 = vmatpush1.bf16.msra.mxu0 %v950
    %1194 = vmatprep.subr.bf16.mxu0 %v957
    %1195 = vmatpush1.bf16.msra.mxu0 %v956
    %1196 = vmatprep.subr.bf16.mxu0 %v963
    %1197 = vmatpush1.bf16.msra.mxu0 %v962
    %1198 = vmatprep.subr.bf16.mxu0 %v969
    %1199 = vmatpush1.bf16.msra.mxu0 %v968
    %1200 = vmatprep.subr.bf16.mxu0 %v975
    %1201 = vmatpush1.bf16.msra.mxu0 %v974
    %1202 = vmatprep.subr.bf16.mxu0 %v981
    %1203 = vmatpush1.bf16.msra.mxu0 %v980
    %1204 = vmatprep.subr.bf16.mxu0 %v987
    %1205 = vmatpush1.bf16.msra.mxu0 %v986
    %1206 = vmatprep.subr.bf16.mxu0 %v993
    %1207 = vmatpush1.bf16.msra.mxu0 %v992
    %1208 = vmatprep.subr.bf16.mxu0 %v999
    %1209 = vmatpush1.bf16.msra.mxu0 %v998
    %1210 = vmatprep.mubr.bf16.mxu0 0
    %1211 = vmatmul.mubr.bf16.gmra.mrb[0].mxu0 0
    %v1212 = vpop.f32.mrb[0].mxu0
    %v1213 = vadd.f32 0.0, %v1212
    %v1214 = vpop.f32.mrb[0].mxu0
    %v1215 = vadd.f32 0.0, %v1214
    %v1216 = vpop.f32.mrb[0].mxu0
    %v1217 = vpop.f32.mrb[0].mxu0
    %1218 = vdwg.mxu0
    %v1219 = vadd.f32 %v324, %v1131
    %v1220 = vadd.f32 %v326, %v1133
    %v1221 = vxor.u32 %v1219, 2147483648
    %v1222 = vxor.u32 %v1220, 2147483648
    %v1223 = vmul.f32 %v1221, 1.442695
    %v1224 = vpow.pop %v1223
    %v1225 = vmul.f32 %v1222, 1.442695
    %v1226 = vpow.pop %v1225
    %v1227 = vadd.f32 %v1224, 1.0
    %v1228 = vadd.f32 %v1226, 1.0
    %v1229 = vrcp.pop %v1227
    %v1230 = vmul.f32 1.0, %v1229
    %v1231 = vrcp.pop %v1228
    %v1232 = vmul.f32 1.0, %v1231
    %v1233 = vadd.f32 %v397, %v1172
    %v1234 = vadd.f32 %v399, %v1174
    %v1235 = vxor.u32 %v1233, 2147483648
    %v1236 = vxor.u32 %v1234, 2147483648
    %v1237 = vmul.f32 %v1235, 1.442695
    %v1238 = vpow.pop %v1237
    %v1239 = vmul.f32 %v1236, 1.442695
    %v1240 = vpow.pop %v1239
    %v1241 = vadd.f32 %v1238, 1.0
    %v1242 = vadd.f32 %v1240, 1.0
    %v1243 = vrcp.pop %v1241
    %v1244 = vmul.f32 1.0, %v1243
    %v1245 = vrcp.pop %v1242
    %v1246 = vmul.f32 1.0, %v1245
    %v1247 = vadd.f32 %v1213, %v513
    %v1248 = vadd.f32 %v1215, %v517
    %v1249 = vmul.f32 %v1230, %v1247
    %v1250 = vmul.f32 %v1232, %v1248
    %v1251 = vadd.f32 %v470, %v1249
    %v1252 = vadd.f32 %v472, %v1250
    %v1253 = vtanh.pop %v1251
    %v1254 = vtanh.pop %v1252
    %v1255 = vsub.f32 1.0, %v1244
    %v1256 = vsub.f32 1.0, %v1246
    %v1257 = vmul.f32 %v1255, %v1253
    %v1258 = vmul.f32 %v1256, %v1254
    %v1259 = vmul.f32 %v1244, 0.0
    %v1260 = vmul.f32 %v1246, 0.0
    %v1261 = vadd.f32 %v1257, %v1259
    %v1262 = vadd.f32 %v1258, %v1260
    %v1263 = vpack.c.bf16 %v1261, %v1261
    %v1264 = vpack.c.bf16 %v1262, %v1262
    %1265 = vst [vmem:[#allocation6] sm:$0xf] %v1263
    %1266 = vst [vmem:[#allocation6 + $0x8] sm:$0xf] %v1264
    %v1267 = vld [vmem:[#allocation8] sm:$0xff]
    %v1268 = vld [vmem:[#allocation8 + $0x8] sm:$0xff]
    %v1269 = vld [vmem:[#allocation8 + $0x10] sm:$0xff]
    %v1270 = vld [vmem:[#allocation8 + $0x18] sm:$0xff]
    %v1271 = vld [vmem:[#allocation8 + $0x20] sm:$0xff]
    %v1272 = vld [vmem:[#allocation8 + $0x28] sm:$0xff]
    %v1273 = vld [vmem:[#allocation8 + $0x30] sm:$0xff]
    %v1274 = vld [vmem:[#allocation8 + $0x38] sm:$0xff]
    %v1275 = vld [vmem:[#allocation8 + $0x40] sm:$0xff]
    %v1276 = vld [vmem:[#allocation8 + $0x48] sm:$0xff]
    %v1277 = vld [vmem:[#allocation8 + $0x50] sm:$0xff]
    %v1278 = vld [vmem:[#allocation8 + $0x58] sm:$0xff]
    %v1279 = vld [vmem:[#allocation8 + $0x60] sm:$0xff]
    %v1280 = vld [vmem:[#allocation8 + $0x68] sm:$0xff]
    %v1281 = vld [vmem:[#allocation8 + $0x70] sm:$0xff]
    %v1282 = vld [vmem:[#allocation8 + $0x78] sm:$0xff]
    %v1283 = vld [vmem:[#allocation8 + $0x80] sm:$0xff]
    %v1284 = vld [vmem:[#allocation8 + $0x88] sm:$0xff]
    %v1285 = vld [vmem:[#allocation8 + $0x90] sm:$0xff]
    %v1286 = vld [vmem:[#allocation8 + $0x98] sm:$0xff]
    %v1287 = vld [vmem:[#allocation8 + $0xa0] sm:$0xff]
    %v1288 = vld [vmem:[#allocation8 + $0xa8] sm:$0xff]
    %v1289 = vld [vmem:[#allocation8 + $0xb0] sm:$0xff]
    %v1290 = vld [vmem:[#allocation8 + $0xb8] sm:$0xff]
    %v1291 = vld [vmem:[#allocation8 + $0xc0] sm:$0xff]
    %v1292 = vld [vmem:[#allocation8 + $0xc8] sm:$0xff]
    %v1293 = vld [vmem:[#allocation8 + $0xd0] sm:$0xff]
    %v1294 = vld [vmem:[#allocation8 + $0xd8] sm:$0xff]
    %v1295 = vld [vmem:[#allocation8 + $0xe0] sm:$0xff]
    %v1296 = vld [vmem:[#allocation8 + $0xe8] sm:$0xff]
    %v1297 = vld [vmem:[#allocation8 + $0xf0] sm:$0xff]
    %v1298 = vld [vmem:[#allocation8 + $0xf8] sm:$0xff]
    %v1299 = vld [vmem:[#allocation8 + $0x100] sm:$0xff]
    %v1300 = vld [vmem:[#allocation8 + $0x108] sm:$0xff]
    %v1301 = vld [vmem:[#allocation8 + $0x110] sm:$0xff]
    %v1302 = vld [vmem:[#allocation8 + $0x118] sm:$0xff]
    %v1303 = vld [vmem:[#allocation8 + $0x120] sm:$0xff]
    %v1304 = vld [vmem:[#allocation8 + $0x128] sm:$0xff]
    %v1305 = vld [vmem:[#allocation8 + $0x130] sm:$0xff]
    %v1306 = vld [vmem:[#allocation8 + $0x138] sm:$0xff]
    %v1307 = vld [vmem:[#allocation8 + $0x140] sm:$0xff]
    %v1308 = vld [vmem:[#allocation8 + $0x148] sm:$0xff]
    %v1309 = vld [vmem:[#allocation8 + $0x150] sm:$0xff]
    %v1310 = vld [vmem:[#allocation8 + $0x158] sm:$0xff]
    %v1311 = vld [vmem:[#allocation8 + $0x160] sm:$0xff]
    %v1312 = vld [vmem:[#allocation8 + $0x168] sm:$0xff]
    %v1313 = vld [vmem:[#allocation8 + $0x170] sm:$0xff]
    %v1314 = vld [vmem:[#allocation8 + $0x178] sm:$0xff]
    %v1315 = vld [vmem:[#allocation8 + $0x180] sm:$0xff]
    %v1316 = vld [vmem:[#allocation8 + $0x188] sm:$0xff]
    %v1317 = vld [vmem:[#allocation8 + $0x190] sm:$0xff]
    %v1318 = vld [vmem:[#allocation8 + $0x198] sm:$0xff]
    %v1319 = vld [vmem:[#allocation8 + $0x1a0] sm:$0xff]
    %v1320 = vld [vmem:[#allocation8 + $0x1a8] sm:$0xff]
    %v1321 = vld [vmem:[#allocation8 + $0x1b0] sm:$0xff]
    %v1322 = vld [vmem:[#allocation8 + $0x1b8] sm:$0xff]
    %v1323 = vld [vmem:[#allocation8 + $0x1c0] sm:$0xff]
    %v1324 = vld [vmem:[#allocation8 + $0x1c8] sm:$0xff]
    %v1325 = vld [vmem:[#allocation8 + $0x1d0] sm:$0xff]
    %v1326 = vld [vmem:[#allocation8 + $0x1d8] sm:$0xff]
    %v1327 = vld [vmem:[#allocation8 + $0x1e0] sm:$0xff]
    %v1328 = vld [vmem:[#allocation8 + $0x1e8] sm:$0xff]
    %v1329 = vld [vmem:[#allocation8 + $0x1f0] sm:$0xff]
    %v1330 = vld [vmem:[#allocation8 + $0x1f8] sm:$0xff]
    %v1331 = vld [vmem:[#allocation8 + $0x200] sm:$0xff]
    %v1332 = vld [vmem:[#allocation8 + $0x208] sm:$0xff]
    %v1333 = vld [vmem:[#allocation8 + $0x210] sm:$0xff]
    %v1334 = vld [vmem:[#allocation8 + $0x218] sm:$0xff]
    %v1335 = vld [vmem:[#allocation8 + $0x220] sm:$0xff]
    %v1336 = vld [vmem:[#allocation8 + $0x228] sm:$0xff]
    %v1337 = vld [vmem:[#allocation8 + $0x230] sm:$0xff]
    %v1338 = vld [vmem:[#allocation8 + $0x238] sm:$0xff]
    %v1339 = vld [vmem:[#allocation8 + $0x240] sm:$0xff]
    %v1340 = vld [vmem:[#allocation8 + $0x248] sm:$0xff]
    %v1341 = vld [vmem:[#allocation8 + $0x250] sm:$0xff]
    %v1342 = vld [vmem:[#allocation8 + $0x258] sm:$0xff]
    %v1343 = vld [vmem:[#allocation8 + $0x260] sm:$0xff]
    %v1344 = vld [vmem:[#allocation8 + $0x268] sm:$0xff]
    %v1345 = vld [vmem:[#allocation8 + $0x270] sm:$0xff]
    %v1346 = vld [vmem:[#allocation8 + $0x278] sm:$0xff]
    %v1347 = vld [vmem:[#allocation8 + $0x280] sm:$0xff]
    %v1348 = vld [vmem:[#allocation8 + $0x288] sm:$0xff]
    %v1349 = vld [vmem:[#allocation8 + $0x290] sm:$0xff]
    %v1350 = vld [vmem:[#allocation8 + $0x298] sm:$0xff]
    %v1351 = vld [vmem:[#allocation8 + $0x2a0] sm:$0xff]
    %v1352 = vld [vmem:[#allocation8 + $0x2a8] sm:$0xff]
    %v1353 = vld [vmem:[#allocation8 + $0x2b0] sm:$0xff]
    %v1354 = vld [vmem:[#allocation8 + $0x2b8] sm:$0xff]
    %v1355 = vld [vmem:[#allocation8 + $0x2c0] sm:$0xff]
    %v1356 = vld [vmem:[#allocation8 + $0x2c8] sm:$0xff]
    %v1357 = vld [vmem:[#allocation8 + $0x2d0] sm:$0xff]
    %v1358 = vld [vmem:[#allocation8 + $0x2d8] sm:$0xff]
    %v1359 = vld [vmem:[#allocation8 + $0x2e0] sm:$0xff]
    %v1360 = vld [vmem:[#allocation8 + $0x2e8] sm:$0xff]
    %v1361 = vld [vmem:[#allocation8 + $0x2f0] sm:$0xff]
    %v1362 = vld [vmem:[#allocation8 + $0x2f8] sm:$0xff]
    %v1459 = vunpack.c.l.b16 %v1267
    %v1460 = vunpack.c.h.b16 %v1267
    %v1461 = vunpack.c.l.b16 %v1268
    %v1462 = vunpack.c.h.b16 %v1268
    %v1463 = vunpack.c.l.b16 %v1269
    %v1464 = vunpack.c.h.b16 %v1269
    %v1465 = vunpack.c.l.b16 %v1270
    %v1466 = vunpack.c.h.b16 %v1270
    %v1467 = vunpack.c.l.b16 %v1271
    %v1468 = vunpack.c.h.b16 %v1271
    %v1469 = vunpack.c.l.b16 %v1272
    %v1470 = vunpack.c.h.b16 %v1272
    %v1471 = vunpack.c.l.b16 %v1273
    %v1472 = vunpack.c.h.b16 %v1273
    %v1473 = vunpack.c.l.b16 %v1274
    %v1474 = vunpack.c.h.b16 %v1274
    %v1475 = vunpack.c.l.b16 %v1275
    %v1476 = vunpack.c.h.b16 %v1275
    %v1477 = vunpack.c.l.b16 %v1276
    %v1478 = vunpack.c.h.b16 %v1276
    %v1479 = vunpack.c.l.b16 %v1277
    %v1480 = vunpack.c.h.b16 %v1277
    %v1481 = vunpack.c.l.b16 %v1278
    %v1482 = vunpack.c.h.b16 %v1278
    %v1483 = vunpack.c.l.b16 %v1279
    %v1484 = vunpack.c.h.b16 %v1279
    %v1485 = vunpack.c.l.b16 %v1280
    %v1486 = vunpack.c.h.b16 %v1280
    %v1487 = vunpack.c.l.b16 %v1281
    %v1488 = vunpack.c.h.b16 %v1281
    %v1489 = vunpack.c.l.b16 %v1282
    %v1490 = vunpack.c.h.b16 %v1282
    %v1491 = vunpack.c.l.b16 %v1283
    %v1492 = vunpack.c.h.b16 %v1283
    %v1493 = vunpack.c.l.b16 %v1284
    %v1494 = vunpack.c.h.b16 %v1284
    %v1495 = vunpack.c.l.b16 %v1285
    %v1496 = vunpack.c.h.b16 %v1285
    %v1497 = vunpack.c.l.b16 %v1286
    %v1498 = vunpack.c.h.b16 %v1286
    %v1499 = vunpack.c.l.b16 %v1287
    %v1500 = vunpack.c.h.b16 %v1287
    %v1501 = vunpack.c.l.b16 %v1288
    %v1502 = vunpack.c.h.b16 %v1288
    %v1503 = vunpack.c.l.b16 %v1289
    %v1504 = vunpack.c.h.b16 %v1289
    %v1505 = vunpack.c.l.b16 %v1290
    %v1506 = vunpack.c.h.b16 %v1290
    %v1507 = vunpack.c.l.b16 %v1291
    %v1508 = vunpack.c.h.b16 %v1291
    %v1509 = vunpack.c.l.b16 %v1292
    %v1510 = vunpack.c.h.b16 %v1292
    %v1511 = vunpack.c.l.b16 %v1293
    %v1512 = vunpack.c.h.b16 %v1293
    %v1513 = vunpack.c.l.b16 %v1294
    %v1514 = vunpack.c.h.b16 %v1294
    %v1515 = vunpack.c.l.b16 %v1295
    %v1516 = vunpack.c.h.b16 %v1295
    %v1517 = vunpack.c.l.b16 %v1296
    %v1518 = vunpack.c.h.b16 %v1296
    %v1519 = vunpack.c.l.b16 %v1297
    %v1520 = vunpack.c.h.b16 %v1297
    %v1521 = vunpack.c.l.b16 %v1298
    %v1522 = vunpack.c.h.b16 %v1298
    %v1523 = vunpack.c.l.b16 %v1299
    %v1524 = vunpack.c.h.b16 %v1299
    %v1525 = vunpack.c.l.b16 %v1300
    %v1526 = vunpack.c.h.b16 %v1300
    %v1527 = vunpack.c.l.b16 %v1301
    %v1528 = vunpack.c.h.b16 %v1301
    %v1529 = vunpack.c.l.b16 %v1302
    %v1530 = vunpack.c.h.b16 %v1302
    %v1531 = vunpack.c.l.b16 %v1303
    %v1532 = vunpack.c.h.b16 %v1303
    %v1533 = vunpack.c.l.b16 %v1304
    %v1534 = vunpack.c.h.b16 %v1304
    %v1535 = vunpack.c.l.b16 %v1305
    %v1536 = vunpack.c.h.b16 %v1305
    %v1537 = vunpack.c.l.b16 %v1306
    %v1538 = vunpack.c.h.b16 %v1306
    %v1539 = vunpack.c.l.b16 %v1307
    %v1540 = vunpack.c.h.b16 %v1307
    %v1541 = vunpack.c.l.b16 %v1308
    %v1542 = vunpack.c.h.b16 %v1308
    %v1543 = vunpack.c.l.b16 %v1309
    %v1544 = vunpack.c.h.b16 %v1309
    %v1545 = vunpack.c.l.b16 %v1310
    %v1546 = vunpack.c.h.b16 %v1310
    %v1547 = vunpack.c.l.b16 %v1311
    %v1548 = vunpack.c.h.b16 %v1311
    %v1549 = vunpack.c.l.b16 %v1312
    %v1550 = vunpack.c.h.b16 %v1312
    %v1551 = vunpack.c.l.b16 %v1313
    %v1552 = vunpack.c.h.b16 %v1313
    %v1553 = vunpack.c.l.b16 %v1314
    %v1554 = vunpack.c.h.b16 %v1314
    %v1555 = vunpack.c.l.b16 %v1315
    %v1556 = vunpack.c.h.b16 %v1315
    %v1557 = vunpack.c.l.b16 %v1316
    %v1558 = vunpack.c.h.b16 %v1316
    %v1559 = vunpack.c.l.b16 %v1317
    %v1560 = vunpack.c.h.b16 %v1317
    %v1561 = vunpack.c.l.b16 %v1318
    %v1562 = vunpack.c.h.b16 %v1318
    %v1563 = vunpack.c.l.b16 %v1319
    %v1564 = vunpack.c.h.b16 %v1319
    %v1565 = vunpack.c.l.b16 %v1320
    %v1566 = vunpack.c.h.b16 %v1320
    %v1567 = vunpack.c.l.b16 %v1321
    %v1568 = vunpack.c.h.b16 %v1321
    %v1569 = vunpack.c.l.b16 %v1322
    %v1570 = vunpack.c.h.b16 %v1322
    %v1571 = vunpack.c.l.b16 %v1323
    %v1572 = vunpack.c.h.b16 %v1323
    %v1573 = vunpack.c.l.b16 %v1324
    %v1574 = vunpack.c.h.b16 %v1324
    %v1575 = vunpack.c.l.b16 %v1325
    %v1576 = vunpack.c.h.b16 %v1325
    %v1577 = vunpack.c.l.b16 %v1326
    %v1578 = vunpack.c.h.b16 %v1326
    %v1579 = vunpack.c.l.b16 %v1327
    %v1580 = vunpack.c.h.b16 %v1327
    %v1581 = vunpack.c.l.b16 %v1328
    %v1582 = vunpack.c.h.b16 %v1328
    %v1583 = vunpack.c.l.b16 %v1329
    %v1584 = vunpack.c.h.b16 %v1329
    %v1585 = vunpack.c.l.b16 %v1330
    %v1586 = vunpack.c.h.b16 %v1330
    %v1587 = vunpack.c.l.b16 %v1331
    %v1588 = vunpack.c.h.b16 %v1331
    %v1589 = vunpack.c.l.b16 %v1332
    %v1590 = vunpack.c.h.b16 %v1332
    %v1591 = vunpack.c.l.b16 %v1333
    %v1592 = vunpack.c.h.b16 %v1333
    %v1593 = vunpack.c.l.b16 %v1334
    %v1594 = vunpack.c.h.b16 %v1334
    %v1595 = vunpack.c.l.b16 %v1335
    %v1596 = vunpack.c.h.b16 %v1335
    %v1597 = vunpack.c.l.b16 %v1336
    %v1598 = vunpack.c.h.b16 %v1336
    %v1599 = vunpack.c.l.b16 %v1337
    %v1600 = vunpack.c.h.b16 %v1337
    %v1601 = vunpack.c.l.b16 %v1338
    %v1602 = vunpack.c.h.b16 %v1338
    %v1603 = vunpack.c.l.b16 %v1339
    %v1604 = vunpack.c.h.b16 %v1339
    %v1605 = vunpack.c.l.b16 %v1340
    %v1606 = vunpack.c.h.b16 %v1340
    %v1607 = vunpack.c.l.b16 %v1341
    %v1608 = vunpack.c.h.b16 %v1341
    %v1609 = vunpack.c.l.b16 %v1342
    %v1610 = vunpack.c.h.b16 %v1342
    %v1611 = vunpack.c.l.b16 %v1343
    %v1612 = vunpack.c.h.b16 %v1343
    %v1613 = vunpack.c.l.b16 %v1344
    %v1614 = vunpack.c.h.b16 %v1344
    %v1615 = vunpack.c.l.b16 %v1345
    %v1616 = vunpack.c.h.b16 %v1345
    %v1617 = vunpack.c.l.b16 %v1346
    %v1618 = vunpack.c.h.b16 %v1346
    %v1619 = vunpack.c.l.b16 %v1347
    %v1620 = vunpack.c.h.b16 %v1347
    %v1621 = vunpack.c.l.b16 %v1348
    %v1622 = vunpack.c.h.b16 %v1348
    %v1623 = vunpack.c.l.b16 %v1349
    %v1624 = vunpack.c.h.b16 %v1349
    %v1625 = vunpack.c.l.b16 %v1350
    %v1626 = vunpack.c.h.b16 %v1350
    %v1627 = vunpack.c.l.b16 %v1351
    %v1628 = vunpack.c.h.b16 %v1351
    %v1629 = vunpack.c.l.b16 %v1352
    %v1630 = vunpack.c.h.b16 %v1352
    %v1631 = vunpack.c.l.b16 %v1353
    %v1632 = vunpack.c.h.b16 %v1353
    %v1633 = vunpack.c.l.b16 %v1354
    %v1634 = vunpack.c.h.b16 %v1354
    %v1635 = vunpack.c.l.b16 %v1355
    %v1636 = vunpack.c.h.b16 %v1355
    %v1637 = vunpack.c.l.b16 %v1356
    %v1638 = vunpack.c.h.b16 %v1356
    %v1639 = vunpack.c.l.b16 %v1357
    %v1640 = vunpack.c.h.b16 %v1357
    %v1641 = vunpack.c.l.b16 %v1358
    %v1642 = vunpack.c.h.b16 %v1358
    %v1643 = vunpack.c.l.b16 %v1359
    %v1644 = vunpack.c.h.b16 %v1359
    %v1645 = vunpack.c.l.b16 %v1360
    %v1646 = vunpack.c.h.b16 %v1360
    %v1647 = vunpack.c.l.b16 %v1361
    %v1648 = vunpack.c.h.b16 %v1361
    %v1649 = vunpack.c.l.b16 %v1362
    %v1650 = vunpack.c.h.b16 %v1362
    %v1651 = vpack.c.b16 %v1465, %v1459
    %v1652 = vpack.c.b16 %v1466, %v1460
    %v1653 = vpack.c.b16 %v1467, %v1461
    %v1654 = vpack.c.b16 %v1468, %v1462
    %v1655 = vpack.c.b16 %v1469, %v1463
    %v1656 = vpack.c.b16 %v1470, %v1464
    %v1657 = vpack.c.b16 %v1477, %v1471
    %v1658 = vpack.c.b16 %v1478, %v1472
    %v1659 = vpack.c.b16 %v1479, %v1473
    %v1660 = vpack.c.b16 %v1480, %v1474
    %v1661 = vpack.c.b16 %v1481, %v1475
    %v1662 = vpack.c.b16 %v1482, %v1476
    %v1663 = vpack.c.b16 %v1489, %v1483
    %v1664 = vpack.c.b16 %v1490, %v1484
    %v1665 = vpack.c.b16 %v1491, %v1485
    %v1666 = vpack.c.b16 %v1492, %v1486
    %v1667 = vpack.c.b16 %v1493, %v1487
    %v1668 = vpack.c.b16 %v1494, %v1488
    %v1669 = vpack.c.b16 %v1501, %v1495
    %v1670 = vpack.c.b16 %v1502, %v1496
    %v1671 = vpack.c.b16 %v1503, %v1497
    %v1672 = vpack.c.b16 %v1504, %v1498
    %v1673 = vpack.c.b16 %v1505, %v1499
    %v1674 = vpack.c.b16 %v1506, %v1500
    %v1675 = vpack.c.b16 %v1513, %v1507
    %v1676 = vpack.c.b16 %v1514, %v1508
    %v1677 = vpack.c.b16 %v1515, %v1509
    %v1678 = vpack.c.b16 %v1516, %v1510
    %v1679 = vpack.c.b16 %v1517, %v1511
    %v1680 = vpack.c.b16 %v1518, %v1512
    %v1681 = vpack.c.b16 %v1525, %v1519
    %v1682 = vpack.c.b16 %v1526, %v1520
    %v1683 = vpack.c.b16 %v1527, %v1521
    %v1684 = vpack.c.b16 %v1528, %v1522
    %v1685 = vpack.c.b16 %v1529, %v1523
    %v1686 = vpack.c.b16 %v1530, %v1524
    %v1687 = vpack.c.b16 %v1537, %v1531
    %v1688 = vpack.c.b16 %v1538, %v1532
    %v1689 = vpack.c.b16 %v1539, %v1533
    %v1690 = vpack.c.b16 %v1540, %v1534
    %v1691 = vpack.c.b16 %v1541, %v1535
    %v1692 = vpack.c.b16 %v1542, %v1536
    %v1693 = vpack.c.b16 %v1549, %v1543
    %v1694 = vpack.c.b16 %v1550, %v1544
    %v1695 = vpack.c.b16 %v1551, %v1545
    %v1696 = vpack.c.b16 %v1552, %v1546
    %v1697 = vpack.c.b16 %v1553, %v1547
    %v1698 = vpack.c.b16 %v1554, %v1548
    %v1699 = vpack.c.b16 %v1561, %v1555
    %v1700 = vpack.c.b16 %v1562, %v1556
    %v1701 = vpack.c.b16 %v1563, %v1557
    %v1702 = vpack.c.b16 %v1564, %v1558
    %v1703 = vpack.c.b16 %v1565, %v1559
    %v1704 = vpack.c.b16 %v1566, %v1560
    %v1705 = vpack.c.b16 %v1573, %v1567
    %v1706 = vpack.c.b16 %v1574, %v1568
    %v1707 = vpack.c.b16 %v1575, %v1569
    %v1708 = vpack.c.b16 %v1576, %v1570
    %v1709 = vpack.c.b16 %v1577, %v1571
    %v1710 = vpack.c.b16 %v1578, %v1572
    %v1711 = vpack.c.b16 %v1585, %v1579
    %v1712 = vpack.c.b16 %v1586, %v1580
    %v1713 = vpack.c.b16 %v1587, %v1581
    %v1714 = vpack.c.b16 %v1588, %v1582
    %v1715 = vpack.c.b16 %v1589, %v1583
    %v1716 = vpack.c.b16 %v1590, %v1584
    %v1717 = vpack.c.b16 %v1597, %v1591
    %v1718 = vpack.c.b16 %v1598, %v1592
    %v1719 = vpack.c.b16 %v1599, %v1593
    %v1720 = vpack.c.b16 %v1600, %v1594
    %v1721 = vpack.c.b16 %v1601, %v1595
    %v1722 = vpack.c.b16 %v1602, %v1596
    %v1723 = vpack.c.b16 %v1609, %v1603
    %v1724 = vpack.c.b16 %v1610, %v1604
    %v1725 = vpack.c.b16 %v1611, %v1605
    %v1726 = vpack.c.b16 %v1612, %v1606
    %v1727 = vpack.c.b16 %v1613, %v1607
    %v1728 = vpack.c.b16 %v1614, %v1608
    %v1729 = vpack.c.b16 %v1621, %v1615
    %v1730 = vpack.c.b16 %v1622, %v1616
    %v1731 = vpack.c.b16 %v1623, %v1617
    %v1732 = vpack.c.b16 %v1624, %v1618
    %v1733 = vpack.c.b16 %v1625, %v1619
    %v1734 = vpack.c.b16 %v1626, %v1620
    %v1735 = vpack.c.b16 %v1633, %v1627
    %v1736 = vpack.c.b16 %v1634, %v1628
    %v1737 = vpack.c.b16 %v1635, %v1629
    %v1738 = vpack.c.b16 %v1636, %v1630
    %v1739 = vpack.c.b16 %v1637, %v1631
    %v1740 = vpack.c.b16 %v1638, %v1632
    %v1741 = vpack.c.b16 %v1645, %v1639
    %v1742 = vpack.c.b16 %v1646, %v1640
    %v1743 = vpack.c.b16 %v1647, %v1641
    %v1744 = vpack.c.b16 %v1648, %v1642
    %v1745 = vpack.c.b16 %v1649, %v1643
    %v1746 = vpack.c.b16 %v1650, %v1644
    %1843 = vmatprep.subr.bf16.mxu0 %v1652
    %1844 = vmatpush1.bf16.msra.mxu0 %v1651
    %1845 = vmatprep.subr.bf16.mxu0 %v1658
    %1846 = vmatpush1.bf16.msra.mxu0 %v1657
    %1847 = vmatprep.subr.bf16.mxu0 %v1664
    %1848 = vmatpush1.bf16.msra.mxu0 %v1663
    %1849 = vmatprep.subr.bf16.mxu0 %v1670
    %1850 = vmatpush1.bf16.msra.mxu0 %v1669
    %1851 = vmatprep.subr.bf16.mxu0 %v1676
    %1852 = vmatpush1.bf16.msra.mxu0 %v1675
    %1853 = vmatprep.subr.bf16.mxu0 %v1682
    %1854 = vmatpush1.bf16.msra.mxu0 %v1681
    %1855 = vmatprep.subr.bf16.mxu0 %v1688
    %1856 = vmatpush1.bf16.msra.mxu0 %v1687
    %1857 = vmatprep.subr.bf16.mxu0 %v1694
    %1858 = vmatpush1.bf16.msra.mxu0 %v1693
    %1859 = vmatprep.subr.bf16.mxu0 %v1700
    %1860 = vmatpush1.bf16.msra.mxu0 %v1699
    %1861 = vmatprep.subr.bf16.mxu0 %v1706
    %1862 = vmatpush1.bf16.msra.mxu0 %v1705
    %1863 = vmatprep.subr.bf16.mxu0 %v1712
    %1864 = vmatpush1.bf16.msra.mxu0 %v1711
    %1865 = vmatprep.subr.bf16.mxu0 %v1718
    %1866 = vmatpush1.bf16.msra.mxu0 %v1717
    %1867 = vmatprep.subr.bf16.mxu0 %v1724
    %1868 = vmatpush1.bf16.msra.mxu0 %v1723
    %1869 = vmatprep.subr.bf16.mxu0 %v1730
    %1870 = vmatpush1.bf16.msra.mxu0 %v1729
    %1871 = vmatprep.subr.bf16.mxu0 %v1736
    %1872 = vmatpush1.bf16.msra.mxu0 %v1735
    %1873 = vmatprep.subr.bf16.mxu0 %v1742
    %1874 = vmatpush1.bf16.msra.mxu0 %v1741
    %1875 = vmatprep.mubr.bf16.mxu0 %v1264
    %1876 = vmatmul.mubr.bf16.gmra.mrb[0].mxu0 %v1263
    %v1877 = vpop.f32.mrb[0].mxu0
    %v1878 = vadd.f32 0.0, %v1877
    %v1879 = vpop.f32.mrb[0].mxu0
    %v1880 = vadd.f32 0.0, %v1879
    %v1881 = vpop.f32.mrb[0].mxu0
    %v1882 = vpop.f32.mrb[0].mxu0
    %1883 = vdwg.mxu0
    %1884 = vmatprep.subr.bf16.mxu0 %v1654
    %1885 = vmatpush1.bf16.msra.mxu0 %v1653
    %1886 = vmatprep.subr.bf16.mxu0 %v1660
    %1887 = vmatpush1.bf16.msra.mxu0 %v1659
    %1888 = vmatprep.subr.bf16.mxu0 %v1666
    %1889 = vmatpush1.bf16.msra.mxu0 %v1665
    %1890 = vmatprep.subr.bf16.mxu0 %v1672
    %1891 = vmatpush1.bf16.msra.mxu0 %v1671
    %1892 = vmatprep.subr.bf16.mxu0 %v1678
    %1893 = vmatpush1.bf16.msra.mxu0 %v1677
    %1894 = vmatprep.subr.bf16.mxu0 %v1684
    %1895 = vmatpush1.bf16.msra.mxu0 %v1683
    %1896 = vmatprep.subr.bf16.mxu0 %v1690
    %1897 = vmatpush1.bf16.msra.mxu0 %v1689
    %1898 = vmatprep.subr.bf16.mxu0 %v1696
    %1899 = vmatpush1.bf16.msra.mxu0 %v1695
    %1900 = vmatprep.subr.bf16.mxu0 %v1702
    %1901 = vmatpush1.bf16.msra.mxu0 %v1701
    %1902 = vmatprep.subr.bf16.mxu0 %v1708
    %1903 = vmatpush1.bf16.msra.mxu0 %v1707
    %1904 = vmatprep.subr.bf16.mxu0 %v1714
    %1905 = vmatpush1.bf16.msra.mxu0 %v1713
    %1906 = vmatprep.subr.bf16.mxu0 %v1720
    %1907 = vmatpush1.bf16.msra.mxu0 %v1719
    %1908 = vmatprep.subr.bf16.mxu0 %v1726
    %1909 = vmatpush1.bf16.msra.mxu0 %v1725
    %1910 = vmatprep.subr.bf16.mxu0 %v1732
    %1911 = vmatpush1.bf16.msra.mxu0 %v1731
    %1912 = vmatprep.subr.bf16.mxu0 %v1738
    %1913 = vmatpush1.bf16.msra.mxu0 %v1737
    %1914 = vmatprep.subr.bf16.mxu0 %v1744
    %1915 = vmatpush1.bf16.msra.mxu0 %v1743
    %1916 = vmatprep.mubr.bf16.mxu0 %v1264
    %1917 = vmatmul.mubr.bf16.gmra.mrb[0].mxu0 %v1263
    %v1918 = vpop.f32.mrb[0].mxu0
    %v1919 = vadd.f32 0.0, %v1918
    %v1920 = vpop.f32.mrb[0].mxu0
    %v1921 = vadd.f32 0.0, %v1920
    %v1922 = vpop.f32.mrb[0].mxu0
    %v1923 = vpop.f32.mrb[0].mxu0
    %1924 = vdwg.mxu0
    %1925 = vmatprep.subr.bf16.mxu0 %v1656
    %1926 = vmatpush1.bf16.msra.mxu0 %v1655
    %1927 = vmatprep.subr.bf16.mxu0 %v1662
    %1928 = vmatpush1.bf16.msra.mxu0 %v1661
    %1929 = vmatprep.subr.bf16.mxu0 %v1668
    %1930 = vmatpush1.bf16.msra.mxu0 %v1667
    %1931 = vmatprep.subr.bf16.mxu0 %v1674
    %1932 = vmatpush1.bf16.msra.mxu0 %v1673
    %1933 = vmatprep.subr.bf16.mxu0 %v1680
    %1934 = vmatpush1.bf16.msra.mxu0 %v1679
    %1935 = vmatprep.subr.bf16.mxu0 %v1686
    %1936 = vmatpush1.bf16.msra.mxu0 %v1685
    %1937 = vmatprep.subr.bf16.mxu0 %v1692
    %1938 = vmatpush1.bf16.msra.mxu0 %v1691
    %1939 = vmatprep.subr.bf16.mxu0 %v1698
    %1940 = vmatpush1.bf16.msra.mxu0 %v1697
    %1941 = vmatprep.subr.bf16.mxu0 %v1704
    %1942 = vmatpush1.bf16.msra.mxu0 %v1703
    %1943 = vmatprep.subr.bf16.mxu0 %v1710
    %1944 = vmatpush1.bf16.msra.mxu0 %v1709
    %1945 = vmatprep.subr.bf16.mxu0 %v1716
    %1946 = vmatpush1.bf16.msra.mxu0 %v1715
    %1947 = vmatprep.subr.bf16.mxu0 %v1722
    %1948 = vmatpush1.bf16.msra.mxu0 %v1721
    %1949 = vmatprep.subr.bf16.mxu0 %v1728
    %1950 = vmatpush1.bf16.msra.mxu0 %v1727
    %1951 = vmatprep.subr.bf16.mxu0 %v1734
    %1952 = vmatpush1.bf16.msra.mxu0 %v1733
    %1953 = vmatprep.subr.bf16.mxu0 %v1740
    %1954 = vmatpush1.bf16.msra.mxu0 %v1739
    %1955 = vmatprep.subr.bf16.mxu0 %v1746
    %1956 = vmatpush1.bf16.msra.mxu0 %v1745
    %1957 = vmatprep.mubr.bf16.mxu0 %v1264
    %1958 = vmatmul.mubr.bf16.gmra.mrb[0].mxu0 %v1263
    %v1959 = vpop.f32.mrb[0].mxu0
    %v1960 = vadd.f32 0.0, %v1959
    %v1961 = vpop.f32.mrb[0].mxu0
    %v1962 = vadd.f32 0.0, %v1961
    %v1963 = vpop.f32.mrb[0].mxu0
    %v1964 = vpop.f32.mrb[0].mxu0
    %1965 = vdwg.mxu0
    %v1966 = vadd.f32 %v328, %v1878
    %v1967 = vadd.f32 %v330, %v1880
    %v1968 = vxor.u32 %v1966, 2147483648
    %v1969 = vxor.u32 %v1967, 2147483648
    %v1970 = vmul.f32 %v1968, 1.442695
    %v1971 = vpow.pop %v1970
    %v1972 = vmul.f32 %v1969, 1.442695
    %v1973 = vpow.pop %v1972
    %v1974 = vadd.f32 %v1971, 1.0
    %v1975 = vadd.f32 %v1973, 1.0
    %v1976 = vrcp.pop %v1974
    %v1977 = vmul.f32 1.0, %v1976
    %v1978 = vrcp.pop %v1975
    %v1979 = vmul.f32 1.0, %v1978
    %v1980 = vadd.f32 %v401, %v1919
    %v1981 = vadd.f32 %v403, %v1921
    %v1982 = vxor.u32 %v1980, 2147483648
    %v1983 = vxor.u32 %v1981, 2147483648
    %v1984 = vmul.f32 %v1982, 1.442695
    %v1985 = vpow.pop %v1984
    %v1986 = vmul.f32 %v1983, 1.442695
    %v1987 = vpow.pop %v1986
    %v1988 = vadd.f32 %v1985, 1.0
    %v1989 = vadd.f32 %v1987, 1.0
    %v1990 = vrcp.pop %v1988
    %v1991 = vmul.f32 1.0, %v1990
    %v1992 = vrcp.pop %v1989
    %v1993 = vmul.f32 1.0, %v1992
    %v1994 = vadd.f32 %v1960, %v513
    %v1995 = vadd.f32 %v1962, %v517
    %v1996 = vmul.f32 %v1977, %v1994
    %v1997 = vmul.f32 %v1979, %v1995
    %v1998 = vadd.f32 %v474, %v1996
    %v1999 = vadd.f32 %v476, %v1997
    %v2000 = vtanh.pop %v1998
    %v2001 = vtanh.pop %v1999
    %v2002 = vsub.f32 1.0, %v1991
    %v2003 = vsub.f32 1.0, %v1993
    %v2004 = vmul.f32 %v2002, %v2000
    %v2005 = vmul.f32 %v2003, %v2001
    %v2006 = vmul.f32 %v1991, %v1261
    %v2007 = vmul.f32 %v1993, %v1262
    %v2008 = vadd.f32 %v2004, %v2006
    %v2009 = vadd.f32 %v2005, %v2007
    %v2010 = vpack.c.bf16 %v2008, %v2008
    %v2011 = vpack.c.bf16 %v2009, %v2009
    %v2014 = vrot.slane %v2010, 4
    %v2015 = vrot.slane %v2011, 4
    %2018 = vst [vmem:[#allocation6] sm:$0xf0] %v2014
    %2019 = vst [vmem:[#allocation6 + $0x8] sm:$0xf0] %v2015
    %v2020 = vld [vmem:[#allocation8] sm:$0xff]
    %v2021 = vld [vmem:[#allocation8 + $0x8] sm:$0xff]
    %v2022 = vld [vmem:[#allocation8 + $0x10] sm:$0xff]
    %v2023 = vld [vmem:[#allocation8 + $0x18] sm:$0xff]
    %v2024 = vld [vmem:[#allocation8 + $0x20] sm:$0xff]
    %v2025 = vld [vmem:[#allocation8 + $0x28] sm:$0xff]
    %v2026 = vld [vmem:[#allocation8 + $0x30] sm:$0xff]
    %v2027 = vld [vmem:[#allocation8 + $0x38] sm:$0xff]
    %v2028 = vld [vmem:[#allocation8 + $0x40] sm:$0xff]
    %v2029 = vld [vmem:[#allocation8 + $0x48] sm:$0xff]
    %v2030 = vld [vmem:[#allocation8 + $0x50] sm:$0xff]
    %v2031 = vld [vmem:[#allocation8 + $0x58] sm:$0xff]
    %v2032 = vld [vmem:[#allocation8 + $0x60] sm:$0xff]
    %v2033 = vld [vmem:[#allocation8 + $0x68] sm:$0xff]
    %v2034 = vld [vmem:[#allocation8 + $0x70] sm:$0xff]
    %v2035 = vld [vmem:[#allocation8 + $0x78] sm:$0xff]
    %v2036 = vld [vmem:[#allocation8 + $0x80] sm:$0xff]
    %v2037 = vld [vmem:[#allocation8 + $0x88] sm:$0xff]
    %v2038 = vld [vmem:[#allocation8 + $0x90] sm:$0xff]
    %v2039 = vld [vmem:[#allocation8 + $0x98] sm:$0xff]
    %v2040 = vld [vmem:[#allocation8 + $0xa0] sm:$0xff]
    %v2041 = vld [vmem:[#allocation8 + $0xa8] sm:$0xff]
    %v2042 = vld [vmem:[#allocation8 + $0xb0] sm:$0xff]
    %v2043 = vld [vmem:[#allocation8 + $0xb8] sm:$0xff]
    %v2044 = vld [vmem:[#allocation8 + $0xc0] sm:$0xff]
    %v2045 = vld [vmem:[#allocation8 + $0xc8] sm:$0xff]
    %v2046 = vld [vmem:[#allocation8 + $0xd0] sm:$0xff]
    %v2047 = vld [vmem:[#allocation8 + $0xd8] sm:$0xff]
    %v2048 = vld [vmem:[#allocation8 + $0xe0] sm:$0xff]
    %v2049 = vld [vmem:[#allocation8 + $0xe8] sm:$0xff]
    %v2050 = vld [vmem:[#allocation8 + $0xf0] sm:$0xff]
    %v2051 = vld [vmem:[#allocation8 + $0xf8] sm:$0xff]
    %v2052 = vld [vmem:[#allocation8 + $0x100] sm:$0xff]
    %v2053 = vld [vmem:[#allocation8 + $0x108] sm:$0xff]
    %v2054 = vld [vmem:[#allocation8 + $0x110] sm:$0xff]
    %v2055 = vld [vmem:[#allocation8 + $0x118] sm:$0xff]
    %v2056 = vld [vmem:[#allocation8 + $0x120] sm:$0xff]
    %v2057 = vld [vmem:[#allocation8 + $0x128] sm:$0xff]
    %v2058 = vld [vmem:[#allocation8 + $0x130] sm:$0xff]
    %v2059 = vld [vmem:[#allocation8 + $0x138] sm:$0xff]
    %v2060 = vld [vmem:[#allocation8 + $0x140] sm:$0xff]
    %v2061 = vld [vmem:[#allocation8 + $0x148] sm:$0xff]
    %v2062 = vld [vmem:[#allocation8 + $0x150] sm:$0xff]
    %v2063 = vld [vmem:[#allocation8 + $0x158] sm:$0xff]
    %v2064 = vld [vmem:[#allocation8 + $0x160] sm:$0xff]
    %v2065 = vld [vmem:[#allocation8 + $0x168] sm:$0xff]
    %v2066 = vld [vmem:[#allocation8 + $0x170] sm:$0xff]
    %v2067 = vld [vmem:[#allocation8 + $0x178] sm:$0xff]
    %v2068 = vld [vmem:[#allocation8 + $0x180] sm:$0xff]
    %v2069 = vld [vmem:[#allocation8 + $0x188] sm:$0xff]
    %v2070 = vld [vmem:[#allocation8 + $0x190] sm:$0xff]
    %v2071 = vld [vmem:[#allocation8 + $0x198] sm:$0xff]
    %v2072 = vld [vmem:[#allocation8 + $0x1a0] sm:$0xff]
    %v2073 = vld [vmem:[#allocation8 + $0x1a8] sm:$0xff]
    %v2074 = vld [vmem:[#allocation8 + $0x1b0] sm:$0xff]
    %v2075 = vld [vmem:[#allocation8 + $0x1b8] sm:$0xff]
    %v2076 = vld [vmem:[#allocation8 + $0x1c0] sm:$0xff]
    %v2077 = vld [vmem:[#allocation8 + $0x1c8] sm:$0xff]
    %v2078 = vld [vmem:[#allocation8 + $0x1d0] sm:$0xff]
    %v2079 = vld [vmem:[#allocation8 + $0x1d8] sm:$0xff]
    %v2080 = vld [vmem:[#allocation8 + $0x1e0] sm:$0xff]
    %v2081 = vld [vmem:[#allocation8 + $0x1e8] sm:$0xff]
    %v2082 = vld [vmem:[#allocation8 + $0x1f0] sm:$0xff]
    %v2083 = vld [vmem:[#allocation8 + $0x1f8] sm:$0xff]
    %v2084 = vld [vmem:[#allocation8 + $0x200] sm:$0xff]
    %v2085 = vld [vmem:[#allocation8 + $0x208] sm:$0xff]
    %v2086 = vld [vmem:[#allocation8 + $0x210] sm:$0xff]
    %v2087 = vld [vmem:[#allocation8 + $0x218] sm:$0xff]
    %v2088 = vld [vmem:[#allocation8 + $0x220] sm:$0xff]
    %v2089 = vld [vmem:[#allocation8 + $0x228] sm:$0xff]
    %v2090 = vld [vmem:[#allocation8 + $0x230] sm:$0xff]
    %v2091 = vld [vmem:[#allocation8 + $0x238] sm:$0xff]
    %v2092 = vld [vmem:[#allocation8 + $0x240] sm:$0xff]
    %v2093 = vld [vmem:[#allocation8 + $0x248] sm:$0xff]
    %v2094 = vld [vmem:[#allocation8 + $0x250] sm:$0xff]
    %v2095 = vld [vmem:[#allocation8 + $0x258] sm:$0xff]
    %v2096 = vld [vmem:[#allocation8 + $0x260] sm:$0xff]
    %v2097 = vld [vmem:[#allocation8 + $0x268] sm:$0xff]
    %v2098 = vld [vmem:[#allocation8 + $0x270] sm:$0xff]
    %v2099 = vld [vmem:[#allocation8 + $0x278] sm:$0xff]
    %v2100 = vld [vmem:[#allocation8 + $0x280] sm:$0xff]
    %v2101 = vld [vmem:[#allocation8 + $0x288] sm:$0xff]
    %v2102 = vld [vmem:[#allocation8 + $0x290] sm:$0xff]
    %v2103 = vld [vmem:[#allocation8 + $0x298] sm:$0xff]
    %v2104 = vld [vmem:[#allocation8 + $0x2a0] sm:$0xff]
    %v2105 = vld [vmem:[#allocation8 + $0x2a8] sm:$0xff]
    %v2106 = vld [vmem:[#allocation8 + $0x2b0] sm:$0xff]
    %v2107 = vld [vmem:[#allocation8 + $0x2b8] sm:$0xff]
    %v2108 = vld [vmem:[#allocation8 + $0x2c0] sm:$0xff]
    %v2109 = vld [vmem:[#allocation8 + $0x2c8] sm:$0xff]
    %v2110 = vld [vmem:[#allocation8 + $0x2d0] sm:$0xff]
    %v2111 = vld [vmem:[#allocation8 + $0x2d8] sm:$0xff]
    %v2112 = vld [vmem:[#allocation8 + $0x2e0] sm:$0xff]
    %v2113 = vld [vmem:[#allocation8 + $0x2e8] sm:$0xff]
    %v2114 = vld [vmem:[#allocation8 + $0x2f0] sm:$0xff]
    %v2115 = vld [vmem:[#allocation8 + $0x2f8] sm:$0xff]
    %v2212 = vunpack.c.l.b16 %v2020
    %v2213 = vunpack.c.h.b16 %v2020
    %v2214 = vunpack.c.l.b16 %v2021
    %v2215 = vunpack.c.h.b16 %v2021
    %v2216 = vunpack.c.l.b16 %v2022
    %v2217 = vunpack.c.h.b16 %v2022
    %v2218 = vunpack.c.l.b16 %v2023
    %v2219 = vunpack.c.h.b16 %v2023
    %v2220 = vunpack.c.l.b16 %v2024
    %v2221 = vunpack.c.h.b16 %v2024
    %v2222 = vunpack.c.l.b16 %v2025
    %v2223 = vunpack.c.h.b16 %v2025
    %v2224 = vunpack.c.l.b16 %v2026
    %v2225 = vunpack.c.h.b16 %v2026
    %v2226 = vunpack.c.l.b16 %v2027
    %v2227 = vunpack.c.h.b16 %v2027
    %v2228 = vunpack.c.l.b16 %v2028
    %v2229 = vunpack.c.h.b16 %v2028
    %v2230 = vunpack.c.l.b16 %v2029
    %v2231 = vunpack.c.h.b16 %v2029
    %v2232 = vunpack.c.l.b16 %v2030
    %v2233 = vunpack.c.h.b16 %v2030
    %v2234 = vunpack.c.l.b16 %v2031
    %v2235 = vunpack.c.h.b16 %v2031
    %v2236 = vunpack.c.l.b16 %v2032
    %v2237 = vunpack.c.h.b16 %v2032
    %v2238 = vunpack.c.l.b16 %v2033
    %v2239 = vunpack.c.h.b16 %v2033
    %v2240 = vunpack.c.l.b16 %v2034
    %v2241 = vunpack.c.h.b16 %v2034
    %v2242 = vunpack.c.l.b16 %v2035
    %v2243 = vunpack.c.h.b16 %v2035
    %v2244 = vunpack.c.l.b16 %v2036
    %v2245 = vunpack.c.h.b16 %v2036
    %v2246 = vunpack.c.l.b16 %v2037
    %v2247 = vunpack.c.h.b16 %v2037
    %v2248 = vunpack.c.l.b16 %v2038
    %v2249 = vunpack.c.h.b16 %v2038
    %v2250 = vunpack.c.l.b16 %v2039
    %v2251 = vunpack.c.h.b16 %v2039
    %v2252 = vunpack.c.l.b16 %v2040
    %v2253 = vunpack.c.h.b16 %v2040
    %v2254 = vunpack.c.l.b16 %v2041
    %v2255 = vunpack.c.h.b16 %v2041
    %v2256 = vunpack.c.l.b16 %v2042
    %v2257 = vunpack.c.h.b16 %v2042
    %v2258 = vunpack.c.l.b16 %v2043
    %v2259 = vunpack.c.h.b16 %v2043
    %v2260 = vunpack.c.l.b16 %v2044
    %v2261 = vunpack.c.h.b16 %v2044
    %v2262 = vunpack.c.l.b16 %v2045
    %v2263 = vunpack.c.h.b16 %v2045
    %v2264 = vunpack.c.l.b16 %v2046
    %v2265 = vunpack.c.h.b16 %v2046
    %v2266 = vunpack.c.l.b16 %v2047
    %v2267 = vunpack.c.h.b16 %v2047
    %v2268 = vunpack.c.l.b16 %v2048
    %v2269 = vunpack.c.h.b16 %v2048
    %v2270 = vunpack.c.l.b16 %v2049
    %v2271 = vunpack.c.h.b16 %v2049
    %v2272 = vunpack.c.l.b16 %v2050
    %v2273 = vunpack.c.h.b16 %v2050
    %v2274 = vunpack.c.l.b16 %v2051
    %v2275 = vunpack.c.h.b16 %v2051
    %v2276 = vunpack.c.l.b16 %v2052
    %v2277 = vunpack.c.h.b16 %v2052
    %v2278 = vunpack.c.l.b16 %v2053
    %v2279 = vunpack.c.h.b16 %v2053
    %v2280 = vunpack.c.l.b16 %v2054
    %v2281 = vunpack.c.h.b16 %v2054
    %v2282 = vunpack.c.l.b16 %v2055
    %v2283 = vunpack.c.h.b16 %v2055
    %v2284 = vunpack.c.l.b16 %v2056
    %v2285 = vunpack.c.h.b16 %v2056
    %v2286 = vunpack.c.l.b16 %v2057
    %v2287 = vunpack.c.h.b16 %v2057
    %v2288 = vunpack.c.l.b16 %v2058
    %v2289 = vunpack.c.h.b16 %v2058
    %v2290 = vunpack.c.l.b16 %v2059
    %v2291 = vunpack.c.h.b16 %v2059
    %v2292 = vunpack.c.l.b16 %v2060
    %v2293 = vunpack.c.h.b16 %v2060
    %v2294 = vunpack.c.l.b16 %v2061
    %v2295 = vunpack.c.h.b16 %v2061
    %v2296 = vunpack.c.l.b16 %v2062
    %v2297 = vunpack.c.h.b16 %v2062
    %v2298 = vunpack.c.l.b16 %v2063
    %v2299 = vunpack.c.h.b16 %v2063
    %v2300 = vunpack.c.l.b16 %v2064
    %v2301 = vunpack.c.h.b16 %v2064
    %v2302 = vunpack.c.l.b16 %v2065
    %v2303 = vunpack.c.h.b16 %v2065
    %v2304 = vunpack.c.l.b16 %v2066
    %v2305 = vunpack.c.h.b16 %v2066
    %v2306 = vunpack.c.l.b16 %v2067
    %v2307 = vunpack.c.h.b16 %v2067
    %v2308 = vunpack.c.l.b16 %v2068
    %v2309 = vunpack.c.h.b16 %v2068
    %v2310 = vunpack.c.l.b16 %v2069
    %v2311 = vunpack.c.h.b16 %v2069
    %v2312 = vunpack.c.l.b16 %v2070
    %v2313 = vunpack.c.h.b16 %v2070
    %v2314 = vunpack.c.l.b16 %v2071
    %v2315 = vunpack.c.h.b16 %v2071
    %v2316 = vunpack.c.l.b16 %v2072
    %v2317 = vunpack.c.h.b16 %v2072
    %v2318 = vunpack.c.l.b16 %v2073
    %v2319 = vunpack.c.h.b16 %v2073
    %v2320 = vunpack.c.l.b16 %v2074
    %v2321 = vunpack.c.h.b16 %v2074
    %v2322 = vunpack.c.l.b16 %v2075
    %v2323 = vunpack.c.h.b16 %v2075
    %v2324 = vunpack.c.l.b16 %v2076
    %v2325 = vunpack.c.h.b16 %v2076
    %v2326 = vunpack.c.l.b16 %v2077
    %v2327 = vunpack.c.h.b16 %v2077
    %v2328 = vunpack.c.l.b16 %v2078
    %v2329 = vunpack.c.h.b16 %v2078
    %v2330 = vunpack.c.l.b16 %v2079
    %v2331 = vunpack.c.h.b16 %v2079
    %v2332 = vunpack.c.l.b16 %v2080
    %v2333 = vunpack.c.h.b16 %v2080
    %v2334 = vunpack.c.l.b16 %v2081
    %v2335 = vunpack.c.h.b16 %v2081
    %v2336 = vunpack.c.l.b16 %v2082
    %v2337 = vunpack.c.h.b16 %v2082
    %v2338 = vunpack.c.l.b16 %v2083
    %v2339 = vunpack.c.h.b16 %v2083
    %v2340 = vunpack.c.l.b16 %v2084
    %v2341 = vunpack.c.h.b16 %v2084
    %v2342 = vunpack.c.l.b16 %v2085
    %v2343 = vunpack.c.h.b16 %v2085
    %v2344 = vunpack.c.l.b16 %v2086
    %v2345 = vunpack.c.h.b16 %v2086
    %v2346 = vunpack.c.l.b16 %v2087
    %v2347 = vunpack.c.h.b16 %v2087
    %v2348 = vunpack.c.l.b16 %v2088
    %v2349 = vunpack.c.h.b16 %v2088
    %v2350 = vunpack.c.l.b16 %v2089
    %v2351 = vunpack.c.h.b16 %v2089
    %v2352 = vunpack.c.l.b16 %v2090
    %v2353 = vunpack.c.h.b16 %v2090
    %v2354 = vunpack.c.l.b16 %v2091
    %v2355 = vunpack.c.h.b16 %v2091
    %v2356 = vunpack.c.l.b16 %v2092
    %v2357 = vunpack.c.h.b16 %v2092
    %v2358 = vunpack.c.l.b16 %v2093
    %v2359 = vunpack.c.h.b16 %v2093
    %v2360 = vunpack.c.l.b16 %v2094
    %v2361 = vunpack.c.h.b16 %v2094
    %v2362 = vunpack.c.l.b16 %v2095
    %v2363 = vunpack.c.h.b16 %v2095
    %v2364 = vunpack.c.l.b16 %v2096
    %v2365 = vunpack.c.h.b16 %v2096
    %v2366 = vunpack.c.l.b16 %v2097
    %v2367 = vunpack.c.h.b16 %v2097
    %v2368 = vunpack.c.l.b16 %v2098
    %v2369 = vunpack.c.h.b16 %v2098
    %v2370 = vunpack.c.l.b16 %v2099
    %v2371 = vunpack.c.h.b16 %v2099
    %v2372 = vunpack.c.l.b16 %v2100
    %v2373 = vunpack.c.h.b16 %v2100
    %v2374 = vunpack.c.l.b16 %v2101
    %v2375 = vunpack.c.h.b16 %v2101
    %v2376 = vunpack.c.l.b16 %v2102
    %v2377 = vunpack.c.h.b16 %v2102
    %v2378 = vunpack.c.l.b16 %v2103
    %v2379 = vunpack.c.h.b16 %v2103
    %v2380 = vunpack.c.l.b16 %v2104
    %v2381 = vunpack.c.h.b16 %v2104
    %v2382 = vunpack.c.l.b16 %v2105
    %v2383 = vunpack.c.h.b16 %v2105
    %v2384 = vunpack.c.l.b16 %v2106
    %v2385 = vunpack.c.h.b16 %v2106
    %v2386 = vunpack.c.l.b16 %v2107
    %v2387 = vunpack.c.h.b16 %v2107
    %v2388 = vunpack.c.l.b16 %v2108
    %v2389 = vunpack.c.h.b16 %v2108
    %v2390 = vunpack.c.l.b16 %v2109
    %v2391 = vunpack.c.h.b16 %v2109
    %v2392 = vunpack.c.l.b16 %v2110
    %v2393 = vunpack.c.h.b16 %v2110
    %v2394 = vunpack.c.l.b16 %v2111
    %v2395 = vunpack.c.h.b16 %v2111
    %v2396 = vunpack.c.l.b16 %v2112
    %v2397 = vunpack.c.h.b16 %v2112
    %v2398 = vunpack.c.l.b16 %v2113
    %v2399 = vunpack.c.h.b16 %v2113
    %v2400 = vunpack.c.l.b16 %v2114
    %v2401 = vunpack.c.h.b16 %v2114
    %v2402 = vunpack.c.l.b16 %v2115
    %v2403 = vunpack.c.h.b16 %v2115
    %v2404 = vpack.c.b16 %v2218, %v2212
    %v2405 = vpack.c.b16 %v2219, %v2213
    %v2406 = vpack.c.b16 %v2220, %v2214
    %v2407 = vpack.c.b16 %v2221, %v2215
    %v2408 = vpack.c.b16 %v2222, %v2216
    %v2409 = vpack.c.b16 %v2223, %v2217
    %v2410 = vpack.c.b16 %v2230, %v2224
    %v2411 = vpack.c.b16 %v2231, %v2225
    %v2412 = vpack.c.b16 %v2232, %v2226
    %v2413 = vpack.c.b16 %v2233, %v2227
    %v2414 = vpack.c.b16 %v2234, %v2228
    %v2415 = vpack.c.b16 %v2235, %v2229
    %v2416 = vpack.c.b16 %v2242, %v2236
    %v2417 = vpack.c.b16 %v2243, %v2237
    %v2418 = vpack.c.b16 %v2244, %v2238
    %v2419 = vpack.c.b16 %v2245, %v2239
    %v2420 = vpack.c.b16 %v2246, %v2240
    %v2421 = vpack.c.b16 %v2247, %v2241
    %v2422 = vpack.c.b16 %v2254, %v2248
    %v2423 = vpack.c.b16 %v2255, %v2249
    %v2424 = vpack.c.b16 %v2256, %v2250
    %v2425 = vpack.c.b16 %v2257, %v2251
    %v2426 = vpack.c.b16 %v2258, %v2252
    %v2427 = vpack.c.b16 %v2259, %v2253
    %v2428 = vpack.c.b16 %v2266, %v2260
    %v2429 = vpack.c.b16 %v2267, %v2261
    %v2430 = vpack.c.b16 %v2268, %v2262
    %v2431 = vpack.c.b16 %v2269, %v2263
    %v2432 = vpack.c.b16 %v2270, %v2264
    %v2433 = vpack.c.b16 %v2271, %v2265
    %v2434 = vpack.c.b16 %v2278, %v2272
    %v2435 = vpack.c.b16 %v2279, %v2273
    %v2436 = vpack.c.b16 %v2280, %v2274
    %v2437 = vpack.c.b16 %v2281, %v2275
    %v2438 = vpack.c.b16 %v2282, %v2276
    %v2439 = vpack.c.b16 %v2283, %v2277
    %v2440 = vpack.c.b16 %v2290, %v2284
    %v2441 = vpack.c.b16 %v2291, %v2285
    %v2442 = vpack.c.b16 %v2292, %v2286
    %v2443 = vpack.c.b16 %v2293, %v2287
    %v2444 = vpack.c.b16 %v2294, %v2288
    %v2445 = vpack.c.b16 %v2295, %v2289
    %v2446 = vpack.c.b16 %v2302, %v2296
    %v2447 = vpack.c.b16 %v2303, %v2297
    %v2448 = vpack.c.b16 %v2304, %v2298
    %v2449 = vpack.c.b16 %v2305, %v2299
    %v2450 = vpack.c.b16 %v2306, %v2300
    %v2451 = vpack.c.b16 %v2307, %v2301
    %v2452 = vpack.c.b16 %v2314, %v2308
    %v2453 = vpack.c.b16 %v2315, %v2309
    %v2454 = vpack.c.b16 %v2316, %v2310
    %v2455 = vpack.c.b16 %v2317, %v2311
    %v2456 = vpack.c.b16 %v2318, %v2312
    %v2457 = vpack.c.b16 %v2319, %v2313
    %v2458 = vpack.c.b16 %v2326, %v2320
    %v2459 = vpack.c.b16 %v2327, %v2321
    %v2460 = vpack.c.b16 %v2328, %v2322
    %v2461 = vpack.c.b16 %v2329, %v2323
    %v2462 = vpack.c.b16 %v2330, %v2324
    %v2463 = vpack.c.b16 %v2331, %v2325
    %v2464 = vpack.c.b16 %v2338, %v2332
    %v2465 = vpack.c.b16 %v2339, %v2333
    %v2466 = vpack.c.b16 %v2340, %v2334
    %v2467 = vpack.c.b16 %v2341, %v2335
    %v2468 = vpack.c.b16 %v2342, %v2336
    %v2469 = vpack.c.b16 %v2343, %v2337
    %v2470 = vpack.c.b16 %v2350, %v2344
    %v2471 = vpack.c.b16 %v2351, %v2345
    %v2472 = vpack.c.b16 %v2352, %v2346
    %v2473 = vpack.c.b16 %v2353, %v2347
    %v2474 = vpack.c.b16 %v2354, %v2348
    %v2475 = vpack.c.b16 %v2355, %v2349
    %v2476 = vpack.c.b16 %v2362, %v2356
    %v2477 = vpack.c.b16 %v2363, %v2357
    %v2478 = vpack.c.b16 %v2364, %v2358
    %v2479 = vpack.c.b16 %v2365, %v2359
    %v2480 = vpack.c.b16 %v2366, %v2360
    %v2481 = vpack.c.b16 %v2367, %v2361
    %v2482 = vpack.c.b16 %v2374, %v2368
    %v2483 = vpack.c.b16 %v2375, %v2369
    %v2484 = vpack.c.b16 %v2376, %v2370
    %v2485 = vpack.c.b16 %v2377, %v2371
    %v2486 = vpack.c.b16 %v2378, %v2372
    %v2487 = vpack.c.b16 %v2379, %v2373
    %v2488 = vpack.c.b16 %v2386, %v2380
    %v2489 = vpack.c.b16 %v2387, %v2381
    %v2490 = vpack.c.b16 %v2388, %v2382
    %v2491 = vpack.c.b16 %v2389, %v2383
    %v2492 = vpack.c.b16 %v2390, %v2384
    %v2493 = vpack.c.b16 %v2391, %v2385
    %v2494 = vpack.c.b16 %v2398, %v2392
    %v2495 = vpack.c.b16 %v2399, %v2393
    %v2496 = vpack.c.b16 %v2400, %v2394
    %v2497 = vpack.c.b16 %v2401, %v2395
    %v2498 = vpack.c.b16 %v2402, %v2396
    %v2499 = vpack.c.b16 %v2403, %v2397
    %2596 = vmatprep.subr.bf16.mxu0 %v2405
    %2597 = vmatpush1.bf16.msra.mxu0 %v2404
    %2598 = vmatprep.subr.bf16.mxu0 %v2411
    %2599 = vmatpush1.bf16.msra.mxu0 %v2410
    %2600 = vmatprep.subr.bf16.mxu0 %v2417
    %2601 = vmatpush1.bf16.msra.mxu0 %v2416
    %2602 = vmatprep.subr.bf16.mxu0 %v2423
    %2603 = vmatpush1.bf16.msra.mxu0 %v2422
    %2604 = vmatprep.subr.bf16.mxu0 %v2429
    %2605 = vmatpush1.bf16.msra.mxu0 %v2428
    %2606 = vmatprep.subr.bf16.mxu0 %v2435
    %2607 = vmatpush1.bf16.msra.mxu0 %v2434
    %2608 = vmatprep.subr.bf16.mxu0 %v2441
    %2609 = vmatpush1.bf16.msra.mxu0 %v2440
    %2610 = vmatprep.subr.bf16.mxu0 %v2447
    %2611 = vmatpush1.bf16.msra.mxu0 %v2446
    %2612 = vmatprep.subr.bf16.mxu0 %v2453
    %2613 = vmatpush1.bf16.msra.mxu0 %v2452
    %2614 = vmatprep.subr.bf16.mxu0 %v2459
    %2615 = vmatpush1.bf16.msra.mxu0 %v2458
    %2616 = vmatprep.subr.bf16.mxu0 %v2465
    %2617 = vmatpush1.bf16.msra.mxu0 %v2464
    %2618 = vmatprep.subr.bf16.mxu0 %v2471
    %2619 = vmatpush1.bf16.msra.mxu0 %v2470
    %2620 = vmatprep.subr.bf16.mxu0 %v2477
    %2621 = vmatpush1.bf16.msra.mxu0 %v2476
    %2622 = vmatprep.subr.bf16.mxu0 %v2483
    %2623 = vmatpush1.bf16.msra.mxu0 %v2482
    %2624 = vmatprep.subr.bf16.mxu0 %v2489
    %2625 = vmatpush1.bf16.msra.mxu0 %v2488
    %2626 = vmatprep.subr.bf16.mxu0 %v2495
    %2627 = vmatpush1.bf16.msra.mxu0 %v2494
    %2628 = vmatprep.mubr.bf16.mxu0 %v2011
    %2629 = vmatmul.mubr.bf16.gmra.mrb[0].mxu0 %v2010
    %v2630 = vpop.f32.mrb[0].mxu0
    %v2631 = vadd.f32 0.0, %v2630
    %v2632 = vpop.f32.mrb[0].mxu0
    %v2633 = vadd.f32 0.0, %v2632
    %v2634 = vpop.f32.mrb[0].mxu0
    %v2635 = vpop.f32.mrb[0].mxu0
    %2636 = vdwg.mxu0
    %2637 = vmatprep.subr.bf16.mxu0 %v2407
    %2638 = vmatpush1.bf16.msra.mxu0 %v2406
    %2639 = vmatprep.subr.bf16.mxu0 %v2413
    %2640 = vmatpush1.bf16.msra.mxu0 %v2412
    %2641 = vmatprep.subr.bf16.mxu0 %v2419
    %2642 = vmatpush1.bf16.msra.mxu0 %v2418
    %2643 = vmatprep.subr.bf16.mxu0 %v2425
    %2644 = vmatpush1.bf16.msra.mxu0 %v2424
    %2645 = vmatprep.subr.bf16.mxu0 %v2431
    %2646 = vmatpush1.bf16.msra.mxu0 %v2430
    %2647 = vmatprep.subr.bf16.mxu0 %v2437
    %2648 = vmatpush1.bf16.msra.mxu0 %v2436
    %2649 = vmatprep.subr.bf16.mxu0 %v2443
    %2650 = vmatpush1.bf16.msra.mxu0 %v2442
    %2651 = vmatprep.subr.bf16.mxu0 %v2449
    %2652 = vmatpush1.bf16.msra.mxu0 %v2448
    %2653 = vmatprep.subr.bf16.mxu0 %v2455
    %2654 = vmatpush1.bf16.msra.mxu0 %v2454
    %2655 = vmatprep.subr.bf16.mxu0 %v2461
    %2656 = vmatpush1.bf16.msra.mxu0 %v2460
    %2657 = vmatprep.subr.bf16.mxu0 %v2467
    %2658 = vmatpush1.bf16.msra.mxu0 %v2466
    %2659 = vmatprep.subr.bf16.mxu0 %v2473
    %2660 = vmatpush1.bf16.msra.mxu0 %v2472
    %2661 = vmatprep.subr.bf16.mxu0 %v2479
    %2662 = vmatpush1.bf16.msra.mxu0 %v2478
    %2663 = vmatprep.subr.bf16.mxu0 %v2485
    %2664 = vmatpush1.bf16.msra.mxu0 %v2484
    %2665 = vmatprep.subr.bf16.mxu0 %v2491
    %2666 = vmatpush1.bf16.msra.mxu0 %v2490
    %2667 = vmatprep.subr.bf16.mxu0 %v2497
    %2668 = vmatpush1.bf16.msra.mxu0 %v2496
    %2669 = vmatprep.mubr.bf16.mxu0 %v2011
    %2670 = vmatmul.mubr.bf16.gmra.mrb[0].mxu0 %v2010
    %v2671 = vpop.f32.mrb[0].mxu0
    %v2672 = vadd.f32 0.0, %v2671
    %v2673 = vpop.f32.mrb[0].mxu0
    %v2674 = vadd.f32 0.0, %v2673
    %v2675 = vpop.f32.mrb[0].mxu0
    %v2676 = vpop.f32.mrb[0].mxu0
    %2677 = vdwg.mxu0
    %2678 = vmatprep.subr.bf16.mxu0 %v2409
    %2679 = vmatpush1.bf16.msra.mxu0 %v2408
    %2680 = vmatprep.subr.bf16.mxu0 %v2415
    %2681 = vmatpush1.bf16.msra.mxu0 %v2414
    %2682 = vmatprep.subr.bf16.mxu0 %v2421
    %2683 = vmatpush1.bf16.msra.mxu0 %v2420
    %2684 = vmatprep.subr.bf16.mxu0 %v2427
    %2685 = vmatpush1.bf16.msra.mxu0 %v2426
    %2686 = vmatprep.subr.bf16.mxu0 %v2433
    %2687 = vmatpush1.bf16.msra.mxu0 %v2432
    %2688 = vmatprep.subr.bf16.mxu0 %v2439
    %2689 = vmatpush1.bf16.msra.mxu0 %v2438
    %2690 = vmatprep.subr.bf16.mxu0 %v2445
    %2691 = vmatpush1.bf16.msra.mxu0 %v2444
    %2692 = vmatprep.subr.bf16.mxu0 %v2451
    %2693 = vmatpush1.bf16.msra.mxu0 %v2450
    %2694 = vmatprep.subr.bf16.mxu0 %v2457
    %2695 = vmatpush1.bf16.msra.mxu0 %v2456
    %2696 = vmatprep.subr.bf16.mxu0 %v2463
    %2697 = vmatpush1.bf16.msra.mxu0 %v2462
    %2698 = vmatprep.subr.bf16.mxu0 %v2469
    %2699 = vmatpush1.bf16.msra.mxu0 %v2468
    %2700 = vmatprep.subr.bf16.mxu0 %v2475
    %2701 = vmatpush1.bf16.msra.mxu0 %v2474
    %2702 = vmatprep.subr.bf16.mxu0 %v2481
    %2703 = vmatpush1.bf16.msra.mxu0 %v2480
    %2704 = vmatprep.subr.bf16.mxu0 %v2487
    %2705 = vmatpush1.bf16.msra.mxu0 %v2486
    %2706 = vmatprep.subr.bf16.mxu0 %v2493
    %2707 = vmatpush1.bf16.msra.mxu0 %v2492
    %2708 = vmatprep.subr.bf16.mxu0 %v2499
    %2709 = vmatpush1.bf16.msra.mxu0 %v2498
    %2710 = vmatprep.mubr.bf16.mxu0 %v2011
    %2711 = vmatmul.mubr.bf16.gmra.mrb[0].mxu0 %v2010
    %v2712 = vpop.f32.mrb[0].mxu0
    %v2713 = vadd.f32 0.0, %v2712
    %v2714 = vpop.f32.mrb[0].mxu0
    %v2715 = vadd.f32 0.0, %v2714
    %v2716 = vpop.f32.mrb[0].mxu0
    %v2717 = vpop.f32.mrb[0].mxu0
    %2718 = vdwg.mxu0
    %v2719 = vadd.f32 %v334, %v2631
    %v2720 = vadd.f32 %v336, %v2633
    %v2721 = vxor.u32 %v2719, 2147483648
    %v2722 = vxor.u32 %v2720, 2147483648
    %v2723 = vmul.f32 %v2721, 1.442695
    %v2724 = vpow.pop %v2723
    %v2725 = vmul.f32 %v2722, 1.442695
    %v2726 = vpow.pop %v2725
    %v2727 = vadd.f32 %v2724, 1.0
    %v2728 = vadd.f32 %v2726, 1.0
    %v2729 = vrcp.pop %v2727
    %v2730 = vmul.f32 1.0, %v2729
    %v2731 = vrcp.pop %v2728
    %v2732 = vmul.f32 1.0, %v2731
    %v2733 = vadd.f32 %v407, %v2672
    %v2734 = vadd.f32 %v409, %v2674
    %v2735 = vxor.u32 %v2733, 2147483648
    %v2736 = vxor.u32 %v2734, 2147483648
    %v2737 = vmul.f32 %v2735, 1.442695
    %v2738 = vpow.pop %v2737
    %v2739 = vmul.f32 %v2736, 1.442695
    %v2740 = vpow.pop %v2739
    %v2741 = vadd.f32 %v2738, 1.0
    %v2742 = vadd.f32 %v2740, 1.0
    %v2743 = vrcp.pop %v2741
    %v2744 = vmul.f32 1.0, %v2743
    %v2745 = vrcp.pop %v2742
    %v2746 = vmul.f32 1.0, %v2745
    %v2747 = vadd.f32 %v2713, %v513
    %v2748 = vadd.f32 %v2715, %v517
    %v2749 = vmul.f32 %v2730, %v2747
    %v2750 = vmul.f32 %v2732, %v2748
    %v2751 = vadd.f32 %v480, %v2749
    %v2752 = vadd.f32 %v482, %v2750
    %v2753 = vtanh.pop %v2751
    %v2754 = vtanh.pop %v2752
    %v2755 = vsub.f32 1.0, %v2744
    %v2756 = vsub.f32 1.0, %v2746
    %v2757 = vmul.f32 %v2755, %v2753
    %v2758 = vmul.f32 %v2756, %v2754
    %v2759 = vmul.f32 %v2744, %v2008
    %v2760 = vmul.f32 %v2746, %v2009
    %v2761 = vadd.f32 %v2757, %v2759
    %v2762 = vadd.f32 %v2758, %v2760
    %v2763 = vpack.c.bf16 %v2761, %v2761
    %v2764 = vpack.c.bf16 %v2762, %v2762
    %2765 = vst [vmem:[#allocation6 + $0x10] sm:$0xf] %v2763
    %2766 = vst [vmem:[#allocation6 + $0x18] sm:$0xf] %v2764
    %v2767 = vld [vmem:[#allocation8] sm:$0xff]
    %v2768 = vld [vmem:[#allocation8 + $0x8] sm:$0xff]
    %v2769 = vld [vmem:[#allocation8 + $0x10] sm:$0xff]
    %v2770 = vld [vmem:[#allocation8 + $0x18] sm:$0xff]
    %v2771 = vld [vmem:[#allocation8 + $0x20] sm:$0xff]
    %v2772 = vld [vmem:[#allocation8 + $0x28] sm:$0xff]
    %v2773 = vld [vmem:[#allocation8 + $0x30] sm:$0xff]
    %v2774 = vld [vmem:[#allocation8 + $0x38] sm:$0xff]
    %v2775 = vld [vmem:[#allocation8 + $0x40] sm:$0xff]
    %v2776 = vld [vmem:[#allocation8 + $0x48] sm:$0xff]
    %v2777 = vld [vmem:[#allocation8 + $0x50] sm:$0xff]
    %v2778 = vld [vmem:[#allocation8 + $0x58] sm:$0xff]
    %v2779 = vld [vmem:[#allocation8 + $0x60] sm:$0xff]
    %v2780 = vld [vmem:[#allocation8 + $0x68] sm:$0xff]
    %v2781 = vld [vmem:[#allocation8 + $0x70] sm:$0xff]
    %v2782 = vld [vmem:[#allocation8 + $0x78] sm:$0xff]
    %v2783 = vld [vmem:[#allocation8 + $0x80] sm:$0xff]
    %v2784 = vld [vmem:[#allocation8 + $0x88] sm:$0xff]
    %v2785 = vld [vmem:[#allocation8 + $0x90] sm:$0xff]
    %v2786 = vld [vmem:[#allocation8 + $0x98] sm:$0xff]
    %v2787 = vld [vmem:[#allocation8 + $0xa0] sm:$0xff]
    %v2788 = vld [vmem:[#allocation8 + $0xa8] sm:$0xff]
    %v2789 = vld [vmem:[#allocation8 + $0xb0] sm:$0xff]
    %v2790 = vld [vmem:[#allocation8 + $0xb8] sm:$0xff]
    %v2791 = vld [vmem:[#allocation8 + $0xc0] sm:$0xff]
    %v2792 = vld [vmem:[#allocation8 + $0xc8] sm:$0xff]
    %v2793 = vld [vmem:[#allocation8 + $0xd0] sm:$0xff]
    %v2794 = vld [vmem:[#allocation8 + $0xd8] sm:$0xff]
    %v2795 = vld [vmem:[#allocation8 + $0xe0] sm:$0xff]
    %v2796 = vld [vmem:[#allocation8 + $0xe8] sm:$0xff]
    %v2797 = vld [vmem:[#allocation8 + $0xf0] sm:$0xff]
    %v2798 = vld [vmem:[#allocation8 + $0xf8] sm:$0xff]
    %v2799 = vld [vmem:[#allocation8 + $0x100] sm:$0xff]
    %v2800 = vld [vmem:[#allocation8 + $0x108] sm:$0xff]
    %v2801 = vld [vmem:[#allocation8 + $0x110] sm:$0xff]
    %v2802 = vld [vmem:[#allocation8 + $0x118] sm:$0xff]
    %v2803 = vld [vmem:[#allocation8 + $0x120] sm:$0xff]
    %v2804 = vld [vmem:[#allocation8 + $0x128] sm:$0xff]
    %v2805 = vld [vmem:[#allocation8 + $0x130] sm:$0xff]
    %v2806 = vld [vmem:[#allocation8 + $0x138] sm:$0xff]
    %v2807 = vld [vmem:[#allocation8 + $0x140] sm:$0xff]
    %v2808 = vld [vmem:[#allocation8 + $0x148] sm:$0xff]
    %v2809 = vld [vmem:[#allocation8 + $0x150] sm:$0xff]
    %v2810 = vld [vmem:[#allocation8 + $0x158] sm:$0xff]
    %v2811 = vld [vmem:[#allocation8 + $0x160] sm:$0xff]
    %v2812 = vld [vmem:[#allocation8 + $0x168] sm:$0xff]
    %v2813 = vld [vmem:[#allocation8 + $0x170] sm:$0xff]
    %v2814 = vld [vmem:[#allocation8 + $0x178] sm:$0xff]
    %v2815 = vld [vmem:[#allocation8 + $0x180] sm:$0xff]
    %v2816 = vld [vmem:[#allocation8 + $0x188] sm:$0xff]
    %v2817 = vld [vmem:[#allocation8 + $0x190] sm:$0xff]
    %v2818 = vld [vmem:[#allocation8 + $0x198] sm:$0xff]
    %v2819 = vld [vmem:[#allocation8 + $0x1a0] sm:$0xff]
    %v2820 = vld [vmem:[#allocation8 + $0x1a8] sm:$0xff]
    %v2821 = vld [vmem:[#allocation8 + $0x1b0] sm:$0xff]
    %v2822 = vld [vmem:[#allocation8 + $0x1b8] sm:$0xff]
    %v2823 = vld [vmem:[#allocation8 + $0x1c0] sm:$0xff]
    %v2824 = vld [vmem:[#allocation8 + $0x1c8] sm:$0xff]
    %v2825 = vld [vmem:[#allocation8 + $0x1d0] sm:$0xff]
    %v2826 = vld [vmem:[#allocation8 + $0x1d8] sm:$0xff]
    %v2827 = vld [vmem:[#allocation8 + $0x1e0] sm:$0xff]
    %v2828 = vld [vmem:[#allocation8 + $0x1e8] sm:$0xff]
    %v2829 = vld [vmem:[#allocation8 + $0x1f0] sm:$0xff]
    %v2830 = vld [vmem:[#allocation8 + $0x1f8] sm:$0xff]
    %v2831 = vld [vmem:[#allocation8 + $0x200] sm:$0xff]
    %v2832 = vld [vmem:[#allocation8 + $0x208] sm:$0xff]
    %v2833 = vld [vmem:[#allocation8 + $0x210] sm:$0xff]
    %v2834 = vld [vmem:[#allocation8 + $0x218] sm:$0xff]
    %v2835 = vld [vmem:[#allocation8 + $0x220] sm:$0xff]
    %v2836 = vld [vmem:[#allocation8 + $0x228] sm:$0xff]
    %v2837 = vld [vmem:[#allocation8 + $0x230] sm:$0xff]
    %v2838 = vld [vmem:[#allocation8 + $0x238] sm:$0xff]
    %v2839 = vld [vmem:[#allocation8 + $0x240] sm:$0xff]
    %v2840 = vld [vmem:[#allocation8 + $0x248] sm:$0xff]
    %v2841 = vld [vmem:[#allocation8 + $0x250] sm:$0xff]
    %v2842 = vld [vmem:[#allocation8 + $0x258] sm:$0xff]
    %v2843 = vld [vmem:[#allocation8 + $0x260] sm:$0xff]
    %v2844 = vld [vmem:[#allocation8 + $0x268] sm:$0xff]
    %v2845 = vld [vmem:[#allocation8 + $0x270] sm:$0xff]
    %v2846 = vld [vmem:[#allocation8 + $0x278] sm:$0xff]
    %v2847 = vld [vmem:[#allocation8 + $0x280] sm:$0xff]
    %v2848 = vld [vmem:[#allocation8 + $0x288] sm:$0xff]
    %v2849 = vld [vmem:[#allocation8 + $0x290] sm:$0xff]
    %v2850 = vld [vmem:[#allocation8 + $0x298] sm:$0xff]
    %v2851 = vld [vmem:[#allocation8 + $0x2a0] sm:$0xff]
    %v2852 = vld [vmem:[#allocation8 + $0x2a8] sm:$0xff]
    %v2853 = vld [vmem:[#allocation8 + $0x2b0] sm:$0xff]
    %v2854 = vld [vmem:[#allocation8 + $0x2b8] sm:$0xff]
    %v2855 = vld [vmem:[#allocation8 + $0x2c0] sm:$0xff]
    %v2856 = vld [vmem:[#allocation8 + $0x2c8] sm:$0xff]
    %v2857 = vld [vmem:[#allocation8 + $0x2d0] sm:$0xff]
    %v2858 = vld [vmem:[#allocation8 + $0x2d8] sm:$0xff]
    %v2859 = vld [vmem:[#allocation8 + $0x2e0] sm:$0xff]
    %v2860 = vld [vmem:[#allocation8 + $0x2e8] sm:$0xff]
    %v2861 = vld [vmem:[#allocation8 + $0x2f0] sm:$0xff]
    %v2862 = vld [vmem:[#allocation8 + $0x2f8] sm:$0xff]
    %v2959 = vunpack.c.l.b16 %v2767
    %v2960 = vunpack.c.h.b16 %v2767
    %v2961 = vunpack.c.l.b16 %v2768
    %v2962 = vunpack.c.h.b16 %v2768
    %v2963 = vunpack.c.l.b16 %v2769
    %v2964 = vunpack.c.h.b16 %v2769
    %v2965 = vunpack.c.l.b16 %v2770
    %v2966 = vunpack.c.h.b16 %v2770
    %v2967 = vunpack.c.l.b16 %v2771
    %v2968 = vunpack.c.h.b16 %v2771
    %v2969 = vunpack.c.l.b16 %v2772
    %v2970 = vunpack.c.h.b16 %v2772
    %v2971 = vunpack.c.l.b16 %v2773
    %v2972 = vunpack.c.h.b16 %v2773
    %v2973 = vunpack.c.l.b16 %v2774
    %v2974 = vunpack.c.h.b16 %v2774
    %v2975 = vunpack.c.l.b16 %v2775
    %v2976 = vunpack.c.h.b16 %v2775
    %v2977 = vunpack.c.l.b16 %v2776
    %v2978 = vunpack.c.h.b16 %v2776
    %v2979 = vunpack.c.l.b16 %v2777
    %v2980 = vunpack.c.h.b16 %v2777
    %v2981 = vunpack.c.l.b16 %v2778
    %v2982 = vunpack.c.h.b16 %v2778
    %v2983 = vunpack.c.l.b16 %v2779
    %v2984 = vunpack.c.h.b16 %v2779
    %v2985 = vunpack.c.l.b16 %v2780
    %v2986 = vunpack.c.h.b16 %v2780
    %v2987 = vunpack.c.l.b16 %v2781
    %v2988 = vunpack.c.h.b16 %v2781
    %v2989 = vunpack.c.l.b16 %v2782
    %v2990 = vunpack.c.h.b16 %v2782
    %v2991 = vunpack.c.l.b16 %v2783
    %v2992 = vunpack.c.h.b16 %v2783
    %v2993 = vunpack.c.l.b16 %v2784
    %v2994 = vunpack.c.h.b16 %v2784
    %v2995 = vunpack.c.l.b16 %v2785
    %v2996 = vunpack.c.h.b16 %v2785
    %v2997 = vunpack.c.l.b16 %v2786
    %v2998 = vunpack.c.h.b16 %v2786
    %v2999 = vunpack.c.l.b16 %v2787
    %v3000 = vunpack.c.h.b16 %v2787
    %v3001 = vunpack.c.l.b16 %v2788
    %v3002 = vunpack.c.h.b16 %v2788
    %v3003 = vunpack.c.l.b16 %v2789
    %v3004 = vunpack.c.h.b16 %v2789
    %v3005 = vunpack.c.l.b16 %v2790
    %v3006 = vunpack.c.h.b16 %v2790
    %v3007 = vunpack.c.l.b16 %v2791
    %v3008 = vunpack.c.h.b16 %v2791
    %v3009 = vunpack.c.l.b16 %v2792
    %v3010 = vunpack.c.h.b16 %v2792
    %v3011 = vunpack.c.l.b16 %v2793
    %v3012 = vunpack.c.h.b16 %v2793
    %v3013 = vunpack.c.l.b16 %v2794
    %v3014 = vunpack.c.h.b16 %v2794
    %v3015 = vunpack.c.l.b16 %v2795
    %v3016 = vunpack.c.h.b16 %v2795
    %v3017 = vunpack.c.l.b16 %v2796
    %v3018 = vunpack.c.h.b16 %v2796
    %v3019 = vunpack.c.l.b16 %v2797
    %v3020 = vunpack.c.h.b16 %v2797
    %v3021 = vunpack.c.l.b16 %v2798
    %v3022 = vunpack.c.h.b16 %v2798
    %v3023 = vunpack.c.l.b16 %v2799
    %v3024 = vunpack.c.h.b16 %v2799
    %v3025 = vunpack.c.l.b16 %v2800
    %v3026 = vunpack.c.h.b16 %v2800
    %v3027 = vunpack.c.l.b16 %v2801
    %v3028 = vunpack.c.h.b16 %v2801
    %v3029 = vunpack.c.l.b16 %v2802
    %v3030 = vunpack.c.h.b16 %v2802
    %v3031 = vunpack.c.l.b16 %v2803
    %v3032 = vunpack.c.h.b16 %v2803
    %v3033 = vunpack.c.l.b16 %v2804
    %v3034 = vunpack.c.h.b16 %v2804
    %v3035 = vunpack.c.l.b16 %v2805
    %v3036 = vunpack.c.h.b16 %v2805
    %v3037 = vunpack.c.l.b16 %v2806
    %v3038 = vunpack.c.h.b16 %v2806
    %v3039 = vunpack.c.l.b16 %v2807
    %v3040 = vunpack.c.h.b16 %v2807
    %v3041 = vunpack.c.l.b16 %v2808
    %v3042 = vunpack.c.h.b16 %v2808
    %v3043 = vunpack.c.l.b16 %v2809
    %v3044 = vunpack.c.h.b16 %v2809
    %v3045 = vunpack.c.l.b16 %v2810
    %v3046 = vunpack.c.h.b16 %v2810
    %v3047 = vunpack.c.l.b16 %v2811
    %v3048 = vunpack.c.h.b16 %v2811
    %v3049 = vunpack.c.l.b16 %v2812
    %v3050 = vunpack.c.h.b16 %v2812
    %v3051 = vunpack.c.l.b16 %v2813
    %v3052 = vunpack.c.h.b16 %v2813
    %v3053 = vunpack.c.l.b16 %v2814
    %v3054 = vunpack.c.h.b16 %v2814
    %v3055 = vunpack.c.l.b16 %v2815
    %v3056 = vunpack.c.h.b16 %v2815
    %v3057 = vunpack.c.l.b16 %v2816
    %v3058 = vunpack.c.h.b16 %v2816
    %v3059 = vunpack.c.l.b16 %v2817
    %v3060 = vunpack.c.h.b16 %v2817
    %v3061 = vunpack.c.l.b16 %v2818
    %v3062 = vunpack.c.h.b16 %v2818
    %v3063 = vunpack.c.l.b16 %v2819
    %v3064 = vunpack.c.h.b16 %v2819
    %v3065 = vunpack.c.l.b16 %v2820
    %v3066 = vunpack.c.h.b16 %v2820
    %v3067 = vunpack.c.l.b16 %v2821
    %v3068 = vunpack.c.h.b16 %v2821
    %v3069 = vunpack.c.l.b16 %v2822
    %v3070 = vunpack.c.h.b16 %v2822
    %v3071 = vunpack.c.l.b16 %v2823
    %v3072 = vunpack.c.h.b16 %v2823
    %v3073 = vunpack.c.l.b16 %v2824
    %v3074 = vunpack.c.h.b16 %v2824
    %v3075 = vunpack.c.l.b16 %v2825
    %v3076 = vunpack.c.h.b16 %v2825
    %v3077 = vunpack.c.l.b16 %v2826
    %v3078 = vunpack.c.h.b16 %v2826
    %v3079 = vunpack.c.l.b16 %v2827
    %v3080 = vunpack.c.h.b16 %v2827
    %v3081 = vunpack.c.l.b16 %v2828
    %v3082 = vunpack.c.h.b16 %v2828
    %v3083 = vunpack.c.l.b16 %v2829
    %v3084 = vunpack.c.h.b16 %v2829
    %v3085 = vunpack.c.l.b16 %v2830
    %v3086 = vunpack.c.h.b16 %v2830
    %v3087 = vunpack.c.l.b16 %v2831
    %v3088 = vunpack.c.h.b16 %v2831
    %v3089 = vunpack.c.l.b16 %v2832
    %v3090 = vunpack.c.h.b16 %v2832
    %v3091 = vunpack.c.l.b16 %v2833
    %v3092 = vunpack.c.h.b16 %v2833
    %v3093 = vunpack.c.l.b16 %v2834
    %v3094 = vunpack.c.h.b16 %v2834
    %v3095 = vunpack.c.l.b16 %v2835
    %v3096 = vunpack.c.h.b16 %v2835
    %v3097 = vunpack.c.l.b16 %v2836
    %v3098 = vunpack.c.h.b16 %v2836
    %v3099 = vunpack.c.l.b16 %v2837
    %v3100 = vunpack.c.h.b16 %v2837
    %v3101 = vunpack.c.l.b16 %v2838
    %v3102 = vunpack.c.h.b16 %v2838
    %v3103 = vunpack.c.l.b16 %v2839
    %v3104 = vunpack.c.h.b16 %v2839
    %v3105 = vunpack.c.l.b16 %v2840
    %v3106 = vunpack.c.h.b16 %v2840
    %v3107 = vunpack.c.l.b16 %v2841
    %v3108 = vunpack.c.h.b16 %v2841
    %v3109 = vunpack.c.l.b16 %v2842
    %v3110 = vunpack.c.h.b16 %v2842
    %v3111 = vunpack.c.l.b16 %v2843
    %v3112 = vunpack.c.h.b16 %v2843
    %v3113 = vunpack.c.l.b16 %v2844
    %v3114 = vunpack.c.h.b16 %v2844
    %v3115 = vunpack.c.l.b16 %v2845
    %v3116 = vunpack.c.h.b16 %v2845
    %v3117 = vunpack.c.l.b16 %v2846
    %v3118 = vunpack.c.h.b16 %v2846
    %v3119 = vunpack.c.l.b16 %v2847
    %v3120 = vunpack.c.h.b16 %v2847
    %v3121 = vunpack.c.l.b16 %v2848
    %v3122 = vunpack.c.h.b16 %v2848
    %v3123 = vunpack.c.l.b16 %v2849
    %v3124 = vunpack.c.h.b16 %v2849
    %v3125 = vunpack.c.l.b16 %v2850
    %v3126 = vunpack.c.h.b16 %v2850
    %v3127 = vunpack.c.l.b16 %v2851
    %v3128 = vunpack.c.h.b16 %v2851
    %v3129 = vunpack.c.l.b16 %v2852
    %v3130 = vunpack.c.h.b16 %v2852
    %v3131 = vunpack.c.l.b16 %v2853
    %v3132 = vunpack.c.h.b16 %v2853
    %v3133 = vunpack.c.l.b16 %v2854
    %v3134 = vunpack.c.h.b16 %v2854
    %v3135 = vunpack.c.l.b16 %v2855
    %v3136 = vunpack.c.h.b16 %v2855
    %v3137 = vunpack.c.l.b16 %v2856
    %v3138 = vunpack.c.h.b16 %v2856
    %v3139 = vunpack.c.l.b16 %v2857
    %v3140 = vunpack.c.h.b16 %v2857
    %v3141 = vunpack.c.l.b16 %v2858
    %v3142 = vunpack.c.h.b16 %v2858
    %v3143 = vunpack.c.l.b16 %v2859
    %v3144 = vunpack.c.h.b16 %v2859
    %v3145 = vunpack.c.l.b16 %v2860
    %v3146 = vunpack.c.h.b16 %v2860
    %v3147 = vunpack.c.l.b16 %v2861
    %v3148 = vunpack.c.h.b16 %v2861
    %v3149 = vunpack.c.l.b16 %v2862
    %v3150 = vunpack.c.h.b16 %v2862
    %v3151 = vpack.c.b16 %v2965, %v2959
    %v3152 = vpack.c.b16 %v2966, %v2960
    %v3153 = vpack.c.b16 %v2967, %v2961
    %v3154 = vpack.c.b16 %v2968, %v2962
    %v3155 = vpack.c.b16 %v2969, %v2963
    %v3156 = vpack.c.b16 %v2970, %v2964
    %v3157 = vpack.c.b16 %v2977, %v2971
    %v3158 = vpack.c.b16 %v2978, %v2972
    %v3159 = vpack.c.b16 %v2979, %v2973
    %v3160 = vpack.c.b16 %v2980, %v2974
    %v3161 = vpack.c.b16 %v2981, %v2975
    %v3162 = vpack.c.b16 %v2982, %v2976
    %v3163 = vpack.c.b16 %v2989, %v2983
    %v3164 = vpack.c.b16 %v2990, %v2984
    %v3165 = vpack.c.b16 %v2991, %v2985
    %v3166 = vpack.c.b16 %v2992, %v2986
    %v3167 = vpack.c.b16 %v2993, %v2987
    %v3168 = vpack.c.b16 %v2994, %v2988
    %v3169 = vpack.c.b16 %v3001, %v2995
    %v3170 = vpack.c.b16 %v3002, %v2996
    %v3171 = vpack.c.b16 %v3003, %v2997
    %v3172 = vpack.c.b16 %v3004, %v2998
    %v3173 = vpack.c.b16 %v3005, %v2999
    %v3174 = vpack.c.b16 %v3006, %v3000
    %v3175 = vpack.c.b16 %v3013, %v3007
    %v3176 = vpack.c.b16 %v3014, %v3008
    %v3177 = vpack.c.b16 %v3015, %v3009
    %v3178 = vpack.c.b16 %v3016, %v3010
    %v3179 = vpack.c.b16 %v3017, %v3011
    %v3180 = vpack.c.b16 %v3018, %v3012
    %v3181 = vpack.c.b16 %v3025, %v3019
    %v3182 = vpack.c.b16 %v3026, %v3020
    %v3183 = vpack.c.b16 %v3027, %v3021
    %v3184 = vpack.c.b16 %v3028, %v3022
    %v3185 = vpack.c.b16 %v3029, %v3023
    %v3186 = vpack.c.b16 %v3030, %v3024
    %v3187 = vpack.c.b16 %v3037, %v3031
    %v3188 = vpack.c.b16 %v3038, %v3032
    %v3189 = vpack.c.b16 %v3039, %v3033
    %v3190 = vpack.c.b16 %v3040, %v3034
    %v3191 = vpack.c.b16 %v3041, %v3035
    %v3192 = vpack.c.b16 %v3042, %v3036
    %v3193 = vpack.c.b16 %v3049, %v3043
    %v3194 = vpack.c.b16 %v3050, %v3044
    %v3195 = vpack.c.b16 %v3051, %v3045
    %v3196 = vpack.c.b16 %v3052, %v3046
    %v3197 = vpack.c.b16 %v3053, %v3047
    %v3198 = vpack.c.b16 %v3054, %v3048
    %v3199 = vpack.c.b16 %v3061, %v3055
    %v3200 = vpack.c.b16 %v3062, %v3056
    %v3201 = vpack.c.b16 %v3063, %v3057
    %v3202 = vpack.c.b16 %v3064, %v3058
    %v3203 = vpack.c.b16 %v3065, %v3059
    %v3204 = vpack.c.b16 %v3066, %v3060
    %v3205 = vpack.c.b16 %v3073, %v3067
    %v3206 = vpack.c.b16 %v3074, %v3068
    %v3207 = vpack.c.b16 %v3075, %v3069
    %v3208 = vpack.c.b16 %v3076, %v3070
    %v3209 = vpack.c.b16 %v3077, %v3071
    %v3210 = vpack.c.b16 %v3078, %v3072
    %v3211 = vpack.c.b16 %v3085, %v3079
    %v3212 = vpack.c.b16 %v3086, %v3080
    %v3213 = vpack.c.b16 %v3087, %v3081
    %v3214 = vpack.c.b16 %v3088, %v3082
    %v3215 = vpack.c.b16 %v3089, %v3083
    %v3216 = vpack.c.b16 %v3090, %v3084
    %v3217 = vpack.c.b16 %v3097, %v3091
    %v3218 = vpack.c.b16 %v3098, %v3092
    %v3219 = vpack.c.b16 %v3099, %v3093
    %v3220 = vpack.c.b16 %v3100, %v3094
    %v3221 = vpack.c.b16 %v3101, %v3095
    %v3222 = vpack.c.b16 %v3102, %v3096
    %v3223 = vpack.c.b16 %v3109, %v3103
    %v3224 = vpack.c.b16 %v3110, %v3104
    %v3225 = vpack.c.b16 %v3111, %v3105
    %v3226 = vpack.c.b16 %v3112, %v3106
    %v3227 = vpack.c.b16 %v3113, %v3107
    %v3228 = vpack.c.b16 %v3114, %v3108
    %v3229 = vpack.c.b16 %v3121, %v3115
    %v3230 = vpack.c.b16 %v3122, %v3116
    %v3231 = vpack.c.b16 %v3123, %v3117
    %v3232 = vpack.c.b16 %v3124, %v3118
    %v3233 = vpack.c.b16 %v3125, %v3119
    %v3234 = vpack.c.b16 %v3126, %v3120
    %v3235 = vpack.c.b16 %v3133, %v3127
    %v3236 = vpack.c.b16 %v3134, %v3128
    %v3237 = vpack.c.b16 %v3135, %v3129
    %v3238 = vpack.c.b16 %v3136, %v3130
    %v3239 = vpack.c.b16 %v3137, %v3131
    %v3240 = vpack.c.b16 %v3138, %v3132
    %v3241 = vpack.c.b16 %v3145, %v3139
    %v3242 = vpack.c.b16 %v3146, %v3140
    %v3243 = vpack.c.b16 %v3147, %v3141
    %v3244 = vpack.c.b16 %v3148, %v3142
    %v3245 = vpack.c.b16 %v3149, %v3143
    %v3246 = vpack.c.b16 %v3150, %v3144
    %3343 = vmatprep.subr.bf16.mxu0 %v3152
    %3344 = vmatpush1.bf16.msra.mxu0 %v3151
    %3345 = vmatprep.subr.bf16.mxu0 %v3158
    %3346 = vmatpush1.bf16.msra.mxu0 %v3157
    %3347 = vmatprep.subr.bf16.mxu0 %v3164
    %3348 = vmatpush1.bf16.msra.mxu0 %v3163
    %3349 = vmatprep.subr.bf16.mxu0 %v3170
    %3350 = vmatpush1.bf16.msra.mxu0 %v3169
    %3351 = vmatprep.subr.bf16.mxu0 %v3176
    %3352 = vmatpush1.bf16.msra.mxu0 %v3175
    %3353 = vmatprep.subr.bf16.mxu0 %v3182
    %3354 = vmatpush1.bf16.msra.mxu0 %v3181
    %3355 = vmatprep.subr.bf16.mxu0 %v3188
    %3356 = vmatpush1.bf16.msra.mxu0 %v3187
    %3357 = vmatprep.subr.bf16.mxu0 %v3194
    %3358 = vmatpush1.bf16.msra.mxu0 %v3193
    %3359 = vmatprep.subr.bf16.mxu0 %v3200
    %3360 = vmatpush1.bf16.msra.mxu0 %v3199
    %3361 = vmatprep.subr.bf16.mxu0 %v3206
    %3362 = vmatpush1.bf16.msra.mxu0 %v3205
    %3363 = vmatprep.subr.bf16.mxu0 %v3212
    %3364 = vmatpush1.bf16.msra.mxu0 %v3211
    %3365 = vmatprep.subr.bf16.mxu0 %v3218
    %3366 = vmatpush1.bf16.msra.mxu0 %v3217
    %3367 = vmatprep.subr.bf16.mxu0 %v3224
    %3368 = vmatpush1.bf16.msra.mxu0 %v3223
    %3369 = vmatprep.subr.bf16.mxu0 %v3230
    %3370 = vmatpush1.bf16.msra.mxu0 %v3229
    %3371 = vmatprep.subr.bf16.mxu0 %v3236
    %3372 = vmatpush1.bf16.msra.mxu0 %v3235
    %3373 = vmatprep.subr.bf16.mxu0 %v3242
    %3374 = vmatpush1.bf16.msra.mxu0 %v3241
    %3375 = vmatprep.mubr.bf16.mxu0 %v2764
    %3376 = vmatmul.mubr.bf16.gmra.mrb[0].mxu0 %v2763
    %v3377 = vpop.f32.mrb[0].mxu0
    %v3378 = vadd.f32 0.0, %v3377
    %v3379 = vpop.f32.mrb[0].mxu0
    %v3380 = vadd.f32 0.0, %v3379
    %v3381 = vpop.f32.mrb[0].mxu0
    %v3382 = vpop.f32.mrb[0].mxu0
    %3383 = vdwg.mxu0
    %3384 = vmatprep.subr.bf16.mxu0 %v3154
    %3385 = vmatpush1.bf16.msra.mxu0 %v3153
    %3386 = vmatprep.subr.bf16.mxu0 %v3160
    %3387 = vmatpush1.bf16.msra.mxu0 %v3159
    %3388 = vmatprep.subr.bf16.mxu0 %v3166
    %3389 = vmatpush1.bf16.msra.mxu0 %v3165
    %3390 = vmatprep.subr.bf16.mxu0 %v3172
    %3391 = vmatpush1.bf16.msra.mxu0 %v3171
    %3392 = vmatprep.subr.bf16.mxu0 %v3178
    %3393 = vmatpush1.bf16.msra.mxu0 %v3177
    %3394 = vmatprep.subr.bf16.mxu0 %v3184
    %3395 = vmatpush1.bf16.msra.mxu0 %v3183
    %3396 = vmatprep.subr.bf16.mxu0 %v3190
    %3397 = vmatpush1.bf16.msra.mxu0 %v3189
    %3398 = vmatprep.subr.bf16.mxu0 %v3196
    %3399 = vmatpush1.bf16.msra.mxu0 %v3195
    %3400 = vmatprep.subr.bf16.mxu0 %v3202
    %3401 = vmatpush1.bf16.msra.mxu0 %v3201
    %3402 = vmatprep.subr.bf16.mxu0 %v3208
    %3403 = vmatpush1.bf16.msra.mxu0 %v3207
    %3404 = vmatprep.subr.bf16.mxu0 %v3214
    %3405 = vmatpush1.bf16.msra.mxu0 %v3213
    %3406 = vmatprep.subr.bf16.mxu0 %v3220
    %3407 = vmatpush1.bf16.msra.mxu0 %v3219
    %3408 = vmatprep.subr.bf16.mxu0 %v3226
    %3409 = vmatpush1.bf16.msra.mxu0 %v3225
    %3410 = vmatprep.subr.bf16.mxu0 %v3232
    %3411 = vmatpush1.bf16.msra.mxu0 %v3231
    %3412 = vmatprep.subr.bf16.mxu0 %v3238
    %3413 = vmatpush1.bf16.msra.mxu0 %v3237
    %3414 = vmatprep.subr.bf16.mxu0 %v3244
    %3415 = vmatpush1.bf16.msra.mxu0 %v3243
    %3416 = vmatprep.mubr.bf16.mxu0 %v2764
    %3417 = vmatmul.mubr.bf16.gmra.mrb[0].mxu0 %v2763
    %v3418 = vpop.f32.mrb[0].mxu0
    %v3419 = vadd.f32 0.0, %v3418
    %v3420 = vpop.f32.mrb[0].mxu0
    %v3421 = vadd.f32 0.0, %v3420
    %v3422 = vpop.f32.mrb[0].mxu0
    %v3423 = vpop.f32.mrb[0].mxu0
    %3424 = vdwg.mxu0
    %3425 = vmatprep.subr.bf16.mxu0 %v3156
    %3426 = vmatpush1.bf16.msra.mxu0 %v3155
    %3427 = vmatprep.subr.bf16.mxu0 %v3162
    %3428 = vmatpush1.bf16.msra.mxu0 %v3161
    %3429 = vmatprep.subr.bf16.mxu0 %v3168
    %3430 = vmatpush1.bf16.msra.mxu0 %v3167
    %3431 = vmatprep.subr.bf16.mxu0 %v3174
    %3432 = vmatpush1.bf16.msra.mxu0 %v3173
    %3433 = vmatprep.subr.bf16.mxu0 %v3180
    %3434 = vmatpush1.bf16.msra.mxu0 %v3179
    %3435 = vmatprep.subr.bf16.mxu0 %v3186
    %3436 = vmatpush1.bf16.msra.mxu0 %v3185
    %3437 = vmatprep.subr.bf16.mxu0 %v3192
    %3438 = vmatpush1.bf16.msra.mxu0 %v3191
    %3439 = vmatprep.subr.bf16.mxu0 %v3198
    %3440 = vmatpush1.bf16.msra.mxu0 %v3197
    %3441 = vmatprep.subr.bf16.mxu0 %v3204
    %3442 = vmatpush1.bf16.msra.mxu0 %v3203
    %3443 = vmatprep.subr.bf16.mxu0 %v3210
    %3444 = vmatpush1.bf16.msra.mxu0 %v3209
    %3445 = vmatprep.subr.bf16.mxu0 %v3216
    %3446 = vmatpush1.bf16.msra.mxu0 %v3215
    %3447 = vmatprep.subr.bf16.mxu0 %v3222
    %3448 = vmatpush1.bf16.msra.mxu0 %v3221
    %3449 = vmatprep.subr.bf16.mxu0 %v3228
    %3450 = vmatpush1.bf16.msra.mxu0 %v3227
    %3451 = vmatprep.subr.bf16.mxu0 %v3234
    %3452 = vmatpush1.bf16.msra.mxu0 %v3233
    %3453 = vmatprep.subr.bf16.mxu0 %v3240
    %3454 = vmatpush1.bf16.msra.mxu0 %v3239
    %3455 = vmatprep.subr.bf16.mxu0 %v3246
    %3456 = vmatpush1.bf16.msra.mxu0 %v3245
    %3457 = vmatprep.mubr.bf16.mxu0 %v2764
    %3458 = vmatmul.mubr.bf16.gmra.mrb[0].mxu0 %v2763
    %v3459 = vpop.f32.mrb[0].mxu0
    %v3460 = vadd.f32 0.0, %v3459
    %v3461 = vpop.f32.mrb[0].mxu0
    %v3462 = vadd.f32 0.0, %v3461
    %v3463 = vpop.f32.mrb[0].mxu0
    %v3464 = vpop.f32.mrb[0].mxu0
    %3465 = vdwg.mxu0
    %v3466 = vadd.f32 %v338, %v3378
    %v3467 = vadd.f32 %v340, %v3380
    %v3468 = vxor.u32 %v3466, 2147483648
    %v3469 = vxor.u32 %v3467, 2147483648
    %v3470 = vmul.f32 %v3468, 1.442695
    %v3471 = vpow.pop %v3470
    %v3472 = vmul.f32 %v3469, 1.442695
    %v3473 = vpow.pop %v3472
    %v3474 = vadd.f32 %v3471, 1.0
    %v3475 = vadd.f32 %v3473, 1.0
    %v3476 = vrcp.pop %v3474
    %v3477 = vmul.f32 1.0, %v3476
    %v3478 = vrcp.pop %v3475
    %v3479 = vmul.f32 1.0, %v3478
    %v3480 = vadd.f32 %v411, %v3419
    %v3481 = vadd.f32 %v413, %v3421
    %v3482 = vxor.u32 %v3480, 2147483648
    %v3483 = vxor.u32 %v3481, 2147483648
    %v3484 = vmul.f32 %v3482, 1.442695
    %v3485 = vpow.pop %v3484
    %v3486 = vmul.f32 %v3483, 1.442695
    %v3487 = vpow.pop %v3486
    %v3488 = vadd.f32 %v3485, 1.0
    %v3489 = vadd.f32 %v3487, 1.0
    %v3490 = vrcp.pop %v3488
    %v3491 = vmul.f32 1.0, %v3490
    %v3492 = vrcp.pop %v3489
    %v3493 = vmul.f32 1.0, %v3492
    %v3494 = vadd.f32 %v3460, %v513
    %v3495 = vadd.f32 %v3462, %v517
    %v3496 = vmul.f32 %v3477, %v3494
    %v3497 = vmul.f32 %v3479, %v3495
    %v3498 = vadd.f32 %v484, %v3496
    %v3499 = vadd.f32 %v486, %v3497
    %v3500 = vtanh.pop %v3498
    %v3501 = vtanh.pop %v3499
    %v3502 = vsub.f32 1.0, %v3491
    %v3503 = vsub.f32 1.0, %v3493
    %v3504 = vmul.f32 %v3502, %v3500
    %v3505 = vmul.f32 %v3503, %v3501
    %v3506 = vmul.f32 %v3491, %v2761
    %v3507 = vmul.f32 %v3493, %v2762
    %v3508 = vadd.f32 %v3504, %v3506
    %v3509 = vadd.f32 %v3505, %v3507
    %v3510 = vpack.c.bf16 %v3508, %v3508
    %v3511 = vpack.c.bf16 %v3509, %v3509
    %v3514 = vrot.slane %v3510, 4
    %v3515 = vrot.slane %v3511, 4
    %3518 = vst [vmem:[#allocation6 + $0x10] sm:$0xf0] %v3514
    %3519 = vst [vmem:[#allocation6 + $0x18] sm:$0xf0] %v3515
    %v3520 = vld [vmem:[#allocation8] sm:$0xff]
    %v3521 = vld [vmem:[#allocation8 + $0x8] sm:$0xff]
    %v3522 = vld [vmem:[#allocation8 + $0x10] sm:$0xff]
    %v3523 = vld [vmem:[#allocation8 + $0x18] sm:$0xff]
    %v3524 = vld [vmem:[#allocation8 + $0x20] sm:$0xff]
    %v3525 = vld [vmem:[#allocation8 + $0x28] sm:$0xff]
    %v3526 = vld [vmem:[#allocation8 + $0x30] sm:$0xff]
    %v3527 = vld [vmem:[#allocation8 + $0x38] sm:$0xff]
    %v3528 = vld [vmem:[#allocation8 + $0x40] sm:$0xff]
    %v3529 = vld [vmem:[#allocation8 + $0x48] sm:$0xff]
    %v3530 = vld [vmem:[#allocation8 + $0x50] sm:$0xff]
    %v3531 = vld [vmem:[#allocation8 + $0x58] sm:$0xff]
    %v3532 = vld [vmem:[#allocation8 + $0x60] sm:$0xff]
    %v3533 = vld [vmem:[#allocation8 + $0x68] sm:$0xff]
    %v3534 = vld [vmem:[#allocation8 + $0x70] sm:$0xff]
    %v3535 = vld [vmem:[#allocation8 + $0x78] sm:$0xff]
    %v3536 = vld [vmem:[#allocation8 + $0x80] sm:$0xff]
    %v3537 = vld [vmem:[#allocation8 + $0x88] sm:$0xff]
    %v3538 = vld [vmem:[#allocation8 + $0x90] sm:$0xff]
    %v3539 = vld [vmem:[#allocation8 + $0x98] sm:$0xff]
    %v3540 = vld [vmem:[#allocation8 + $0xa0] sm:$0xff]
    %v3541 = vld [vmem:[#allocation8 + $0xa8] sm:$0xff]
    %v3542 = vld [vmem:[#allocation8 + $0xb0] sm:$0xff]
    %v3543 = vld [vmem:[#allocation8 + $0xb8] sm:$0xff]
    %v3544 = vld [vmem:[#allocation8 + $0xc0] sm:$0xff]
    %v3545 = vld [vmem:[#allocation8 + $0xc8] sm:$0xff]
    %v3546 = vld [vmem:[#allocation8 + $0xd0] sm:$0xff]
    %v3547 = vld [vmem:[#allocation8 + $0xd8] sm:$0xff]
    %v3548 = vld [vmem:[#allocation8 + $0xe0] sm:$0xff]
    %v3549 = vld [vmem:[#allocation8 + $0xe8] sm:$0xff]
    %v3550 = vld [vmem:[#allocation8 + $0xf0] sm:$0xff]
    %v3551 = vld [vmem:[#allocation8 + $0xf8] sm:$0xff]
    %v3552 = vld [vmem:[#allocation8 + $0x100] sm:$0xff]
    %v3553 = vld [vmem:[#allocation8 + $0x108] sm:$0xff]
    %v3554 = vld [vmem:[#allocation8 + $0x110] sm:$0xff]
    %v3555 = vld [vmem:[#allocation8 + $0x118] sm:$0xff]
    %v3556 = vld [vmem:[#allocation8 + $0x120] sm:$0xff]
    %v3557 = vld [vmem:[#allocation8 + $0x128] sm:$0xff]
    %v3558 = vld [vmem:[#allocation8 + $0x130] sm:$0xff]
    %v3559 = vld [vmem:[#allocation8 + $0x138] sm:$0xff]
    %v3560 = vld [vmem:[#allocation8 + $0x140] sm:$0xff]
    %v3561 = vld [vmem:[#allocation8 + $0x148] sm:$0xff]
    %v3562 = vld [vmem:[#allocation8 + $0x150] sm:$0xff]
    %v3563 = vld [vmem:[#allocation8 + $0x158] sm:$0xff]
    %v3564 = vld [vmem:[#allocation8 + $0x160] sm:$0xff]
    %v3565 = vld [vmem:[#allocation8 + $0x168] sm:$0xff]
    %v3566 = vld [vmem:[#allocation8 + $0x170] sm:$0xff]
    %v3567 = vld [vmem:[#allocation8 + $0x178] sm:$0xff]
    %v3568 = vld [vmem:[#allocation8 + $0x180] sm:$0xff]
    %v3569 = vld [vmem:[#allocation8 + $0x188] sm:$0xff]
    %v3570 = vld [vmem:[#allocation8 + $0x190] sm:$0xff]
    %v3571 = vld [vmem:[#allocation8 + $0x198] sm:$0xff]
    %v3572 = vld [vmem:[#allocation8 + $0x1a0] sm:$0xff]
    %v3573 = vld [vmem:[#allocation8 + $0x1a8] sm:$0xff]
    %v3574 = vld [vmem:[#allocation8 + $0x1b0] sm:$0xff]
    %v3575 = vld [vmem:[#allocation8 + $0x1b8] sm:$0xff]
    %v3576 = vld [vmem:[#allocation8 + $0x1c0] sm:$0xff]
    %v3577 = vld [vmem:[#allocation8 + $0x1c8] sm:$0xff]
    %v3578 = vld [vmem:[#allocation8 + $0x1d0] sm:$0xff]
    %v3579 = vld [vmem:[#allocation8 + $0x1d8] sm:$0xff]
    %v3580 = vld [vmem:[#allocation8 + $0x1e0] sm:$0xff]
    %v3581 = vld [vmem:[#allocation8 + $0x1e8] sm:$0xff]
    %v3582 = vld [vmem:[#allocation8 + $0x1f0] sm:$0xff]
    %v3583 = vld [vmem:[#allocation8 + $0x1f8] sm:$0xff]
    %v3584 = vld [vmem:[#allocation8 + $0x200] sm:$0xff]
    %v3585 = vld [vmem:[#allocation8 + $0x208] sm:$0xff]
    %v3586 = vld [vmem:[#allocation8 + $0x210] sm:$0xff]
    %v3587 = vld [vmem:[#allocation8 + $0x218] sm:$0xff]
    %v3588 = vld [vmem:[#allocation8 + $0x220] sm:$0xff]
    %v3589 = vld [vmem:[#allocation8 + $0x228] sm:$0xff]
    %v3590 = vld [vmem:[#allocation8 + $0x230] sm:$0xff]
    %v3591 = vld [vmem:[#allocation8 + $0x238] sm:$0xff]
    %v3592 = vld [vmem:[#allocation8 + $0x240] sm:$0xff]
    %v3593 = vld [vmem:[#allocation8 + $0x248] sm:$0xff]
    %v3594 = vld [vmem:[#allocation8 + $0x250] sm:$0xff]
    %v3595 = vld [vmem:[#allocation8 + $0x258] sm:$0xff]
    %v3596 = vld [vmem:[#allocation8 + $0x260] sm:$0xff]
    %v3597 = vld [vmem:[#allocation8 + $0x268] sm:$0xff]
    %v3598 = vld [vmem:[#allocation8 + $0x270] sm:$0xff]
    %v3599 = vld [vmem:[#allocation8 + $0x278] sm:$0xff]
    %v3600 = vld [vmem:[#allocation8 + $0x280] sm:$0xff]
    %v3601 = vld [vmem:[#allocation8 + $0x288] sm:$0xff]
    %v3602 = vld [vmem:[#allocation8 + $0x290] sm:$0xff]
    %v3603 = vld [vmem:[#allocation8 + $0x298] sm:$0xff]
    %v3604 = vld [vmem:[#allocation8 + $0x2a0] sm:$0xff]
    %v3605 = vld [vmem:[#allocation8 + $0x2a8] sm:$0xff]
    %v3606 = vld [vmem:[#allocation8 + $0x2b0] sm:$0xff]
    %v3607 = vld [vmem:[#allocation8 + $0x2b8] sm:$0xff]
    %v3608 = vld [vmem:[#allocation8 + $0x2c0] sm:$0xff]
    %v3609 = vld [vmem:[#allocation8 + $0x2c8] sm:$0xff]
    %v3610 = vld [vmem:[#allocation8 + $0x2d0] sm:$0xff]
    %v3611 = vld [vmem:[#allocation8 + $0x2d8] sm:$0xff]
    %v3612 = vld [vmem:[#allocation8 + $0x2e0] sm:$0xff]
    %v3613 = vld [vmem:[#allocation8 + $0x2e8] sm:$0xff]
    %v3614 = vld [vmem:[#allocation8 + $0x2f0] sm:$0xff]
    %v3615 = vld [vmem:[#allocation8 + $0x2f8] sm:$0xff]
    %v3712 = vunpack.c.l.b16 %v3520
    %v3713 = vunpack.c.h.b16 %v3520
    %v3714 = vunpack.c.l.b16 %v3521
    %v3715 = vunpack.c.h.b16 %v3521
    %v3716 = vunpack.c.l.b16 %v3522
    %v3717 = vunpack.c.h.b16 %v3522
    %v3718 = vunpack.c.l.b16 %v3523
    %v3719 = vunpack.c.h.b16 %v3523
    %v3720 = vunpack.c.l.b16 %v3524
    %v3721 = vunpack.c.h.b16 %v3524
    %v3722 = vunpack.c.l.b16 %v3525
    %v3723 = vunpack.c.h.b16 %v3525
    %v3724 = vunpack.c.l.b16 %v3526
    %v3725 = vunpack.c.h.b16 %v3526
    %v3726 = vunpack.c.l.b16 %v3527
    %v3727 = vunpack.c.h.b16 %v3527
    %v3728 = vunpack.c.l.b16 %v3528
    %v3729 = vunpack.c.h.b16 %v3528
    %v3730 = vunpack.c.l.b16 %v3529
    %v3731 = vunpack.c.h.b16 %v3529
    %v3732 = vunpack.c.l.b16 %v3530
    %v3733 = vunpack.c.h.b16 %v3530
    %v3734 = vunpack.c.l.b16 %v3531
    %v3735 = vunpack.c.h.b16 %v3531
    %v3736 = vunpack.c.l.b16 %v3532
    %v3737 = vunpack.c.h.b16 %v3532
    %v3738 = vunpack.c.l.b16 %v3533
    %v3739 = vunpack.c.h.b16 %v3533
    %v3740 = vunpack.c.l.b16 %v3534
    %v3741 = vunpack.c.h.b16 %v3534
    %v3742 = vunpack.c.l.b16 %v3535
    %v3743 = vunpack.c.h.b16 %v3535
    %v3744 = vunpack.c.l.b16 %v3536
    %v3745 = vunpack.c.h.b16 %v3536
    %v3746 = vunpack.c.l.b16 %v3537
    %v3747 = vunpack.c.h.b16 %v3537
    %v3748 = vunpack.c.l.b16 %v3538
    %v3749 = vunpack.c.h.b16 %v3538
    %v3750 = vunpack.c.l.b16 %v3539
    %v3751 = vunpack.c.h.b16 %v3539
    %v3752 = vunpack.c.l.b16 %v3540
    %v3753 = vunpack.c.h.b16 %v3540
    %v3754 = vunpack.c.l.b16 %v3541
    %v3755 = vunpack.c.h.b16 %v3541
    %v3756 = vunpack.c.l.b16 %v3542
    %v3757 = vunpack.c.h.b16 %v3542
    %v3758 = vunpack.c.l.b16 %v3543
    %v3759 = vunpack.c.h.b16 %v3543
    %v3760 = vunpack.c.l.b16 %v3544
    %v3761 = vunpack.c.h.b16 %v3544
    %v3762 = vunpack.c.l.b16 %v3545
    %v3763 = vunpack.c.h.b16 %v3545
    %v3764 = vunpack.c.l.b16 %v3546
    %v3765 = vunpack.c.h.b16 %v3546
    %v3766 = vunpack.c.l.b16 %v3547
    %v3767 = vunpack.c.h.b16 %v3547
    %v3768 = vunpack.c.l.b16 %v3548
    %v3769 = vunpack.c.h.b16 %v3548
    %v3770 = vunpack.c.l.b16 %v3549
    %v3771 = vunpack.c.h.b16 %v3549
    %v3772 = vunpack.c.l.b16 %v3550
    %v3773 = vunpack.c.h.b16 %v3550
    %v3774 = vunpack.c.l.b16 %v3551
    %v3775 = vunpack.c.h.b16 %v3551
    %v3776 = vunpack.c.l.b16 %v3552
    %v3777 = vunpack.c.h.b16 %v3552
    %v3778 = vunpack.c.l.b16 %v3553
    %v3779 = vunpack.c.h.b16 %v3553
    %v3780 = vunpack.c.l.b16 %v3554
    %v3781 = vunpack.c.h.b16 %v3554
    %v3782 = vunpack.c.l.b16 %v3555
    %v3783 = vunpack.c.h.b16 %v3555
    %v3784 = vunpack.c.l.b16 %v3556
    %v3785 = vunpack.c.h.b16 %v3556
    %v3786 = vunpack.c.l.b16 %v3557
    %v3787 = vunpack.c.h.b16 %v3557
    %v3788 = vunpack.c.l.b16 %v3558
    %v3789 = vunpack.c.h.b16 %v3558
    %v3790 = vunpack.c.l.b16 %v3559
    %v3791 = vunpack.c.h.b16 %v3559
    %v3792 = vunpack.c.l.b16 %v3560
    %v3793 = vunpack.c.h.b16 %v3560
    %v3794 = vunpack.c.l.b16 %v3561
    %v3795 = vunpack.c.h.b16 %v3561
    %v3796 = vunpack.c.l.b16 %v3562
    %v3797 = vunpack.c.h.b16 %v3562
    %v3798 = vunpack.c.l.b16 %v3563
    %v3799 = vunpack.c.h.b16 %v3563
    %v3800 = vunpack.c.l.b16 %v3564
    %v3801 = vunpack.c.h.b16 %v3564
    %v3802 = vunpack.c.l.b16 %v3565
    %v3803 = vunpack.c.h.b16 %v3565
    %v3804 = vunpack.c.l.b16 %v3566
    %v3805 = vunpack.c.h.b16 %v3566
    %v3806 = vunpack.c.l.b16 %v3567
    %v3807 = vunpack.c.h.b16 %v3567
    %v3808 = vunpack.c.l.b16 %v3568
    %v3809 = vunpack.c.h.b16 %v3568
    %v3810 = vunpack.c.l.b16 %v3569
    %v3811 = vunpack.c.h.b16 %v3569
    %v3812 = vunpack.c.l.b16 %v3570
    %v3813 = vunpack.c.h.b16 %v3570
    %v3814 = vunpack.c.l.b16 %v3571
    %v3815 = vunpack.c.h.b16 %v3571
    %v3816 = vunpack.c.l.b16 %v3572
    %v3817 = vunpack.c.h.b16 %v3572
    %v3818 = vunpack.c.l.b16 %v3573
    %v3819 = vunpack.c.h.b16 %v3573
    %v3820 = vunpack.c.l.b16 %v3574
    %v3821 = vunpack.c.h.b16 %v3574
    %v3822 = vunpack.c.l.b16 %v3575
    %v3823 = vunpack.c.h.b16 %v3575
    %v3824 = vunpack.c.l.b16 %v3576
    %v3825 = vunpack.c.h.b16 %v3576
    %v3826 = vunpack.c.l.b16 %v3577
    %v3827 = vunpack.c.h.b16 %v3577
    %v3828 = vunpack.c.l.b16 %v3578
    %v3829 = vunpack.c.h.b16 %v3578
    %v3830 = vunpack.c.l.b16 %v3579
    %v3831 = vunpack.c.h.b16 %v3579
    %v3832 = vunpack.c.l.b16 %v3580
    %v3833 = vunpack.c.h.b16 %v3580
    %v3834 = vunpack.c.l.b16 %v3581
    %v3835 = vunpack.c.h.b16 %v3581
    %v3836 = vunpack.c.l.b16 %v3582
    %v3837 = vunpack.c.h.b16 %v3582
    %v3838 = vunpack.c.l.b16 %v3583
    %v3839 = vunpack.c.h.b16 %v3583
    %v3840 = vunpack.c.l.b16 %v3584
    %v3841 = vunpack.c.h.b16 %v3584
    %v3842 = vunpack.c.l.b16 %v3585
    %v3843 = vunpack.c.h.b16 %v3585
    %v3844 = vunpack.c.l.b16 %v3586
    %v3845 = vunpack.c.h.b16 %v3586
    %v3846 = vunpack.c.l.b16 %v3587
    %v3847 = vunpack.c.h.b16 %v3587
    %v3848 = vunpack.c.l.b16 %v3588
    %v3849 = vunpack.c.h.b16 %v3588
    %v3850 = vunpack.c.l.b16 %v3589
    %v3851 = vunpack.c.h.b16 %v3589
    %v3852 = vunpack.c.l.b16 %v3590
    %v3853 = vunpack.c.h.b16 %v3590
    %v3854 = vunpack.c.l.b16 %v3591
    %v3855 = vunpack.c.h.b16 %v3591
    %v3856 = vunpack.c.l.b16 %v3592
    %v3857 = vunpack.c.h.b16 %v3592
    %v3858 = vunpack.c.l.b16 %v3593
    %v3859 = vunpack.c.h.b16 %v3593
    %v3860 = vunpack.c.l.b16 %v3594
    %v3861 = vunpack.c.h.b16 %v3594
    %v3862 = vunpack.c.l.b16 %v3595
    %v3863 = vunpack.c.h.b16 %v3595
    %v3864 = vunpack.c.l.b16 %v3596
    %v3865 = vunpack.c.h.b16 %v3596
    %v3866 = vunpack.c.l.b16 %v3597
    %v3867 = vunpack.c.h.b16 %v3597
    %v3868 = vunpack.c.l.b16 %v3598
    %v3869 = vunpack.c.h.b16 %v3598
    %v3870 = vunpack.c.l.b16 %v3599
    %v3871 = vunpack.c.h.b16 %v3599
    %v3872 = vunpack.c.l.b16 %v3600
    %v3873 = vunpack.c.h.b16 %v3600
    %v3874 = vunpack.c.l.b16 %v3601
    %v3875 = vunpack.c.h.b16 %v3601
    %v3876 = vunpack.c.l.b16 %v3602
    %v3877 = vunpack.c.h.b16 %v3602
    %v3878 = vunpack.c.l.b16 %v3603
    %v3879 = vunpack.c.h.b16 %v3603
    %v3880 = vunpack.c.l.b16 %v3604
    %v3881 = vunpack.c.h.b16 %v3604
    %v3882 = vunpack.c.l.b16 %v3605
    %v3883 = vunpack.c.h.b16 %v3605
    %v3884 = vunpack.c.l.b16 %v3606
    %v3885 = vunpack.c.h.b16 %v3606
    %v3886 = vunpack.c.l.b16 %v3607
    %v3887 = vunpack.c.h.b16 %v3607
    %v3888 = vunpack.c.l.b16 %v3608
    %v3889 = vunpack.c.h.b16 %v3608
    %v3890 = vunpack.c.l.b16 %v3609
    %v3891 = vunpack.c.h.b16 %v3609
    %v3892 = vunpack.c.l.b16 %v3610
    %v3893 = vunpack.c.h.b16 %v3610
    %v3894 = vunpack.c.l.b16 %v3611
    %v3895 = vunpack.c.h.b16 %v3611
    %v3896 = vunpack.c.l.b16 %v3612
    %v3897 = vunpack.c.h.b16 %v3612
    %v3898 = vunpack.c.l.b16 %v3613
    %v3899 = vunpack.c.h.b16 %v3613
    %v3900 = vunpack.c.l.b16 %v3614
    %v3901 = vunpack.c.h.b16 %v3614
    %v3902 = vunpack.c.l.b16 %v3615
    %v3903 = vunpack.c.h.b16 %v3615
    %v3904 = vpack.c.b16 %v3718, %v3712
    %v3905 = vpack.c.b16 %v3719, %v3713
    %v3906 = vpack.c.b16 %v3720, %v3714
    %v3907 = vpack.c.b16 %v3721, %v3715
    %v3908 = vpack.c.b16 %v3722, %v3716
    %v3909 = vpack.c.b16 %v3723, %v3717
    %v3910 = vpack.c.b16 %v3730, %v3724
    %v3911 = vpack.c.b16 %v3731, %v3725
    %v3912 = vpack.c.b16 %v3732, %v3726
    %v3913 = vpack.c.b16 %v3733, %v3727
    %v3914 = vpack.c.b16 %v3734, %v3728
    %v3915 = vpack.c.b16 %v3735, %v3729
    %v3916 = vpack.c.b16 %v3742, %v3736
    %v3917 = vpack.c.b16 %v3743, %v3737
    %v3918 = vpack.c.b16 %v3744, %v3738
    %v3919 = vpack.c.b16 %v3745, %v3739
    %v3920 = vpack.c.b16 %v3746, %v3740
    %v3921 = vpack.c.b16 %v3747, %v3741
    %v3922 = vpack.c.b16 %v3754, %v3748
    %v3923 = vpack.c.b16 %v3755, %v3749
    %v3924 = vpack.c.b16 %v3756, %v3750
    %v3925 = vpack.c.b16 %v3757, %v3751
    %v3926 = vpack.c.b16 %v3758, %v3752
    %v3927 = vpack.c.b16 %v3759, %v3753
    %v3928 = vpack.c.b16 %v3766, %v3760
    %v3929 = vpack.c.b16 %v3767, %v3761
    %v3930 = vpack.c.b16 %v3768, %v3762
    %v3931 = vpack.c.b16 %v3769, %v3763
    %v3932 = vpack.c.b16 %v3770, %v3764
    %v3933 = vpack.c.b16 %v3771, %v3765
    %v3934 = vpack.c.b16 %v3778, %v3772
    %v3935 = vpack.c.b16 %v3779, %v3773
    %v3936 = vpack.c.b16 %v3780, %v3774
    %v3937 = vpack.c.b16 %v3781, %v3775
    %v3938 = vpack.c.b16 %v3782, %v3776
    %v3939 = vpack.c.b16 %v3783, %v3777
    %v3940 = vpack.c.b16 %v3790, %v3784
    %v3941 = vpack.c.b16 %v3791, %v3785
    %v3942 = vpack.c.b16 %v3792, %v3786
    %v3943 = vpack.c.b16 %v3793, %v3787
    %v3944 = vpack.c.b16 %v3794, %v3788
    %v3945 = vpack.c.b16 %v3795, %v3789
    %v3946 = vpack.c.b16 %v3802, %v3796
    %v3947 = vpack.c.b16 %v3803, %v3797
    %v3948 = vpack.c.b16 %v3804, %v3798
    %v3949 = vpack.c.b16 %v3805, %v3799
    %v3950 = vpack.c.b16 %v3806, %v3800
    %v3951 = vpack.c.b16 %v3807, %v3801
    %v3952 = vpack.c.b16 %v3814, %v3808
    %v3953 = vpack.c.b16 %v3815, %v3809
    %v3954 = vpack.c.b16 %v3816, %v3810
    %v3955 = vpack.c.b16 %v3817, %v3811
    %v3956 = vpack.c.b16 %v3818, %v3812
    %v3957 = vpack.c.b16 %v3819, %v3813
    %v3958 = vpack.c.b16 %v3826, %v3820
    %v3959 = vpack.c.b16 %v3827, %v3821
    %v3960 = vpack.c.b16 %v3828, %v3822
    %v3961 = vpack.c.b16 %v3829, %v3823
    %v3962 = vpack.c.b16 %v3830, %v3824
    %v3963 = vpack.c.b16 %v3831, %v3825
    %v3964 = vpack.c.b16 %v3838, %v3832
    %v3965 = vpack.c.b16 %v3839, %v3833
    %v3966 = vpack.c.b16 %v3840, %v3834
    %v3967 = vpack.c.b16 %v3841, %v3835
    %v3968 = vpack.c.b16 %v3842, %v3836
    %v3969 = vpack.c.b16 %v3843, %v3837
    %v3970 = vpack.c.b16 %v3850, %v3844
    %v3971 = vpack.c.b16 %v3851, %v3845
    %v3972 = vpack.c.b16 %v3852, %v3846
    %v3973 = vpack.c.b16 %v3853, %v3847
    %v3974 = vpack.c.b16 %v3854, %v3848
    %v3975 = vpack.c.b16 %v3855, %v3849
    %v3976 = vpack.c.b16 %v3862, %v3856
    %v3977 = vpack.c.b16 %v3863, %v3857
    %v3978 = vpack.c.b16 %v3864, %v3858
    %v3979 = vpack.c.b16 %v3865, %v3859
    %v3980 = vpack.c.b16 %v3866, %v3860
    %v3981 = vpack.c.b16 %v3867, %v3861
    %v3982 = vpack.c.b16 %v3874, %v3868
    %v3983 = vpack.c.b16 %v3875, %v3869
    %v3984 = vpack.c.b16 %v3876, %v3870
    %v3985 = vpack.c.b16 %v3877, %v3871
    %v3986 = vpack.c.b16 %v3878, %v3872
    %v3987 = vpack.c.b16 %v3879, %v3873
    %v3988 = vpack.c.b16 %v3886, %v3880
    %v3989 = vpack.c.b16 %v3887, %v3881
    %v3990 = vpack.c.b16 %v3888, %v3882
    %v3991 = vpack.c.b16 %v3889, %v3883
    %v3992 = vpack.c.b16 %v3890, %v3884
    %v3993 = vpack.c.b16 %v3891, %v3885
    %v3994 = vpack.c.b16 %v3898, %v3892
    %v3995 = vpack.c.b16 %v3899, %v3893
    %v3996 = vpack.c.b16 %v3900, %v3894
    %v3997 = vpack.c.b16 %v3901, %v3895
    %v3998 = vpack.c.b16 %v3902, %v3896
    %v3999 = vpack.c.b16 %v3903, %v3897
    %4096 = vmatprep.subr.bf16.mxu0 %v3905
    %4097 = vmatpush1.bf16.msra.mxu0 %v3904
    %4098 = vmatprep.subr.bf16.mxu0 %v3911
    %4099 = vmatpush1.bf16.msra.mxu0 %v3910
    %4100 = vmatprep.subr.bf16.mxu0 %v3917
    %4101 = vmatpush1.bf16.msra.mxu0 %v3916
    %4102 = vmatprep.subr.bf16.mxu0 %v3923
    %4103 = vmatpush1.bf16.msra.mxu0 %v3922
    %4104 = vmatprep.subr.bf16.mxu0 %v3929
    %4105 = vmatpush1.bf16.msra.mxu0 %v3928
    %4106 = vmatprep.subr.bf16.mxu0 %v3935
    %4107 = vmatpush1.bf16.msra.mxu0 %v3934
    %4108 = vmatprep.subr.bf16.mxu0 %v3941
    %4109 = vmatpush1.bf16.msra.mxu0 %v3940
    %4110 = vmatprep.subr.bf16.mxu0 %v3947
    %4111 = vmatpush1.bf16.msra.mxu0 %v3946
    %4112 = vmatprep.subr.bf16.mxu0 %v3953
    %4113 = vmatpush1.bf16.msra.mxu0 %v3952
    %4114 = vmatprep.subr.bf16.mxu0 %v3959
    %4115 = vmatpush1.bf16.msra.mxu0 %v3958
    %4116 = vmatprep.subr.bf16.mxu0 %v3965
    %4117 = vmatpush1.bf16.msra.mxu0 %v3964
    %4118 = vmatprep.subr.bf16.mxu0 %v3971
    %4119 = vmatpush1.bf16.msra.mxu0 %v3970
    %4120 = vmatprep.subr.bf16.mxu0 %v3977
    %4121 = vmatpush1.bf16.msra.mxu0 %v3976
    %4122 = vmatprep.subr.bf16.mxu0 %v3983
    %4123 = vmatpush1.bf16.msra.mxu0 %v3982
    %4124 = vmatprep.subr.bf16.mxu0 %v3989
    %4125 = vmatpush1.bf16.msra.mxu0 %v3988
    %4126 = vmatprep.subr.bf16.mxu0 %v3995
    %4127 = vmatpush1.bf16.msra.mxu0 %v3994
    %4128 = vmatprep.mubr.bf16.mxu0 %v3511
    %4129 = vmatmul.mubr.bf16.gmra.mrb[0].mxu0 %v3510
    %v4130 = vpop.f32.mrb[0].mxu0
    %v4131 = vadd.f32 0.0, %v4130
    %v4132 = vpop.f32.mrb[0].mxu0
    %v4133 = vadd.f32 0.0, %v4132
    %v4134 = vpop.f32.mrb[0].mxu0
    %v4135 = vpop.f32.mrb[0].mxu0
    %4136 = vdwg.mxu0
    %4137 = vmatprep.subr.bf16.mxu0 %v3907
    %4138 = vmatpush1.bf16.msra.mxu0 %v3906
    %4139 = vmatprep.subr.bf16.mxu0 %v3913
    %4140 = vmatpush1.bf16.msra.mxu0 %v3912
    %4141 = vmatprep.subr.bf16.mxu0 %v3919
    %4142 = vmatpush1.bf16.msra.mxu0 %v3918
    %4143 = vmatprep.subr.bf16.mxu0 %v3925
    %4144 = vmatpush1.bf16.msra.mxu0 %v3924
    %4145 = vmatprep.subr.bf16.mxu0 %v3931
    %4146 = vmatpush1.bf16.msra.mxu0 %v3930
    %4147 = vmatprep.subr.bf16.mxu0 %v3937
    %4148 = vmatpush1.bf16.msra.mxu0 %v3936
    %4149 = vmatprep.subr.bf16.mxu0 %v3943
    %4150 = vmatpush1.bf16.msra.mxu0 %v3942
    %4151 = vmatprep.subr.bf16.mxu0 %v3949
    %4152 = vmatpush1.bf16.msra.mxu0 %v3948
    %4153 = vmatprep.subr.bf16.mxu0 %v3955
    %4154 = vmatpush1.bf16.msra.mxu0 %v3954
    %4155 = vmatprep.subr.bf16.mxu0 %v3961
    %4156 = vmatpush1.bf16.msra.mxu0 %v3960
    %4157 = vmatprep.subr.bf16.mxu0 %v3967
    %4158 = vmatpush1.bf16.msra.mxu0 %v3966
    %4159 = vmatprep.subr.bf16.mxu0 %v3973
    %4160 = vmatpush1.bf16.msra.mxu0 %v3972
    %4161 = vmatprep.subr.bf16.mxu0 %v3979
    %4162 = vmatpush1.bf16.msra.mxu0 %v3978
    %4163 = vmatprep.subr.bf16.mxu0 %v3985
    %4164 = vmatpush1.bf16.msra.mxu0 %v3984
    %4165 = vmatprep.subr.bf16.mxu0 %v3991
    %4166 = vmatpush1.bf16.msra.mxu0 %v3990
    %4167 = vmatprep.subr.bf16.mxu0 %v3997
    %4168 = vmatpush1.bf16.msra.mxu0 %v3996
    %4169 = vmatprep.mubr.bf16.mxu0 %v3511
    %4170 = vmatmul.mubr.bf16.gmra.mrb[0].mxu0 %v3510
    %v4171 = vpop.f32.mrb[0].mxu0
    %v4172 = vadd.f32 0.0, %v4171
    %v4173 = vpop.f32.mrb[0].mxu0
    %v4174 = vadd.f32 0.0, %v4173
    %v4175 = vpop.f32.mrb[0].mxu0
    %v4176 = vpop.f32.mrb[0].mxu0
    %4177 = vdwg.mxu0
    %4178 = vmatprep.subr.bf16.mxu0 %v3909
    %4179 = vmatpush1.bf16.msra.mxu0 %v3908
    %4180 = vmatprep.subr.bf16.mxu0 %v3915
    %4181 = vmatpush1.bf16.msra.mxu0 %v3914
    %4182 = vmatprep.subr.bf16.mxu0 %v3921
    %4183 = vmatpush1.bf16.msra.mxu0 %v3920
    %4184 = vmatprep.subr.bf16.mxu0 %v3927
    %4185 = vmatpush1.bf16.msra.mxu0 %v3926
    %4186 = vmatprep.subr.bf16.mxu0 %v3933
    %4187 = vmatpush1.bf16.msra.mxu0 %v3932
    %4188 = vmatprep.subr.bf16.mxu0 %v3939
    %4189 = vmatpush1.bf16.msra.mxu0 %v3938
    %4190 = vmatprep.subr.bf16.mxu0 %v3945
    %4191 = vmatpush1.bf16.msra.mxu0 %v3944
    %4192 = vmatprep.subr.bf16.mxu0 %v3951
    %4193 = vmatpush1.bf16.msra.mxu0 %v3950
    %4194 = vmatprep.subr.bf16.mxu0 %v3957
    %4195 = vmatpush1.bf16.msra.mxu0 %v3956
    %4196 = vmatprep.subr.bf16.mxu0 %v3963
    %4197 = vmatpush1.bf16.msra.mxu0 %v3962
    %4198 = vmatprep.subr.bf16.mxu0 %v3969
    %4199 = vmatpush1.bf16.msra.mxu0 %v3968
    %4200 = vmatprep.subr.bf16.mxu0 %v3975
    %4201 = vmatpush1.bf16.msra.mxu0 %v3974
    %4202 = vmatprep.subr.bf16.mxu0 %v3981
    %4203 = vmatpush1.bf16.msra.mxu0 %v3980
    %4204 = vmatprep.subr.bf16.mxu0 %v3987
    %4205 = vmatpush1.bf16.msra.mxu0 %v3986
    %4206 = vmatprep.subr.bf16.mxu0 %v3993
    %4207 = vmatpush1.bf16.msra.mxu0 %v3992
    %4208 = vmatprep.subr.bf16.mxu0 %v3999
    %4209 = vmatpush1.bf16.msra.mxu0 %v3998
    %4210 = vmatprep.mubr.bf16.mxu0 %v3511
    %4211 = vmatmul.mubr.bf16.gmra.mrb[0].mxu0 %v3510
    %v4212 = vpop.f32.mrb[0].mxu0
    %v4213 = vadd.f32 0.0, %v4212
    %v4214 = vpop.f32.mrb[0].mxu0
    %v4215 = vadd.f32 0.0, %v4214
    %v4216 = vpop.f32.mrb[0].mxu0
    %v4217 = vpop.f32.mrb[0].mxu0
    %4218 = vdwg.mxu0
    %v4219 = vadd.f32 %v344, %v4131
    %v4220 = vadd.f32 %v346, %v4133
    %v4221 = vxor.u32 %v4219, 2147483648
    %v4222 = vxor.u32 %v4220, 2147483648
    %v4223 = vmul.f32 %v4221, 1.442695
    %v4224 = vpow.pop %v4223
    %v4225 = vmul.f32 %v4222, 1.442695
    %v4226 = vpow.pop %v4225
    %v4227 = vadd.f32 %v4224, 1.0
    %v4228 = vadd.f32 %v4226, 1.0
    %v4229 = vrcp.pop %v4227
    %v4230 = vmul.f32 1.0, %v4229
    %v4231 = vrcp.pop %v4228
    %v4232 = vmul.f32 1.0, %v4231
    %v4233 = vadd.f32 %v417, %v4172
    %v4234 = vadd.f32 %v419, %v4174
    %v4235 = vxor.u32 %v4233, 2147483648
    %v4236 = vxor.u32 %v4234, 2147483648
    %v4237 = vmul.f32 %v4235, 1.442695
    %v4238 = vpow.pop %v4237
    %v4239 = vmul.f32 %v4236, 1.442695
    %v4240 = vpow.pop %v4239
    %v4241 = vadd.f32 %v4238, 1.0
    %v4242 = vadd.f32 %v4240, 1.0
    %v4243 = vrcp.pop %v4241
    %v4244 = vmul.f32 1.0, %v4243
    %v4245 = vrcp.pop %v4242
    %v4246 = vmul.f32 1.0, %v4245
    %v4247 = vadd.f32 %v4213, %v513
    %v4248 = vadd.f32 %v4215, %v517
    %v4249 = vmul.f32 %v4230, %v4247
    %v4250 = vmul.f32 %v4232, %v4248
    %v4251 = vadd.f32 %v490, %v4249
    %v4252 = vadd.f32 %v492, %v4250
    %v4253 = vtanh.pop %v4251
    %v4254 = vtanh.pop %v4252
    %v4255 = vsub.f32 1.0, %v4244
    %v4256 = vsub.f32 1.0, %v4246
    %v4257 = vmul.f32 %v4255, %v4253
    %v4258 = vmul.f32 %v4256, %v4254
    %v4259 = vmul.f32 %v4244, %v3508
    %v4260 = vmul.f32 %v4246, %v3509
    %v4261 = vadd.f32 %v4257, %v4259
    %v4262 = vadd.f32 %v4258, %v4260
    %v4263 = vpack.c.bf16 %v4261, %v4261
    %v4264 = vpack.c.bf16 %v4262, %v4262
    %4265 = vst [vmem:[#allocation6 + $0x20] sm:$0xf] %v4263
    %4266 = vst [vmem:[#allocation6 + $0x28] sm:$0xf] %v4264
    %v4267 = vld [vmem:[#allocation8] sm:$0xff]
    %v4268 = vld [vmem:[#allocation8 + $0x8] sm:$0xff]
    %v4269 = vld [vmem:[#allocation8 + $0x10] sm:$0xff]
    %v4270 = vld [vmem:[#allocation8 + $0x18] sm:$0xff]
    %v4271 = vld [vmem:[#allocation8 + $0x20] sm:$0xff]
    %v4272 = vld [vmem:[#allocation8 + $0x28] sm:$0xff]
    %v4273 = vld [vmem:[#allocation8 + $0x30] sm:$0xff]
    %v4274 = vld [vmem:[#allocation8 + $0x38] sm:$0xff]
    %v4275 = vld [vmem:[#allocation8 + $0x40] sm:$0xff]
    %v4276 = vld [vmem:[#allocation8 + $0x48] sm:$0xff]
    %v4277 = vld [vmem:[#allocation8 + $0x50] sm:$0xff]
    %v4278 = vld [vmem:[#allocation8 + $0x58] sm:$0xff]
    %v4279 = vld [vmem:[#allocation8 + $0x60] sm:$0xff]
    %v4280 = vld [vmem:[#allocation8 + $0x68] sm:$0xff]
    %v4281 = vld [vmem:[#allocation8 + $0x70] sm:$0xff]
    %v4282 = vld [vmem:[#allocation8 + $0x78] sm:$0xff]
    %v4283 = vld [vmem:[#allocation8 + $0x80] sm:$0xff]
    %v4284 = vld [vmem:[#allocation8 + $0x88] sm:$0xff]
    %v4285 = vld [vmem:[#allocation8 + $0x90] sm:$0xff]
    %v4286 = vld [vmem:[#allocation8 + $0x98] sm:$0xff]
    %v4287 = vld [vmem:[#allocation8 + $0xa0] sm:$0xff]
    %v4288 = vld [vmem:[#allocation8 + $0xa8] sm:$0xff]
    %v4289 = vld [vmem:[#allocation8 + $0xb0] sm:$0xff]
    %v4290 = vld [vmem:[#allocation8 + $0xb8] sm:$0xff]
    %v4291 = vld [vmem:[#allocation8 + $0xc0] sm:$0xff]
    %v4292 = vld [vmem:[#allocation8 + $0xc8] sm:$0xff]
    %v4293 = vld [vmem:[#allocation8 + $0xd0] sm:$0xff]
    %v4294 = vld [vmem:[#allocation8 + $0xd8] sm:$0xff]
    %v4295 = vld [vmem:[#allocation8 + $0xe0] sm:$0xff]
    %v4296 = vld [vmem:[#allocation8 + $0xe8] sm:$0xff]
    %v4297 = vld [vmem:[#allocation8 + $0xf0] sm:$0xff]
    %v4298 = vld [vmem:[#allocation8 + $0xf8] sm:$0xff]
    %v4299 = vld [vmem:[#allocation8 + $0x100] sm:$0xff]
    %v4300 = vld [vmem:[#allocation8 + $0x108] sm:$0xff]
    %v4301 = vld [vmem:[#allocation8 + $0x110] sm:$0xff]
    %v4302 = vld [vmem:[#allocation8 + $0x118] sm:$0xff]
    %v4303 = vld [vmem:[#allocation8 + $0x120] sm:$0xff]
    %v4304 = vld [vmem:[#allocation8 + $0x128] sm:$0xff]
    %v4305 = vld [vmem:[#allocation8 + $0x130] sm:$0xff]
    %v4306 = vld [vmem:[#allocation8 + $0x138] sm:$0xff]
    %v4307 = vld [vmem:[#allocation8 + $0x140] sm:$0xff]
    %v4308 = vld [vmem:[#allocation8 + $0x148] sm:$0xff]
    %v4309 = vld [vmem:[#allocation8 + $0x150] sm:$0xff]
    %v4310 = vld [vmem:[#allocation8 + $0x158] sm:$0xff]
    %v4311 = vld [vmem:[#allocation8 + $0x160] sm:$0xff]
    %v4312 = vld [vmem:[#allocation8 + $0x168] sm:$0xff]
    %v4313 = vld [vmem:[#allocation8 + $0x170] sm:$0xff]
    %v4314 = vld [vmem:[#allocation8 + $0x178] sm:$0xff]
    %v4315 = vld [vmem:[#allocation8 + $0x180] sm:$0xff]
    %v4316 = vld [vmem:[#allocation8 + $0x188] sm:$0xff]
    %v4317 = vld [vmem:[#allocation8 + $0x190] sm:$0xff]
    %v4318 = vld [vmem:[#allocation8 + $0x198] sm:$0xff]
    %v4319 = vld [vmem:[#allocation8 + $0x1a0] sm:$0xff]
    %v4320 = vld [vmem:[#allocation8 + $0x1a8] sm:$0xff]
    %v4321 = vld [vmem:[#allocation8 + $0x1b0] sm:$0xff]
    %v4322 = vld [vmem:[#allocation8 + $0x1b8] sm:$0xff]
    %v4323 = vld [vmem:[#allocation8 + $0x1c0] sm:$0xff]
    %v4324 = vld [vmem:[#allocation8 + $0x1c8] sm:$0xff]
    %v4325 = vld [vmem:[#allocation8 + $0x1d0] sm:$0xff]
    %v4326 = vld [vmem:[#allocation8 + $0x1d8] sm:$0xff]
    %v4327 = vld [vmem:[#allocation8 + $0x1e0] sm:$0xff]
    %v4328 = vld [vmem:[#allocation8 + $0x1e8] sm:$0xff]
    %v4329 = vld [vmem:[#allocation8 + $0x1f0] sm:$0xff]
    %v4330 = vld [vmem:[#allocation8 + $0x1f8] sm:$0xff]
    %v4331 = vld [vmem:[#allocation8 + $0x200] sm:$0xff]
    %v4332 = vld [vmem:[#allocation8 + $0x208] sm:$0xff]
    %v4333 = vld [vmem:[#allocation8 + $0x210] sm:$0xff]
    %v4334 = vld [vmem:[#allocation8 + $0x218] sm:$0xff]
    %v4335 = vld [vmem:[#allocation8 + $0x220] sm:$0xff]
    %v4336 = vld [vmem:[#allocation8 + $0x228] sm:$0xff]
    %v4337 = vld [vmem:[#allocation8 + $0x230] sm:$0xff]
    %v4338 = vld [vmem:[#allocation8 + $0x238] sm:$0xff]
    %v4339 = vld [vmem:[#allocation8 + $0x240] sm:$0xff]
    %v4340 = vld [vmem:[#allocation8 + $0x248] sm:$0xff]
    %v4341 = vld [vmem:[#allocation8 + $0x250] sm:$0xff]
    %v4342 = vld [vmem:[#allocation8 + $0x258] sm:$0xff]
    %v4343 = vld [vmem:[#allocation8 + $0x260] sm:$0xff]
    %v4344 = vld [vmem:[#allocation8 + $0x268] sm:$0xff]
    %v4345 = vld [vmem:[#allocation8 + $0x270] sm:$0xff]
    %v4346 = vld [vmem:[#allocation8 + $0x278] sm:$0xff]
    %v4347 = vld [vmem:[#allocation8 + $0x280] sm:$0xff]
    %v4348 = vld [vmem:[#allocation8 + $0x288] sm:$0xff]
    %v4349 = vld [vmem:[#allocation8 + $0x290] sm:$0xff]
    %v4350 = vld [vmem:[#allocation8 + $0x298] sm:$0xff]
    %v4351 = vld [vmem:[#allocation8 + $0x2a0] sm:$0xff]
    %v4352 = vld [vmem:[#allocation8 + $0x2a8] sm:$0xff]
    %v4353 = vld [vmem:[#allocation8 + $0x2b0] sm:$0xff]
    %v4354 = vld [vmem:[#allocation8 + $0x2b8] sm:$0xff]
    %v4355 = vld [vmem:[#allocation8 + $0x2c0] sm:$0xff]
    %v4356 = vld [vmem:[#allocation8 + $0x2c8] sm:$0xff]
    %v4357 = vld [vmem:[#allocation8 + $0x2d0] sm:$0xff]
    %v4358 = vld [vmem:[#allocation8 + $0x2d8] sm:$0xff]
    %v4359 = vld [vmem:[#allocation8 + $0x2e0] sm:$0xff]
    %v4360 = vld [vmem:[#allocation8 + $0x2e8] sm:$0xff]
    %v4361 = vld [vmem:[#allocation8 + $0x2f0] sm:$0xff]
    %v4362 = vld [vmem:[#allocation8 + $0x2f8] sm:$0xff]
    %v4459 = vunpack.c.l.b16 %v4267
    %v4460 = vunpack.c.h.b16 %v4267
    %v4461 = vunpack.c.l.b16 %v4268
    %v4462 = vunpack.c.h.b16 %v4268
    %v4463 = vunpack.c.l.b16 %v4269
    %v4464 = vunpack.c.h.b16 %v4269
    %v4465 = vunpack.c.l.b16 %v4270
    %v4466 = vunpack.c.h.b16 %v4270
    %v4467 = vunpack.c.l.b16 %v4271
    %v4468 = vunpack.c.h.b16 %v4271
    %v4469 = vunpack.c.l.b16 %v4272
    %v4470 = vunpack.c.h.b16 %v4272
    %v4471 = vunpack.c.l.b16 %v4273
    %v4472 = vunpack.c.h.b16 %v4273
    %v4473 = vunpack.c.l.b16 %v4274
    %v4474 = vunpack.c.h.b16 %v4274
    %v4475 = vunpack.c.l.b16 %v4275
    %v4476 = vunpack.c.h.b16 %v4275
    %v4477 = vunpack.c.l.b16 %v4276
    %v4478 = vunpack.c.h.b16 %v4276
    %v4479 = vunpack.c.l.b16 %v4277
    %v4480 = vunpack.c.h.b16 %v4277
    %v4481 = vunpack.c.l.b16 %v4278
    %v4482 = vunpack.c.h.b16 %v4278
    %v4483 = vunpack.c.l.b16 %v4279
    %v4484 = vunpack.c.h.b16 %v4279
    %v4485 = vunpack.c.l.b16 %v4280
    %v4486 = vunpack.c.h.b16 %v4280
    %v4487 = vunpack.c.l.b16 %v4281
    %v4488 = vunpack.c.h.b16 %v4281
    %v4489 = vunpack.c.l.b16 %v4282
    %v4490 = vunpack.c.h.b16 %v4282
    %v4491 = vunpack.c.l.b16 %v4283
    %v4492 = vunpack.c.h.b16 %v4283
    %v4493 = vunpack.c.l.b16 %v4284
    %v4494 = vunpack.c.h.b16 %v4284
    %v4495 = vunpack.c.l.b16 %v4285
    %v4496 = vunpack.c.h.b16 %v4285
    %v4497 = vunpack.c.l.b16 %v4286
    %v4498 = vunpack.c.h.b16 %v4286
    %v4499 = vunpack.c.l.b16 %v4287
    %v4500 = vunpack.c.h.b16 %v4287
    %v4501 = vunpack.c.l.b16 %v4288
    %v4502 = vunpack.c.h.b16 %v4288
    %v4503 = vunpack.c.l.b16 %v4289
    %v4504 = vunpack.c.h.b16 %v4289
    %v4505 = vunpack.c.l.b16 %v4290
    %v4506 = vunpack.c.h.b16 %v4290
    %v4507 = vunpack.c.l.b16 %v4291
    %v4508 = vunpack.c.h.b16 %v4291
    %v4509 = vunpack.c.l.b16 %v4292
    %v4510 = vunpack.c.h.b16 %v4292
    %v4511 = vunpack.c.l.b16 %v4293
    %v4512 = vunpack.c.h.b16 %v4293
    %v4513 = vunpack.c.l.b16 %v4294
    %v4514 = vunpack.c.h.b16 %v4294
    %v4515 = vunpack.c.l.b16 %v4295
    %v4516 = vunpack.c.h.b16 %v4295
    %v4517 = vunpack.c.l.b16 %v4296
    %v4518 = vunpack.c.h.b16 %v4296
    %v4519 = vunpack.c.l.b16 %v4297
    %v4520 = vunpack.c.h.b16 %v4297
    %v4521 = vunpack.c.l.b16 %v4298
    %v4522 = vunpack.c.h.b16 %v4298
    %v4523 = vunpack.c.l.b16 %v4299
    %v4524 = vunpack.c.h.b16 %v4299
    %v4525 = vunpack.c.l.b16 %v4300
    %v4526 = vunpack.c.h.b16 %v4300
    %v4527 = vunpack.c.l.b16 %v4301
    %v4528 = vunpack.c.h.b16 %v4301
    %v4529 = vunpack.c.l.b16 %v4302
    %v4530 = vunpack.c.h.b16 %v4302
    %v4531 = vunpack.c.l.b16 %v4303
    %v4532 = vunpack.c.h.b16 %v4303
    %v4533 = vunpack.c.l.b16 %v4304
    %v4534 = vunpack.c.h.b16 %v4304
    %v4535 = vunpack.c.l.b16 %v4305
    %v4536 = vunpack.c.h.b16 %v4305
    %v4537 = vunpack.c.l.b16 %v4306
    %v4538 = vunpack.c.h.b16 %v4306
    %v4539 = vunpack.c.l.b16 %v4307
    %v4540 = vunpack.c.h.b16 %v4307
    %v4541 = vunpack.c.l.b16 %v4308
    %v4542 = vunpack.c.h.b16 %v4308
    %v4543 = vunpack.c.l.b16 %v4309
    %v4544 = vunpack.c.h.b16 %v4309
    %v4545 = vunpack.c.l.b16 %v4310
    %v4546 = vunpack.c.h.b16 %v4310
    %v4547 = vunpack.c.l.b16 %v4311
    %v4548 = vunpack.c.h.b16 %v4311
    %v4549 = vunpack.c.l.b16 %v4312
    %v4550 = vunpack.c.h.b16 %v4312
    %v4551 = vunpack.c.l.b16 %v4313
    %v4552 = vunpack.c.h.b16 %v4313
    %v4553 = vunpack.c.l.b16 %v4314
    %v4554 = vunpack.c.h.b16 %v4314
    %v4555 = vunpack.c.l.b16 %v4315
    %v4556 = vunpack.c.h.b16 %v4315
    %v4557 = vunpack.c.l.b16 %v4316
    %v4558 = vunpack.c.h.b16 %v4316
    %v4559 = vunpack.c.l.b16 %v4317
    %v4560 = vunpack.c.h.b16 %v4317
    %v4561 = vunpack.c.l.b16 %v4318
    %v4562 = vunpack.c.h.b16 %v4318
    %v4563 = vunpack.c.l.b16 %v4319
    %v4564 = vunpack.c.h.b16 %v4319
    %v4565 = vunpack.c.l.b16 %v4320
    %v4566 = vunpack.c.h.b16 %v4320
    %v4567 = vunpack.c.l.b16 %v4321
    %v4568 = vunpack.c.h.b16 %v4321
    %v4569 = vunpack.c.l.b16 %v4322
    %v4570 = vunpack.c.h.b16 %v4322
    %v4571 = vunpack.c.l.b16 %v4323
    %v4572 = vunpack.c.h.b16 %v4323
    %v4573 = vunpack.c.l.b16 %v4324
    %v4574 = vunpack.c.h.b16 %v4324
    %v4575 = vunpack.c.l.b16 %v4325
    %v4576 = vunpack.c.h.b16 %v4325
    %v4577 = vunpack.c.l.b16 %v4326
    %v4578 = vunpack.c.h.b16 %v4326
    %v4579 = vunpack.c.l.b16 %v4327
    %v4580 = vunpack.c.h.b16 %v4327
    %v4581 = vunpack.c.l.b16 %v4328
    %v4582 = vunpack.c.h.b16 %v4328
    %v4583 = vunpack.c.l.b16 %v4329
    %v4584 = vunpack.c.h.b16 %v4329
    %v4585 = vunpack.c.l.b16 %v4330
    %v4586 = vunpack.c.h.b16 %v4330
    %v4587 = vunpack.c.l.b16 %v4331
    %v4588 = vunpack.c.h.b16 %v4331
    %v4589 = vunpack.c.l.b16 %v4332
    %v4590 = vunpack.c.h.b16 %v4332
    %v4591 = vunpack.c.l.b16 %v4333
    %v4592 = vunpack.c.h.b16 %v4333
    %v4593 = vunpack.c.l.b16 %v4334
    %v4594 = vunpack.c.h.b16 %v4334
    %v4595 = vunpack.c.l.b16 %v4335
    %v4596 = vunpack.c.h.b16 %v4335
    %v4597 = vunpack.c.l.b16 %v4336
    %v4598 = vunpack.c.h.b16 %v4336
    %v4599 = vunpack.c.l.b16 %v4337
    %v4600 = vunpack.c.h.b16 %v4337
    %v4601 = vunpack.c.l.b16 %v4338
    %v4602 = vunpack.c.h.b16 %v4338
    %v4603 = vunpack.c.l.b16 %v4339
    %v4604 = vunpack.c.h.b16 %v4339
    %v4605 = vunpack.c.l.b16 %v4340
    %v4606 = vunpack.c.h.b16 %v4340
    %v4607 = vunpack.c.l.b16 %v4341
    %v4608 = vunpack.c.h.b16 %v4341
    %v4609 = vunpack.c.l.b16 %v4342
    %v4610 = vunpack.c.h.b16 %v4342
    %v4611 = vunpack.c.l.b16 %v4343
    %v4612 = vunpack.c.h.b16 %v4343
    %v4613 = vunpack.c.l.b16 %v4344
    %v4614 = vunpack.c.h.b16 %v4344
    %v4615 = vunpack.c.l.b16 %v4345
    %v4616 = vunpack.c.h.b16 %v4345
    %v4617 = vunpack.c.l.b16 %v4346
    %v4618 = vunpack.c.h.b16 %v4346
    %v4619 = vunpack.c.l.b16 %v4347
    %v4620 = vunpack.c.h.b16 %v4347
    %v4621 = vunpack.c.l.b16 %v4348
    %v4622 = vunpack.c.h.b16 %v4348
    %v4623 = vunpack.c.l.b16 %v4349
    %v4624 = vunpack.c.h.b16 %v4349
    %v4625 = vunpack.c.l.b16 %v4350
    %v4626 = vunpack.c.h.b16 %v4350
    %v4627 = vunpack.c.l.b16 %v4351
    %v4628 = vunpack.c.h.b16 %v4351
    %v4629 = vunpack.c.l.b16 %v4352
    %v4630 = vunpack.c.h.b16 %v4352
    %v4631 = vunpack.c.l.b16 %v4353
    %v4632 = vunpack.c.h.b16 %v4353
    %v4633 = vunpack.c.l.b16 %v4354
    %v4634 = vunpack.c.h.b16 %v4354
    %v4635 = vunpack.c.l.b16 %v4355
    %v4636 = vunpack.c.h.b16 %v4355
    %v4637 = vunpack.c.l.b16 %v4356
    %v4638 = vunpack.c.h.b16 %v4356
    %v4639 = vunpack.c.l.b16 %v4357
    %v4640 = vunpack.c.h.b16 %v4357
    %v4641 = vunpack.c.l.b16 %v4358
    %v4642 = vunpack.c.h.b16 %v4358
    %v4643 = vunpack.c.l.b16 %v4359
    %v4644 = vunpack.c.h.b16 %v4359
    %v4645 = vunpack.c.l.b16 %v4360
    %v4646 = vunpack.c.h.b16 %v4360
    %v4647 = vunpack.c.l.b16 %v4361
    %v4648 = vunpack.c.h.b16 %v4361
    %v4649 = vunpack.c.l.b16 %v4362
    %v4650 = vunpack.c.h.b16 %v4362
    %v4651 = vpack.c.b16 %v4465, %v4459
    %v4652 = vpack.c.b16 %v4466, %v4460
    %v4653 = vpack.c.b16 %v4467, %v4461
    %v4654 = vpack.c.b16 %v4468, %v4462
    %v4655 = vpack.c.b16 %v4469, %v4463
    %v4656 = vpack.c.b16 %v4470, %v4464
    %v4657 = vpack.c.b16 %v4477, %v4471
    %v4658 = vpack.c.b16 %v4478, %v4472
    %v4659 = vpack.c.b16 %v4479, %v4473
    %v4660 = vpack.c.b16 %v4480, %v4474
    %v4661 = vpack.c.b16 %v4481, %v4475
    %v4662 = vpack.c.b16 %v4482, %v4476
    %v4663 = vpack.c.b16 %v4489, %v4483
    %v4664 = vpack.c.b16 %v4490, %v4484
    %v4665 = vpack.c.b16 %v4491, %v4485
    %v4666 = vpack.c.b16 %v4492, %v4486
    %v4667 = vpack.c.b16 %v4493, %v4487
    %v4668 = vpack.c.b16 %v4494, %v4488
    %v4669 = vpack.c.b16 %v4501, %v4495
    %v4670 = vpack.c.b16 %v4502, %v4496
    %v4671 = vpack.c.b16 %v4503, %v4497
    %v4672 = vpack.c.b16 %v4504, %v4498
    %v4673 = vpack.c.b16 %v4505, %v4499
    %v4674 = vpack.c.b16 %v4506, %v4500
    %v4675 = vpack.c.b16 %v4513, %v4507
    %v4676 = vpack.c.b16 %v4514, %v4508
    %v4677 = vpack.c.b16 %v4515, %v4509
    %v4678 = vpack.c.b16 %v4516, %v4510
    %v4679 = vpack.c.b16 %v4517, %v4511
    %v4680 = vpack.c.b16 %v4518, %v4512
    %v4681 = vpack.c.b16 %v4525, %v4519
    %v4682 = vpack.c.b16 %v4526, %v4520
    %v4683 = vpack.c.b16 %v4527, %v4521
    %v4684 = vpack.c.b16 %v4528, %v4522
    %v4685 = vpack.c.b16 %v4529, %v4523
    %v4686 = vpack.c.b16 %v4530, %v4524
    %v4687 = vpack.c.b16 %v4537, %v4531
    %v4688 = vpack.c.b16 %v4538, %v4532
    %v4689 = vpack.c.b16 %v4539, %v4533
    %v4690 = vpack.c.b16 %v4540, %v4534
    %v4691 = vpack.c.b16 %v4541, %v4535
    %v4692 = vpack.c.b16 %v4542, %v4536
    %v4693 = vpack.c.b16 %v4549, %v4543
    %v4694 = vpack.c.b16 %v4550, %v4544
    %v4695 = vpack.c.b16 %v4551, %v4545
    %v4696 = vpack.c.b16 %v4552, %v4546
    %v4697 = vpack.c.b16 %v4553, %v4547
    %v4698 = vpack.c.b16 %v4554, %v4548
    %v4699 = vpack.c.b16 %v4561, %v4555
    %v4700 = vpack.c.b16 %v4562, %v4556
    %v4701 = vpack.c.b16 %v4563, %v4557
    %v4702 = vpack.c.b16 %v4564, %v4558
    %v4703 = vpack.c.b16 %v4565, %v4559
    %v4704 = vpack.c.b16 %v4566, %v4560
    %v4705 = vpack.c.b16 %v4573, %v4567
    %v4706 = vpack.c.b16 %v4574, %v4568
    %v4707 = vpack.c.b16 %v4575, %v4569
    %v4708 = vpack.c.b16 %v4576, %v4570
    %v4709 = vpack.c.b16 %v4577, %v4571
    %v4710 = vpack.c.b16 %v4578, %v4572
    %v4711 = vpack.c.b16 %v4585, %v4579
    %v4712 = vpack.c.b16 %v4586, %v4580
    %v4713 = vpack.c.b16 %v4587, %v4581
    %v4714 = vpack.c.b16 %v4588, %v4582
    %v4715 = vpack.c.b16 %v4589, %v4583
    %v4716 = vpack.c.b16 %v4590, %v4584
    %v4717 = vpack.c.b16 %v4597, %v4591
    %v4718 = vpack.c.b16 %v4598, %v4592
    %v4719 = vpack.c.b16 %v4599, %v4593
    %v4720 = vpack.c.b16 %v4600, %v4594
    %v4721 = vpack.c.b16 %v4601, %v4595
    %v4722 = vpack.c.b16 %v4602, %v4596
    %v4723 = vpack.c.b16 %v4609, %v4603
    %v4724 = vpack.c.b16 %v4610, %v4604
    %v4725 = vpack.c.b16 %v4611, %v4605
    %v4726 = vpack.c.b16 %v4612, %v4606
    %v4727 = vpack.c.b16 %v4613, %v4607
    %v4728 = vpack.c.b16 %v4614, %v4608
    %v4729 = vpack.c.b16 %v4621, %v4615
    %v4730 = vpack.c.b16 %v4622, %v4616
    %v4731 = vpack.c.b16 %v4623, %v4617
    %v4732 = vpack.c.b16 %v4624, %v4618
    %v4733 = vpack.c.b16 %v4625, %v4619
    %v4734 = vpack.c.b16 %v4626, %v4620
    %v4735 = vpack.c.b16 %v4633, %v4627
    %v4736 = vpack.c.b16 %v4634, %v4628
    %v4737 = vpack.c.b16 %v4635, %v4629
    %v4738 = vpack.c.b16 %v4636, %v4630
    %v4739 = vpack.c.b16 %v4637, %v4631
    %v4740 = vpack.c.b16 %v4638, %v4632
    %v4741 = vpack.c.b16 %v4645, %v4639
    %v4742 = vpack.c.b16 %v4646, %v4640
    %v4743 = vpack.c.b16 %v4647, %v4641
    %v4744 = vpack.c.b16 %v4648, %v4642
    %v4745 = vpack.c.b16 %v4649, %v4643
    %v4746 = vpack.c.b16 %v4650, %v4644
    %4843 = vmatprep.subr.bf16.mxu0 %v4652
    %4844 = vmatpush1.bf16.msra.mxu0 %v4651
    %4845 = vmatprep.subr.bf16.mxu0 %v4658
    %4846 = vmatpush1.bf16.msra.mxu0 %v4657
    %4847 = vmatprep.subr.bf16.mxu0 %v4664
    %4848 = vmatpush1.bf16.msra.mxu0 %v4663
    %4849 = vmatprep.subr.bf16.mxu0 %v4670
    %4850 = vmatpush1.bf16.msra.mxu0 %v4669
    %4851 = vmatprep.subr.bf16.mxu0 %v4676
    %4852 = vmatpush1.bf16.msra.mxu0 %v4675
    %4853 = vmatprep.subr.bf16.mxu0 %v4682
    %4854 = vmatpush1.bf16.msra.mxu0 %v4681
    %4855 = vmatprep.subr.bf16.mxu0 %v4688
    %4856 = vmatpush1.bf16.msra.mxu0 %v4687
    %4857 = vmatprep.subr.bf16.mxu0 %v4694
    %4858 = vmatpush1.bf16.msra.mxu0 %v4693
    %4859 = vmatprep.subr.bf16.mxu0 %v4700
    %4860 = vmatpush1.bf16.msra.mxu0 %v4699
    %4861 = vmatprep.subr.bf16.mxu0 %v4706
    %4862 = vmatpush1.bf16.msra.mxu0 %v4705
    %4863 = vmatprep.subr.bf16.mxu0 %v4712
    %4864 = vmatpush1.bf16.msra.mxu0 %v4711
    %4865 = vmatprep.subr.bf16.mxu0 %v4718
    %4866 = vmatpush1.bf16.msra.mxu0 %v4717
    %4867 = vmatprep.subr.bf16.mxu0 %v4724
    %4868 = vmatpush1.bf16.msra.mxu0 %v4723
    %4869 = vmatprep.subr.bf16.mxu0 %v4730
    %4870 = vmatpush1.bf16.msra.mxu0 %v4729
    %4871 = vmatprep.subr.bf16.mxu0 %v4736
    %4872 = vmatpush1.bf16.msra.mxu0 %v4735
    %4873 = vmatprep.subr.bf16.mxu0 %v4742
    %4874 = vmatpush1.bf16.msra.mxu0 %v4741
    %4875 = vmatprep.mubr.bf16.mxu0 %v4264
    %4876 = vmatmul.mubr.bf16.gmra.mrb[0].mxu0 %v4263
    %v4877 = vpop.f32.mrb[0].mxu0
    %v4878 = vadd.f32 0.0, %v4877
    %v4879 = vpop.f32.mrb[0].mxu0
    %v4880 = vadd.f32 0.0, %v4879
    %v4881 = vpop.f32.mrb[0].mxu0
    %v4882 = vpop.f32.mrb[0].mxu0
    %4883 = vdwg.mxu0
    %4884 = vmatprep.subr.bf16.mxu0 %v4654
    %4885 = vmatpush1.bf16.msra.mxu0 %v4653
    %4886 = vmatprep.subr.bf16.mxu0 %v4660
    %4887 = vmatpush1.bf16.msra.mxu0 %v4659
    %4888 = vmatprep.subr.bf16.mxu0 %v4666
    %4889 = vmatpush1.bf16.msra.mxu0 %v4665
    %4890 = vmatprep.subr.bf16.mxu0 %v4672
    %4891 = vmatpush1.bf16.msra.mxu0 %v4671
    %4892 = vmatprep.subr.bf16.mxu0 %v4678
    %4893 = vmatpush1.bf16.msra.mxu0 %v4677
    %4894 = vmatprep.subr.bf16.mxu0 %v4684
    %4895 = vmatpush1.bf16.msra.mxu0 %v4683
    %4896 = vmatprep.subr.bf16.mxu0 %v4690
    %4897 = vmatpush1.bf16.msra.mxu0 %v4689
    %4898 = vmatprep.subr.bf16.mxu0 %v4696
    %4899 = vmatpush1.bf16.msra.mxu0 %v4695
    %4900 = vmatprep.subr.bf16.mxu0 %v4702
    %4901 = vmatpush1.bf16.msra.mxu0 %v4701
    %4902 = vmatprep.subr.bf16.mxu0 %v4708
    %4903 = vmatpush1.bf16.msra.mxu0 %v4707
    %4904 = vmatprep.subr.bf16.mxu0 %v4714
    %4905 = vmatpush1.bf16.msra.mxu0 %v4713
    %4906 = vmatprep.subr.bf16.mxu0 %v4720
    %4907 = vmatpush1.bf16.msra.mxu0 %v4719
    %4908 = vmatprep.subr.bf16.mxu0 %v4726
    %4909 = vmatpush1.bf16.msra.mxu0 %v4725
    %4910 = vmatprep.subr.bf16.mxu0 %v4732
    %4911 = vmatpush1.bf16.msra.mxu0 %v4731
    %4912 = vmatprep.subr.bf16.mxu0 %v4738
    %4913 = vmatpush1.bf16.msra.mxu0 %v4737
    %4914 = vmatprep.subr.bf16.mxu0 %v4744
    %4915 = vmatpush1.bf16.msra.mxu0 %v4743
    %4916 = vmatprep.mubr.bf16.mxu0 %v4264
    %4917 = vmatmul.mubr.bf16.gmra.mrb[0].mxu0 %v4263
    %v4918 = vpop.f32.mrb[0].mxu0
    %v4919 = vadd.f32 0.0, %v4918
    %v4920 = vpop.f32.mrb[0].mxu0
    %v4921 = vadd.f32 0.0, %v4920
    %v4922 = vpop.f32.mrb[0].mxu0
    %v4923 = vpop.f32.mrb[0].mxu0
    %4924 = vdwg.mxu0
    %4925 = vmatprep.subr.bf16.mxu0 %v4656
    %4926 = vmatpush1.bf16.msra.mxu0 %v4655
    %4927 = vmatprep.subr.bf16.mxu0 %v4662
    %4928 = vmatpush1.bf16.msra.mxu0 %v4661
    %4929 = vmatprep.subr.bf16.mxu0 %v4668
    %4930 = vmatpush1.bf16.msra.mxu0 %v4667
    %4931 = vmatprep.subr.bf16.mxu0 %v4674
    %4932 = vmatpush1.bf16.msra.mxu0 %v4673
    %4933 = vmatprep.subr.bf16.mxu0 %v4680
    %4934 = vmatpush1.bf16.msra.mxu0 %v4679
    %4935 = vmatprep.subr.bf16.mxu0 %v4686
    %4936 = vmatpush1.bf16.msra.mxu0 %v4685
    %4937 = vmatprep.subr.bf16.mxu0 %v4692
    %4938 = vmatpush1.bf16.msra.mxu0 %v4691
    %4939 = vmatprep.subr.bf16.mxu0 %v4698
    %4940 = vmatpush1.bf16.msra.mxu0 %v4697
    %4941 = vmatprep.subr.bf16.mxu0 %v4704
    %4942 = vmatpush1.bf16.msra.mxu0 %v4703
    %4943 = vmatprep.subr.bf16.mxu0 %v4710
    %4944 = vmatpush1.bf16.msra.mxu0 %v4709
    %4945 = vmatprep.subr.bf16.mxu0 %v4716
    %4946 = vmatpush1.bf16.msra.mxu0 %v4715
    %4947 = vmatprep.subr.bf16.mxu0 %v4722
    %4948 = vmatpush1.bf16.msra.mxu0 %v4721
    %4949 = vmatprep.subr.bf16.mxu0 %v4728
    %4950 = vmatpush1.bf16.msra.mxu0 %v4727
    %4951 = vmatprep.subr.bf16.mxu0 %v4734
    %4952 = vmatpush1.bf16.msra.mxu0 %v4733
    %4953 = vmatprep.subr.bf16.mxu0 %v4740
    %4954 = vmatpush1.bf16.msra.mxu0 %v4739
    %4955 = vmatprep.subr.bf16.mxu0 %v4746
    %4956 = vmatpush1.bf16.msra.mxu0 %v4745
    %4957 = vmatprep.mubr.bf16.mxu0 %v4264
    %4958 = vmatmul.mubr.bf16.gmra.mrb[0].mxu0 %v4263
    %v4959 = vpop.f32.mrb[0].mxu0
    %v4960 = vadd.f32 0.0, %v4959
    %v4961 = vpop.f32.mrb[0].mxu0
    %v4962 = vadd.f32 0.0, %v4961
    %v4963 = vpop.f32.mrb[0].mxu0
    %v4964 = vpop.f32.mrb[0].mxu0
    %4965 = vdwg.mxu0
    %v4966 = vadd.f32 %v348, %v4878
    %v4967 = vadd.f32 %v350, %v4880
    %v4968 = vxor.u32 %v4966, 2147483648
    %v4969 = vxor.u32 %v4967, 2147483648
    %v4970 = vmul.f32 %v4968, 1.442695
    %v4971 = vpow.pop %v4970
    %v4972 = vmul.f32 %v4969, 1.442695
    %v4973 = vpow.pop %v4972
    %v4974 = vadd.f32 %v4971, 1.0
    %v4975 = vadd.f32 %v4973, 1.0
    %v4976 = vrcp.pop %v4974
    %v4977 = vmul.f32 1.0, %v4976
    %v4978 = vrcp.pop %v4975
    %v4979 = vmul.f32 1.0, %v4978
    %v4980 = vadd.f32 %v421, %v4919
    %v4981 = vadd.f32 %v423, %v4921
    %v4982 = vxor.u32 %v4980, 2147483648
    %v4983 = vxor.u32 %v4981, 2147483648
    %v4984 = vmul.f32 %v4982, 1.442695
    %v4985 = vpow.pop %v4984
    %v4986 = vmul.f32 %v4983, 1.442695
    %v4987 = vpow.pop %v4986
    %v4988 = vadd.f32 %v4985, 1.0
    %v4989 = vadd.f32 %v4987, 1.0
    %v4990 = vrcp.pop %v4988
    %v4991 = vmul.f32 1.0, %v4990
    %v4992 = vrcp.pop %v4989
    %v4993 = vmul.f32 1.0, %v4992
    %v4994 = vadd.f32 %v4960, %v513
    %v4995 = vadd.f32 %v4962, %v517
    %v4996 = vmul.f32 %v4977, %v4994
    %v4997 = vmul.f32 %v4979, %v4995
    %v4998 = vadd.f32 %v494, %v4996
    %v4999 = vadd.f32 %v496, %v4997
    %v5000 = vtanh.pop %v4998
    %v5001 = vtanh.pop %v4999
    %v5002 = vsub.f32 1.0, %v4991
    %v5003 = vsub.f32 1.0, %v4993
    %v5004 = vmul.f32 %v5002, %v5000
    %v5005 = vmul.f32 %v5003, %v5001
    %v5006 = vmul.f32 %v4991, %v4261
    %v5007 = vmul.f32 %v4993, %v4262
    %v5008 = vadd.f32 %v5004, %v5006
    %v5009 = vadd.f32 %v5005, %v5007
    %v5010 = vpack.c.bf16 %v5008, %v5008
    %v5011 = vpack.c.bf16 %v5009, %v5009
    %v5014 = vrot.slane %v5010, 4
    %v5015 = vrot.slane %v5011, 4
    %5018 = vst [vmem:[#allocation6 + $0x20] sm:$0xf0] %v5014
    %5019 = vst [vmem:[#allocation6 + $0x28] sm:$0xf0] %v5015
    %v5020 = vld [vmem:[#allocation8] sm:$0xff]
    %v5021 = vld [vmem:[#allocation8 + $0x8] sm:$0xff]
    %v5022 = vld [vmem:[#allocation8 + $0x10] sm:$0xff]
    %v5023 = vld [vmem:[#allocation8 + $0x18] sm:$0xff]
    %v5024 = vld [vmem:[#allocation8 + $0x20] sm:$0xff]
    %v5025 = vld [vmem:[#allocation8 + $0x28] sm:$0xff]
    %v5026 = vld [vmem:[#allocation8 + $0x30] sm:$0xff]
    %v5027 = vld [vmem:[#allocation8 + $0x38] sm:$0xff]
    %v5028 = vld [vmem:[#allocation8 + $0x40] sm:$0xff]
    %v5029 = vld [vmem:[#allocation8 + $0x48] sm:$0xff]
    %v5030 = vld [vmem:[#allocation8 + $0x50] sm:$0xff]
    %v5031 = vld [vmem:[#allocation8 + $0x58] sm:$0xff]
    %v5032 = vld [vmem:[#allocation8 + $0x60] sm:$0xff]
    %v5033 = vld [vmem:[#allocation8 + $0x68] sm:$0xff]
    %v5034 = vld [vmem:[#allocation8 + $0x70] sm:$0xff]
    %v5035 = vld [vmem:[#allocation8 + $0x78] sm:$0xff]
    %v5036 = vld [vmem:[#allocation8 + $0x80] sm:$0xff]
    %v5037 = vld [vmem:[#allocation8 + $0x88] sm:$0xff]
    %v5038 = vld [vmem:[#allocation8 + $0x90] sm:$0xff]
    %v5039 = vld [vmem:[#allocation8 + $0x98] sm:$0xff]
    %v5040 = vld [vmem:[#allocation8 + $0xa0] sm:$0xff]
    %v5041 = vld [vmem:[#allocation8 + $0xa8] sm:$0xff]
    %v5042 = vld [vmem:[#allocation8 + $0xb0] sm:$0xff]
    %v5043 = vld [vmem:[#allocation8 + $0xb8] sm:$0xff]
    %v5044 = vld [vmem:[#allocation8 + $0xc0] sm:$0xff]
    %v5045 = vld [vmem:[#allocation8 + $0xc8] sm:$0xff]
    %v5046 = vld [vmem:[#allocation8 + $0xd0] sm:$0xff]
    %v5047 = vld [vmem:[#allocation8 + $0xd8] sm:$0xff]
    %v5048 = vld [vmem:[#allocation8 + $0xe0] sm:$0xff]
    %v5049 = vld [vmem:[#allocation8 + $0xe8] sm:$0xff]
    %v5050 = vld [vmem:[#allocation8 + $0xf0] sm:$0xff]
    %v5051 = vld [vmem:[#allocation8 + $0xf8] sm:$0xff]
    %v5052 = vld [vmem:[#allocation8 + $0x100] sm:$0xff]
    %v5053 = vld [vmem:[#allocation8 + $0x108] sm:$0xff]
    %v5054 = vld [vmem:[#allocation8 + $0x110] sm:$0xff]
    %v5055 = vld [vmem:[#allocation8 + $0x118] sm:$0xff]
    %v5056 = vld [vmem:[#allocation8 + $0x120] sm:$0xff]
    %v5057 = vld [vmem:[#allocation8 + $0x128] sm:$0xff]
    %v5058 = vld [vmem:[#allocation8 + $0x130] sm:$0xff]
    %v5059 = vld [vmem:[#allocation8 + $0x138] sm:$0xff]
    %v5060 = vld [vmem:[#allocation8 + $0x140] sm:$0xff]
    %v5061 = vld [vmem:[#allocation8 + $0x148] sm:$0xff]
    %v5062 = vld [vmem:[#allocation8 + $0x150] sm:$0xff]
    %v5063 = vld [vmem:[#allocation8 + $0x158] sm:$0xff]
    %v5064 = vld [vmem:[#allocation8 + $0x160] sm:$0xff]
    %v5065 = vld [vmem:[#allocation8 + $0x168] sm:$0xff]
    %v5066 = vld [vmem:[#allocation8 + $0x170] sm:$0xff]
    %v5067 = vld [vmem:[#allocation8 + $0x178] sm:$0xff]
    %v5068 = vld [vmem:[#allocation8 + $0x180] sm:$0xff]
    %v5069 = vld [vmem:[#allocation8 + $0x188] sm:$0xff]
    %v5070 = vld [vmem:[#allocation8 + $0x190] sm:$0xff]
    %v5071 = vld [vmem:[#allocation8 + $0x198] sm:$0xff]
    %v5072 = vld [vmem:[#allocation8 + $0x1a0] sm:$0xff]
    %v5073 = vld [vmem:[#allocation8 + $0x1a8] sm:$0xff]
    %v5074 = vld [vmem:[#allocation8 + $0x1b0] sm:$0xff]
    %v5075 = vld [vmem:[#allocation8 + $0x1b8] sm:$0xff]
    %v5076 = vld [vmem:[#allocation8 + $0x1c0] sm:$0xff]
    %v5077 = vld [vmem:[#allocation8 + $0x1c8] sm:$0xff]
    %v5078 = vld [vmem:[#allocation8 + $0x1d0] sm:$0xff]
    %v5079 = vld [vmem:[#allocation8 + $0x1d8] sm:$0xff]
    %v5080 = vld [vmem:[#allocation8 + $0x1e0] sm:$0xff]
    %v5081 = vld [vmem:[#allocation8 + $0x1e8] sm:$0xff]
    %v5082 = vld [vmem:[#allocation8 + $0x1f0] sm:$0xff]
    %v5083 = vld [vmem:[#allocation8 + $0x1f8] sm:$0xff]
    %v5084 = vld [vmem:[#allocation8 + $0x200] sm:$0xff]
    %v5085 = vld [vmem:[#allocation8 + $0x208] sm:$0xff]
    %v5086 = vld [vmem:[#allocation8 + $0x210] sm:$0xff]
    %v5087 = vld [vmem:[#allocation8 + $0x218] sm:$0xff]
    %v5088 = vld [vmem:[#allocation8 + $0x220] sm:$0xff]
    %v5089 = vld [vmem:[#allocation8 + $0x228] sm:$0xff]
    %v5090 = vld [vmem:[#allocation8 + $0x230] sm:$0xff]
    %v5091 = vld [vmem:[#allocation8 + $0x238] sm:$0xff]
    %v5092 = vld [vmem:[#allocation8 + $0x240] sm:$0xff]
    %v5093 = vld [vmem:[#allocation8 + $0x248] sm:$0xff]
    %v5094 = vld [vmem:[#allocation8 + $0x250] sm:$0xff]
    %v5095 = vld [vmem:[#allocation8 + $0x258] sm:$0xff]
    %v5096 = vld [vmem:[#allocation8 + $0x260] sm:$0xff]
    %v5097 = vld [vmem:[#allocation8 + $0x268] sm:$0xff]
    %v5098 = vld [vmem:[#allocation8 + $0x270] sm:$0xff]
    %v5099 = vld [vmem:[#allocation8 + $0x278] sm:$0xff]
    %v5100 = vld [vmem:[#allocation8 + $0x280] sm:$0xff]
    %v5101 = vld [vmem:[#allocation8 + $0x288] sm:$0xff]
    %v5102 = vld [vmem:[#allocation8 + $0x290] sm:$0xff]
    %v5103 = vld [vmem:[#allocation8 + $0x298] sm:$0xff]
    %v5104 = vld [vmem:[#allocation8 + $0x2a0] sm:$0xff]
    %v5105 = vld [vmem:[#allocation8 + $0x2a8] sm:$0xff]
    %v5106 = vld [vmem:[#allocation8 + $0x2b0] sm:$0xff]
    %v5107 = vld [vmem:[#allocation8 + $0x2b8] sm:$0xff]
    %v5108 = vld [vmem:[#allocation8 + $0x2c0] sm:$0xff]
    %v5109 = vld [vmem:[#allocation8 + $0x2c8] sm:$0xff]
    %v5110 = vld [vmem:[#allocation8 + $0x2d0] sm:$0xff]
    %v5111 = vld [vmem:[#allocation8 + $0x2d8] sm:$0xff]
    %v5112 = vld [vmem:[#allocation8 + $0x2e0] sm:$0xff]
    %v5113 = vld [vmem:[#allocation8 + $0x2e8] sm:$0xff]
    %v5114 = vld [vmem:[#allocation8 + $0x2f0] sm:$0xff]
    %v5115 = vld [vmem:[#allocation8 + $0x2f8] sm:$0xff]
    %v5212 = vunpack.c.l.b16 %v5020
    %v5213 = vunpack.c.h.b16 %v5020
    %v5214 = vunpack.c.l.b16 %v5021
    %v5215 = vunpack.c.h.b16 %v5021
    %v5216 = vunpack.c.l.b16 %v5022
    %v5217 = vunpack.c.h.b16 %v5022
    %v5218 = vunpack.c.l.b16 %v5023
    %v5219 = vunpack.c.h.b16 %v5023
    %v5220 = vunpack.c.l.b16 %v5024
    %v5221 = vunpack.c.h.b16 %v5024
    %v5222 = vunpack.c.l.b16 %v5025
    %v5223 = vunpack.c.h.b16 %v5025
    %v5224 = vunpack.c.l.b16 %v5026
    %v5225 = vunpack.c.h.b16 %v5026
    %v5226 = vunpack.c.l.b16 %v5027
    %v5227 = vunpack.c.h.b16 %v5027
    %v5228 = vunpack.c.l.b16 %v5028
    %v5229 = vunpack.c.h.b16 %v5028
    %v5230 = vunpack.c.l.b16 %v5029
    %v5231 = vunpack.c.h.b16 %v5029
    %v5232 = vunpack.c.l.b16 %v5030
    %v5233 = vunpack.c.h.b16 %v5030
    %v5234 = vunpack.c.l.b16 %v5031
    %v5235 = vunpack.c.h.b16 %v5031
    %v5236 = vunpack.c.l.b16 %v5032
    %v5237 = vunpack.c.h.b16 %v5032
    %v5238 = vunpack.c.l.b16 %v5033
    %v5239 = vunpack.c.h.b16 %v5033
    %v5240 = vunpack.c.l.b16 %v5034
    %v5241 = vunpack.c.h.b16 %v5034
    %v5242 = vunpack.c.l.b16 %v5035
    %v5243 = vunpack.c.h.b16 %v5035
    %v5244 = vunpack.c.l.b16 %v5036
    %v5245 = vunpack.c.h.b16 %v5036
    %v5246 = vunpack.c.l.b16 %v5037
    %v5247 = vunpack.c.h.b16 %v5037
    %v5248 = vunpack.c.l.b16 %v5038
    %v5249 = vunpack.c.h.b16 %v5038
    %v5250 = vunpack.c.l.b16 %v5039
    %v5251 = vunpack.c.h.b16 %v5039
    %v5252 = vunpack.c.l.b16 %v5040
    %v5253 = vunpack.c.h.b16 %v5040
    %v5254 = vunpack.c.l.b16 %v5041
    %v5255 = vunpack.c.h.b16 %v5041
    %v5256 = vunpack.c.l.b16 %v5042
    %v5257 = vunpack.c.h.b16 %v5042
    %v5258 = vunpack.c.l.b16 %v5043
    %v5259 = vunpack.c.h.b16 %v5043
    %v5260 = vunpack.c.l.b16 %v5044
    %v5261 = vunpack.c.h.b16 %v5044
    %v5262 = vunpack.c.l.b16 %v5045
    %v5263 = vunpack.c.h.b16 %v5045
    %v5264 = vunpack.c.l.b16 %v5046
    %v5265 = vunpack.c.h.b16 %v5046
    %v5266 = vunpack.c.l.b16 %v5047
    %v5267 = vunpack.c.h.b16 %v5047
    %v5268 = vunpack.c.l.b16 %v5048
    %v5269 = vunpack.c.h.b16 %v5048
    %v5270 = vunpack.c.l.b16 %v5049
    %v5271 = vunpack.c.h.b16 %v5049
    %v5272 = vunpack.c.l.b16 %v5050
    %v5273 = vunpack.c.h.b16 %v5050
    %v5274 = vunpack.c.l.b16 %v5051
    %v5275 = vunpack.c.h.b16 %v5051
    %v5276 = vunpack.c.l.b16 %v5052
    %v5277 = vunpack.c.h.b16 %v5052
    %v5278 = vunpack.c.l.b16 %v5053
    %v5279 = vunpack.c.h.b16 %v5053
    %v5280 = vunpack.c.l.b16 %v5054
    %v5281 = vunpack.c.h.b16 %v5054
    %v5282 = vunpack.c.l.b16 %v5055
    %v5283 = vunpack.c.h.b16 %v5055
    %v5284 = vunpack.c.l.b16 %v5056
    %v5285 = vunpack.c.h.b16 %v5056
    %v5286 = vunpack.c.l.b16 %v5057
    %v5287 = vunpack.c.h.b16 %v5057
    %v5288 = vunpack.c.l.b16 %v5058
    %v5289 = vunpack.c.h.b16 %v5058
    %v5290 = vunpack.c.l.b16 %v5059
    %v5291 = vunpack.c.h.b16 %v5059
    %v5292 = vunpack.c.l.b16 %v5060
    %v5293 = vunpack.c.h.b16 %v5060
    %v5294 = vunpack.c.l.b16 %v5061
    %v5295 = vunpack.c.h.b16 %v5061
    %v5296 = vunpack.c.l.b16 %v5062
    %v5297 = vunpack.c.h.b16 %v5062
    %v5298 = vunpack.c.l.b16 %v5063
    %v5299 = vunpack.c.h.b16 %v5063
    %v5300 = vunpack.c.l.b16 %v5064
    %v5301 = vunpack.c.h.b16 %v5064
    %v5302 = vunpack.c.l.b16 %v5065
    %v5303 = vunpack.c.h.b16 %v5065
    %v5304 = vunpack.c.l.b16 %v5066
    %v5305 = vunpack.c.h.b16 %v5066
    %v5306 = vunpack.c.l.b16 %v5067
    %v5307 = vunpack.c.h.b16 %v5067
    %v5308 = vunpack.c.l.b16 %v5068
    %v5309 = vunpack.c.h.b16 %v5068
    %v5310 = vunpack.c.l.b16 %v5069
    %v5311 = vunpack.c.h.b16 %v5069
    %v5312 = vunpack.c.l.b16 %v5070
    %v5313 = vunpack.c.h.b16 %v5070
    %v5314 = vunpack.c.l.b16 %v5071
    %v5315 = vunpack.c.h.b16 %v5071
    %v5316 = vunpack.c.l.b16 %v5072
    %v5317 = vunpack.c.h.b16 %v5072
    %v5318 = vunpack.c.l.b16 %v5073
    %v5319 = vunpack.c.h.b16 %v5073
    %v5320 = vunpack.c.l.b16 %v5074
    %v5321 = vunpack.c.h.b16 %v5074
    %v5322 = vunpack.c.l.b16 %v5075
    %v5323 = vunpack.c.h.b16 %v5075
    %v5324 = vunpack.c.l.b16 %v5076
    %v5325 = vunpack.c.h.b16 %v5076
    %v5326 = vunpack.c.l.b16 %v5077
    %v5327 = vunpack.c.h.b16 %v5077
    %v5328 = vunpack.c.l.b16 %v5078
    %v5329 = vunpack.c.h.b16 %v5078
    %v5330 = vunpack.c.l.b16 %v5079
    %v5331 = vunpack.c.h.b16 %v5079
    %v5332 = vunpack.c.l.b16 %v5080
    %v5333 = vunpack.c.h.b16 %v5080
    %v5334 = vunpack.c.l.b16 %v5081
    %v5335 = vunpack.c.h.b16 %v5081
    %v5336 = vunpack.c.l.b16 %v5082
    %v5337 = vunpack.c.h.b16 %v5082
    %v5338 = vunpack.c.l.b16 %v5083
    %v5339 = vunpack.c.h.b16 %v5083
    %v5340 = vunpack.c.l.b16 %v5084
    %v5341 = vunpack.c.h.b16 %v5084
    %v5342 = vunpack.c.l.b16 %v5085
    %v5343 = vunpack.c.h.b16 %v5085
    %v5344 = vunpack.c.l.b16 %v5086
    %v5345 = vunpack.c.h.b16 %v5086
    %v5346 = vunpack.c.l.b16 %v5087
    %v5347 = vunpack.c.h.b16 %v5087
    %v5348 = vunpack.c.l.b16 %v5088
    %v5349 = vunpack.c.h.b16 %v5088
    %v5350 = vunpack.c.l.b16 %v5089
    %v5351 = vunpack.c.h.b16 %v5089
    %v5352 = vunpack.c.l.b16 %v5090
    %v5353 = vunpack.c.h.b16 %v5090
    %v5354 = vunpack.c.l.b16 %v5091
    %v5355 = vunpack.c.h.b16 %v5091
    %v5356 = vunpack.c.l.b16 %v5092
    %v5357 = vunpack.c.h.b16 %v5092
    %v5358 = vunpack.c.l.b16 %v5093
    %v5359 = vunpack.c.h.b16 %v5093
    %v5360 = vunpack.c.l.b16 %v5094
    %v5361 = vunpack.c.h.b16 %v5094
    %v5362 = vunpack.c.l.b16 %v5095
    %v5363 = vunpack.c.h.b16 %v5095
    %v5364 = vunpack.c.l.b16 %v5096
    %v5365 = vunpack.c.h.b16 %v5096
    %v5366 = vunpack.c.l.b16 %v5097
    %v5367 = vunpack.c.h.b16 %v5097
    %v5368 = vunpack.c.l.b16 %v5098
    %v5369 = vunpack.c.h.b16 %v5098
    %v5370 = vunpack.c.l.b16 %v5099
    %v5371 = vunpack.c.h.b16 %v5099
    %v5372 = vunpack.c.l.b16 %v5100
    %v5373 = vunpack.c.h.b16 %v5100
    %v5374 = vunpack.c.l.b16 %v5101
    %v5375 = vunpack.c.h.b16 %v5101
    %v5376 = vunpack.c.l.b16 %v5102
    %v5377 = vunpack.c.h.b16 %v5102
    %v5378 = vunpack.c.l.b16 %v5103
    %v5379 = vunpack.c.h.b16 %v5103
    %v5380 = vunpack.c.l.b16 %v5104
    %v5381 = vunpack.c.h.b16 %v5104
    %v5382 = vunpack.c.l.b16 %v5105
    %v5383 = vunpack.c.h.b16 %v5105
    %v5384 = vunpack.c.l.b16 %v5106
    %v5385 = vunpack.c.h.b16 %v5106
    %v5386 = vunpack.c.l.b16 %v5107
    %v5387 = vunpack.c.h.b16 %v5107
    %v5388 = vunpack.c.l.b16 %v5108
    %v5389 = vunpack.c.h.b16 %v5108
    %v5390 = vunpack.c.l.b16 %v5109
    %v5391 = vunpack.c.h.b16 %v5109
    %v5392 = vunpack.c.l.b16 %v5110
    %v5393 = vunpack.c.h.b16 %v5110
    %v5394 = vunpack.c.l.b16 %v5111
    %v5395 = vunpack.c.h.b16 %v5111
    %v5396 = vunpack.c.l.b16 %v5112
    %v5397 = vunpack.c.h.b16 %v5112
    %v5398 = vunpack.c.l.b16 %v5113
    %v5399 = vunpack.c.h.b16 %v5113
    %v5400 = vunpack.c.l.b16 %v5114
    %v5401 = vunpack.c.h.b16 %v5114
    %v5402 = vunpack.c.l.b16 %v5115
    %v5403 = vunpack.c.h.b16 %v5115
    %v5404 = vpack.c.b16 %v5218, %v5212
    %v5405 = vpack.c.b16 %v5219, %v5213
    %v5406 = vpack.c.b16 %v5220, %v5214
    %v5407 = vpack.c.b16 %v5221, %v5215
    %v5408 = vpack.c.b16 %v5222, %v5216
    %v5409 = vpack.c.b16 %v5223, %v5217
    %v5410 = vpack.c.b16 %v5230, %v5224
    %v5411 = vpack.c.b16 %v5231, %v5225
    %v5412 = vpack.c.b16 %v5232, %v5226
    %v5413 = vpack.c.b16 %v5233, %v5227
    %v5414 = vpack.c.b16 %v5234, %v5228
    %v5415 = vpack.c.b16 %v5235, %v5229
    %v5416 = vpack.c.b16 %v5242, %v5236
    %v5417 = vpack.c.b16 %v5243, %v5237
    %v5418 = vpack.c.b16 %v5244, %v5238
    %v5419 = vpack.c.b16 %v5245, %v5239
    %v5420 = vpack.c.b16 %v5246, %v5240
    %v5421 = vpack.c.b16 %v5247, %v5241
    %v5422 = vpack.c.b16 %v5254, %v5248
    %v5423 = vpack.c.b16 %v5255, %v5249
    %v5424 = vpack.c.b16 %v5256, %v5250
    %v5425 = vpack.c.b16 %v5257, %v5251
    %v5426 = vpack.c.b16 %v5258, %v5252
    %v5427 = vpack.c.b16 %v5259, %v5253
    %v5428 = vpack.c.b16 %v5266, %v5260
    %v5429 = vpack.c.b16 %v5267, %v5261
    %v5430 = vpack.c.b16 %v5268, %v5262
    %v5431 = vpack.c.b16 %v5269, %v5263
    %v5432 = vpack.c.b16 %v5270, %v5264
    %v5433 = vpack.c.b16 %v5271, %v5265
    %v5434 = vpack.c.b16 %v5278, %v5272
    %v5435 = vpack.c.b16 %v5279, %v5273
    %v5436 = vpack.c.b16 %v5280, %v5274
    %v5437 = vpack.c.b16 %v5281, %v5275
    %v5438 = vpack.c.b16 %v5282, %v5276
    %v5439 = vpack.c.b16 %v5283, %v5277
    %v5440 = vpack.c.b16 %v5290, %v5284
    %v5441 = vpack.c.b16 %v5291, %v5285
    %v5442 = vpack.c.b16 %v5292, %v5286
    %v5443 = vpack.c.b16 %v5293, %v5287
    %v5444 = vpack.c.b16 %v5294, %v5288
    %v5445 = vpack.c.b16 %v5295, %v5289
    %v5446 = vpack.c.b16 %v5302, %v5296
    %v5447 = vpack.c.b16 %v5303, %v5297
    %v5448 = vpack.c.b16 %v5304, %v5298
    %v5449 = vpack.c.b16 %v5305, %v5299
    %v5450 = vpack.c.b16 %v5306, %v5300
    %v5451 = vpack.c.b16 %v5307, %v5301
    %v5452 = vpack.c.b16 %v5314, %v5308
    %v5453 = vpack.c.b16 %v5315, %v5309
    %v5454 = vpack.c.b16 %v5316, %v5310
    %v5455 = vpack.c.b16 %v5317, %v5311
    %v5456 = vpack.c.b16 %v5318, %v5312
    %v5457 = vpack.c.b16 %v5319, %v5313
    %v5458 = vpack.c.b16 %v5326, %v5320
    %v5459 = vpack.c.b16 %v5327, %v5321
    %v5460 = vpack.c.b16 %v5328, %v5322
    %v5461 = vpack.c.b16 %v5329, %v5323
    %v5462 = vpack.c.b16 %v5330, %v5324
    %v5463 = vpack.c.b16 %v5331, %v5325
    %v5464 = vpack.c.b16 %v5338, %v5332
    %v5465 = vpack.c.b16 %v5339, %v5333
    %v5466 = vpack.c.b16 %v5340, %v5334
    %v5467 = vpack.c.b16 %v5341, %v5335
    %v5468 = vpack.c.b16 %v5342, %v5336
    %v5469 = vpack.c.b16 %v5343, %v5337
    %v5470 = vpack.c.b16 %v5350, %v5344
    %v5471 = vpack.c.b16 %v5351, %v5345
    %v5472 = vpack.c.b16 %v5352, %v5346
    %v5473 = vpack.c.b16 %v5353, %v5347
    %v5474 = vpack.c.b16 %v5354, %v5348
    %v5475 = vpack.c.b16 %v5355, %v5349
    %v5476 = vpack.c.b16 %v5362, %v5356
    %v5477 = vpack.c.b16 %v5363, %v5357
    %v5478 = vpack.c.b16 %v5364, %v5358
    %v5479 = vpack.c.b16 %v5365, %v5359
    %v5480 = vpack.c.b16 %v5366, %v5360
    %v5481 = vpack.c.b16 %v5367, %v5361
    %v5482 = vpack.c.b16 %v5374, %v5368
    %v5483 = vpack.c.b16 %v5375, %v5369
    %v5484 = vpack.c.b16 %v5376, %v5370
    %v5485 = vpack.c.b16 %v5377, %v5371
    %v5486 = vpack.c.b16 %v5378, %v5372
    %v5487 = vpack.c.b16 %v5379, %v5373
    %v5488 = vpack.c.b16 %v5386, %v5380
    %v5489 = vpack.c.b16 %v5387, %v5381
    %v5490 = vpack.c.b16 %v5388, %v5382
    %v5491 = vpack.c.b16 %v5389, %v5383
    %v5492 = vpack.c.b16 %v5390, %v5384
    %v5493 = vpack.c.b16 %v5391, %v5385
    %v5494 = vpack.c.b16 %v5398, %v5392
    %v5495 = vpack.c.b16 %v5399, %v5393
    %v5496 = vpack.c.b16 %v5400, %v5394
    %v5497 = vpack.c.b16 %v5401, %v5395
    %v5498 = vpack.c.b16 %v5402, %v5396
    %v5499 = vpack.c.b16 %v5403, %v5397
    %5596 = vmatprep.subr.bf16.mxu0 %v5405
    %5597 = vmatpush1.bf16.msra.mxu0 %v5404
    %5598 = vmatprep.subr.bf16.mxu0 %v5411
    %5599 = vmatpush1.bf16.msra.mxu0 %v5410
    %5600 = vmatprep.subr.bf16.mxu0 %v5417
    %5601 = vmatpush1.bf16.msra.mxu0 %v5416
    %5602 = vmatprep.subr.bf16.mxu0 %v5423
    %5603 = vmatpush1.bf16.msra.mxu0 %v5422
    %5604 = vmatprep.subr.bf16.mxu0 %v5429
    %5605 = vmatpush1.bf16.msra.mxu0 %v5428
    %5606 = vmatprep.subr.bf16.mxu0 %v5435
    %5607 = vmatpush1.bf16.msra.mxu0 %v5434
    %5608 = vmatprep.subr.bf16.mxu0 %v5441
    %5609 = vmatpush1.bf16.msra.mxu0 %v5440
    %5610 = vmatprep.subr.bf16.mxu0 %v5447
    %5611 = vmatpush1.bf16.msra.mxu0 %v5446
    %5612 = vmatprep.subr.bf16.mxu0 %v5453
    %5613 = vmatpush1.bf16.msra.mxu0 %v5452
    %5614 = vmatprep.subr.bf16.mxu0 %v5459
    %5615 = vmatpush1.bf16.msra.mxu0 %v5458
    %5616 = vmatprep.subr.bf16.mxu0 %v5465
    %5617 = vmatpush1.bf16.msra.mxu0 %v5464
    %5618 = vmatprep.subr.bf16.mxu0 %v5471
    %5619 = vmatpush1.bf16.msra.mxu0 %v5470
    %5620 = vmatprep.subr.bf16.mxu0 %v5477
    %5621 = vmatpush1.bf16.msra.mxu0 %v5476
    %5622 = vmatprep.subr.bf16.mxu0 %v5483
    %5623 = vmatpush1.bf16.msra.mxu0 %v5482
    %5624 = vmatprep.subr.bf16.mxu0 %v5489
    %5625 = vmatpush1.bf16.msra.mxu0 %v5488
    %5626 = vmatprep.subr.bf16.mxu0 %v5495
    %5627 = vmatpush1.bf16.msra.mxu0 %v5494
    %5628 = vmatprep.mubr.bf16.mxu0 %v5011
    %5629 = vmatmul.mubr.bf16.gmra.mrb[0].mxu0 %v5010
    %v5630 = vpop.f32.mrb[0].mxu0
    %v5631 = vadd.f32 0.0, %v5630
    %v5632 = vpop.f32.mrb[0].mxu0
    %v5633 = vadd.f32 0.0, %v5632
    %v5634 = vpop.f32.mrb[0].mxu0
    %v5635 = vpop.f32.mrb[0].mxu0
    %5636 = vdwg.mxu0
    %5637 = vmatprep.subr.bf16.mxu0 %v5407
    %5638 = vmatpush1.bf16.msra.mxu0 %v5406
    %5639 = vmatprep.subr.bf16.mxu0 %v5413
    %5640 = vmatpush1.bf16.msra.mxu0 %v5412
    %5641 = vmatprep.subr.bf16.mxu0 %v5419
    %5642 = vmatpush1.bf16.msra.mxu0 %v5418
    %5643 = vmatprep.subr.bf16.mxu0 %v5425
    %5644 = vmatpush1.bf16.msra.mxu0 %v5424
    %5645 = vmatprep.subr.bf16.mxu0 %v5431
    %5646 = vmatpush1.bf16.msra.mxu0 %v5430
    %5647 = vmatprep.subr.bf16.mxu0 %v5437
    %5648 = vmatpush1.bf16.msra.mxu0 %v5436
    %5649 = vmatprep.subr.bf16.mxu0 %v5443
    %5650 = vmatpush1.bf16.msra.mxu0 %v5442
    %5651 = vmatprep.subr.bf16.mxu0 %v5449
    %5652 = vmatpush1.bf16.msra.mxu0 %v5448
    %5653 = vmatprep.subr.bf16.mxu0 %v5455
    %5654 = vmatpush1.bf16.msra.mxu0 %v5454
    %5655 = vmatprep.subr.bf16.mxu0 %v5461
    %5656 = vmatpush1.bf16.msra.mxu0 %v5460
    %5657 = vmatprep.subr.bf16.mxu0 %v5467
    %5658 = vmatpush1.bf16.msra.mxu0 %v5466
    %5659 = vmatprep.subr.bf16.mxu0 %v5473
    %5660 = vmatpush1.bf16.msra.mxu0 %v5472
    %5661 = vmatprep.subr.bf16.mxu0 %v5479
    %5662 = vmatpush1.bf16.msra.mxu0 %v5478
    %5663 = vmatprep.subr.bf16.mxu0 %v5485
    %5664 = vmatpush1.bf16.msra.mxu0 %v5484
    %5665 = vmatprep.subr.bf16.mxu0 %v5491
    %5666 = vmatpush1.bf16.msra.mxu0 %v5490
    %5667 = vmatprep.subr.bf16.mxu0 %v5497
    %5668 = vmatpush1.bf16.msra.mxu0 %v5496
    %5669 = vmatprep.mubr.bf16.mxu0 %v5011
    %5670 = vmatmul.mubr.bf16.gmra.mrb[0].mxu0 %v5010
    %v5671 = vpop.f32.mrb[0].mxu0
    %v5672 = vadd.f32 0.0, %v5671
    %v5673 = vpop.f32.mrb[0].mxu0
    %v5674 = vadd.f32 0.0, %v5673
    %v5675 = vpop.f32.mrb[0].mxu0
    %v5676 = vpop.f32.mrb[0].mxu0
    %5677 = vdwg.mxu0
    %5678 = vmatprep.subr.bf16.mxu0 %v5409
    %5679 = vmatpush1.bf16.msra.mxu0 %v5408
    %5680 = vmatprep.subr.bf16.mxu0 %v5415
    %5681 = vmatpush1.bf16.msra.mxu0 %v5414
    %5682 = vmatprep.subr.bf16.mxu0 %v5421
    %5683 = vmatpush1.bf16.msra.mxu0 %v5420
    %5684 = vmatprep.subr.bf16.mxu0 %v5427
    %5685 = vmatpush1.bf16.msra.mxu0 %v5426
    %5686 = vmatprep.subr.bf16.mxu0 %v5433
    %5687 = vmatpush1.bf16.msra.mxu0 %v5432
    %5688 = vmatprep.subr.bf16.mxu0 %v5439
    %5689 = vmatpush1.bf16.msra.mxu0 %v5438
    %5690 = vmatprep.subr.bf16.mxu0 %v5445
    %5691 = vmatpush1.bf16.msra.mxu0 %v5444
    %5692 = vmatprep.subr.bf16.mxu0 %v5451
    %5693 = vmatpush1.bf16.msra.mxu0 %v5450
    %5694 = vmatprep.subr.bf16.mxu0 %v5457
    %5695 = vmatpush1.bf16.msra.mxu0 %v5456
    %5696 = vmatprep.subr.bf16.mxu0 %v5463
    %5697 = vmatpush1.bf16.msra.mxu0 %v5462
    %5698 = vmatprep.subr.bf16.mxu0 %v5469
    %5699 = vmatpush1.bf16.msra.mxu0 %v5468
    %5700 = vmatprep.subr.bf16.mxu0 %v5475
    %5701 = vmatpush1.bf16.msra.mxu0 %v5474
    %5702 = vmatprep.subr.bf16.mxu0 %v5481
    %5703 = vmatpush1.bf16.msra.mxu0 %v5480
    %5704 = vmatprep.subr.bf16.mxu0 %v5487
    %5705 = vmatpush1.bf16.msra.mxu0 %v5486
    %5706 = vmatprep.subr.bf16.mxu0 %v5493
    %5707 = vmatpush1.bf16.msra.mxu0 %v5492
    %5708 = vmatprep.subr.bf16.mxu0 %v5499
    %5709 = vmatpush1.bf16.msra.mxu0 %v5498
    %5710 = vmatprep.mubr.bf16.mxu0 %v5011
    %5711 = vmatmul.mubr.bf16.gmra.mrb[0].mxu0 %v5010
    %v5712 = vpop.f32.mrb[0].mxu0
    %v5713 = vadd.f32 0.0, %v5712
    %v5714 = vpop.f32.mrb[0].mxu0
    %v5715 = vadd.f32 0.0, %v5714
    %v5716 = vpop.f32.mrb[0].mxu0
    %v5717 = vpop.f32.mrb[0].mxu0
    %5718 = vdwg.mxu0
    %v5719 = vadd.f32 %v354, %v5631
    %v5720 = vadd.f32 %v356, %v5633
    %v5721 = vxor.u32 %v5719, 2147483648
    %v5722 = vxor.u32 %v5720, 2147483648
    %v5723 = vmul.f32 %v5721, 1.442695
    %v5724 = vpow.pop %v5723
    %v5725 = vmul.f32 %v5722, 1.442695
    %v5726 = vpow.pop %v5725
    %v5727 = vadd.f32 %v5724, 1.0
    %v5728 = vadd.f32 %v5726, 1.0
    %v5729 = vrcp.pop %v5727
    %v5730 = vmul.f32 1.0, %v5729
    %v5731 = vrcp.pop %v5728
    %v5732 = vmul.f32 1.0, %v5731
    %v5733 = vadd.f32 %v427, %v5672
    %v5734 = vadd.f32 %v429, %v5674
    %v5735 = vxor.u32 %v5733, 2147483648
    %v5736 = vxor.u32 %v5734, 2147483648
    %v5737 = vmul.f32 %v5735, 1.442695
    %v5738 = vpow.pop %v5737
    %v5739 = vmul.f32 %v5736, 1.442695
    %v5740 = vpow.pop %v5739
    %v5741 = vadd.f32 %v5738, 1.0
    %v5742 = vadd.f32 %v5740, 1.0
    %v5743 = vrcp.pop %v5741
    %v5744 = vmul.f32 1.0, %v5743
    %v5745 = vrcp.pop %v5742
    %v5746 = vmul.f32 1.0, %v5745
    %v5747 = vadd.f32 %v5713, %v513
    %v5748 = vadd.f32 %v5715, %v517
    %v5749 = vmul.f32 %v5730, %v5747
    %v5750 = vmul.f32 %v5732, %v5748
    %v5751 = vadd.f32 %v500, %v5749
    %v5752 = vadd.f32 %v502, %v5750
    %v5753 = vtanh.pop %v5751
    %v5754 = vtanh.pop %v5752
    %v5755 = vsub.f32 1.0, %v5744
    %v5756 = vsub.f32 1.0, %v5746
    %v5757 = vmul.f32 %v5755, %v5753
    %v5758 = vmul.f32 %v5756, %v5754
    %v5759 = vmul.f32 %v5744, %v5008
    %v5760 = vmul.f32 %v5746, %v5009
    %v5761 = vadd.f32 %v5757, %v5759
    %v5762 = vadd.f32 %v5758, %v5760
    %v5763 = vpack.c.bf16 %v5761, %v5761
    %v5764 = vpack.c.bf16 %v5762, %v5762
    %5765 = vst [vmem:[#allocation6 + $0x30] sm:$0xf] %v5763
    %5766 = vst [vmem:[#allocation6 + $0x38] sm:$0xf] %v5764
    %v5767 = vld [vmem:[#allocation8] sm:$0xff]
    %v5768 = vld [vmem:[#allocation8 + $0x8] sm:$0xff]
    %v5769 = vld [vmem:[#allocation8 + $0x10] sm:$0xff]
    %v5770 = vld [vmem:[#allocation8 + $0x18] sm:$0xff]
    %v5771 = vld [vmem:[#allocation8 + $0x20] sm:$0xff]
    %v5772 = vld [vmem:[#allocation8 + $0x28] sm:$0xff]
    %v5773 = vld [vmem:[#allocation8 + $0x30] sm:$0xff]
    %v5774 = vld [vmem:[#allocation8 + $0x38] sm:$0xff]
    %v5775 = vld [vmem:[#allocation8 + $0x40] sm:$0xff]
    %v5776 = vld [vmem:[#allocation8 + $0x48] sm:$0xff]
    %v5777 = vld [vmem:[#allocation8 + $0x50] sm:$0xff]
    %v5778 = vld [vmem:[#allocation8 + $0x58] sm:$0xff]
    %v5779 = vld [vmem:[#allocation8 + $0x60] sm:$0xff]
    %v5780 = vld [vmem:[#allocation8 + $0x68] sm:$0xff]
    %v5781 = vld [vmem:[#allocation8 + $0x70] sm:$0xff]
    %v5782 = vld [vmem:[#allocation8 + $0x78] sm:$0xff]
    %v5783 = vld [vmem:[#allocation8 + $0x80] sm:$0xff]
    %v5784 = vld [vmem:[#allocation8 + $0x88] sm:$0xff]
    %v5785 = vld [vmem:[#allocation8 + $0x90] sm:$0xff]
    %v5786 = vld [vmem:[#allocation8 + $0x98] sm:$0xff]
    %v5787 = vld [vmem:[#allocation8 + $0xa0] sm:$0xff]
    %v5788 = vld [vmem:[#allocation8 + $0xa8] sm:$0xff]
    %v5789 = vld [vmem:[#allocation8 + $0xb0] sm:$0xff]
    %v5790 = vld [vmem:[#allocation8 + $0xb8] sm:$0xff]
    %v5791 = vld [vmem:[#allocation8 + $0xc0] sm:$0xff]
    %v5792 = vld [vmem:[#allocation8 + $0xc8] sm:$0xff]
    %v5793 = vld [vmem:[#allocation8 + $0xd0] sm:$0xff]
    %v5794 = vld [vmem:[#allocation8 + $0xd8] sm:$0xff]
    %v5795 = vld [vmem:[#allocation8 + $0xe0] sm:$0xff]
    %v5796 = vld [vmem:[#allocation8 + $0xe8] sm:$0xff]
    %v5797 = vld [vmem:[#allocation8 + $0xf0] sm:$0xff]
    %v5798 = vld [vmem:[#allocation8 + $0xf8] sm:$0xff]
    %v5799 = vld [vmem:[#allocation8 + $0x100] sm:$0xff]
    %v5800 = vld [vmem:[#allocation8 + $0x108] sm:$0xff]
    %v5801 = vld [vmem:[#allocation8 + $0x110] sm:$0xff]
    %v5802 = vld [vmem:[#allocation8 + $0x118] sm:$0xff]
    %v5803 = vld [vmem:[#allocation8 + $0x120] sm:$0xff]
    %v5804 = vld [vmem:[#allocation8 + $0x128] sm:$0xff]
    %v5805 = vld [vmem:[#allocation8 + $0x130] sm:$0xff]
    %v5806 = vld [vmem:[#allocation8 + $0x138] sm:$0xff]
    %v5807 = vld [vmem:[#allocation8 + $0x140] sm:$0xff]
    %v5808 = vld [vmem:[#allocation8 + $0x148] sm:$0xff]
    %v5809 = vld [vmem:[#allocation8 + $0x150] sm:$0xff]
    %v5810 = vld [vmem:[#allocation8 + $0x158] sm:$0xff]
    %v5811 = vld [vmem:[#allocation8 + $0x160] sm:$0xff]
    %v5812 = vld [vmem:[#allocation8 + $0x168] sm:$0xff]
    %v5813 = vld [vmem:[#allocation8 + $0x170] sm:$0xff]
    %v5814 = vld [vmem:[#allocation8 + $0x178] sm:$0xff]
    %v5815 = vld [vmem:[#allocation8 + $0x180] sm:$0xff]
    %v5816 = vld [vmem:[#allocation8 + $0x188] sm:$0xff]
    %v5817 = vld [vmem:[#allocation8 + $0x190] sm:$0xff]
    %v5818 = vld [vmem:[#allocation8 + $0x198] sm:$0xff]
    %v5819 = vld [vmem:[#allocation8 + $0x1a0] sm:$0xff]
    %v5820 = vld [vmem:[#allocation8 + $0x1a8] sm:$0xff]
    %v5821 = vld [vmem:[#allocation8 + $0x1b0] sm:$0xff]
    %v5822 = vld [vmem:[#allocation8 + $0x1b8] sm:$0xff]
    %v5823 = vld [vmem:[#allocation8 + $0x1c0] sm:$0xff]
    %v5824 = vld [vmem:[#allocation8 + $0x1c8] sm:$0xff]
    %v5825 = vld [vmem:[#allocation8 + $0x1d0] sm:$0xff]
    %v5826 = vld [vmem:[#allocation8 + $0x1d8] sm:$0xff]
    %v5827 = vld [vmem:[#allocation8 + $0x1e0] sm:$0xff]
    %v5828 = vld [vmem:[#allocation8 + $0x1e8] sm:$0xff]
    %v5829 = vld [vmem:[#allocation8 + $0x1f0] sm:$0xff]
    %v5830 = vld [vmem:[#allocation8 + $0x1f8] sm:$0xff]
    %v5831 = vld [vmem:[#allocation8 + $0x200] sm:$0xff]
    %v5832 = vld [vmem:[#allocation8 + $0x208] sm:$0xff]
    %v5833 = vld [vmem:[#allocation8 + $0x210] sm:$0xff]
    %v5834 = vld [vmem:[#allocation8 + $0x218] sm:$0xff]
    %v5835 = vld [vmem:[#allocation8 + $0x220] sm:$0xff]
    %v5836 = vld [vmem:[#allocation8 + $0x228] sm:$0xff]
    %v5837 = vld [vmem:[#allocation8 + $0x230] sm:$0xff]
    %v5838 = vld [vmem:[#allocation8 + $0x238] sm:$0xff]
    %v5839 = vld [vmem:[#allocation8 + $0x240] sm:$0xff]
    %v5840 = vld [vmem:[#allocation8 + $0x248] sm:$0xff]
    %v5841 = vld [vmem:[#allocation8 + $0x250] sm:$0xff]
    %v5842 = vld [vmem:[#allocation8 + $0x258] sm:$0xff]
    %v5843 = vld [vmem:[#allocation8 + $0x260] sm:$0xff]
    %v5844 = vld [vmem:[#allocation8 + $0x268] sm:$0xff]
    %v5845 = vld [vmem:[#allocation8 + $0x270] sm:$0xff]
    %v5846 = vld [vmem:[#allocation8 + $0x278] sm:$0xff]
    %v5847 = vld [vmem:[#allocation8 + $0x280] sm:$0xff]
    %v5848 = vld [vmem:[#allocation8 + $0x288] sm:$0xff]
    %v5849 = vld [vmem:[#allocation8 + $0x290] sm:$0xff]
    %v5850 = vld [vmem:[#allocation8 + $0x298] sm:$0xff]
    %v5851 = vld [vmem:[#allocation8 + $0x2a0] sm:$0xff]
    %v5852 = vld [vmem:[#allocation8 + $0x2a8] sm:$0xff]
    %v5853 = vld [vmem:[#allocation8 + $0x2b0] sm:$0xff]
    %v5854 = vld [vmem:[#allocation8 + $0x2b8] sm:$0xff]
    %v5855 = vld [vmem:[#allocation8 + $0x2c0] sm:$0xff]
    %v5856 = vld [vmem:[#allocation8 + $0x2c8] sm:$0xff]
    %v5857 = vld [vmem:[#allocation8 + $0x2d0] sm:$0xff]
    %v5858 = vld [vmem:[#allocation8 + $0x2d8] sm:$0xff]
    %v5859 = vld [vmem:[#allocation8 + $0x2e0] sm:$0xff]
    %v5860 = vld [vmem:[#allocation8 + $0x2e8] sm:$0xff]
    %v5861 = vld [vmem:[#allocation8 + $0x2f0] sm:$0xff]
    %v5862 = vld [vmem:[#allocation8 + $0x2f8] sm:$0xff]
    %v5959 = vunpack.c.l.b16 %v5767
    %v5960 = vunpack.c.h.b16 %v5767
    %v5961 = vunpack.c.l.b16 %v5768
    %v5962 = vunpack.c.h.b16 %v5768
    %v5963 = vunpack.c.l.b16 %v5769
    %v5964 = vunpack.c.h.b16 %v5769
    %v5965 = vunpack.c.l.b16 %v5770
    %v5966 = vunpack.c.h.b16 %v5770
    %v5967 = vunpack.c.l.b16 %v5771
    %v5968 = vunpack.c.h.b16 %v5771
    %v5969 = vunpack.c.l.b16 %v5772
    %v5970 = vunpack.c.h.b16 %v5772
    %v5971 = vunpack.c.l.b16 %v5773
    %v5972 = vunpack.c.h.b16 %v5773
    %v5973 = vunpack.c.l.b16 %v5774
    %v5974 = vunpack.c.h.b16 %v5774
    %v5975 = vunpack.c.l.b16 %v5775
    %v5976 = vunpack.c.h.b16 %v5775
    %v5977 = vunpack.c.l.b16 %v5776
    %v5978 = vunpack.c.h.b16 %v5776
    %v5979 = vunpack.c.l.b16 %v5777
    %v5980 = vunpack.c.h.b16 %v5777
    %v5981 = vunpack.c.l.b16 %v5778
    %v5982 = vunpack.c.h.b16 %v5778
    %v5983 = vunpack.c.l.b16 %v5779
    %v5984 = vunpack.c.h.b16 %v5779
    %v5985 = vunpack.c.l.b16 %v5780
    %v5986 = vunpack.c.h.b16 %v5780
    %v5987 = vunpack.c.l.b16 %v5781
    %v5988 = vunpack.c.h.b16 %v5781
    %v5989 = vunpack.c.l.b16 %v5782
    %v5990 = vunpack.c.h.b16 %v5782
    %v5991 = vunpack.c.l.b16 %v5783
    %v5992 = vunpack.c.h.b16 %v5783
    %v5993 = vunpack.c.l.b16 %v5784
    %v5994 = vunpack.c.h.b16 %v5784
    %v5995 = vunpack.c.l.b16 %v5785
    %v5996 = vunpack.c.h.b16 %v5785
    %v5997 = vunpack.c.l.b16 %v5786
    %v5998 = vunpack.c.h.b16 %v5786
    %v5999 = vunpack.c.l.b16 %v5787
    %v6000 = vunpack.c.h.b16 %v5787
    %v6001 = vunpack.c.l.b16 %v5788
    %v6002 = vunpack.c.h.b16 %v5788
    %v6003 = vunpack.c.l.b16 %v5789
    %v6004 = vunpack.c.h.b16 %v5789
    %v6005 = vunpack.c.l.b16 %v5790
    %v6006 = vunpack.c.h.b16 %v5790
    %v6007 = vunpack.c.l.b16 %v5791
    %v6008 = vunpack.c.h.b16 %v5791
    %v6009 = vunpack.c.l.b16 %v5792
    %v6010 = vunpack.c.h.b16 %v5792
    %v6011 = vunpack.c.l.b16 %v5793
    %v6012 = vunpack.c.h.b16 %v5793
    %v6013 = vunpack.c.l.b16 %v5794
    %v6014 = vunpack.c.h.b16 %v5794
    %v6015 = vunpack.c.l.b16 %v5795
    %v6016 = vunpack.c.h.b16 %v5795
    %v6017 = vunpack.c.l.b16 %v5796
    %v6018 = vunpack.c.h.b16 %v5796
    %v6019 = vunpack.c.l.b16 %v5797
    %v6020 = vunpack.c.h.b16 %v5797
    %v6021 = vunpack.c.l.b16 %v5798
    %v6022 = vunpack.c.h.b16 %v5798
    %v6023 = vunpack.c.l.b16 %v5799
    %v6024 = vunpack.c.h.b16 %v5799
    %v6025 = vunpack.c.l.b16 %v5800
    %v6026 = vunpack.c.h.b16 %v5800
    %v6027 = vunpack.c.l.b16 %v5801
    %v6028 = vunpack.c.h.b16 %v5801
    %v6029 = vunpack.c.l.b16 %v5802
    %v6030 = vunpack.c.h.b16 %v5802
    %v6031 = vunpack.c.l.b16 %v5803
    %v6032 = vunpack.c.h.b16 %v5803
    %v6033 = vunpack.c.l.b16 %v5804
    %v6034 = vunpack.c.h.b16 %v5804
    %v6035 = vunpack.c.l.b16 %v5805
    %v6036 = vunpack.c.h.b16 %v5805
    %v6037 = vunpack.c.l.b16 %v5806
    %v6038 = vunpack.c.h.b16 %v5806
    %v6039 = vunpack.c.l.b16 %v5807
    %v6040 = vunpack.c.h.b16 %v5807
    %v6041 = vunpack.c.l.b16 %v5808
    %v6042 = vunpack.c.h.b16 %v5808
    %v6043 = vunpack.c.l.b16 %v5809
    %v6044 = vunpack.c.h.b16 %v5809
    %v6045 = vunpack.c.l.b16 %v5810
    %v6046 = vunpack.c.h.b16 %v5810
    %v6047 = vunpack.c.l.b16 %v5811
    %v6048 = vunpack.c.h.b16 %v5811
    %v6049 = vunpack.c.l.b16 %v5812
    %v6050 = vunpack.c.h.b16 %v5812
    %v6051 = vunpack.c.l.b16 %v5813
    %v6052 = vunpack.c.h.b16 %v5813
    %v6053 = vunpack.c.l.b16 %v5814
    %v6054 = vunpack.c.h.b16 %v5814
    %v6055 = vunpack.c.l.b16 %v5815
    %v6056 = vunpack.c.h.b16 %v5815
    %v6057 = vunpack.c.l.b16 %v5816
    %v6058 = vunpack.c.h.b16 %v5816
    %v6059 = vunpack.c.l.b16 %v5817
    %v6060 = vunpack.c.h.b16 %v5817
    %v6061 = vunpack.c.l.b16 %v5818
    %v6062 = vunpack.c.h.b16 %v5818
    %v6063 = vunpack.c.l.b16 %v5819
    %v6064 = vunpack.c.h.b16 %v5819
    %v6065 = vunpack.c.l.b16 %v5820
    %v6066 = vunpack.c.h.b16 %v5820
    %v6067 = vunpack.c.l.b16 %v5821
    %v6068 = vunpack.c.h.b16 %v5821
    %v6069 = vunpack.c.l.b16 %v5822
    %v6070 = vunpack.c.h.b16 %v5822
    %v6071 = vunpack.c.l.b16 %v5823
    %v6072 = vunpack.c.h.b16 %v5823
    %v6073 = vunpack.c.l.b16 %v5824
    %v6074 = vunpack.c.h.b16 %v5824
    %v6075 = vunpack.c.l.b16 %v5825
    %v6076 = vunpack.c.h.b16 %v5825
    %v6077 = vunpack.c.l.b16 %v5826
    %v6078 = vunpack.c.h.b16 %v5826
    %v6079 = vunpack.c.l.b16 %v5827
    %v6080 = vunpack.c.h.b16 %v5827
    %v6081 = vunpack.c.l.b16 %v5828
    %v6082 = vunpack.c.h.b16 %v5828
    %v6083 = vunpack.c.l.b16 %v5829
    %v6084 = vunpack.c.h.b16 %v5829
    %v6085 = vunpack.c.l.b16 %v5830
    %v6086 = vunpack.c.h.b16 %v5830
    %v6087 = vunpack.c.l.b16 %v5831
    %v6088 = vunpack.c.h.b16 %v5831
    %v6089 = vunpack.c.l.b16 %v5832
    %v6090 = vunpack.c.h.b16 %v5832
    %v6091 = vunpack.c.l.b16 %v5833
    %v6092 = vunpack.c.h.b16 %v5833
    %v6093 = vunpack.c.l.b16 %v5834
    %v6094 = vunpack.c.h.b16 %v5834
    %v6095 = vunpack.c.l.b16 %v5835
    %v6096 = vunpack.c.h.b16 %v5835
    %v6097 = vunpack.c.l.b16 %v5836
    %v6098 = vunpack.c.h.b16 %v5836
    %v6099 = vunpack.c.l.b16 %v5837
    %v6100 = vunpack.c.h.b16 %v5837
    %v6101 = vunpack.c.l.b16 %v5838
    %v6102 = vunpack.c.h.b16 %v5838
    %v6103 = vunpack.c.l.b16 %v5839
    %v6104 = vunpack.c.h.b16 %v5839
    %v6105 = vunpack.c.l.b16 %v5840
    %v6106 = vunpack.c.h.b16 %v5840
    %v6107 = vunpack.c.l.b16 %v5841
    %v6108 = vunpack.c.h.b16 %v5841
    %v6109 = vunpack.c.l.b16 %v5842
    %v6110 = vunpack.c.h.b16 %v5842
    %v6111 = vunpack.c.l.b16 %v5843
    %v6112 = vunpack.c.h.b16 %v5843
    %v6113 = vunpack.c.l.b16 %v5844
    %v6114 = vunpack.c.h.b16 %v5844
    %v6115 = vunpack.c.l.b16 %v5845
    %v6116 = vunpack.c.h.b16 %v5845
    %v6117 = vunpack.c.l.b16 %v5846
    %v6118 = vunpack.c.h.b16 %v5846
    %v6119 = vunpack.c.l.b16 %v5847
    %v6120 = vunpack.c.h.b16 %v5847
    %v6121 = vunpack.c.l.b16 %v5848
    %v6122 = vunpack.c.h.b16 %v5848
    %v6123 = vunpack.c.l.b16 %v5849
    %v6124 = vunpack.c.h.b16 %v5849
    %v6125 = vunpack.c.l.b16 %v5850
    %v6126 = vunpack.c.h.b16 %v5850
    %v6127 = vunpack.c.l.b16 %v5851
    %v6128 = vunpack.c.h.b16 %v5851
    %v6129 = vunpack.c.l.b16 %v5852
    %v6130 = vunpack.c.h.b16 %v5852
    %v6131 = vunpack.c.l.b16 %v5853
    %v6132 = vunpack.c.h.b16 %v5853
    %v6133 = vunpack.c.l.b16 %v5854
    %v6134 = vunpack.c.h.b16 %v5854
    %v6135 = vunpack.c.l.b16 %v5855
    %v6136 = vunpack.c.h.b16 %v5855
    %v6137 = vunpack.c.l.b16 %v5856
    %v6138 = vunpack.c.h.b16 %v5856
    %v6139 = vunpack.c.l.b16 %v5857
    %v6140 = vunpack.c.h.b16 %v5857
    %v6141 = vunpack.c.l.b16 %v5858
    %v6142 = vunpack.c.h.b16 %v5858
    %v6143 = vunpack.c.l.b16 %v5859
    %v6144 = vunpack.c.h.b16 %v5859
    %v6145 = vunpack.c.l.b16 %v5860
    %v6146 = vunpack.c.h.b16 %v5860
    %v6147 = vunpack.c.l.b16 %v5861
    %v6148 = vunpack.c.h.b16 %v5861
    %v6149 = vunpack.c.l.b16 %v5862
    %v6150 = vunpack.c.h.b16 %v5862
    %v6151 = vpack.c.b16 %v5965, %v5959
    %v6152 = vpack.c.b16 %v5966, %v5960
    %v6153 = vpack.c.b16 %v5967, %v5961
    %v6154 = vpack.c.b16 %v5968, %v5962
    %v6155 = vpack.c.b16 %v5969, %v5963
    %v6156 = vpack.c.b16 %v5970, %v5964
    %v6157 = vpack.c.b16 %v5977, %v5971
    %v6158 = vpack.c.b16 %v5978, %v5972
    %v6159 = vpack.c.b16 %v5979, %v5973
    %v6160 = vpack.c.b16 %v5980, %v5974
    %v6161 = vpack.c.b16 %v5981, %v5975
    %v6162 = vpack.c.b16 %v5982, %v5976
    %v6163 = vpack.c.b16 %v5989, %v5983
    %v6164 = vpack.c.b16 %v5990, %v5984
    %v6165 = vpack.c.b16 %v5991, %v5985
    %v6166 = vpack.c.b16 %v5992, %v5986
    %v6167 = vpack.c.b16 %v5993, %v5987
    %v6168 = vpack.c.b16 %v5994, %v5988
    %v6169 = vpack.c.b16 %v6001, %v5995
    %v6170 = vpack.c.b16 %v6002, %v5996
    %v6171 = vpack.c.b16 %v6003, %v5997
    %v6172 = vpack.c.b16 %v6004, %v5998
    %v6173 = vpack.c.b16 %v6005, %v5999
    %v6174 = vpack.c.b16 %v6006, %v6000
    %v6175 = vpack.c.b16 %v6013, %v6007
    %v6176 = vpack.c.b16 %v6014, %v6008
    %v6177 = vpack.c.b16 %v6015, %v6009
    %v6178 = vpack.c.b16 %v6016, %v6010
    %v6179 = vpack.c.b16 %v6017, %v6011
    %v6180 = vpack.c.b16 %v6018, %v6012
    %v6181 = vpack.c.b16 %v6025, %v6019
    %v6182 = vpack.c.b16 %v6026, %v6020
    %v6183 = vpack.c.b16 %v6027, %v6021
    %v6184 = vpack.c.b16 %v6028, %v6022
    %v6185 = vpack.c.b16 %v6029, %v6023
    %v6186 = vpack.c.b16 %v6030, %v6024
    %v6187 = vpack.c.b16 %v6037, %v6031
    %v6188 = vpack.c.b16 %v6038, %v6032
    %v6189 = vpack.c.b16 %v6039, %v6033
    %v6190 = vpack.c.b16 %v6040, %v6034
    %v6191 = vpack.c.b16 %v6041, %v6035
    %v6192 = vpack.c.b16 %v6042, %v6036
    %v6193 = vpack.c.b16 %v6049, %v6043
    %v6194 = vpack.c.b16 %v6050, %v6044
    %v6195 = vpack.c.b16 %v6051, %v6045
    %v6196 = vpack.c.b16 %v6052, %v6046
    %v6197 = vpack.c.b16 %v6053, %v6047
    %v6198 = vpack.c.b16 %v6054, %v6048
    %v6199 = vpack.c.b16 %v6061, %v6055
    %v6200 = vpack.c.b16 %v6062, %v6056
    %v6201 = vpack.c.b16 %v6063, %v6057
    %v6202 = vpack.c.b16 %v6064, %v6058
    %v6203 = vpack.c.b16 %v6065, %v6059
    %v6204 = vpack.c.b16 %v6066, %v6060
    %v6205 = vpack.c.b16 %v6073, %v6067
    %v6206 = vpack.c.b16 %v6074, %v6068
    %v6207 = vpack.c.b16 %v6075, %v6069
    %v6208 = vpack.c.b16 %v6076, %v6070
    %v6209 = vpack.c.b16 %v6077, %v6071
    %v6210 = vpack.c.b16 %v6078, %v6072
    %v6211 = vpack.c.b16 %v6085, %v6079
    %v6212 = vpack.c.b16 %v6086, %v6080
    %v6213 = vpack.c.b16 %v6087, %v6081
    %v6214 = vpack.c.b16 %v6088, %v6082
    %v6215 = vpack.c.b16 %v6089, %v6083
    %v6216 = vpack.c.b16 %v6090, %v6084
    %v6217 = vpack.c.b16 %v6097, %v6091
    %v6218 = vpack.c.b16 %v6098, %v6092
    %v6219 = vpack.c.b16 %v6099, %v6093
    %v6220 = vpack.c.b16 %v6100, %v6094
    %v6221 = vpack.c.b16 %v6101, %v6095
    %v6222 = vpack.c.b16 %v6102, %v6096
    %v6223 = vpack.c.b16 %v6109, %v6103
    %v6224 = vpack.c.b16 %v6110, %v6104
    %v6225 = vpack.c.b16 %v6111, %v6105
    %v6226 = vpack.c.b16 %v6112, %v6106
    %v6227 = vpack.c.b16 %v6113, %v6107
    %v6228 = vpack.c.b16 %v6114, %v6108
    %v6229 = vpack.c.b16 %v6121, %v6115
    %v6230 = vpack.c.b16 %v6122, %v6116
    %v6231 = vpack.c.b16 %v6123, %v6117
    %v6232 = vpack.c.b16 %v6124, %v6118
    %v6233 = vpack.c.b16 %v6125, %v6119
    %v6234 = vpack.c.b16 %v6126, %v6120
    %v6235 = vpack.c.b16 %v6133, %v6127
    %v6236 = vpack.c.b16 %v6134, %v6128
    %v6237 = vpack.c.b16 %v6135, %v6129
    %v6238 = vpack.c.b16 %v6136, %v6130
    %v6239 = vpack.c.b16 %v6137, %v6131
    %v6240 = vpack.c.b16 %v6138, %v6132
    %v6241 = vpack.c.b16 %v6145, %v6139
    %v6242 = vpack.c.b16 %v6146, %v6140
    %v6243 = vpack.c.b16 %v6147, %v6141
    %v6244 = vpack.c.b16 %v6148, %v6142
    %v6245 = vpack.c.b16 %v6149, %v6143
    %v6246 = vpack.c.b16 %v6150, %v6144
    %6343 = vmatprep.subr.bf16.mxu0 %v6152
    %6344 = vmatpush1.bf16.msra.mxu0 %v6151
    %6345 = vmatprep.subr.bf16.mxu0 %v6158
    %6346 = vmatpush1.bf16.msra.mxu0 %v6157
    %6347 = vmatprep.subr.bf16.mxu0 %v6164
    %6348 = vmatpush1.bf16.msra.mxu0 %v6163
    %6349 = vmatprep.subr.bf16.mxu0 %v6170
    %6350 = vmatpush1.bf16.msra.mxu0 %v6169
    %6351 = vmatprep.subr.bf16.mxu0 %v6176
    %6352 = vmatpush1.bf16.msra.mxu0 %v6175
    %6353 = vmatprep.subr.bf16.mxu0 %v6182
    %6354 = vmatpush1.bf16.msra.mxu0 %v6181
    %6355 = vmatprep.subr.bf16.mxu0 %v6188
    %6356 = vmatpush1.bf16.msra.mxu0 %v6187
    %6357 = vmatprep.subr.bf16.mxu0 %v6194
    %6358 = vmatpush1.bf16.msra.mxu0 %v6193
    %6359 = vmatprep.subr.bf16.mxu0 %v6200
    %6360 = vmatpush1.bf16.msra.mxu0 %v6199
    %6361 = vmatprep.subr.bf16.mxu0 %v6206
    %6362 = vmatpush1.bf16.msra.mxu0 %v6205
    %6363 = vmatprep.subr.bf16.mxu0 %v6212
    %6364 = vmatpush1.bf16.msra.mxu0 %v6211
    %6365 = vmatprep.subr.bf16.mxu0 %v6218
    %6366 = vmatpush1.bf16.msra.mxu0 %v6217
    %6367 = vmatprep.subr.bf16.mxu0 %v6224
    %6368 = vmatpush1.bf16.msra.mxu0 %v6223
    %6369 = vmatprep.subr.bf16.mxu0 %v6230
    %6370 = vmatpush1.bf16.msra.mxu0 %v6229
    %6371 = vmatprep.subr.bf16.mxu0 %v6236
    %6372 = vmatpush1.bf16.msra.mxu0 %v6235
    %6373 = vmatprep.subr.bf16.mxu0 %v6242
    %6374 = vmatpush1.bf16.msra.mxu0 %v6241
    %6375 = vmatprep.mubr.bf16.mxu0 %v5764
    %6376 = vmatmul.mubr.bf16.gmra.mrb[0].mxu0 %v5763
    %v6377 = vpop.f32.mrb[0].mxu0
    %v6378 = vadd.f32 0.0, %v6377
    %v6379 = vpop.f32.mrb[0].mxu0
    %v6380 = vadd.f32 0.0, %v6379
    %v6381 = vpop.f32.mrb[0].mxu0
    %v6382 = vpop.f32.mrb[0].mxu0
    %6383 = vdwg.mxu0
    %6384 = vmatprep.subr.bf16.mxu0 %v6154
    %6385 = vmatpush1.bf16.msra.mxu0 %v6153
    %6386 = vmatprep.subr.bf16.mxu0 %v6160
    %6387 = vmatpush1.bf16.msra.mxu0 %v6159
    %6388 = vmatprep.subr.bf16.mxu0 %v6166
    %6389 = vmatpush1.bf16.msra.mxu0 %v6165
    %6390 = vmatprep.subr.bf16.mxu0 %v6172
    %6391 = vmatpush1.bf16.msra.mxu0 %v6171
    %6392 = vmatprep.subr.bf16.mxu0 %v6178
    %6393 = vmatpush1.bf16.msra.mxu0 %v6177
    %6394 = vmatprep.subr.bf16.mxu0 %v6184
    %6395 = vmatpush1.bf16.msra.mxu0 %v6183
    %6396 = vmatprep.subr.bf16.mxu0 %v6190
    %6397 = vmatpush1.bf16.msra.mxu0 %v6189
    %6398 = vmatprep.subr.bf16.mxu0 %v6196
    %6399 = vmatpush1.bf16.msra.mxu0 %v6195
    %6400 = vmatprep.subr.bf16.mxu0 %v6202
    %6401 = vmatpush1.bf16.msra.mxu0 %v6201
    %6402 = vmatprep.subr.bf16.mxu0 %v6208
    %6403 = vmatpush1.bf16.msra.mxu0 %v6207
    %6404 = vmatprep.subr.bf16.mxu0 %v6214
    %6405 = vmatpush1.bf16.msra.mxu0 %v6213
    %6406 = vmatprep.subr.bf16.mxu0 %v6220
    %6407 = vmatpush1.bf16.msra.mxu0 %v6219
    %6408 = vmatprep.subr.bf16.mxu0 %v6226
    %6409 = vmatpush1.bf16.msra.mxu0 %v6225
    %6410 = vmatprep.subr.bf16.mxu0 %v6232
    %6411 = vmatpush1.bf16.msra.mxu0 %v6231
    %6412 = vmatprep.subr.bf16.mxu0 %v6238
    %6413 = vmatpush1.bf16.msra.mxu0 %v6237
    %6414 = vmatprep.subr.bf16.mxu0 %v6244
    %6415 = vmatpush1.bf16.msra.mxu0 %v6243
    %6416 = vmatprep.mubr.bf16.mxu0 %v5764
    %6417 = vmatmul.mubr.bf16.gmra.mrb[0].mxu0 %v5763
    %v6418 = vpop.f32.mrb[0].mxu0
    %v6419 = vadd.f32 0.0, %v6418
    %v6420 = vpop.f32.mrb[0].mxu0
    %v6421 = vadd.f32 0.0, %v6420
    %v6422 = vpop.f32.mrb[0].mxu0
    %v6423 = vpop.f32.mrb[0].mxu0
    %6424 = vdwg.mxu0
    %6425 = vmatprep.subr.bf16.mxu0 %v6156
    %6426 = vmatpush1.bf16.msra.mxu0 %v6155
    %6427 = vmatprep.subr.bf16.mxu0 %v6162
    %6428 = vmatpush1.bf16.msra.mxu0 %v6161
    %6429 = vmatprep.subr.bf16.mxu0 %v6168
    %6430 = vmatpush1.bf16.msra.mxu0 %v6167
    %6431 = vmatprep.subr.bf16.mxu0 %v6174
    %6432 = vmatpush1.bf16.msra.mxu0 %v6173
    %6433 = vmatprep.subr.bf16.mxu0 %v6180
    %6434 = vmatpush1.bf16.msra.mxu0 %v6179
    %6435 = vmatprep.subr.bf16.mxu0 %v6186
    %6436 = vmatpush1.bf16.msra.mxu0 %v6185
    %6437 = vmatprep.subr.bf16.mxu0 %v6192
    %6438 = vmatpush1.bf16.msra.mxu0 %v6191
    %6439 = vmatprep.subr.bf16.mxu0 %v6198
    %6440 = vmatpush1.bf16.msra.mxu0 %v6197
    %6441 = vmatprep.subr.bf16.mxu0 %v6204
    %6442 = vmatpush1.bf16.msra.mxu0 %v6203
    %6443 = vmatprep.subr.bf16.mxu0 %v6210
    %6444 = vmatpush1.bf16.msra.mxu0 %v6209
    %6445 = vmatprep.subr.bf16.mxu0 %v6216
    %6446 = vmatpush1.bf16.msra.mxu0 %v6215
    %6447 = vmatprep.subr.bf16.mxu0 %v6222
    %6448 = vmatpush1.bf16.msra.mxu0 %v6221
    %6449 = vmatprep.subr.bf16.mxu0 %v6228
    %6450 = vmatpush1.bf16.msra.mxu0 %v6227
    %6451 = vmatprep.subr.bf16.mxu0 %v6234
    %6452 = vmatpush1.bf16.msra.mxu0 %v6233
    %6453 = vmatprep.subr.bf16.mxu0 %v6240
    %6454 = vmatpush1.bf16.msra.mxu0 %v6239
    %6455 = vmatprep.subr.bf16.mxu0 %v6246
    %6456 = vmatpush1.bf16.msra.mxu0 %v6245
    %6457 = vmatprep.mubr.bf16.mxu0 %v5764
    %6458 = vmatmul.mubr.bf16.gmra.mrb[0].mxu0 %v5763
    %v6459 = vpop.f32.mrb[0].mxu0
    %v6460 = vadd.f32 0.0, %v6459
    %v6461 = vpop.f32.mrb[0].mxu0
    %v6462 = vadd.f32 0.0, %v6461
    %v6463 = vpop.f32.mrb[0].mxu0
    %v6464 = vpop.f32.mrb[0].mxu0
    %6465 = vdwg.mxu0
    %v6466 = vadd.f32 %v358, %v6378
    %v6467 = vadd.f32 %v360, %v6380
    %v6468 = vxor.u32 %v6466, 2147483648
    %v6469 = vxor.u32 %v6467, 2147483648
    %v6470 = vmul.f32 %v6468, 1.442695
    %v6471 = vpow.pop %v6470
    %v6472 = vmul.f32 %v6469, 1.442695
    %v6473 = vpow.pop %v6472
    %v6474 = vadd.f32 %v6471, 1.0
    %v6475 = vadd.f32 %v6473, 1.0
    %v6476 = vrcp.pop %v6474
    %v6477 = vmul.f32 1.0, %v6476
    %v6478 = vrcp.pop %v6475
    %v6479 = vmul.f32 1.0, %v6478
    %v6480 = vadd.f32 %v431, %v6419
    %v6481 = vadd.f32 %v433, %v6421
    %v6482 = vxor.u32 %v6480, 2147483648
    %v6483 = vxor.u32 %v6481, 2147483648
    %v6484 = vmul.f32 %v6482, 1.442695
    %v6485 = vpow.pop %v6484
    %v6486 = vmul.f32 %v6483, 1.442695
    %v6487 = vpow.pop %v6486
    %v6488 = vadd.f32 %v6485, 1.0
    %v6489 = vadd.f32 %v6487, 1.0
    %v6490 = vrcp.pop %v6488
    %v6491 = vmul.f32 1.0, %v6490
    %v6492 = vrcp.pop %v6489
    %v6493 = vmul.f32 1.0, %v6492
    %v6494 = vadd.f32 %v6460, %v513
    %v6495 = vadd.f32 %v6462, %v517
    %v6496 = vmul.f32 %v6477, %v6494
    %v6497 = vmul.f32 %v6479, %v6495
    %v6498 = vadd.f32 %v504, %v6496
    %v6499 = vadd.f32 %v506, %v6497
    %v6500 = vtanh.pop %v6498
    %v6501 = vtanh.pop %v6499
    %v6502 = vsub.f32 1.0, %v6491
    %v6503 = vsub.f32 1.0, %v6493
    %v6504 = vmul.f32 %v6502, %v6500
    %v6505 = vmul.f32 %v6503, %v6501
    %v6506 = vmul.f32 %v6491, %v5761
    %v6507 = vmul.f32 %v6493, %v5762
    %v6508 = vadd.f32 %v6504, %v6506
    %v6509 = vadd.f32 %v6505, %v6507
    %v6510 = vpack.c.bf16 %v6508, %v6508
    %v6511 = vpack.c.bf16 %v6509, %v6509
    %v6514 = vrot.slane %v6510, 4
    %v6515 = vrot.slane %v6511, 4
    %6518 = vst [vmem:[#allocation6 + $0x30] sm:$0xf0] %v6514
    %6519 = vst [vmem:[#allocation6 + $0x38] sm:$0xf0] %v6515
    %s6520 = smul.u32 4, 32
    %s6521 = smul.u32 %s6520, 6
    %s6522 = sshll.u32 %s6521, 4
    %6523 = dma.done [#allocation7], %s6522
    %s6524 = sshll.u32 %s6521, 4
    %6525 = dma.done %s86, %s6524
    %v6526 = vld [vmem:[#allocation6] sm:$0xff]
    %v6527 = vld [vmem:[#allocation6 + $0x8] sm:$0xff]
    %v6528 = vld [vmem:[#allocation6 + $0x10] sm:$0xff]
    %v6529 = vld [vmem:[#allocation6 + $0x18] sm:$0xff]
    %v6530 = vld [vmem:[#allocation6 + $0x20] sm:$0xff]
    %v6531 = vld [vmem:[#allocation6 + $0x28] sm:$0xff]
    %v6532 = vld [vmem:[#allocation6 + $0x30] sm:$0xff]
    %v6533 = vld [vmem:[#allocation6 + $0x38] sm:$0xff]
    %v6534 = vld [vmem:[#allocation2] sm:$0xff]
    %v6535 = vld [vmem:[#allocation2 + $0x8] sm:$0xff]
    %v6536 = vld [vmem:[#allocation2 + $0x10] sm:$0xff]
    %v6537 = vld [vmem:[#allocation2 + $0x18] sm:$0xff]
    %v6538 = vld [vmem:[#allocation2 + $0x20] sm:$0xff]
    %v6539 = vld [vmem:[#allocation2 + $0x28] sm:$0xff]
    %v6540 = vld [vmem:[#allocation2 + $0x30] sm:$0xff]
    %v6541 = vld [vmem:[#allocation2 + $0x38] sm:$0xff]
    %v6542 = vld [vmem:[#allocation2 + $0x40] sm:$0xff]
    %v6543 = vld [vmem:[#allocation2 + $0x48] sm:$0xff]
    %v6544 = vld [vmem:[#allocation2 + $0x50] sm:$0xff]
    %v6545 = vld [vmem:[#allocation2 + $0x58] sm:$0xff]
    %v6546 = vld [vmem:[#allocation2 + $0x60] sm:$0xff]
    %v6547 = vld [vmem:[#allocation2 + $0x68] sm:$0xff]
    %v6548 = vld [vmem:[#allocation2 + $0x70] sm:$0xff]
    %v6549 = vld [vmem:[#allocation2 + $0x78] sm:$0xff]
    %v6550 = vld [vmem:[#allocation2 + $0x80] sm:$0xff]
    %v6551 = vld [vmem:[#allocation2 + $0x88] sm:$0xff]
    %v6552 = vld [vmem:[#allocation2 + $0x90] sm:$0xff]
    %v6553 = vld [vmem:[#allocation2 + $0x98] sm:$0xff]
    %v6554 = vld [vmem:[#allocation2 + $0xa0] sm:$0xff]
    %v6555 = vld [vmem:[#allocation2 + $0xa8] sm:$0xff]
    %v6556 = vld [vmem:[#allocation2 + $0xb0] sm:$0xff]
    %v6557 = vld [vmem:[#allocation2 + $0xb8] sm:$0xff]
    %v6558 = vld [vmem:[#allocation2 + $0xc0] sm:$0xff]
    %v6559 = vld [vmem:[#allocation2 + $0xc8] sm:$0xff]
    %v6560 = vld [vmem:[#allocation2 + $0xd0] sm:$0xff]
    %v6561 = vld [vmem:[#allocation2 + $0xd8] sm:$0xff]
    %v6562 = vld [vmem:[#allocation2 + $0xe0] sm:$0xff]
    %v6563 = vld [vmem:[#allocation2 + $0xe8] sm:$0xff]
    %v6564 = vld [vmem:[#allocation2 + $0xf0] sm:$0xff]
    %v6565 = vld [vmem:[#allocation2 + $0xf8] sm:$0xff]
    %v6566 = vld [vmem:[#allocation2 + $0x100] sm:$0xff]
    %v6567 = vld [vmem:[#allocation2 + $0x108] sm:$0xff]
    %v6568 = vld [vmem:[#allocation2 + $0x110] sm:$0xff]
    %v6569 = vld [vmem:[#allocation2 + $0x118] sm:$0xff]
    %v6570 = vld [vmem:[#allocation2 + $0x120] sm:$0xff]
    %v6571 = vld [vmem:[#allocation2 + $0x128] sm:$0xff]
    %v6572 = vld [vmem:[#allocation2 + $0x130] sm:$0xff]
    %v6573 = vld [vmem:[#allocation2 + $0x138] sm:$0xff]
    %v6574 = vld [vmem:[#allocation2 + $0x140] sm:$0xff]
    %v6575 = vld [vmem:[#allocation2 + $0x148] sm:$0xff]
    %v6576 = vld [vmem:[#allocation2 + $0x150] sm:$0xff]
    %v6577 = vld [vmem:[#allocation2 + $0x158] sm:$0xff]
    %v6578 = vld [vmem:[#allocation2 + $0x160] sm:$0xff]
    %v6579 = vld [vmem:[#allocation2 + $0x168] sm:$0xff]
    %v6580 = vld [vmem:[#allocation2 + $0x170] sm:$0xff]
    %v6581 = vld [vmem:[#allocation2 + $0x178] sm:$0xff]
    %v6582 = vld [vmem:[#allocation2 + $0x180] sm:$0xff]
    %v6583 = vld [vmem:[#allocation2 + $0x188] sm:$0xff]
    %v6584 = vld [vmem:[#allocation2 + $0x190] sm:$0xff]
    %v6585 = vld [vmem:[#allocation2 + $0x198] sm:$0xff]
    %v6586 = vld [vmem:[#allocation2 + $0x1a0] sm:$0xff]
    %v6587 = vld [vmem:[#allocation2 + $0x1a8] sm:$0xff]
    %v6588 = vld [vmem:[#allocation2 + $0x1b0] sm:$0xff]
    %v6589 = vld [vmem:[#allocation2 + $0x1b8] sm:$0xff]
    %v6590 = vld [vmem:[#allocation2 + $0x1c0] sm:$0xff]
    %v6591 = vld [vmem:[#allocation2 + $0x1c8] sm:$0xff]
    %v6592 = vld [vmem:[#allocation2 + $0x1d0] sm:$0xff]
    %v6593 = vld [vmem:[#allocation2 + $0x1d8] sm:$0xff]
    %v6594 = vld [vmem:[#allocation2 + $0x1e0] sm:$0xff]
    %v6595 = vld [vmem:[#allocation2 + $0x1e8] sm:$0xff]
    %v6596 = vld [vmem:[#allocation2 + $0x1f0] sm:$0xff]
    %v6597 = vld [vmem:[#allocation2 + $0x1f8] sm:$0xff]
    %v6598 = vld [vmem:[#allocation2 + $0x200] sm:$0xff]
    %v6599 = vld [vmem:[#allocation2 + $0x208] sm:$0xff]
    %v6600 = vld [vmem:[#allocation2 + $0x210] sm:$0xff]
    %v6601 = vld [vmem:[#allocation2 + $0x218] sm:$0xff]
    %v6602 = vld [vmem:[#allocation2 + $0x220] sm:$0xff]
    %v6603 = vld [vmem:[#allocation2 + $0x228] sm:$0xff]
    %v6604 = vld [vmem:[#allocation2 + $0x230] sm:$0xff]
    %v6605 = vld [vmem:[#allocation2 + $0x238] sm:$0xff]
    %v6606 = vld [vmem:[#allocation2 + $0x240] sm:$0xff]
    %v6607 = vld [vmem:[#allocation2 + $0x248] sm:$0xff]
    %v6608 = vld [vmem:[#allocation2 + $0x250] sm:$0xff]
    %v6609 = vld [vmem:[#allocation2 + $0x258] sm:$0xff]
    %v6610 = vld [vmem:[#allocation2 + $0x260] sm:$0xff]
    %v6611 = vld [vmem:[#allocation2 + $0x268] sm:$0xff]
    %v6612 = vld [vmem:[#allocation2 + $0x270] sm:$0xff]
    %v6613 = vld [vmem:[#allocation2 + $0x278] sm:$0xff]
    %v6614 = vld [vmem:[#allocation2 + $0x280] sm:$0xff]
    %v6615 = vld [vmem:[#allocation2 + $0x288] sm:$0xff]
    %v6616 = vld [vmem:[#allocation2 + $0x290] sm:$0xff]
    %v6617 = vld [vmem:[#allocation2 + $0x298] sm:$0xff]
    %v6618 = vld [vmem:[#allocation2 + $0x2a0] sm:$0xff]
    %v6619 = vld [vmem:[#allocation2 + $0x2a8] sm:$0xff]
    %v6620 = vld [vmem:[#allocation2 + $0x2b0] sm:$0xff]
    %v6621 = vld [vmem:[#allocation2 + $0x2b8] sm:$0xff]
    %v6622 = vld [vmem:[#allocation2 + $0x2c0] sm:$0xff]
    %v6623 = vld [vmem:[#allocation2 + $0x2c8] sm:$0xff]
    %v6624 = vld [vmem:[#allocation2 + $0x2d0] sm:$0xff]
    %v6625 = vld [vmem:[#allocation2 + $0x2d8] sm:$0xff]
    %v6626 = vld [vmem:[#allocation2 + $0x2e0] sm:$0xff]
    %v6627 = vld [vmem:[#allocation2 + $0x2e8] sm:$0xff]
    %v6628 = vld [vmem:[#allocation2 + $0x2f0] sm:$0xff]
    %v6629 = vld [vmem:[#allocation2 + $0x2f8] sm:$0xff]
    %v6630 = vld [vmem:[%s7] sm:$0x3f]
    %v6632 = vlaneseq
    %v6633 = vshrl.u32 %v6632, 7
    %v6634 = vsub.s32 0, %v6633
    %v6635 = vrot.slane %v6630, %v6634
    %v6636 = vlaneseq
    %v6637 = vshrl.u32 %v6636, 7
    %v6638 = vsub.s32 1, %v6637
    %v6639 = vrot.slane %v6630, %v6638
    %v6640 = vlaneseq
    %v6641 = vshrl.u32 %v6640, 7
    %v6642 = vsub.s32 2, %v6641
    %v6643 = vrot.slane %v6630, %v6642
    %v6644 = vlaneseq
    %v6645 = vshrl.u32 %v6644, 7
    %v6646 = vsub.s32 3, %v6645
    %v6647 = vrot.slane %v6630, %v6646
    %v6648 = vlaneseq
    %v6649 = vshrl.u32 %v6648, 7
    %v6650 = vsub.s32 4, %v6649
    %v6651 = vrot.slane %v6630, %v6650
    %v6652 = vlaneseq
    %v6653 = vshrl.u32 %v6652, 7
    %v6654 = vsub.s32 5, %v6653
    %v6655 = vrot.slane %v6630, %v6654
    %6662 = vmatprep.subr.bf16.mxu0 %v6535
    %6663 = vmatpush1.bf16.msra.mxu0 %v6534
    %6664 = vmatprep.subr.bf16.mxu0 %v6541
    %6665 = vmatpush1.bf16.msra.mxu0 %v6540
    %6666 = vmatprep.subr.bf16.mxu0 %v6547
    %6667 = vmatpush1.bf16.msra.mxu0 %v6546
    %6668 = vmatprep.subr.bf16.mxu0 %v6553
    %6669 = vmatpush1.bf16.msra.mxu0 %v6552
    %6670 = vmatprep.subr.bf16.mxu0 %v6559
    %6671 = vmatpush1.bf16.msra.mxu0 %v6558
    %6672 = vmatprep.subr.bf16.mxu0 %v6565
    %6673 = vmatpush1.bf16.msra.mxu0 %v6564
    %6674 = vmatprep.subr.bf16.mxu0 %v6571
    %6675 = vmatpush1.bf16.msra.mxu0 %v6570
    %6676 = vmatprep.subr.bf16.mxu0 %v6577
    %6677 = vmatpush1.bf16.msra.mxu0 %v6576
    %6678 = vmatprep.subr.bf16.mxu0 %v6583
    %6679 = vmatpush1.bf16.msra.mxu0 %v6582
    %6680 = vmatprep.subr.bf16.mxu0 %v6589
    %6681 = vmatpush1.bf16.msra.mxu0 %v6588
    %6682 = vmatprep.subr.bf16.mxu0 %v6595
    %6683 = vmatpush1.bf16.msra.mxu0 %v6594
    %6684 = vmatprep.subr.bf16.mxu0 %v6601
    %6685 = vmatpush1.bf16.msra.mxu0 %v6600
    %6686 = vmatprep.subr.bf16.mxu0 %v6607
    %6687 = vmatpush1.bf16.msra.mxu0 %v6606
    %6688 = vmatprep.subr.bf16.mxu0 %v6613
    %6689 = vmatpush1.bf16.msra.mxu0 %v6612
    %6690 = vmatprep.subr.bf16.mxu0 %v6619
    %6691 = vmatpush1.bf16.msra.mxu0 %v6618
    %6692 = vmatprep.subr.bf16.mxu0 %v6625
    %6693 = vmatpush1.bf16.msra.mxu0 %v6624
    %6694 = vmatprep.mubr.bf16.mxu0 %v6527
    %6695 = vmatmul.mubr.bf16.gmra.mrb[0].mxu0 %v6526
    %v6696 = vpop.f32.mrb[0].mxu0
    %v6697 = vadd.f32 %v6635, %v6696
    %v6698 = vpop.f32.mrb[0].mxu0
    %v6699 = vadd.f32 %v6639, %v6698
    %v6700 = vpop.f32.mrb[0].mxu0
    %v6701 = vadd.f32 %v6635, %v6700
    %v6702 = vpop.f32.mrb[0].mxu0
    %v6703 = vadd.f32 %v6639, %v6702
    %6704 = vmatprep.mubr.bf16.mxu0 %v6529
    %6705 = vmatmul.mubr.bf16.gmra.mrb[0].mxu0 %v6528
    %v6706 = vpop.f32.mrb[0].mxu0
    %v6707 = vadd.f32 %v6635, %v6706
    %v6708 = vpop.f32.mrb[0].mxu0
    %v6709 = vadd.f32 %v6639, %v6708
    %v6710 = vpop.f32.mrb[0].mxu0
    %v6711 = vadd.f32 %v6635, %v6710
    %v6712 = vpop.f32.mrb[0].mxu0
    %v6713 = vadd.f32 %v6639, %v6712
    %6714 = vmatprep.mubr.bf16.mxu0 %v6531
    %6715 = vmatmul.mubr.bf16.gmra.mrb[0].mxu0 %v6530
    %v6716 = vpop.f32.mrb[0].mxu0
    %v6717 = vadd.f32 %v6635, %v6716
    %v6718 = vpop.f32.mrb[0].mxu0
    %v6719 = vadd.f32 %v6639, %v6718
    %v6720 = vpop.f32.mrb[0].mxu0
    %v6721 = vadd.f32 %v6635, %v6720
    %v6722 = vpop.f32.mrb[0].mxu0
    %v6723 = vadd.f32 %v6639, %v6722
    %6724 = vmatprep.mubr.bf16.mxu0 %v6533
    %6725 = vmatmul.mubr.bf16.gmra.mrb[0].mxu0 %v6532
    %v6726 = vpop.f32.mrb[0].mxu0
    %v6727 = vadd.f32 %v6635, %v6726
    %v6728 = vpop.f32.mrb[0].mxu0
    %v6729 = vadd.f32 %v6639, %v6728
    %v6730 = vpop.f32.mrb[0].mxu0
    %v6731 = vadd.f32 %v6635, %v6730
    %v6732 = vpop.f32.mrb[0].mxu0
    %v6733 = vadd.f32 %v6639, %v6732
    %6734 = vdwg.mxu0
    %6735 = vmatprep.subr.bf16.mxu0 %v6537
    %6736 = vmatpush1.bf16.msra.mxu0 %v6536
    %6737 = vmatprep.subr.bf16.mxu0 %v6543
    %6738 = vmatpush1.bf16.msra.mxu0 %v6542
    %6739 = vmatprep.subr.bf16.mxu0 %v6549
    %6740 = vmatpush1.bf16.msra.mxu0 %v6548
    %6741 = vmatprep.subr.bf16.mxu0 %v6555
    %6742 = vmatpush1.bf16.msra.mxu0 %v6554
    %6743 = vmatprep.subr.bf16.mxu0 %v6561
    %6744 = vmatpush1.bf16.msra.mxu0 %v6560
    %6745 = vmatprep.subr.bf16.mxu0 %v6567
    %6746 = vmatpush1.bf16.msra.mxu0 %v6566
    %6747 = vmatprep.subr.bf16.mxu0 %v6573
    %6748 = vmatpush1.bf16.msra.mxu0 %v6572
    %6749 = vmatprep.subr.bf16.mxu0 %v6579
    %6750 = vmatpush1.bf16.msra.mxu0 %v6578
    %6751 = vmatprep.subr.bf16.mxu0 %v6585
    %6752 = vmatpush1.bf16.msra.mxu0 %v6584
    %6753 = vmatprep.subr.bf16.mxu0 %v6591
    %6754 = vmatpush1.bf16.msra.mxu0 %v6590
    %6755 = vmatprep.subr.bf16.mxu0 %v6597
    %6756 = vmatpush1.bf16.msra.mxu0 %v6596
    %6757 = vmatprep.subr.bf16.mxu0 %v6603
    %6758 = vmatpush1.bf16.msra.mxu0 %v6602
    %6759 = vmatprep.subr.bf16.mxu0 %v6609
    %6760 = vmatpush1.bf16.msra.mxu0 %v6608
    %6761 = vmatprep.subr.bf16.mxu0 %v6615
    %6762 = vmatpush1.bf16.msra.mxu0 %v6614
    %6763 = vmatprep.subr.bf16.mxu0 %v6621
    %6764 = vmatpush1.bf16.msra.mxu0 %v6620
    %6765 = vmatprep.subr.bf16.mxu0 %v6627
    %6766 = vmatpush1.bf16.msra.mxu0 %v6626
    %6767 = vmatprep.mubr.bf16.mxu0 %v6527
    %6768 = vmatmul.mubr.bf16.gmra.mrb[0].mxu0 %v6526
    %v6769 = vpop.f32.mrb[0].mxu0
    %v6770 = vadd.f32 %v6643, %v6769
    %v6771 = vpop.f32.mrb[0].mxu0
    %v6772 = vadd.f32 %v6647, %v6771
    %v6773 = vpop.f32.mrb[0].mxu0
    %v6774 = vadd.f32 %v6643, %v6773
    %v6775 = vpop.f32.mrb[0].mxu0
    %v6776 = vadd.f32 %v6647, %v6775
    %6777 = vmatprep.mubr.bf16.mxu0 %v6529
    %6778 = vmatmul.mubr.bf16.gmra.mrb[0].mxu0 %v6528
    %v6779 = vpop.f32.mrb[0].mxu0
    %v6780 = vadd.f32 %v6643, %v6779
    %v6781 = vpop.f32.mrb[0].mxu0
    %v6782 = vadd.f32 %v6647, %v6781
    %v6783 = vpop.f32.mrb[0].mxu0
    %v6784 = vadd.f32 %v6643, %v6783
    %v6785 = vpop.f32.mrb[0].mxu0
    %v6786 = vadd.f32 %v6647, %v6785
    %6787 = vmatprep.mubr.bf16.mxu0 %v6531
    %6788 = vmatmul.mubr.bf16.gmra.mrb[0].mxu0 %v6530
    %v6789 = vpop.f32.mrb[0].mxu0
    %v6790 = vadd.f32 %v6643, %v6789
    %v6791 = vpop.f32.mrb[0].mxu0
    %v6792 = vadd.f32 %v6647, %v6791
    %v6793 = vpop.f32.mrb[0].mxu0
    %v6794 = vadd.f32 %v6643, %v6793
    %v6795 = vpop.f32.mrb[0].mxu0
    %v6796 = vadd.f32 %v6647, %v6795
    %6797 = vmatprep.mubr.bf16.mxu0 %v6533
    %6798 = vmatmul.mubr.bf16.gmra.mrb[0].mxu0 %v6532
    %v6799 = vpop.f32.mrb[0].mxu0
    %v6800 = vadd.f32 %v6643, %v6799
    %v6801 = vpop.f32.mrb[0].mxu0
    %v6802 = vadd.f32 %v6647, %v6801
    %v6803 = vpop.f32.mrb[0].mxu0
    %v6804 = vadd.f32 %v6643, %v6803
    %v6805 = vpop.f32.mrb[0].mxu0
    %v6806 = vadd.f32 %v6647, %v6805
    %6807 = vdwg.mxu0
    %6808 = vmatprep.subr.bf16.mxu0 %v6539
    %6809 = vmatpush1.bf16.msra.mxu0 %v6538
    %6810 = vmatprep.subr.bf16.mxu0 %v6545
    %6811 = vmatpush1.bf16.msra.mxu0 %v6544
    %6812 = vmatprep.subr.bf16.mxu0 %v6551
    %6813 = vmatpush1.bf16.msra.mxu0 %v6550
    %6814 = vmatprep.subr.bf16.mxu0 %v6557
    %6815 = vmatpush1.bf16.msra.mxu0 %v6556
    %6816 = vmatprep.subr.bf16.mxu0 %v6563
    %6817 = vmatpush1.bf16.msra.mxu0 %v6562
    %6818 = vmatprep.subr.bf16.mxu0 %v6569
    %6819 = vmatpush1.bf16.msra.mxu0 %v6568
    %6820 = vmatprep.subr.bf16.mxu0 %v6575
    %6821 = vmatpush1.bf16.msra.mxu0 %v6574
    %6822 = vmatprep.subr.bf16.mxu0 %v6581
    %6823 = vmatpush1.bf16.msra.mxu0 %v6580
    %6824 = vmatprep.subr.bf16.mxu0 %v6587
    %6825 = vmatpush1.bf16.msra.mxu0 %v6586
    %6826 = vmatprep.subr.bf16.mxu0 %v6593
    %6827 = vmatpush1.bf16.msra.mxu0 %v6592
    %6828 = vmatprep.subr.bf16.mxu0 %v6599
    %6829 = vmatpush1.bf16.msra.mxu0 %v6598
    %6830 = vmatprep.subr.bf16.mxu0 %v6605
    %6831 = vmatpush1.bf16.msra.mxu0 %v6604
    %6832 = vmatprep.subr.bf16.mxu0 %v6611
    %6833 = vmatpush1.bf16.msra.mxu0 %v6610
    %6834 = vmatprep.subr.bf16.mxu0 %v6617
    %6835 = vmatpush1.bf16.msra.mxu0 %v6616
    %6836 = vmatprep.subr.bf16.mxu0 %v6623
    %6837 = vmatpush1.bf16.msra.mxu0 %v6622
    %6838 = vmatprep.subr.bf16.mxu0 %v6629
    %6839 = vmatpush1.bf16.msra.mxu0 %v6628
    %6840 = vmatprep.mubr.bf16.mxu0 %v6527
    %6841 = vmatmul.mubr.bf16.gmra.mrb[0].mxu0 %v6526
    %v6842 = vpop.f32.mrb[0].mxu0
    %v6843 = vadd.f32 %v6651, %v6842
    %v6844 = vpop.f32.mrb[0].mxu0
    %v6845 = vadd.f32 %v6655, %v6844
    %v6846 = vpop.f32.mrb[0].mxu0
    %v6847 = vadd.f32 %v6651, %v6846
    %v6848 = vpop.f32.mrb[0].mxu0
    %v6849 = vadd.f32 %v6655, %v6848
    %6850 = vmatprep.mubr.bf16.mxu0 %v6529
    %6851 = vmatmul.mubr.bf16.gmra.mrb[0].mxu0 %v6528
    %v6852 = vpop.f32.mrb[0].mxu0
    %v6853 = vadd.f32 %v6651, %v6852
    %v6854 = vpop.f32.mrb[0].mxu0
    %v6855 = vadd.f32 %v6655, %v6854
    %v6856 = vpop.f32.mrb[0].mxu0
    %v6857 = vadd.f32 %v6651, %v6856
    %v6858 = vpop.f32.mrb[0].mxu0
    %v6859 = vadd.f32 %v6655, %v6858
    %6860 = vmatprep.mubr.bf16.mxu0 %v6531
    %6861 = vmatmul.mubr.bf16.gmra.mrb[0].mxu0 %v6530
    %v6862 = vpop.f32.mrb[0].mxu0
    %v6863 = vadd.f32 %v6651, %v6862
    %v6864 = vpop.f32.mrb[0].mxu0
    %v6865 = vadd.f32 %v6655, %v6864
    %v6866 = vpop.f32.mrb[0].mxu0
    %v6867 = vadd.f32 %v6651, %v6866
    %v6868 = vpop.f32.mrb[0].mxu0
    %v6869 = vadd.f32 %v6655, %v6868
    %6870 = vmatprep.mubr.bf16.mxu0 %v6533
    %6871 = vmatmul.mubr.bf16.gmra.mrb[0].mxu0 %v6532
    %v6872 = vpop.f32.mrb[0].mxu0
    %v6873 = vadd.f32 %v6651, %v6872
    %v6874 = vpop.f32.mrb[0].mxu0
    %v6875 = vadd.f32 %v6655, %v6874
    %v6876 = vpop.f32.mrb[0].mxu0
    %v6877 = vadd.f32 %v6651, %v6876
    %v6878 = vpop.f32.mrb[0].mxu0
    %v6879 = vadd.f32 %v6655, %v6878
    %6880 = vdwg.mxu0
    %v6881 = vld [vmem:[%s8] sm:$0x3]
    %v6883 = vlaneseq
    %v6884 = vshrl.u32 %v6883, 7
    %v6885 = vsub.s32 0, %v6884
    %v6886 = vrot.slane %v6881, %v6885
    %v6887 = vlaneseq
    %v6888 = vshrl.u32 %v6887, 7
    %v6889 = vsub.s32 1, %v6888
    %v6890 = vrot.slane %v6881, %v6889
    %v6893 = vld [vmem:[#allocation3] sm:$0xff]
    %v6894 = vld [vmem:[#allocation3 + $0x8] sm:$0xff]
    %v6895 = vld [vmem:[#allocation3 + $0x10] sm:$0xff]
    %v6896 = vld [vmem:[#allocation3 + $0x18] sm:$0xff]
    %v6897 = vld [vmem:[#allocation3 + $0x20] sm:$0xff]
    %v6898 = vld [vmem:[#allocation3 + $0x28] sm:$0xff]
    %v6899 = vld [vmem:[#allocation3 + $0x30] sm:$0xff]
    %v6900 = vld [vmem:[#allocation3 + $0x38] sm:$0xff]
    %v6901 = vld [vmem:[#allocation3 + $0x40] sm:$0xff]
    %v6902 = vld [vmem:[#allocation3 + $0x48] sm:$0xff]
    %v6903 = vld [vmem:[#allocation3 + $0x50] sm:$0xff]
    %v6904 = vld [vmem:[#allocation3 + $0x58] sm:$0xff]
    %v6905 = vld [vmem:[#allocation3 + $0x60] sm:$0xff]
    %v6906 = vld [vmem:[#allocation3 + $0x68] sm:$0xff]
    %v6907 = vld [vmem:[#allocation3 + $0x70] sm:$0xff]
    %v6908 = vld [vmem:[#allocation3 + $0x78] sm:$0xff]
    %v6909 = vld [vmem:[#allocation3 + $0x80] sm:$0xff]
    %v6910 = vld [vmem:[#allocation3 + $0x88] sm:$0xff]
    %v6911 = vld [vmem:[#allocation3 + $0x90] sm:$0xff]
    %v6912 = vld [vmem:[#allocation3 + $0x98] sm:$0xff]
    %v6913 = vld [vmem:[#allocation3 + $0xa0] sm:$0xff]
    %v6914 = vld [vmem:[#allocation3 + $0xa8] sm:$0xff]
    %v6915 = vld [vmem:[#allocation3 + $0xb0] sm:$0xff]
    %v6916 = vld [vmem:[#allocation3 + $0xb8] sm:$0xff]
    %v6917 = vld [vmem:[#allocation3 + $0xc0] sm:$0xff]
    %v6918 = vld [vmem:[#allocation3 + $0xc8] sm:$0xff]
    %v6919 = vld [vmem:[#allocation3 + $0xd0] sm:$0xff]
    %v6920 = vld [vmem:[#allocation3 + $0xd8] sm:$0xff]
    %v6921 = vld [vmem:[#allocation3 + $0xe0] sm:$0xff]
    %v6922 = vld [vmem:[#allocation3 + $0xe8] sm:$0xff]
    %v6923 = vld [vmem:[#allocation3 + $0xf0] sm:$0xff]
    %v6924 = vld [vmem:[#allocation3 + $0xf8] sm:$0xff]
    %v6925 = vld [vmem:[#allocation3 + $0x100] sm:$0xff]
    %v6926 = vld [vmem:[#allocation3 + $0x108] sm:$0xff]
    %v6927 = vld [vmem:[#allocation3 + $0x110] sm:$0xff]
    %v6928 = vld [vmem:[#allocation3 + $0x118] sm:$0xff]
    %v6929 = vld [vmem:[#allocation3 + $0x120] sm:$0xff]
    %v6930 = vld [vmem:[#allocation3 + $0x128] sm:$0xff]
    %v6931 = vld [vmem:[#allocation3 + $0x130] sm:$0xff]
    %v6932 = vld [vmem:[#allocation3 + $0x138] sm:$0xff]
    %v6933 = vld [vmem:[#allocation3 + $0x140] sm:$0xff]
    %v6934 = vld [vmem:[#allocation3 + $0x148] sm:$0xff]
    %v6935 = vld [vmem:[#allocation3 + $0x150] sm:$0xff]
    %v6936 = vld [vmem:[#allocation3 + $0x158] sm:$0xff]
    %v6937 = vld [vmem:[#allocation3 + $0x160] sm:$0xff]
    %v6938 = vld [vmem:[#allocation3 + $0x168] sm:$0xff]
    %v6939 = vld [vmem:[#allocation3 + $0x170] sm:$0xff]
    %v6940 = vld [vmem:[#allocation3 + $0x178] sm:$0xff]
    %v6941 = vld [vmem:[#allocation3 + $0x180] sm:$0xff]
    %v6942 = vld [vmem:[#allocation3 + $0x188] sm:$0xff]
    %v6943 = vld [vmem:[#allocation3 + $0x190] sm:$0xff]
    %v6944 = vld [vmem:[#allocation3 + $0x198] sm:$0xff]
    %v6945 = vld [vmem:[#allocation3 + $0x1a0] sm:$0xff]
    %v6946 = vld [vmem:[#allocation3 + $0x1a8] sm:$0xff]
    %v6947 = vld [vmem:[#allocation3 + $0x1b0] sm:$0xff]
    %v6948 = vld [vmem:[#allocation3 + $0x1b8] sm:$0xff]
    %v6949 = vld [vmem:[#allocation3 + $0x1c0] sm:$0xff]
    %v6950 = vld [vmem:[#allocation3 + $0x1c8] sm:$0xff]
    %v6951 = vld [vmem:[#allocation3 + $0x1d0] sm:$0xff]
    %v6952 = vld [vmem:[#allocation3 + $0x1d8] sm:$0xff]
    %v6953 = vld [vmem:[#allocation3 + $0x1e0] sm:$0xff]
    %v6954 = vld [vmem:[#allocation3 + $0x1e8] sm:$0xff]
    %v6955 = vld [vmem:[#allocation3 + $0x1f0] sm:$0xff]
    %v6956 = vld [vmem:[#allocation3 + $0x1f8] sm:$0xff]
    %v6957 = vld [vmem:[#allocation3 + $0x200] sm:$0xff]
    %v6958 = vld [vmem:[#allocation3 + $0x208] sm:$0xff]
    %v6959 = vld [vmem:[#allocation3 + $0x210] sm:$0xff]
    %v6960 = vld [vmem:[#allocation3 + $0x218] sm:$0xff]
    %v6961 = vld [vmem:[#allocation3 + $0x220] sm:$0xff]
    %v6962 = vld [vmem:[#allocation3 + $0x228] sm:$0xff]
    %v6963 = vld [vmem:[#allocation3 + $0x230] sm:$0xff]
    %v6964 = vld [vmem:[#allocation3 + $0x238] sm:$0xff]
    %v6965 = vld [vmem:[#allocation3 + $0x240] sm:$0xff]
    %v6966 = vld [vmem:[#allocation3 + $0x248] sm:$0xff]
    %v6967 = vld [vmem:[#allocation3 + $0x250] sm:$0xff]
    %v6968 = vld [vmem:[#allocation3 + $0x258] sm:$0xff]
    %v6969 = vld [vmem:[#allocation3 + $0x260] sm:$0xff]
    %v6970 = vld [vmem:[#allocation3 + $0x268] sm:$0xff]
    %v6971 = vld [vmem:[#allocation3 + $0x270] sm:$0xff]
    %v6972 = vld [vmem:[#allocation3 + $0x278] sm:$0xff]
    %v6973 = vld [vmem:[#allocation3 + $0x280] sm:$0xff]
    %v6974 = vld [vmem:[#allocation3 + $0x288] sm:$0xff]
    %v6975 = vld [vmem:[#allocation3 + $0x290] sm:$0xff]
    %v6976 = vld [vmem:[#allocation3 + $0x298] sm:$0xff]
    %v6977 = vld [vmem:[#allocation3 + $0x2a0] sm:$0xff]
    %v6978 = vld [vmem:[#allocation3 + $0x2a8] sm:$0xff]
    %v6979 = vld [vmem:[#allocation3 + $0x2b0] sm:$0xff]
    %v6980 = vld [vmem:[#allocation3 + $0x2b8] sm:$0xff]
    %v6981 = vld [vmem:[#allocation3 + $0x2c0] sm:$0xff]
    %v6982 = vld [vmem:[#allocation3 + $0x2c8] sm:$0xff]
    %v6983 = vld [vmem:[#allocation3 + $0x2d0] sm:$0xff]
    %v6984 = vld [vmem:[#allocation3 + $0x2d8] sm:$0xff]
    %v6985 = vld [vmem:[#allocation3 + $0x2e0] sm:$0xff]
    %v6986 = vld [vmem:[#allocation3 + $0x2e8] sm:$0xff]
    %v6987 = vld [vmem:[#allocation3 + $0x2f0] sm:$0xff]
    %v6988 = vld [vmem:[#allocation3 + $0x2f8] sm:$0xff]
    %6989 = vmatprep.subr.bf16.mxu0 %v6894
    %6990 = vmatpush1.bf16.msra.mxu0 %v6893
    %6991 = vmatprep.subr.bf16.mxu0 %v6900
    %6992 = vmatpush1.bf16.msra.mxu0 %v6899
    %6993 = vmatprep.subr.bf16.mxu0 %v6906
    %6994 = vmatpush1.bf16.msra.mxu0 %v6905
    %6995 = vmatprep.subr.bf16.mxu0 %v6912
    %6996 = vmatpush1.bf16.msra.mxu0 %v6911
    %6997 = vmatprep.subr.bf16.mxu0 %v6918
    %6998 = vmatpush1.bf16.msra.mxu0 %v6917
    %6999 = vmatprep.subr.bf16.mxu0 %v6924
    %7000 = vmatpush1.bf16.msra.mxu0 %v6923
    %7001 = vmatprep.subr.bf16.mxu0 %v6930
    %7002 = vmatpush1.bf16.msra.mxu0 %v6929
    %7003 = vmatprep.subr.bf16.mxu0 %v6936
    %7004 = vmatpush1.bf16.msra.mxu0 %v6935
    %7005 = vmatprep.subr.bf16.mxu0 %v6942
    %7006 = vmatpush1.bf16.msra.mxu0 %v6941
    %7007 = vmatprep.subr.bf16.mxu0 %v6948
    %7008 = vmatpush1.bf16.msra.mxu0 %v6947
    %7009 = vmatprep.subr.bf16.mxu0 %v6954
    %7010 = vmatpush1.bf16.msra.mxu0 %v6953
    %7011 = vmatprep.subr.bf16.mxu0 %v6960
    %7012 = vmatpush1.bf16.msra.mxu0 %v6959
    %7013 = vmatprep.subr.bf16.mxu0 %v6966
    %7014 = vmatpush1.bf16.msra.mxu0 %v6965
    %7015 = vmatprep.subr.bf16.mxu0 %v6972
    %7016 = vmatpush1.bf16.msra.mxu0 %v6971
    %7017 = vmatprep.subr.bf16.mxu0 %v6978
    %7018 = vmatpush1.bf16.msra.mxu0 %v6977
    %7019 = vmatprep.subr.bf16.mxu0 %v6984
    %7020 = vmatpush1.bf16.msra.mxu0 %v6983
    %7021 = vmatprep.mubr.bf16.mxu0 0
    %7022 = vmatmul.mubr.bf16.gmra.mrb[0].mxu0 0
    %v7023 = vpop.f32.mrb[0].mxu0
    %v7024 = vadd.f32 0.0, %v7023
    %v7025 = vpop.f32.mrb[0].mxu0
    %v7026 = vadd.f32 0.0, %v7025
    %v7027 = vpop.f32.mrb[0].mxu0
    %v7028 = vpop.f32.mrb[0].mxu0
    %7029 = vdwg.mxu0
    %7030 = vmatprep.subr.bf16.mxu0 %v6896
    %7031 = vmatpush1.bf16.msra.mxu0 %v6895
    %7032 = vmatprep.subr.bf16.mxu0 %v6902
    %7033 = vmatpush1.bf16.msra.mxu0 %v6901
    %7034 = vmatprep.subr.bf16.mxu0 %v6908
    %7035 = vmatpush1.bf16.msra.mxu0 %v6907
    %7036 = vmatprep.subr.bf16.mxu0 %v6914
    %7037 = vmatpush1.bf16.msra.mxu0 %v6913
    %7038 = vmatprep.subr.bf16.mxu0 %v6920
    %7039 = vmatpush1.bf16.msra.mxu0 %v6919
    %7040 = vmatprep.subr.bf16.mxu0 %v6926
    %7041 = vmatpush1.bf16.msra.mxu0 %v6925
    %7042 = vmatprep.subr.bf16.mxu0 %v6932
    %7043 = vmatpush1.bf16.msra.mxu0 %v6931
    %7044 = vmatprep.subr.bf16.mxu0 %v6938
    %7045 = vmatpush1.bf16.msra.mxu0 %v6937
    %7046 = vmatprep.subr.bf16.mxu0 %v6944
    %7047 = vmatpush1.bf16.msra.mxu0 %v6943
    %7048 = vmatprep.subr.bf16.mxu0 %v6950
    %7049 = vmatpush1.bf16.msra.mxu0 %v6949
    %7050 = vmatprep.subr.bf16.mxu0 %v6956
    %7051 = vmatpush1.bf16.msra.mxu0 %v6955
    %7052 = vmatprep.subr.bf16.mxu0 %v6962
    %7053 = vmatpush1.bf16.msra.mxu0 %v6961
    %7054 = vmatprep.subr.bf16.mxu0 %v6968
    %7055 = vmatpush1.bf16.msra.mxu0 %v6967
    %7056 = vmatprep.subr.bf16.mxu0 %v6974
    %7057 = vmatpush1.bf16.msra.mxu0 %v6973
    %7058 = vmatprep.subr.bf16.mxu0 %v6980
    %7059 = vmatpush1.bf16.msra.mxu0 %v6979
    %7060 = vmatprep.subr.bf16.mxu0 %v6986
    %7061 = vmatpush1.bf16.msra.mxu0 %v6985
    %7062 = vmatprep.mubr.bf16.mxu0 0
    %7063 = vmatmul.mubr.bf16.gmra.mrb[0].mxu0 0
    %v7064 = vpop.f32.mrb[0].mxu0
    %v7065 = vadd.f32 0.0, %v7064
    %v7066 = vpop.f32.mrb[0].mxu0
    %v7067 = vadd.f32 0.0, %v7066
    %v7068 = vpop.f32.mrb[0].mxu0
    %v7069 = vpop.f32.mrb[0].mxu0
    %7070 = vdwg.mxu0
    %7071 = vmatprep.subr.bf16.mxu0 %v6898
    %7072 = vmatpush1.bf16.msra.mxu0 %v6897
    %7073 = vmatprep.subr.bf16.mxu0 %v6904
    %7074 = vmatpush1.bf16.msra.mxu0 %v6903
    %7075 = vmatprep.subr.bf16.mxu0 %v6910
    %7076 = vmatpush1.bf16.msra.mxu0 %v6909
    %7077 = vmatprep.subr.bf16.mxu0 %v6916
    %7078 = vmatpush1.bf16.msra.mxu0 %v6915
    %7079 = vmatprep.subr.bf16.mxu0 %v6922
    %7080 = vmatpush1.bf16.msra.mxu0 %v6921
    %7081 = vmatprep.subr.bf16.mxu0 %v6928
    %7082 = vmatpush1.bf16.msra.mxu0 %v6927
    %7083 = vmatprep.subr.bf16.mxu0 %v6934
    %7084 = vmatpush1.bf16.msra.mxu0 %v6933
    %7085 = vmatprep.subr.bf16.mxu0 %v6940
    %7086 = vmatpush1.bf16.msra.mxu0 %v6939
    %7087 = vmatprep.subr.bf16.mxu0 %v6946
    %7088 = vmatpush1.bf16.msra.mxu0 %v6945
    %7089 = vmatprep.subr.bf16.mxu0 %v6952
    %7090 = vmatpush1.bf16.msra.mxu0 %v6951
    %7091 = vmatprep.subr.bf16.mxu0 %v6958
    %7092 = vmatpush1.bf16.msra.mxu0 %v6957
    %7093 = vmatprep.subr.bf16.mxu0 %v6964
    %7094 = vmatpush1.bf16.msra.mxu0 %v6963
    %7095 = vmatprep.subr.bf16.mxu0 %v6970
    %7096 = vmatpush1.bf16.msra.mxu0 %v6969
    %7097 = vmatprep.subr.bf16.mxu0 %v6976
    %7098 = vmatpush1.bf16.msra.mxu0 %v6975
    %7099 = vmatprep.subr.bf16.mxu0 %v6982
    %7100 = vmatpush1.bf16.msra.mxu0 %v6981
    %7101 = vmatprep.subr.bf16.mxu0 %v6988
    %7102 = vmatpush1.bf16.msra.mxu0 %v6987
    %7103 = vmatprep.mubr.bf16.mxu0 0
    %7104 = vmatmul.mubr.bf16.gmra.mrb[0].mxu0 0
    %v7105 = vpop.f32.mrb[0].mxu0
    %v7106 = vadd.f32 0.0, %v7105
    %v7107 = vpop.f32.mrb[0].mxu0
    %v7108 = vadd.f32 0.0, %v7107
    %v7109 = vpop.f32.mrb[0].mxu0
    %v7110 = vpop.f32.mrb[0].mxu0
    %7111 = vdwg.mxu0
    %v7112 = vadd.f32 %v6697, %v7024
    %v7113 = vadd.f32 %v6699, %v7026
    %v7114 = vxor.u32 %v7112, 2147483648
    %v7115 = vxor.u32 %v7113, 2147483648
    %v7116 = vmul.f32 %v7114, 1.442695
    %v7117 = vpow.pop %v7116
    %v7118 = vmul.f32 %v7115, 1.442695
    %v7119 = vpow.pop %v7118
    %v7120 = vadd.f32 %v7117, 1.0
    %v7121 = vadd.f32 %v7119, 1.0
    %v7122 = vrcp.pop %v7120
    %v7123 = vmul.f32 1.0, %v7122
    %v7124 = vrcp.pop %v7121
    %v7125 = vmul.f32 1.0, %v7124
    %v7126 = vadd.f32 %v6770, %v7065
    %v7127 = vadd.f32 %v6772, %v7067
    %v7128 = vxor.u32 %v7126, 2147483648
    %v7129 = vxor.u32 %v7127, 2147483648
    %v7130 = vmul.f32 %v7128, 1.442695
    %v7131 = vpow.pop %v7130
    %v7132 = vmul.f32 %v7129, 1.442695
    %v7133 = vpow.pop %v7132
    %v7134 = vadd.f32 %v7131, 1.0
    %v7135 = vadd.f32 %v7133, 1.0
    %v7136 = vrcp.pop %v7134
    %v7137 = vmul.f32 1.0, %v7136
    %v7138 = vrcp.pop %v7135
    %v7139 = vmul.f32 1.0, %v7138
    %v7140 = vadd.f32 %v7106, %v6886
    %v7141 = vadd.f32 %v7108, %v6890
    %v7142 = vmul.f32 %v7123, %v7140
    %v7143 = vmul.f32 %v7125, %v7141
    %v7144 = vadd.f32 %v6843, %v7142
    %v7145 = vadd.f32 %v6845, %v7143
    %v7146 = vtanh.pop %v7144
    %v7147 = vtanh.pop %v7145
    %v7148 = vsub.f32 1.0, %v7137
    %v7149 = vsub.f32 1.0, %v7139
    %v7150 = vmul.f32 %v7148, %v7146
    %v7151 = vmul.f32 %v7149, %v7147
    %v7152 = vmul.f32 %v7137, 0.0
    %v7153 = vmul.f32 %v7139, 0.0
    %v7154 = vadd.f32 %v7150, %v7152
    %v7155 = vadd.f32 %v7151, %v7153
    %v7156 = vpack.c.bf16 %v7154, %v7154
    %v7157 = vpack.c.bf16 %v7155, %v7155
    %7158 = vmatprep.subr.bf16.mxu0 %v6894
    %7159 = vmatpush1.bf16.msra.mxu0 %v6893
    %7160 = vmatprep.subr.bf16.mxu0 %v6900
    %7161 = vmatpush1.bf16.msra.mxu0 %v6899
    %7162 = vmatprep.subr.bf16.mxu0 %v6906
    %7163 = vmatpush1.bf16.msra.mxu0 %v6905
    %7164 = vmatprep.subr.bf16.mxu0 %v6912
    %7165 = vmatpush1.bf16.msra.mxu0 %v6911
    %7166 = vmatprep.subr.bf16.mxu0 %v6918
    %7167 = vmatpush1.bf16.msra.mxu0 %v6917
    %7168 = vmatprep.subr.bf16.mxu0 %v6924
    %7169 = vmatpush1.bf16.msra.mxu0 %v6923
    %7170 = vmatprep.subr.bf16.mxu0 %v6930
    %7171 = vmatpush1.bf16.msra.mxu0 %v6929
    %7172 = vmatprep.subr.bf16.mxu0 %v6936
    %7173 = vmatpush1.bf16.msra.mxu0 %v6935
    %7174 = vmatprep.subr.bf16.mxu0 %v6942
    %7175 = vmatpush1.bf16.msra.mxu0 %v6941
    %7176 = vmatprep.subr.bf16.mxu0 %v6948
    %7177 = vmatpush1.bf16.msra.mxu0 %v6947
    %7178 = vmatprep.subr.bf16.mxu0 %v6954
    %7179 = vmatpush1.bf16.msra.mxu0 %v6953
    %7180 = vmatprep.subr.bf16.mxu0 %v6960
    %7181 = vmatpush1.bf16.msra.mxu0 %v6959
    %7182 = vmatprep.subr.bf16.mxu0 %v6966
    %7183 = vmatpush1.bf16.msra.mxu0 %v6965
    %7184 = vmatprep.subr.bf16.mxu0 %v6972
    %7185 = vmatpush1.bf16.msra.mxu0 %v6971
    %7186 = vmatprep.subr.bf16.mxu0 %v6978
    %7187 = vmatpush1.bf16.msra.mxu0 %v6977
    %7188 = vmatprep.subr.bf16.mxu0 %v6984
    %7189 = vmatpush1.bf16.msra.mxu0 %v6983
    %7190 = vmatprep.mubr.bf16.mxu0 %v7157
    %7191 = vmatmul.mubr.bf16.gmra.mrb[0].mxu0 %v7156
    %v7192 = vpop.f32.mrb[0].mxu0
    %v7193 = vadd.f32 0.0, %v7192
    %v7194 = vpop.f32.mrb[0].mxu0
    %v7195 = vadd.f32 0.0, %v7194
    %v7196 = vpop.f32.mrb[0].mxu0
    %v7197 = vpop.f32.mrb[0].mxu0
    %7198 = vdwg.mxu0
    %7199 = vmatprep.subr.bf16.mxu0 %v6896
    %7200 = vmatpush1.bf16.msra.mxu0 %v6895
    %7201 = vmatprep.subr.bf16.mxu0 %v6902
    %7202 = vmatpush1.bf16.msra.mxu0 %v6901
    %7203 = vmatprep.subr.bf16.mxu0 %v6908
    %7204 = vmatpush1.bf16.msra.mxu0 %v6907
    %7205 = vmatprep.subr.bf16.mxu0 %v6914
    %7206 = vmatpush1.bf16.msra.mxu0 %v6913
    %7207 = vmatprep.subr.bf16.mxu0 %v6920
    %7208 = vmatpush1.bf16.msra.mxu0 %v6919
    %7209 = vmatprep.subr.bf16.mxu0 %v6926
    %7210 = vmatpush1.bf16.msra.mxu0 %v6925
    %7211 = vmatprep.subr.bf16.mxu0 %v6932
    %7212 = vmatpush1.bf16.msra.mxu0 %v6931
    %7213 = vmatprep.subr.bf16.mxu0 %v6938
    %7214 = vmatpush1.bf16.msra.mxu0 %v6937
    %7215 = vmatprep.subr.bf16.mxu0 %v6944
    %7216 = vmatpush1.bf16.msra.mxu0 %v6943
    %7217 = vmatprep.subr.bf16.mxu0 %v6950
    %7218 = vmatpush1.bf16.msra.mxu0 %v6949
    %7219 = vmatprep.subr.bf16.mxu0 %v6956
    %7220 = vmatpush1.bf16.msra.mxu0 %v6955
    %7221 = vmatprep.subr.bf16.mxu0 %v6962
    %7222 = vmatpush1.bf16.msra.mxu0 %v6961
    %7223 = vmatprep.subr.bf16.mxu0 %v6968
    %7224 = vmatpush1.bf16.msra.mxu0 %v6967
    %7225 = vmatprep.subr.bf16.mxu0 %v6974
    %7226 = vmatpush1.bf16.msra.mxu0 %v6973
    %7227 = vmatprep.subr.bf16.mxu0 %v6980
    %7228 = vmatpush1.bf16.msra.mxu0 %v6979
    %7229 = vmatprep.subr.bf16.mxu0 %v6986
    %7230 = vmatpush1.bf16.msra.mxu0 %v6985
    %7231 = vmatprep.mubr.bf16.mxu0 %v7157
    %7232 = vmatmul.mubr.bf16.gmra.mrb[0].mxu0 %v7156
    %v7233 = vpop.f32.mrb[0].mxu0
    %v7234 = vadd.f32 0.0, %v7233
    %v7235 = vpop.f32.mrb[0].mxu0
    %v7236 = vadd.f32 0.0, %v7235
    %v7237 = vpop.f32.mrb[0].mxu0
    %v7238 = vpop.f32.mrb[0].mxu0
    %7239 = vdwg.mxu0
    %7240 = vmatprep.subr.bf16.mxu0 %v6898
    %7241 = vmatpush1.bf16.msra.mxu0 %v6897
    %7242 = vmatprep.subr.bf16.mxu0 %v6904
    %7243 = vmatpush1.bf16.msra.mxu0 %v6903
    %7244 = vmatprep.subr.bf16.mxu0 %v6910
    %7245 = vmatpush1.bf16.msra.mxu0 %v6909
    %7246 = vmatprep.subr.bf16.mxu0 %v6916
    %7247 = vmatpush1.bf16.msra.mxu0 %v6915
    %7248 = vmatprep.subr.bf16.mxu0 %v6922
    %7249 = vmatpush1.bf16.msra.mxu0 %v6921
    %7250 = vmatprep.subr.bf16.mxu0 %v6928
    %7251 = vmatpush1.bf16.msra.mxu0 %v6927
    %7252 = vmatprep.subr.bf16.mxu0 %v6934
    %7253 = vmatpush1.bf16.msra.mxu0 %v6933
    %7254 = vmatprep.subr.bf16.mxu0 %v6940
    %7255 = vmatpush1.bf16.msra.mxu0 %v6939
    %7256 = vmatprep.subr.bf16.mxu0 %v6946
    %7257 = vmatpush1.bf16.msra.mxu0 %v6945
    %7258 = vmatprep.subr.bf16.mxu0 %v6952
    %7259 = vmatpush1.bf16.msra.mxu0 %v6951
    %7260 = vmatprep.subr.bf16.mxu0 %v6958
    %7261 = vmatpush1.bf16.msra.mxu0 %v6957
    %7262 = vmatprep.subr.bf16.mxu0 %v6964
    %7263 = vmatpush1.bf16.msra.mxu0 %v6963
    %7264 = vmatprep.subr.bf16.mxu0 %v6970
    %7265 = vmatpush1.bf16.msra.mxu0 %v6969
    %7266 = vmatprep.subr.bf16.mxu0 %v6976
    %7267 = vmatpush1.bf16.msra.mxu0 %v6975
    %7268 = vmatprep.subr.bf16.mxu0 %v6982
    %7269 = vmatpush1.bf16.msra.mxu0 %v6981
    %7270 = vmatprep.subr.bf16.mxu0 %v6988
    %7271 = vmatpush1.bf16.msra.mxu0 %v6987
    %7272 = vmatprep.mubr.bf16.mxu0 %v7157
    %7273 = vmatmul.mubr.bf16.gmra.mrb[0].mxu0 %v7156
    %v7274 = vpop.f32.mrb[0].mxu0
    %v7275 = vadd.f32 0.0, %v7274
    %v7276 = vpop.f32.mrb[0].mxu0
    %v7277 = vadd.f32 0.0, %v7276
    %v7278 = vpop.f32.mrb[0].mxu0
    %v7279 = vpop.f32.mrb[0].mxu0
    %7280 = vdwg.mxu0
    %v7281 = vadd.f32 %v6701, %v7193
    %v7282 = vadd.f32 %v6703, %v7195
    %v7283 = vxor.u32 %v7281, 2147483648
    %v7284 = vxor.u32 %v7282, 2147483648
    %v7285 = vmul.f32 %v7283, 1.442695
    %v7286 = vpow.pop %v7285
    %v7287 = vmul.f32 %v7284, 1.442695
    %v7288 = vpow.pop %v7287
    %v7289 = vadd.f32 %v7286, 1.0
    %v7290 = vadd.f32 %v7288, 1.0
    %v7291 = vrcp.pop %v7289
    %v7292 = vmul.f32 1.0, %v7291
    %v7293 = vrcp.pop %v7290
    %v7294 = vmul.f32 1.0, %v7293
    %v7295 = vadd.f32 %v6774, %v7234
    %v7296 = vadd.f32 %v6776, %v7236
    %v7297 = vxor.u32 %v7295, 2147483648
    %v7298 = vxor.u32 %v7296, 2147483648
    %v7299 = vmul.f32 %v7297, 1.442695
    %v7300 = vpow.pop %v7299
    %v7301 = vmul.f32 %v7298, 1.442695
    %v7302 = vpow.pop %v7301
    %v7303 = vadd.f32 %v7300, 1.0
    %v7304 = vadd.f32 %v7302, 1.0
    %v7305 = vrcp.pop %v7303
    %v7306 = vmul.f32 1.0, %v7305
    %v7307 = vrcp.pop %v7304
    %v7308 = vmul.f32 1.0, %v7307
    %v7309 = vadd.f32 %v7275, %v6886
    %v7310 = vadd.f32 %v7277, %v6890
    %v7311 = vmul.f32 %v7292, %v7309
    %v7312 = vmul.f32 %v7294, %v7310
    %v7313 = vadd.f32 %v6847, %v7311
    %v7314 = vadd.f32 %v6849, %v7312
    %v7315 = vtanh.pop %v7313
    %v7316 = vtanh.pop %v7314
    %v7317 = vsub.f32 1.0, %v7306
    %v7318 = vsub.f32 1.0, %v7308
    %v7319 = vmul.f32 %v7317, %v7315
    %v7320 = vmul.f32 %v7318, %v7316
    %v7321 = vmul.f32 %v7306, %v7154
    %v7322 = vmul.f32 %v7308, %v7155
    %v7323 = vadd.f32 %v7319, %v7321
    %v7324 = vadd.f32 %v7320, %v7322
    %v7325 = vpack.c.bf16 %v7323, %v7323
    %v7326 = vpack.c.bf16 %v7324, %v7324
    %7327 = vmatprep.subr.bf16.mxu0 %v6894
    %7328 = vmatpush1.bf16.msra.mxu0 %v6893
    %7329 = vmatprep.subr.bf16.mxu0 %v6900
    %7330 = vmatpush1.bf16.msra.mxu0 %v6899
    %7331 = vmatprep.subr.bf16.mxu0 %v6906
    %7332 = vmatpush1.bf16.msra.mxu0 %v6905
    %7333 = vmatprep.subr.bf16.mxu0 %v6912
    %7334 = vmatpush1.bf16.msra.mxu0 %v6911
    %7335 = vmatprep.subr.bf16.mxu0 %v6918
    %7336 = vmatpush1.bf16.msra.mxu0 %v6917
    %7337 = vmatprep.subr.bf16.mxu0 %v6924
    %7338 = vmatpush1.bf16.msra.mxu0 %v6923
    %7339 = vmatprep.subr.bf16.mxu0 %v6930
    %7340 = vmatpush1.bf16.msra.mxu0 %v6929
    %7341 = vmatprep.subr.bf16.mxu0 %v6936
    %7342 = vmatpush1.bf16.msra.mxu0 %v6935
    %7343 = vmatprep.subr.bf16.mxu0 %v6942
    %7344 = vmatpush1.bf16.msra.mxu0 %v6941
    %7345 = vmatprep.subr.bf16.mxu0 %v6948
    %7346 = vmatpush1.bf16.msra.mxu0 %v6947
    %7347 = vmatprep.subr.bf16.mxu0 %v6954
    %7348 = vmatpush1.bf16.msra.mxu0 %v6953
    %7349 = vmatprep.subr.bf16.mxu0 %v6960
    %7350 = vmatpush1.bf16.msra.mxu0 %v6959
    %7351 = vmatprep.subr.bf16.mxu0 %v6966
    %7352 = vmatpush1.bf16.msra.mxu0 %v6965
    %7353 = vmatprep.subr.bf16.mxu0 %v6972
    %7354 = vmatpush1.bf16.msra.mxu0 %v6971
    %7355 = vmatprep.subr.bf16.mxu0 %v6978
    %7356 = vmatpush1.bf16.msra.mxu0 %v6977
    %7357 = vmatprep.subr.bf16.mxu0 %v6984
    %7358 = vmatpush1.bf16.msra.mxu0 %v6983
    %7359 = vmatprep.mubr.bf16.mxu0 %v7326
    %7360 = vmatmul.mubr.bf16.gmra.mrb[0].mxu0 %v7325
    %v7361 = vpop.f32.mrb[0].mxu0
    %v7362 = vadd.f32 0.0, %v7361
    %v7363 = vpop.f32.mrb[0].mxu0
    %v7364 = vadd.f32 0.0, %v7363
    %v7365 = vpop.f32.mrb[0].mxu0
    %v7366 = vpop.f32.mrb[0].mxu0
    %7367 = vdwg.mxu0
    %7368 = vmatprep.subr.bf16.mxu0 %v6896
    %7369 = vmatpush1.bf16.msra.mxu0 %v6895
    %7370 = vmatprep.subr.bf16.mxu0 %v6902
    %7371 = vmatpush1.bf16.msra.mxu0 %v6901
    %7372 = vmatprep.subr.bf16.mxu0 %v6908
    %7373 = vmatpush1.bf16.msra.mxu0 %v6907
    %7374 = vmatprep.subr.bf16.mxu0 %v6914
    %7375 = vmatpush1.bf16.msra.mxu0 %v6913
    %7376 = vmatprep.subr.bf16.mxu0 %v6920
    %7377 = vmatpush1.bf16.msra.mxu0 %v6919
    %7378 = vmatprep.subr.bf16.mxu0 %v6926
    %7379 = vmatpush1.bf16.msra.mxu0 %v6925
    %7380 = vmatprep.subr.bf16.mxu0 %v6932
    %7381 = vmatpush1.bf16.msra.mxu0 %v6931
    %7382 = vmatprep.subr.bf16.mxu0 %v6938
    %7383 = vmatpush1.bf16.msra.mxu0 %v6937
    %7384 = vmatprep.subr.bf16.mxu0 %v6944
    %7385 = vmatpush1.bf16.msra.mxu0 %v6943
    %7386 = vmatprep.subr.bf16.mxu0 %v6950
    %7387 = vmatpush1.bf16.msra.mxu0 %v6949
    %7388 = vmatprep.subr.bf16.mxu0 %v6956
    %7389 = vmatpush1.bf16.msra.mxu0 %v6955
    %7390 = vmatprep.subr.bf16.mxu0 %v6962
    %7391 = vmatpush1.bf16.msra.mxu0 %v6961
    %7392 = vmatprep.subr.bf16.mxu0 %v6968
    %7393 = vmatpush1.bf16.msra.mxu0 %v6967
    %7394 = vmatprep.subr.bf16.mxu0 %v6974
    %7395 = vmatpush1.bf16.msra.mxu0 %v6973
    %7396 = vmatprep.subr.bf16.mxu0 %v6980
    %7397 = vmatpush1.bf16.msra.mxu0 %v6979
    %7398 = vmatprep.subr.bf16.mxu0 %v6986
    %7399 = vmatpush1.bf16.msra.mxu0 %v6985
    %7400 = vmatprep.mubr.bf16.mxu0 %v7326
    %7401 = vmatmul.mubr.bf16.gmra.mrb[0].mxu0 %v7325
    %v7402 = vpop.f32.mrb[0].mxu0
    %v7403 = vadd.f32 0.0, %v7402
    %v7404 = vpop.f32.mrb[0].mxu0
    %v7405 = vadd.f32 0.0, %v7404
    %v7406 = vpop.f32.mrb[0].mxu0
    %v7407 = vpop.f32.mrb[0].mxu0
    %7408 = vdwg.mxu0
    %7409 = vmatprep.subr.bf16.mxu0 %v6898
    %7410 = vmatpush1.bf16.msra.mxu0 %v6897
    %7411 = vmatprep.subr.bf16.mxu0 %v6904
    %7412 = vmatpush1.bf16.msra.mxu0 %v6903
    %7413 = vmatprep.subr.bf16.mxu0 %v6910
    %7414 = vmatpush1.bf16.msra.mxu0 %v6909
    %7415 = vmatprep.subr.bf16.mxu0 %v6916
    %7416 = vmatpush1.bf16.msra.mxu0 %v6915
    %7417 = vmatprep.subr.bf16.mxu0 %v6922
    %7418 = vmatpush1.bf16.msra.mxu0 %v6921
    %7419 = vmatprep.subr.bf16.mxu0 %v6928
    %7420 = vmatpush1.bf16.msra.mxu0 %v6927
    %7421 = vmatprep.subr.bf16.mxu0 %v6934
    %7422 = vmatpush1.bf16.msra.mxu0 %v6933
    %7423 = vmatprep.subr.bf16.mxu0 %v6940
    %7424 = vmatpush1.bf16.msra.mxu0 %v6939
    %7425 = vmatprep.subr.bf16.mxu0 %v6946
    %7426 = vmatpush1.bf16.msra.mxu0 %v6945
    %7427 = vmatprep.subr.bf16.mxu0 %v6952
    %7428 = vmatpush1.bf16.msra.mxu0 %v6951
    %7429 = vmatprep.subr.bf16.mxu0 %v6958
    %7430 = vmatpush1.bf16.msra.mxu0 %v6957
    %7431 = vmatprep.subr.bf16.mxu0 %v6964
    %7432 = vmatpush1.bf16.msra.mxu0 %v6963
    %7433 = vmatprep.subr.bf16.mxu0 %v6970
    %7434 = vmatpush1.bf16.msra.mxu0 %v6969
    %7435 = vmatprep.subr.bf16.mxu0 %v6976
    %7436 = vmatpush1.bf16.msra.mxu0 %v6975
    %7437 = vmatprep.subr.bf16.mxu0 %v6982
    %7438 = vmatpush1.bf16.msra.mxu0 %v6981
    %7439 = vmatprep.subr.bf16.mxu0 %v6988
    %7440 = vmatpush1.bf16.msra.mxu0 %v6987
    %7441 = vmatprep.mubr.bf16.mxu0 %v7326
    %7442 = vmatmul.mubr.bf16.gmra.mrb[0].mxu0 %v7325
    %v7443 = vpop.f32.mrb[0].mxu0
    %v7444 = vadd.f32 0.0, %v7443
    %v7445 = vpop.f32.mrb[0].mxu0
    %v7446 = vadd.f32 0.0, %v7445
    %v7447 = vpop.f32.mrb[0].mxu0
    %v7448 = vpop.f32.mrb[0].mxu0
    %7449 = vdwg.mxu0
    %v7450 = vadd.f32 %v6707, %v7362
    %v7451 = vadd.f32 %v6709, %v7364
    %v7452 = vxor.u32 %v7450, 2147483648
    %v7453 = vxor.u32 %v7451, 2147483648
    %v7454 = vmul.f32 %v7452, 1.442695
    %v7455 = vpow.pop %v7454
    %v7456 = vmul.f32 %v7453, 1.442695
    %v7457 = vpow.pop %v7456
    %v7458 = vadd.f32 %v7455, 1.0
    %v7459 = vadd.f32 %v7457, 1.0
    %v7460 = vrcp.pop %v7458
    %v7461 = vmul.f32 1.0, %v7460
    %v7462 = vrcp.pop %v7459
    %v7463 = vmul.f32 1.0, %v7462
    %v7464 = vadd.f32 %v6780, %v7403
    %v7465 = vadd.f32 %v6782, %v7405
    %v7466 = vxor.u32 %v7464, 2147483648
    %v7467 = vxor.u32 %v7465, 2147483648
    %v7468 = vmul.f32 %v7466, 1.442695
    %v7469 = vpow.pop %v7468
    %v7470 = vmul.f32 %v7467, 1.442695
    %v7471 = vpow.pop %v7470
    %v7472 = vadd.f32 %v7469, 1.0
    %v7473 = vadd.f32 %v7471, 1.0
    %v7474 = vrcp.pop %v7472
    %v7475 = vmul.f32 1.0, %v7474
    %v7476 = vrcp.pop %v7473
    %v7477 = vmul.f32 1.0, %v7476
    %v7478 = vadd.f32 %v7444, %v6886
    %v7479 = vadd.f32 %v7446, %v6890
    %v7480 = vmul.f32 %v7461, %v7478
    %v7481 = vmul.f32 %v7463, %v7479
    %v7482 = vadd.f32 %v6853, %v7480
    %v7483 = vadd.f32 %v6855, %v7481
    %v7484 = vtanh.pop %v7482
    %v7485 = vtanh.pop %v7483
    %v7486 = vsub.f32 1.0, %v7475
    %v7487 = vsub.f32 1.0, %v7477
    %v7488 = vmul.f32 %v7486, %v7484
    %v7489 = vmul.f32 %v7487, %v7485
    %v7490 = vmul.f32 %v7475, %v7323
    %v7491 = vmul.f32 %v7477, %v7324
    %v7492 = vadd.f32 %v7488, %v7490
    %v7493 = vadd.f32 %v7489, %v7491
    %v7494 = vpack.c.bf16 %v7492, %v7492
    %v7495 = vpack.c.bf16 %v7493, %v7493
    %7496 = vmatprep.subr.bf16.mxu0 %v6894
    %7497 = vmatpush1.bf16.msra.mxu0 %v6893
    %7498 = vmatprep.subr.bf16.mxu0 %v6900
    %7499 = vmatpush1.bf16.msra.mxu0 %v6899
    %7500 = vmatprep.subr.bf16.mxu0 %v6906
    %7501 = vmatpush1.bf16.msra.mxu0 %v6905
    %7502 = vmatprep.subr.bf16.mxu0 %v6912
    %7503 = vmatpush1.bf16.msra.mxu0 %v6911
    %7504 = vmatprep.subr.bf16.mxu0 %v6918
    %7505 = vmatpush1.bf16.msra.mxu0 %v6917
    %7506 = vmatprep.subr.bf16.mxu0 %v6924
    %7507 = vmatpush1.bf16.msra.mxu0 %v6923
    %7508 = vmatprep.subr.bf16.mxu0 %v6930
    %7509 = vmatpush1.bf16.msra.mxu0 %v6929
    %7510 = vmatprep.subr.bf16.mxu0 %v6936
    %7511 = vmatpush1.bf16.msra.mxu0 %v6935
    %7512 = vmatprep.subr.bf16.mxu0 %v6942
    %7513 = vmatpush1.bf16.msra.mxu0 %v6941
    %7514 = vmatprep.subr.bf16.mxu0 %v6948
    %7515 = vmatpush1.bf16.msra.mxu0 %v6947
    %7516 = vmatprep.subr.bf16.mxu0 %v6954
    %7517 = vmatpush1.bf16.msra.mxu0 %v6953
    %7518 = vmatprep.subr.bf16.mxu0 %v6960
    %7519 = vmatpush1.bf16.msra.mxu0 %v6959
    %7520 = vmatprep.subr.bf16.mxu0 %v6966
    %7521 = vmatpush1.bf16.msra.mxu0 %v6965
    %7522 = vmatprep.subr.bf16.mxu0 %v6972
    %7523 = vmatpush1.bf16.msra.mxu0 %v6971
    %7524 = vmatprep.subr.bf16.mxu0 %v6978
    %7525 = vmatpush1.bf16.msra.mxu0 %v6977
    %7526 = vmatprep.subr.bf16.mxu0 %v6984
    %7527 = vmatpush1.bf16.msra.mxu0 %v6983
    %7528 = vmatprep.mubr.bf16.mxu0 %v7495
    %7529 = vmatmul.mubr.bf16.gmra.mrb[0].mxu0 %v7494
    %v7530 = vpop.f32.mrb[0].mxu0
    %v7531 = vadd.f32 0.0, %v7530
    %v7532 = vpop.f32.mrb[0].mxu0
    %v7533 = vadd.f32 0.0, %v7532
    %v7534 = vpop.f32.mrb[0].mxu0
    %v7535 = vpop.f32.mrb[0].mxu0
    %7536 = vdwg.mxu0
    %7537 = vmatprep.subr.bf16.mxu0 %v6896
    %7538 = vmatpush1.bf16.msra.mxu0 %v6895
    %7539 = vmatprep.subr.bf16.mxu0 %v6902
    %7540 = vmatpush1.bf16.msra.mxu0 %v6901
    %7541 = vmatprep.subr.bf16.mxu0 %v6908
    %7542 = vmatpush1.bf16.msra.mxu0 %v6907
    %7543 = vmatprep.subr.bf16.mxu0 %v6914
    %7544 = vmatpush1.bf16.msra.mxu0 %v6913
    %7545 = vmatprep.subr.bf16.mxu0 %v6920
    %7546 = vmatpush1.bf16.msra.mxu0 %v6919
    %7547 = vmatprep.subr.bf16.mxu0 %v6926
    %7548 = vmatpush1.bf16.msra.mxu0 %v6925
    %7549 = vmatprep.subr.bf16.mxu0 %v6932
    %7550 = vmatpush1.bf16.msra.mxu0 %v6931
    %7551 = vmatprep.subr.bf16.mxu0 %v6938
    %7552 = vmatpush1.bf16.msra.mxu0 %v6937
    %7553 = vmatprep.subr.bf16.mxu0 %v6944
    %7554 = vmatpush1.bf16.msra.mxu0 %v6943
    %7555 = vmatprep.subr.bf16.mxu0 %v6950
    %7556 = vmatpush1.bf16.msra.mxu0 %v6949
    %7557 = vmatprep.subr.bf16.mxu0 %v6956
    %7558 = vmatpush1.bf16.msra.mxu0 %v6955
    %7559 = vmatprep.subr.bf16.mxu0 %v6962
    %7560 = vmatpush1.bf16.msra.mxu0 %v6961
    %7561 = vmatprep.subr.bf16.mxu0 %v6968
    %7562 = vmatpush1.bf16.msra.mxu0 %v6967
    %7563 = vmatprep.subr.bf16.mxu0 %v6974
    %7564 = vmatpush1.bf16.msra.mxu0 %v6973
    %7565 = vmatprep.subr.bf16.mxu0 %v6980
    %7566 = vmatpush1.bf16.msra.mxu0 %v6979
    %7567 = vmatprep.subr.bf16.mxu0 %v6986
    %7568 = vmatpush1.bf16.msra.mxu0 %v6985
    %7569 = vmatprep.mubr.bf16.mxu0 %v7495
    %7570 = vmatmul.mubr.bf16.gmra.mrb[0].mxu0 %v7494
    %v7571 = vpop.f32.mrb[0].mxu0
    %v7572 = vadd.f32 0.0, %v7571
    %v7573 = vpop.f32.mrb[0].mxu0
    %v7574 = vadd.f32 0.0, %v7573
    %v7575 = vpop.f32.mrb[0].mxu0
    %v7576 = vpop.f32.mrb[0].mxu0
    %7577 = vdwg.mxu0
    %7578 = vmatprep.subr.bf16.mxu0 %v6898
    %7579 = vmatpush1.bf16.msra.mxu0 %v6897
    %7580 = vmatprep.subr.bf16.mxu0 %v6904
    %7581 = vmatpush1.bf16.msra.mxu0 %v6903
    %7582 = vmatprep.subr.bf16.mxu0 %v6910
    %7583 = vmatpush1.bf16.msra.mxu0 %v6909
    %7584 = vmatprep.subr.bf16.mxu0 %v6916
    %7585 = vmatpush1.bf16.msra.mxu0 %v6915
    %7586 = vmatprep.subr.bf16.mxu0 %v6922
    %7587 = vmatpush1.bf16.msra.mxu0 %v6921
    %7588 = vmatprep.subr.bf16.mxu0 %v6928
    %7589 = vmatpush1.bf16.msra.mxu0 %v6927
    %7590 = vmatprep.subr.bf16.mxu0 %v6934
    %7591 = vmatpush1.bf16.msra.mxu0 %v6933
    %7592 = vmatprep.subr.bf16.mxu0 %v6940
    %7593 = vmatpush1.bf16.msra.mxu0 %v6939
    %7594 = vmatprep.subr.bf16.mxu0 %v6946
    %7595 = vmatpush1.bf16.msra.mxu0 %v6945
    %7596 = vmatprep.subr.bf16.mxu0 %v6952
    %7597 = vmatpush1.bf16.msra.mxu0 %v6951
    %7598 = vmatprep.subr.bf16.mxu0 %v6958
    %7599 = vmatpush1.bf16.msra.mxu0 %v6957
    %7600 = vmatprep.subr.bf16.mxu0 %v6964
    %7601 = vmatpush1.bf16.msra.mxu0 %v6963
    %7602 = vmatprep.subr.bf16.mxu0 %v6970
    %7603 = vmatpush1.bf16.msra.mxu0 %v6969
    %7604 = vmatprep.subr.bf16.mxu0 %v6976
    %7605 = vmatpush1.bf16.msra.mxu0 %v6975
    %7606 = vmatprep.subr.bf16.mxu0 %v6982
    %7607 = vmatpush1.bf16.msra.mxu0 %v6981
    %7608 = vmatprep.subr.bf16.mxu0 %v6988
    %7609 = vmatpush1.bf16.msra.mxu0 %v6987
    %7610 = vmatprep.mubr.bf16.mxu0 %v7495
    %7611 = vmatmul.mubr.bf16.gmra.mrb[0].mxu0 %v7494
    %v7612 = vpop.f32.mrb[0].mxu0
    %v7613 = vadd.f32 0.0, %v7612
    %v7614 = vpop.f32.mrb[0].mxu0
    %v7615 = vadd.f32 0.0, %v7614
    %v7616 = vpop.f32.mrb[0].mxu0
    %v7617 = vpop.f32.mrb[0].mxu0
    %7618 = vdwg.mxu0
    %v7619 = vadd.f32 %v6711, %v7531
    %v7620 = vadd.f32 %v6713, %v7533
    %v7621 = vxor.u32 %v7619, 2147483648
    %v7622 = vxor.u32 %v7620, 2147483648
    %v7623 = vmul.f32 %v7621, 1.442695
    %v7624 = vpow.pop %v7623
    %v7625 = vmul.f32 %v7622, 1.442695
    %v7626 = vpow.pop %v7625
    %v7627 = vadd.f32 %v7624, 1.0
    %v7628 = vadd.f32 %v7626, 1.0
    %v7629 = vrcp.pop %v7627
    %v7630 = vmul.f32 1.0, %v7629
    %v7631 = vrcp.pop %v7628
    %v7632 = vmul.f32 1.0, %v7631
    %v7633 = vadd.f32 %v6784, %v7572
    %v7634 = vadd.f32 %v6786, %v7574
    %v7635 = vxor.u32 %v7633, 2147483648
    %v7636 = vxor.u32 %v7634, 2147483648
    %v7637 = vmul.f32 %v7635, 1.442695
    %v7638 = vpow.pop %v7637
    %v7639 = vmul.f32 %v7636, 1.442695
    %v7640 = vpow.pop %v7639
    %v7641 = vadd.f32 %v7638, 1.0
    %v7642 = vadd.f32 %v7640, 1.0
    %v7643 = vrcp.pop %v7641
    %v7644 = vmul.f32 1.0, %v7643
    %v7645 = vrcp.pop %v7642
    %v7646 = vmul.f32 1.0, %v7645
    %v7647 = vadd.f32 %v7613, %v6886
    %v7648 = vadd.f32 %v7615, %v6890
    %v7649 = vmul.f32 %v7630, %v7647
    %v7650 = vmul.f32 %v7632, %v7648
    %v7651 = vadd.f32 %v6857, %v7649
    %v7652 = vadd.f32 %v6859, %v7650
    %v7653 = vtanh.pop %v7651
    %v7654 = vtanh.pop %v7652
    %v7655 = vsub.f32 1.0, %v7644
    %v7656 = vsub.f32 1.0, %v7646
    %v7657 = vmul.f32 %v7655, %v7653
    %v7658 = vmul.f32 %v7656, %v7654
    %v7659 = vmul.f32 %v7644, %v7492
    %v7660 = vmul.f32 %v7646, %v7493
    %v7661 = vadd.f32 %v7657, %v7659
    %v7662 = vadd.f32 %v7658, %v7660
    %v7663 = vpack.c.bf16 %v7661, %v7661
    %v7664 = vpack.c.bf16 %v7662, %v7662
    %7665 = vmatprep.subr.bf16.mxu0 %v6894
    %7666 = vmatpush1.bf16.msra.mxu0 %v6893
    %7667 = vmatprep.subr.bf16.mxu0 %v6900
    %7668 = vmatpush1.bf16.msra.mxu0 %v6899
    %7669 = vmatprep.subr.bf16.mxu0 %v6906
    %7670 = vmatpush1.bf16.msra.mxu0 %v6905
    %7671 = vmatprep.subr.bf16.mxu0 %v6912
    %7672 = vmatpush1.bf16.msra.mxu0 %v6911
    %7673 = vmatprep.subr.bf16.mxu0 %v6918
    %7674 = vmatpush1.bf16.msra.mxu0 %v6917
    %7675 = vmatprep.subr.bf16.mxu0 %v6924
    %7676 = vmatpush1.bf16.msra.mxu0 %v6923
    %7677 = vmatprep.subr.bf16.mxu0 %v6930
    %7678 = vmatpush1.bf16.msra.mxu0 %v6929
    %7679 = vmatprep.subr.bf16.mxu0 %v6936
    %7680 = vmatpush1.bf16.msra.mxu0 %v6935
    %7681 = vmatprep.subr.bf16.mxu0 %v6942
    %7682 = vmatpush1.bf16.msra.mxu0 %v6941
    %7683 = vmatprep.subr.bf16.mxu0 %v6948
    %7684 = vmatpush1.bf16.msra.mxu0 %v6947
    %7685 = vmatprep.subr.bf16.mxu0 %v6954
    %7686 = vmatpush1.bf16.msra.mxu0 %v6953
    %7687 = vmatprep.subr.bf16.mxu0 %v6960
    %7688 = vmatpush1.bf16.msra.mxu0 %v6959
    %7689 = vmatprep.subr.bf16.mxu0 %v6966
    %7690 = vmatpush1.bf16.msra.mxu0 %v6965
    %7691 = vmatprep.subr.bf16.mxu0 %v6972
    %7692 = vmatpush1.bf16.msra.mxu0 %v6971
    %7693 = vmatprep.subr.bf16.mxu0 %v6978
    %7694 = vmatpush1.bf16.msra.mxu0 %v6977
    %7695 = vmatprep.subr.bf16.mxu0 %v6984
    %7696 = vmatpush1.bf16.msra.mxu0 %v6983
    %7697 = vmatprep.mubr.bf16.mxu0 %v7664
    %7698 = vmatmul.mubr.bf16.gmra.mrb[0].mxu0 %v7663
    %v7699 = vpop.f32.mrb[0].mxu0
    %v7700 = vadd.f32 0.0, %v7699
    %v7701 = vpop.f32.mrb[0].mxu0
    %v7702 = vadd.f32 0.0, %v7701
    %v7703 = vpop.f32.mrb[0].mxu0
    %v7704 = vpop.f32.mrb[0].mxu0
    %7705 = vdwg.mxu0
    %7706 = vmatprep.subr.bf16.mxu0 %v6896
    %7707 = vmatpush1.bf16.msra.mxu0 %v6895
    %7708 = vmatprep.subr.bf16.mxu0 %v6902
    %7709 = vmatpush1.bf16.msra.mxu0 %v6901
    %7710 = vmatprep.subr.bf16.mxu0 %v6908
    %7711 = vmatpush1.bf16.msra.mxu0 %v6907
    %7712 = vmatprep.subr.bf16.mxu0 %v6914
    %7713 = vmatpush1.bf16.msra.mxu0 %v6913
    %7714 = vmatprep.subr.bf16.mxu0 %v6920
    %7715 = vmatpush1.bf16.msra.mxu0 %v6919
    %7716 = vmatprep.subr.bf16.mxu0 %v6926
    %7717 = vmatpush1.bf16.msra.mxu0 %v6925
    %7718 = vmatprep.subr.bf16.mxu0 %v6932
    %7719 = vmatpush1.bf16.msra.mxu0 %v6931
    %7720 = vmatprep.subr.bf16.mxu0 %v6938
    %7721 = vmatpush1.bf16.msra.mxu0 %v6937
    %7722 = vmatprep.subr.bf16.mxu0 %v6944
    %7723 = vmatpush1.bf16.msra.mxu0 %v6943
    %7724 = vmatprep.subr.bf16.mxu0 %v6950
    %7725 = vmatpush1.bf16.msra.mxu0 %v6949
    %7726 = vmatprep.subr.bf16.mxu0 %v6956
    %7727 = vmatpush1.bf16.msra.mxu0 %v6955
    %7728 = vmatprep.subr.bf16.mxu0 %v6962
    %7729 = vmatpush1.bf16.msra.mxu0 %v6961
    %7730 = vmatprep.subr.bf16.mxu0 %v6968
    %7731 = vmatpush1.bf16.msra.mxu0 %v6967
    %7732 = vmatprep.subr.bf16.mxu0 %v6974
    %7733 = vmatpush1.bf16.msra.mxu0 %v6973
    %7734 = vmatprep.subr.bf16.mxu0 %v6980
    %7735 = vmatpush1.bf16.msra.mxu0 %v6979
    %7736 = vmatprep.subr.bf16.mxu0 %v6986
    %7737 = vmatpush1.bf16.msra.mxu0 %v6985
    %7738 = vmatprep.mubr.bf16.mxu0 %v7664
    %7739 = vmatmul.mubr.bf16.gmra.mrb[0].mxu0 %v7663
    %v7740 = vpop.f32.mrb[0].mxu0
    %v7741 = vadd.f32 0.0, %v7740
    %v7742 = vpop.f32.mrb[0].mxu0
    %v7743 = vadd.f32 0.0, %v7742
    %v7744 = vpop.f32.mrb[0].mxu0
    %v7745 = vpop.f32.mrb[0].mxu0
    %7746 = vdwg.mxu0
    %7747 = vmatprep.subr.bf16.mxu0 %v6898
    %7748 = vmatpush1.bf16.msra.mxu0 %v6897
    %7749 = vmatprep.subr.bf16.mxu0 %v6904
    %7750 = vmatpush1.bf16.msra.mxu0 %v6903
    %7751 = vmatprep.subr.bf16.mxu0 %v6910
    %7752 = vmatpush1.bf16.msra.mxu0 %v6909
    %7753 = vmatprep.subr.bf16.mxu0 %v6916
    %7754 = vmatpush1.bf16.msra.mxu0 %v6915
    %7755 = vmatprep.subr.bf16.mxu0 %v6922
    %7756 = vmatpush1.bf16.msra.mxu0 %v6921
    %7757 = vmatprep.subr.bf16.mxu0 %v6928
    %7758 = vmatpush1.bf16.msra.mxu0 %v6927
    %7759 = vmatprep.subr.bf16.mxu0 %v6934
    %7760 = vmatpush1.bf16.msra.mxu0 %v6933
    %7761 = vmatprep.subr.bf16.mxu0 %v6940
    %7762 = vmatpush1.bf16.msra.mxu0 %v6939
    %7763 = vmatprep.subr.bf16.mxu0 %v6946
    %7764 = vmatpush1.bf16.msra.mxu0 %v6945
    %7765 = vmatprep.subr.bf16.mxu0 %v6952
    %7766 = vmatpush1.bf16.msra.mxu0 %v6951
    %7767 = vmatprep.subr.bf16.mxu0 %v6958
    %7768 = vmatpush1.bf16.msra.mxu0 %v6957
    %7769 = vmatprep.subr.bf16.mxu0 %v6964
    %7770 = vmatpush1.bf16.msra.mxu0 %v6963
    %7771 = vmatprep.subr.bf16.mxu0 %v6970
    %7772 = vmatpush1.bf16.msra.mxu0 %v6969
    %7773 = vmatprep.subr.bf16.mxu0 %v6976
    %7774 = vmatpush1.bf16.msra.mxu0 %v6975
    %7775 = vmatprep.subr.bf16.mxu0 %v6982
    %7776 = vmatpush1.bf16.msra.mxu0 %v6981
    %7777 = vmatprep.subr.bf16.mxu0 %v6988
    %7778 = vmatpush1.bf16.msra.mxu0 %v6987
    %7779 = vmatprep.mubr.bf16.mxu0 %v7664
    %7780 = vmatmul.mubr.bf16.gmra.mrb[0].mxu0 %v7663
    %v7781 = vpop.f32.mrb[0].mxu0
    %v7782 = vadd.f32 0.0, %v7781
    %v7783 = vpop.f32.mrb[0].mxu0
    %v7784 = vadd.f32 0.0, %v7783
    %v7785 = vpop.f32.mrb[0].mxu0
    %v7786 = vpop.f32.mrb[0].mxu0
    %7787 = vdwg.mxu0
    %v7788 = vadd.f32 %v6717, %v7700
    %v7789 = vadd.f32 %v6719, %v7702
    %v7790 = vxor.u32 %v7788, 2147483648
    %v7791 = vxor.u32 %v7789, 2147483648
    %v7792 = vmul.f32 %v7790, 1.442695
    %v7793 = vpow.pop %v7792
    %v7794 = vmul.f32 %v7791, 1.442695
    %v7795 = vpow.pop %v7794
    %v7796 = vadd.f32 %v7793, 1.0
    %v7797 = vadd.f32 %v7795, 1.0
    %v7798 = vrcp.pop %v7796
    %v7799 = vmul.f32 1.0, %v7798
    %v7800 = vrcp.pop %v7797
    %v7801 = vmul.f32 1.0, %v7800
    %v7802 = vadd.f32 %v6790, %v7741
    %v7803 = vadd.f32 %v6792, %v7743
    %v7804 = vxor.u32 %v7802, 2147483648
    %v7805 = vxor.u32 %v7803, 2147483648
    %v7806 = vmul.f32 %v7804, 1.442695
    %v7807 = vpow.pop %v7806
    %v7808 = vmul.f32 %v7805, 1.442695
    %v7809 = vpow.pop %v7808
    %v7810 = vadd.f32 %v7807, 1.0
    %v7811 = vadd.f32 %v7809, 1.0
    %v7812 = vrcp.pop %v7810
    %v7813 = vmul.f32 1.0, %v7812
    %v7814 = vrcp.pop %v7811
    %v7815 = vmul.f32 1.0, %v7814
    %v7816 = vadd.f32 %v7782, %v6886
    %v7817 = vadd.f32 %v7784, %v6890
    %v7818 = vmul.f32 %v7799, %v7816
    %v7819 = vmul.f32 %v7801, %v7817
    %v7820 = vadd.f32 %v6863, %v7818
    %v7821 = vadd.f32 %v6865, %v7819
    %v7822 = vtanh.pop %v7820
    %v7823 = vtanh.pop %v7821
    %v7824 = vsub.f32 1.0, %v7813
    %v7825 = vsub.f32 1.0, %v7815
    %v7826 = vmul.f32 %v7824, %v7822
    %v7827 = vmul.f32 %v7825, %v7823
    %v7828 = vmul.f32 %v7813, %v7661
    %v7829 = vmul.f32 %v7815, %v7662
    %v7830 = vadd.f32 %v7826, %v7828
    %v7831 = vadd.f32 %v7827, %v7829
    %v7832 = vpack.c.bf16 %v7830, %v7830
    %v7833 = vpack.c.bf16 %v7831, %v7831
    %7834 = vmatprep.subr.bf16.mxu0 %v6894
    %7835 = vmatpush1.bf16.msra.mxu0 %v6893
    %7836 = vmatprep.subr.bf16.mxu0 %v6900
    %7837 = vmatpush1.bf16.msra.mxu0 %v6899
    %7838 = vmatprep.subr.bf16.mxu0 %v6906
    %7839 = vmatpush1.bf16.msra.mxu0 %v6905
    %7840 = vmatprep.subr.bf16.mxu0 %v6912
    %7841 = vmatpush1.bf16.msra.mxu0 %v6911
    %7842 = vmatprep.subr.bf16.mxu0 %v6918
    %7843 = vmatpush1.bf16.msra.mxu0 %v6917
    %7844 = vmatprep.subr.bf16.mxu0 %v6924
    %7845 = vmatpush1.bf16.msra.mxu0 %v6923
    %7846 = vmatprep.subr.bf16.mxu0 %v6930
    %7847 = vmatpush1.bf16.msra.mxu0 %v6929
    %7848 = vmatprep.subr.bf16.mxu0 %v6936
    %7849 = vmatpush1.bf16.msra.mxu0 %v6935
    %7850 = vmatprep.subr.bf16.mxu0 %v6942
    %7851 = vmatpush1.bf16.msra.mxu0 %v6941
    %7852 = vmatprep.subr.bf16.mxu0 %v6948
    %7853 = vmatpush1.bf16.msra.mxu0 %v6947
    %7854 = vmatprep.subr.bf16.mxu0 %v6954
    %7855 = vmatpush1.bf16.msra.mxu0 %v6953
    %7856 = vmatprep.subr.bf16.mxu0 %v6960
    %7857 = vmatpush1.bf16.msra.mxu0 %v6959
    %7858 = vmatprep.subr.bf16.mxu0 %v6966
    %7859 = vmatpush1.bf16.msra.mxu0 %v6965
    %7860 = vmatprep.subr.bf16.mxu0 %v6972
    %7861 = vmatpush1.bf16.msra.mxu0 %v6971
    %7862 = vmatprep.subr.bf16.mxu0 %v6978
    %7863 = vmatpush1.bf16.msra.mxu0 %v6977
    %7864 = vmatprep.subr.bf16.mxu0 %v6984
    %7865 = vmatpush1.bf16.msra.mxu0 %v6983
    %7866 = vmatprep.mubr.bf16.mxu0 %v7833
    %7867 = vmatmul.mubr.bf16.gmra.mrb[0].mxu0 %v7832
    %v7868 = vpop.f32.mrb[0].mxu0
    %v7869 = vadd.f32 0.0, %v7868
    %v7870 = vpop.f32.mrb[0].mxu0
    %v7871 = vadd.f32 0.0, %v7870
    %v7872 = vpop.f32.mrb[0].mxu0
    %v7873 = vpop.f32.mrb[0].mxu0
    %7874 = vdwg.mxu0
    %7875 = vmatprep.subr.bf16.mxu0 %v6896
    %7876 = vmatpush1.bf16.msra.mxu0 %v6895
    %7877 = vmatprep.subr.bf16.mxu0 %v6902
    %7878 = vmatpush1.bf16.msra.mxu0 %v6901
    %7879 = vmatprep.subr.bf16.mxu0 %v6908
    %7880 = vmatpush1.bf16.msra.mxu0 %v6907
    %7881 = vmatprep.subr.bf16.mxu0 %v6914
    %7882 = vmatpush1.bf16.msra.mxu0 %v6913
    %7883 = vmatprep.subr.bf16.mxu0 %v6920
    %7884 = vmatpush1.bf16.msra.mxu0 %v6919
    %7885 = vmatprep.subr.bf16.mxu0 %v6926
    %7886 = vmatpush1.bf16.msra.mxu0 %v6925
    %7887 = vmatprep.subr.bf16.mxu0 %v6932
    %7888 = vmatpush1.bf16.msra.mxu0 %v6931
    %7889 = vmatprep.subr.bf16.mxu0 %v6938
    %7890 = vmatpush1.bf16.msra.mxu0 %v6937
    %7891 = vmatprep.subr.bf16.mxu0 %v6944
    %7892 = vmatpush1.bf16.msra.mxu0 %v6943
    %7893 = vmatprep.subr.bf16.mxu0 %v6950
    %7894 = vmatpush1.bf16.msra.mxu0 %v6949
    %7895 = vmatprep.subr.bf16.mxu0 %v6956
    %7896 = vmatpush1.bf16.msra.mxu0 %v6955
    %7897 = vmatprep.subr.bf16.mxu0 %v6962
    %7898 = vmatpush1.bf16.msra.mxu0 %v6961
    %7899 = vmatprep.subr.bf16.mxu0 %v6968
    %7900 = vmatpush1.bf16.msra.mxu0 %v6967
    %7901 = vmatprep.subr.bf16.mxu0 %v6974
    %7902 = vmatpush1.bf16.msra.mxu0 %v6973
    %7903 = vmatprep.subr.bf16.mxu0 %v6980
    %7904 = vmatpush1.bf16.msra.mxu0 %v6979
    %7905 = vmatprep.subr.bf16.mxu0 %v6986
    %7906 = vmatpush1.bf16.msra.mxu0 %v6985
    %7907 = vmatprep.mubr.bf16.mxu0 %v7833
    %7908 = vmatmul.mubr.bf16.gmra.mrb[0].mxu0 %v7832
    %v7909 = vpop.f32.mrb[0].mxu0
    %v7910 = vadd.f32 0.0, %v7909
    %v7911 = vpop.f32.mrb[0].mxu0
    %v7912 = vadd.f32 0.0, %v7911
    %v7913 = vpop.f32.mrb[0].mxu0
    %v7914 = vpop.f32.mrb[0].mxu0
    %7915 = vdwg.mxu0
    %7916 = vmatprep.subr.bf16.mxu0 %v6898
    %7917 = vmatpush1.bf16.msra.mxu0 %v6897
    %7918 = vmatprep.subr.bf16.mxu0 %v6904
    %7919 = vmatpush1.bf16.msra.mxu0 %v6903
    %7920 = vmatprep.subr.bf16.mxu0 %v6910
    %7921 = vmatpush1.bf16.msra.mxu0 %v6909
    %7922 = vmatprep.subr.bf16.mxu0 %v6916
    %7923 = vmatpush1.bf16.msra.mxu0 %v6915
    %7924 = vmatprep.subr.bf16.mxu0 %v6922
    %7925 = vmatpush1.bf16.msra.mxu0 %v6921
    %7926 = vmatprep.subr.bf16.mxu0 %v6928
    %7927 = vmatpush1.bf16.msra.mxu0 %v6927
    %7928 = vmatprep.subr.bf16.mxu0 %v6934
    %7929 = vmatpush1.bf16.msra.mxu0 %v6933
    %7930 = vmatprep.subr.bf16.mxu0 %v6940
    %7931 = vmatpush1.bf16.msra.mxu0 %v6939
    %7932 = vmatprep.subr.bf16.mxu0 %v6946
    %7933 = vmatpush1.bf16.msra.mxu0 %v6945
    %7934 = vmatprep.subr.bf16.mxu0 %v6952
    %7935 = vmatpush1.bf16.msra.mxu0 %v6951
    %7936 = vmatprep.subr.bf16.mxu0 %v6958
    %7937 = vmatpush1.bf16.msra.mxu0 %v6957
    %7938 = vmatprep.subr.bf16.mxu0 %v6964
    %7939 = vmatpush1.bf16.msra.mxu0 %v6963
    %7940 = vmatprep.subr.bf16.mxu0 %v6970
    %7941 = vmatpush1.bf16.msra.mxu0 %v6969
    %7942 = vmatprep.subr.bf16.mxu0 %v6976
    %7943 = vmatpush1.bf16.msra.mxu0 %v6975
    %7944 = vmatprep.subr.bf16.mxu0 %v6982
    %7945 = vmatpush1.bf16.msra.mxu0 %v6981
    %7946 = vmatprep.subr.bf16.mxu0 %v6988
    %7947 = vmatpush1.bf16.msra.mxu0 %v6987
    %7948 = vmatprep.mubr.bf16.mxu0 %v7833
    %7949 = vmatmul.mubr.bf16.gmra.mrb[0].mxu0 %v7832
    %v7950 = vpop.f32.mrb[0].mxu0
    %v7951 = vadd.f32 0.0, %v7950
    %v7952 = vpop.f32.mrb[0].mxu0
    %v7953 = vadd.f32 0.0, %v7952
    %v7954 = vpop.f32.mrb[0].mxu0
    %v7955 = vpop.f32.mrb[0].mxu0
    %7956 = vdwg.mxu0
    %v7957 = vadd.f32 %v6721, %v7869
    %v7958 = vadd.f32 %v6723, %v7871
    %v7959 = vxor.u32 %v7957, 2147483648
    %v7960 = vxor.u32 %v7958, 2147483648
    %v7961 = vmul.f32 %v7959, 1.442695
    %v7962 = vpow.pop %v7961
    %v7963 = vmul.f32 %v7960, 1.442695
    %v7964 = vpow.pop %v7963
    %v7965 = vadd.f32 %v7962, 1.0
    %v7966 = vadd.f32 %v7964, 1.0
    %v7967 = vrcp.pop %v7965
    %v7968 = vmul.f32 1.0, %v7967
    %v7969 = vrcp.pop %v7966
    %v7970 = vmul.f32 1.0, %v7969
    %v7971 = vadd.f32 %v6794, %v7910
    %v7972 = vadd.f32 %v6796, %v7912
    %v7973 = vxor.u32 %v7971, 2147483648
    %v7974 = vxor.u32 %v7972, 2147483648
    %v7975 = vmul.f32 %v7973, 1.442695
    %v7976 = vpow.pop %v7975
    %v7977 = vmul.f32 %v7974, 1.442695
    %v7978 = vpow.pop %v7977
    %v7979 = vadd.f32 %v7976, 1.0
    %v7980 = vadd.f32 %v7978, 1.0
    %v7981 = vrcp.pop %v7979
    %v7982 = vmul.f32 1.0, %v7981
    %v7983 = vrcp.pop %v7980
    %v7984 = vmul.f32 1.0, %v7983
    %v7985 = vadd.f32 %v7951, %v6886
    %v7986 = vadd.f32 %v7953, %v6890
    %v7987 = vmul.f32 %v7968, %v7985
    %v7988 = vmul.f32 %v7970, %v7986
    %v7989 = vadd.f32 %v6867, %v7987
    %v7990 = vadd.f32 %v6869, %v7988
    %v7991 = vtanh.pop %v7989
    %v7992 = vtanh.pop %v7990
    %v7993 = vsub.f32 1.0, %v7982
    %v7994 = vsub.f32 1.0, %v7984
    %v7995 = vmul.f32 %v7993, %v7991
    %v7996 = vmul.f32 %v7994, %v7992
    %v7997 = vmul.f32 %v7982, %v7830
    %v7998 = vmul.f32 %v7984, %v7831
    %v7999 = vadd.f32 %v7995, %v7997
    %v8000 = vadd.f32 %v7996, %v7998
    %v8001 = vpack.c.bf16 %v7999, %v7999
    %v8002 = vpack.c.bf16 %v8000, %v8000
    %8003 = vmatprep.subr.bf16.mxu0 %v6894
    %8004 = vmatpush1.bf16.msra.mxu0 %v6893
    %8005 = vmatprep.subr.bf16.mxu0 %v6900
    %8006 = vmatpush1.bf16.msra.mxu0 %v6899
    %8007 = vmatprep.subr.bf16.mxu0 %v6906
    %8008 = vmatpush1.bf16.msra.mxu0 %v6905
    %8009 = vmatprep.subr.bf16.mxu0 %v6912
    %8010 = vmatpush1.bf16.msra.mxu0 %v6911
    %8011 = vmatprep.subr.bf16.mxu0 %v6918
    %8012 = vmatpush1.bf16.msra.mxu0 %v6917
    %8013 = vmatprep.subr.bf16.mxu0 %v6924
    %8014 = vmatpush1.bf16.msra.mxu0 %v6923
    %8015 = vmatprep.subr.bf16.mxu0 %v6930
    %8016 = vmatpush1.bf16.msra.mxu0 %v6929
    %8017 = vmatprep.subr.bf16.mxu0 %v6936
    %8018 = vmatpush1.bf16.msra.mxu0 %v6935
    %8019 = vmatprep.subr.bf16.mxu0 %v6942
    %8020 = vmatpush1.bf16.msra.mxu0 %v6941
    %8021 = vmatprep.subr.bf16.mxu0 %v6948
    %8022 = vmatpush1.bf16.msra.mxu0 %v6947
    %8023 = vmatprep.subr.bf16.mxu0 %v6954
    %8024 = vmatpush1.bf16.msra.mxu0 %v6953
    %8025 = vmatprep.subr.bf16.mxu0 %v6960
    %8026 = vmatpush1.bf16.msra.mxu0 %v6959
    %8027 = vmatprep.subr.bf16.mxu0 %v6966
    %8028 = vmatpush1.bf16.msra.mxu0 %v6965
    %8029 = vmatprep.subr.bf16.mxu0 %v6972
    %8030 = vmatpush1.bf16.msra.mxu0 %v6971
    %8031 = vmatprep.subr.bf16.mxu0 %v6978
    %8032 = vmatpush1.bf16.msra.mxu0 %v6977
    %8033 = vmatprep.subr.bf16.mxu0 %v6984
    %8034 = vmatpush1.bf16.msra.mxu0 %v6983
    %8035 = vmatprep.mubr.bf16.mxu0 %v8002
    %8036 = vmatmul.mubr.bf16.gmra.mrb[0].mxu0 %v8001
    %v8037 = vpop.f32.mrb[0].mxu0
    %v8038 = vadd.f32 0.0, %v8037
    %v8039 = vpop.f32.mrb[0].mxu0
    %v8040 = vadd.f32 0.0, %v8039
    %v8041 = vpop.f32.mrb[0].mxu0
    %v8042 = vpop.f32.mrb[0].mxu0
    %8043 = vdwg.mxu0
    %8044 = vmatprep.subr.bf16.mxu0 %v6896
    %8045 = vmatpush1.bf16.msra.mxu0 %v6895
    %8046 = vmatprep.subr.bf16.mxu0 %v6902
    %8047 = vmatpush1.bf16.msra.mxu0 %v6901
    %8048 = vmatprep.subr.bf16.mxu0 %v6908
    %8049 = vmatpush1.bf16.msra.mxu0 %v6907
    %8050 = vmatprep.subr.bf16.mxu0 %v6914
    %8051 = vmatpush1.bf16.msra.mxu0 %v6913
    %8052 = vmatprep.subr.bf16.mxu0 %v6920
    %8053 = vmatpush1.bf16.msra.mxu0 %v6919
    %8054 = vmatprep.subr.bf16.mxu0 %v6926
    %8055 = vmatpush1.bf16.msra.mxu0 %v6925
    %8056 = vmatprep.subr.bf16.mxu0 %v6932
    %8057 = vmatpush1.bf16.msra.mxu0 %v6931
    %8058 = vmatprep.subr.bf16.mxu0 %v6938
    %8059 = vmatpush1.bf16.msra.mxu0 %v6937
    %8060 = vmatprep.subr.bf16.mxu0 %v6944
    %8061 = vmatpush1.bf16.msra.mxu0 %v6943
    %8062 = vmatprep.subr.bf16.mxu0 %v6950
    %8063 = vmatpush1.bf16.msra.mxu0 %v6949
    %8064 = vmatprep.subr.bf16.mxu0 %v6956
    %8065 = vmatpush1.bf16.msra.mxu0 %v6955
    %8066 = vmatprep.subr.bf16.mxu0 %v6962
    %8067 = vmatpush1.bf16.msra.mxu0 %v6961
    %8068 = vmatprep.subr.bf16.mxu0 %v6968
    %8069 = vmatpush1.bf16.msra.mxu0 %v6967
    %8070 = vmatprep.subr.bf16.mxu0 %v6974
    %8071 = vmatpush1.bf16.msra.mxu0 %v6973
    %8072 = vmatprep.subr.bf16.mxu0 %v6980
    %8073 = vmatpush1.bf16.msra.mxu0 %v6979
    %8074 = vmatprep.subr.bf16.mxu0 %v6986
    %8075 = vmatpush1.bf16.msra.mxu0 %v6985
    %8076 = vmatprep.mubr.bf16.mxu0 %v8002
    %8077 = vmatmul.mubr.bf16.gmra.mrb[0].mxu0 %v8001
    %v8078 = vpop.f32.mrb[0].mxu0
    %v8079 = vadd.f32 0.0, %v8078
    %v8080 = vpop.f32.mrb[0].mxu0
    %v8081 = vadd.f32 0.0, %v8080
    %v8082 = vpop.f32.mrb[0].mxu0
    %v8083 = vpop.f32.mrb[0].mxu0
    %8084 = vdwg.mxu0
    %8085 = vmatprep.subr.bf16.mxu0 %v6898
    %8086 = vmatpush1.bf16.msra.mxu0 %v6897
    %8087 = vmatprep.subr.bf16.mxu0 %v6904
    %8088 = vmatpush1.bf16.msra.mxu0 %v6903
    %8089 = vmatprep.subr.bf16.mxu0 %v6910
    %8090 = vmatpush1.bf16.msra.mxu0 %v6909
    %8091 = vmatprep.subr.bf16.mxu0 %v6916
    %8092 = vmatpush1.bf16.msra.mxu0 %v6915
    %8093 = vmatprep.subr.bf16.mxu0 %v6922
    %8094 = vmatpush1.bf16.msra.mxu0 %v6921
    %8095 = vmatprep.subr.bf16.mxu0 %v6928
    %8096 = vmatpush1.bf16.msra.mxu0 %v6927
    %8097 = vmatprep.subr.bf16.mxu0 %v6934
    %8098 = vmatpush1.bf16.msra.mxu0 %v6933
    %8099 = vmatprep.subr.bf16.mxu0 %v6940
    %8100 = vmatpush1.bf16.msra.mxu0 %v6939
    %8101 = vmatprep.subr.bf16.mxu0 %v6946
    %8102 = vmatpush1.bf16.msra.mxu0 %v6945
    %8103 = vmatprep.subr.bf16.mxu0 %v6952
    %8104 = vmatpush1.bf16.msra.mxu0 %v6951
    %8105 = vmatprep.subr.bf16.mxu0 %v6958
    %8106 = vmatpush1.bf16.msra.mxu0 %v6957
    %8107 = vmatprep.subr.bf16.mxu0 %v6964
    %8108 = vmatpush1.bf16.msra.mxu0 %v6963
    %8109 = vmatprep.subr.bf16.mxu0 %v6970
    %8110 = vmatpush1.bf16.msra.mxu0 %v6969
    %8111 = vmatprep.subr.bf16.mxu0 %v6976
    %8112 = vmatpush1.bf16.msra.mxu0 %v6975
    %8113 = vmatprep.subr.bf16.mxu0 %v6982
    %8114 = vmatpush1.bf16.msra.mxu0 %v6981
    %8115 = vmatprep.subr.bf16.mxu0 %v6988
    %8116 = vmatpush1.bf16.msra.mxu0 %v6987
    %8117 = vmatprep.mubr.bf16.mxu0 %v8002
    %8118 = vmatmul.mubr.bf16.gmra.mrb[0].mxu0 %v8001
    %v8119 = vpop.f32.mrb[0].mxu0
    %v8120 = vadd.f32 0.0, %v8119
    %v8121 = vpop.f32.mrb[0].mxu0
    %v8122 = vadd.f32 0.0, %v8121
    %v8123 = vpop.f32.mrb[0].mxu0
    %v8124 = vpop.f32.mrb[0].mxu0
    %8125 = vdwg.mxu0
    %v8126 = vadd.f32 %v6727, %v8038
    %v8127 = vadd.f32 %v6729, %v8040
    %v8128 = vxor.u32 %v8126, 2147483648
    %v8129 = vxor.u32 %v8127, 2147483648
    %v8130 = vmul.f32 %v8128, 1.442695
    %v8131 = vpow.pop %v8130
    %v8132 = vmul.f32 %v8129, 1.442695
    %v8133 = vpow.pop %v8132
    %v8134 = vadd.f32 %v8131, 1.0
    %v8135 = vadd.f32 %v8133, 1.0
    %v8136 = vrcp.pop %v8134
    %v8137 = vmul.f32 1.0, %v8136
    %v8138 = vrcp.pop %v8135
    %v8139 = vmul.f32 1.0, %v8138
    %v8140 = vadd.f32 %v6800, %v8079
    %v8141 = vadd.f32 %v6802, %v8081
    %v8142 = vxor.u32 %v8140, 2147483648
    %v8143 = vxor.u32 %v8141, 2147483648
    %v8144 = vmul.f32 %v8142, 1.442695
    %v8145 = vpow.pop %v8144
    %v8146 = vmul.f32 %v8143, 1.442695
    %v8147 = vpow.pop %v8146
    %v8148 = vadd.f32 %v8145, 1.0
    %v8149 = vadd.f32 %v8147, 1.0
    %v8150 = vrcp.pop %v8148
    %v8151 = vmul.f32 1.0, %v8150
    %v8152 = vrcp.pop %v8149
    %v8153 = vmul.f32 1.0, %v8152
    %v8154 = vadd.f32 %v8120, %v6886
    %v8155 = vadd.f32 %v8122, %v6890
    %v8156 = vmul.f32 %v8137, %v8154
    %v8157 = vmul.f32 %v8139, %v8155
    %v8158 = vadd.f32 %v6873, %v8156
    %v8159 = vadd.f32 %v6875, %v8157
    %v8160 = vtanh.pop %v8158
    %v8161 = vtanh.pop %v8159
    %v8162 = vsub.f32 1.0, %v8151
    %v8163 = vsub.f32 1.0, %v8153
    %v8164 = vmul.f32 %v8162, %v8160
    %v8165 = vmul.f32 %v8163, %v8161
    %v8166 = vmul.f32 %v8151, %v7999
    %v8167 = vmul.f32 %v8153, %v8000
    %v8168 = vadd.f32 %v8164, %v8166
    %v8169 = vadd.f32 %v8165, %v8167
    %v8170 = vpack.c.bf16 %v8168, %v8168
    %v8171 = vpack.c.bf16 %v8169, %v8169
    %8172 = vmatprep.subr.bf16.mxu0 %v6894
    %8173 = vmatpush1.bf16.msra.mxu0 %v6893
    %8174 = vmatprep.subr.bf16.mxu0 %v6900
    %8175 = vmatpush1.bf16.msra.mxu0 %v6899
    %8176 = vmatprep.subr.bf16.mxu0 %v6906
    %8177 = vmatpush1.bf16.msra.mxu0 %v6905
    %8178 = vmatprep.subr.bf16.mxu0 %v6912
    %8179 = vmatpush1.bf16.msra.mxu0 %v6911
    %8180 = vmatprep.subr.bf16.mxu0 %v6918
    %8181 = vmatpush1.bf16.msra.mxu0 %v6917
    %8182 = vmatprep.subr.bf16.mxu0 %v6924
    %8183 = vmatpush1.bf16.msra.mxu0 %v6923
    %8184 = vmatprep.subr.bf16.mxu0 %v6930
    %8185 = vmatpush1.bf16.msra.mxu0 %v6929
    %8186 = vmatprep.subr.bf16.mxu0 %v6936
    %8187 = vmatpush1.bf16.msra.mxu0 %v6935
    %8188 = vmatprep.subr.bf16.mxu0 %v6942
    %8189 = vmatpush1.bf16.msra.mxu0 %v6941
    %8190 = vmatprep.subr.bf16.mxu0 %v6948
    %8191 = vmatpush1.bf16.msra.mxu0 %v6947
    %8192 = vmatprep.subr.bf16.mxu0 %v6954
    %8193 = vmatpush1.bf16.msra.mxu0 %v6953
    %8194 = vmatprep.subr.bf16.mxu0 %v6960
    %8195 = vmatpush1.bf16.msra.mxu0 %v6959
    %8196 = vmatprep.subr.bf16.mxu0 %v6966
    %8197 = vmatpush1.bf16.msra.mxu0 %v6965
    %8198 = vmatprep.subr.bf16.mxu0 %v6972
    %8199 = vmatpush1.bf16.msra.mxu0 %v6971
    %8200 = vmatprep.subr.bf16.mxu0 %v6978
    %8201 = vmatpush1.bf16.msra.mxu0 %v6977
    %8202 = vmatprep.subr.bf16.mxu0 %v6984
    %8203 = vmatpush1.bf16.msra.mxu0 %v6983
    %8204 = vmatprep.mubr.bf16.mxu0 %v8171
    %8205 = vmatmul.mubr.bf16.gmra.mrb[0].mxu0 %v8170
    %v8206 = vpop.f32.mrb[0].mxu0
    %v8207 = vadd.f32 0.0, %v8206
    %v8208 = vpop.f32.mrb[0].mxu0
    %v8209 = vadd.f32 0.0, %v8208
    %v8210 = vpop.f32.mrb[0].mxu0
    %v8211 = vpop.f32.mrb[0].mxu0
    %8212 = vdwg.mxu0
    %8213 = vmatprep.subr.bf16.mxu0 %v6896
    %8214 = vmatpush1.bf16.msra.mxu0 %v6895
    %8215 = vmatprep.subr.bf16.mxu0 %v6902
    %8216 = vmatpush1.bf16.msra.mxu0 %v6901
    %8217 = vmatprep.subr.bf16.mxu0 %v6908
    %8218 = vmatpush1.bf16.msra.mxu0 %v6907
    %8219 = vmatprep.subr.bf16.mxu0 %v6914
    %8220 = vmatpush1.bf16.msra.mxu0 %v6913
    %8221 = vmatprep.subr.bf16.mxu0 %v6920
    %8222 = vmatpush1.bf16.msra.mxu0 %v6919
    %8223 = vmatprep.subr.bf16.mxu0 %v6926
    %8224 = vmatpush1.bf16.msra.mxu0 %v6925
    %8225 = vmatprep.subr.bf16.mxu0 %v6932
    %8226 = vmatpush1.bf16.msra.mxu0 %v6931
    %8227 = vmatprep.subr.bf16.mxu0 %v6938
    %8228 = vmatpush1.bf16.msra.mxu0 %v6937
    %8229 = vmatprep.subr.bf16.mxu0 %v6944
    %8230 = vmatpush1.bf16.msra.mxu0 %v6943
    %8231 = vmatprep.subr.bf16.mxu0 %v6950
    %8232 = vmatpush1.bf16.msra.mxu0 %v6949
    %8233 = vmatprep.subr.bf16.mxu0 %v6956
    %8234 = vmatpush1.bf16.msra.mxu0 %v6955
    %8235 = vmatprep.subr.bf16.mxu0 %v6962
    %8236 = vmatpush1.bf16.msra.mxu0 %v6961
    %8237 = vmatprep.subr.bf16.mxu0 %v6968
    %8238 = vmatpush1.bf16.msra.mxu0 %v6967
    %8239 = vmatprep.subr.bf16.mxu0 %v6974
    %8240 = vmatpush1.bf16.msra.mxu0 %v6973
    %8241 = vmatprep.subr.bf16.mxu0 %v6980
    %8242 = vmatpush1.bf16.msra.mxu0 %v6979
    %8243 = vmatprep.subr.bf16.mxu0 %v6986
    %8244 = vmatpush1.bf16.msra.mxu0 %v6985
    %8245 = vmatprep.mubr.bf16.mxu0 %v8171
    %8246 = vmatmul.mubr.bf16.gmra.mrb[0].mxu0 %v8170
    %v8247 = vpop.f32.mrb[0].mxu0
    %v8248 = vadd.f32 0.0, %v8247
    %v8249 = vpop.f32.mrb[0].mxu0
    %v8250 = vadd.f32 0.0, %v8249
    %v8251 = vpop.f32.mrb[0].mxu0
    %v8252 = vpop.f32.mrb[0].mxu0
    %8253 = vdwg.mxu0
    %8254 = vmatprep.subr.bf16.mxu0 %v6898
    %8255 = vmatpush1.bf16.msra.mxu0 %v6897
    %8256 = vmatprep.subr.bf16.mxu0 %v6904
    %8257 = vmatpush1.bf16.msra.mxu0 %v6903
    %8258 = vmatprep.subr.bf16.mxu0 %v6910
    %8259 = vmatpush1.bf16.msra.mxu0 %v6909
    %8260 = vmatprep.subr.bf16.mxu0 %v6916
    %8261 = vmatpush1.bf16.msra.mxu0 %v6915
    %8262 = vmatprep.subr.bf16.mxu0 %v6922
    %8263 = vmatpush1.bf16.msra.mxu0 %v6921
    %8264 = vmatprep.subr.bf16.mxu0 %v6928
    %8265 = vmatpush1.bf16.msra.mxu0 %v6927
    %8266 = vmatprep.subr.bf16.mxu0 %v6934
    %8267 = vmatpush1.bf16.msra.mxu0 %v6933
    %8268 = vmatprep.subr.bf16.mxu0 %v6940
    %8269 = vmatpush1.bf16.msra.mxu0 %v6939
    %8270 = vmatprep.subr.bf16.mxu0 %v6946
    %8271 = vmatpush1.bf16.msra.mxu0 %v6945
    %8272 = vmatprep.subr.bf16.mxu0 %v6952
    %8273 = vmatpush1.bf16.msra.mxu0 %v6951
    %8274 = vmatprep.subr.bf16.mxu0 %v6958
    %8275 = vmatpush1.bf16.msra.mxu0 %v6957
    %8276 = vmatprep.subr.bf16.mxu0 %v6964
    %8277 = vmatpush1.bf16.msra.mxu0 %v6963
    %8278 = vmatprep.subr.bf16.mxu0 %v6970
    %8279 = vmatpush1.bf16.msra.mxu0 %v6969
    %8280 = vmatprep.subr.bf16.mxu0 %v6976
    %8281 = vmatpush1.bf16.msra.mxu0 %v6975
    %8282 = vmatprep.subr.bf16.mxu0 %v6982
    %8283 = vmatpush1.bf16.msra.mxu0 %v6981
    %8284 = vmatprep.subr.bf16.mxu0 %v6988
    %8285 = vmatpush1.bf16.msra.mxu0 %v6987
    %8286 = vmatprep.mubr.bf16.mxu0 %v8171
    %8287 = vmatmul.mubr.bf16.gmra.mrb[0].mxu0 %v8170
    %v8288 = vpop.f32.mrb[0].mxu0
    %v8289 = vadd.f32 0.0, %v8288
    %v8290 = vpop.f32.mrb[0].mxu0
    %v8291 = vadd.f32 0.0, %v8290
    %v8292 = vpop.f32.mrb[0].mxu0
    %v8293 = vpop.f32.mrb[0].mxu0
    %8294 = vdwg.mxu0
    %v8295 = vadd.f32 %v6731, %v8207
    %v8296 = vadd.f32 %v6733, %v8209
    %v8297 = vxor.u32 %v8295, 2147483648
    %v8298 = vxor.u32 %v8296, 2147483648
    %v8299 = vmul.f32 %v8297, 1.442695
    %v8300 = vpow.pop %v8299
    %v8301 = vmul.f32 %v8298, 1.442695
    %v8302 = vpow.pop %v8301
    %v8303 = vadd.f32 %v8300, 1.0
    %v8304 = vadd.f32 %v8302, 1.0
    %v8305 = vrcp.pop %v8303
    %v8306 = vmul.f32 1.0, %v8305
    %v8307 = vrcp.pop %v8304
    %v8308 = vmul.f32 1.0, %v8307
    %v8309 = vadd.f32 %v6804, %v8248
    %v8310 = vadd.f32 %v6806, %v8250
    %v8311 = vxor.u32 %v8309, 2147483648
    %v8312 = vxor.u32 %v8310, 2147483648
    %v8313 = vmul.f32 %v8311, 1.442695
    %v8314 = vpow.pop %v8313
    %v8315 = vmul.f32 %v8312, 1.442695
    %v8316 = vpow.pop %v8315
    %v8317 = vadd.f32 %v8314, 1.0
    %v8318 = vadd.f32 %v8316, 1.0
    %v8319 = vrcp.pop %v8317
    %v8320 = vmul.f32 1.0, %v8319
    %v8321 = vrcp.pop %v8318
    %v8322 = vmul.f32 1.0, %v8321
    %v8323 = vadd.f32 %v8289, %v6886
    %v8324 = vadd.f32 %v8291, %v6890
    %v8325 = vmul.f32 %v8306, %v8323
    %v8326 = vmul.f32 %v8308, %v8324
    %v8327 = vadd.f32 %v6877, %v8325
    %v8328 = vadd.f32 %v6879, %v8326
    %v8329 = vtanh.pop %v8327
    %v8330 = vtanh.pop %v8328
    %v8331 = vsub.f32 1.0, %v8320
    %v8332 = vsub.f32 1.0, %v8322
    %v8333 = vmul.f32 %v8331, %v8329
    %v8334 = vmul.f32 %v8332, %v8330
    %v8335 = vmul.f32 %v8320, %v8168
    %v8336 = vmul.f32 %v8322, %v8169
    %v8337 = vadd.f32 %v8333, %v8335
    %v8338 = vadd.f32 %v8334, %v8336
    %s8339 = smul.u32 %s6520, 5
    %s8340 = sshll.u32 %s8339, 4
    %8341 = dma.done %s121, %s8340
    %s8342 = smul.u32 4, 80
    %s8343 = smul.u32 %s8342, 1
    %s8344 = sshll.u32 %s8343, 4
    %8345 = dma.done %s156, %s8344
    %v8346 = vmax.f32 %v8337, 0.0
    %v8347 = vmax.f32 %v8338, 0.0
    %v8348 = vpack.c.bf16 %v8346, %v8346
    %v8349 = vpack.c.bf16 %v8347, %v8347
    %v8350 = vld [vmem:[#allocation4] sm:$0xff]
    %v8351 = vld [vmem:[#allocation4 + $0x8] sm:$0xff]
    %v8352 = vld [vmem:[#allocation4 + $0x10] sm:$0xff]
    %v8353 = vld [vmem:[#allocation4 + $0x18] sm:$0xff]
    %v8354 = vld [vmem:[#allocation4 + $0x20] sm:$0xff]
    %v8355 = vld [vmem:[#allocation4 + $0x28] sm:$0xff]
    %v8356 = vld [vmem:[#allocation4 + $0x30] sm:$0xff]
    %v8357 = vld [vmem:[#allocation4 + $0x38] sm:$0xff]
    %v8358 = vld [vmem:[#allocation4 + $0x40] sm:$0xff]
    %v8359 = vld [vmem:[#allocation4 + $0x48] sm:$0xff]
    %v8360 = vld [vmem:[#allocation4 + $0x50] sm:$0xff]
    %v8361 = vld [vmem:[#allocation4 + $0x58] sm:$0xff]
    %v8362 = vld [vmem:[#allocation4 + $0x60] sm:$0xff]
    %v8363 = vld [vmem:[#allocation4 + $0x68] sm:$0xff]
    %v8364 = vld [vmem:[#allocation4 + $0x70] sm:$0xff]
    %v8365 = vld [vmem:[#allocation4 + $0x78] sm:$0xff]
    %v8366 = vld [vmem:[#allocation4 + $0x80] sm:$0xff]
    %v8367 = vld [vmem:[#allocation4 + $0x88] sm:$0xff]
    %v8368 = vld [vmem:[#allocation4 + $0x90] sm:$0xff]
    %v8369 = vld [vmem:[#allocation4 + $0x98] sm:$0xff]
    %v8370 = vld [vmem:[#allocation4 + $0xa0] sm:$0xff]
    %v8371 = vld [vmem:[#allocation4 + $0xa8] sm:$0xff]
    %v8372 = vld [vmem:[#allocation4 + $0xb0] sm:$0xff]
    %v8373 = vld [vmem:[#allocation4 + $0xb8] sm:$0xff]
    %v8374 = vld [vmem:[#allocation4 + $0xc0] sm:$0xff]
    %v8375 = vld [vmem:[#allocation4 + $0xc8] sm:$0xff]
    %v8376 = vld [vmem:[#allocation4 + $0xd0] sm:$0xff]
    %v8377 = vld [vmem:[#allocation4 + $0xd8] sm:$0xff]
    %v8378 = vld [vmem:[#allocation4 + $0xe0] sm:$0xff]
    %v8379 = vld [vmem:[#allocation4 + $0xe8] sm:$0xff]
    %v8380 = vld [vmem:[#allocation4 + $0xf0] sm:$0xff]
    %v8381 = vld [vmem:[#allocation4 + $0xf8] sm:$0xff]
    %v8382 = vld [vmem:[#allocation4 + $0x100] sm:$0xff]
    %v8383 = vld [vmem:[#allocation4 + $0x108] sm:$0xff]
    %v8384 = vld [vmem:[#allocation4 + $0x110] sm:$0xff]
    %v8385 = vld [vmem:[#allocation4 + $0x118] sm:$0xff]
    %v8386 = vld [vmem:[#allocation4 + $0x120] sm:$0xff]
    %v8387 = vld [vmem:[#allocation4 + $0x128] sm:$0xff]
    %v8388 = vld [vmem:[#allocation4 + $0x130] sm:$0xff]
    %v8389 = vld [vmem:[#allocation4 + $0x138] sm:$0xff]
    %v8390 = vld [vmem:[#allocation4 + $0x140] sm:$0xff]
    %v8391 = vld [vmem:[#allocation4 + $0x148] sm:$0xff]
    %v8392 = vld [vmem:[#allocation4 + $0x150] sm:$0xff]
    %v8393 = vld [vmem:[#allocation4 + $0x158] sm:$0xff]
    %v8394 = vld [vmem:[#allocation4 + $0x160] sm:$0xff]
    %v8395 = vld [vmem:[#allocation4 + $0x168] sm:$0xff]
    %v8396 = vld [vmem:[#allocation4 + $0x170] sm:$0xff]
    %v8397 = vld [vmem:[#allocation4 + $0x178] sm:$0xff]
    %v8398 = vld [vmem:[#allocation4 + $0x180] sm:$0xff]
    %v8399 = vld [vmem:[#allocation4 + $0x188] sm:$0xff]
    %v8400 = vld [vmem:[#allocation4 + $0x190] sm:$0xff]
    %v8401 = vld [vmem:[#allocation4 + $0x198] sm:$0xff]
    %v8402 = vld [vmem:[#allocation4 + $0x1a0] sm:$0xff]
    %v8403 = vld [vmem:[#allocation4 + $0x1a8] sm:$0xff]
    %v8404 = vld [vmem:[#allocation4 + $0x1b0] sm:$0xff]
    %v8405 = vld [vmem:[#allocation4 + $0x1b8] sm:$0xff]
    %v8406 = vld [vmem:[#allocation4 + $0x1c0] sm:$0xff]
    %v8407 = vld [vmem:[#allocation4 + $0x1c8] sm:$0xff]
    %v8408 = vld [vmem:[#allocation4 + $0x1d0] sm:$0xff]
    %v8409 = vld [vmem:[#allocation4 + $0x1d8] sm:$0xff]
    %v8410 = vld [vmem:[#allocation4 + $0x1e0] sm:$0xff]
    %v8411 = vld [vmem:[#allocation4 + $0x1e8] sm:$0xff]
    %v8412 = vld [vmem:[#allocation4 + $0x1f0] sm:$0xff]
    %v8413 = vld [vmem:[#allocation4 + $0x1f8] sm:$0xff]
    %v8414 = vld [vmem:[#allocation4 + $0x200] sm:$0xff]
    %v8415 = vld [vmem:[#allocation4 + $0x208] sm:$0xff]
    %v8416 = vld [vmem:[#allocation4 + $0x210] sm:$0xff]
    %v8417 = vld [vmem:[#allocation4 + $0x218] sm:$0xff]
    %v8418 = vld [vmem:[#allocation4 + $0x220] sm:$0xff]
    %v8419 = vld [vmem:[#allocation4 + $0x228] sm:$0xff]
    %v8420 = vld [vmem:[#allocation4 + $0x230] sm:$0xff]
    %v8421 = vld [vmem:[#allocation4 + $0x238] sm:$0xff]
    %v8422 = vld [vmem:[#allocation4 + $0x240] sm:$0xff]
    %v8423 = vld [vmem:[#allocation4 + $0x248] sm:$0xff]
    %v8424 = vld [vmem:[#allocation4 + $0x250] sm:$0xff]
    %v8425 = vld [vmem:[#allocation4 + $0x258] sm:$0xff]
    %v8426 = vld [vmem:[#allocation4 + $0x260] sm:$0xff]
    %v8427 = vld [vmem:[#allocation4 + $0x268] sm:$0xff]
    %v8428 = vld [vmem:[#allocation4 + $0x270] sm:$0xff]
    %v8429 = vld [vmem:[#allocation4 + $0x278] sm:$0xff]
    %v8430 = vld [vmem:[%s10] sm:$0x1f]
    %v8432 = vlaneseq
    %v8433 = vshrl.u32 %v8432, 7
    %v8434 = vsub.s32 0, %v8433
    %v8435 = vrot.slane %v8430, %v8434
    %v8436 = vlaneseq
    %v8437 = vshrl.u32 %v8436, 7
    %v8438 = vsub.s32 1, %v8437
    %v8439 = vrot.slane %v8430, %v8438
    %v8440 = vlaneseq
    %v8441 = vshrl.u32 %v8440, 7
    %v8442 = vsub.s32 2, %v8441
    %v8443 = vrot.slane %v8430, %v8442
    %v8444 = vlaneseq
    %v8445 = vshrl.u32 %v8444, 7
    %v8446 = vsub.s32 3, %v8445
    %v8447 = vrot.slane %v8430, %v8446
    %v8448 = vlaneseq
    %v8449 = vshrl.u32 %v8448, 7
    %v8450 = vsub.s32 4, %v8449
    %v8451 = vrot.slane %v8430, %v8450
    %8457 = vmatprep.subr.bf16.mxu0 %v8351
    %8458 = vmatpush1.bf16.msra.mxu0 %v8350
    %8459 = vmatprep.subr.bf16.mxu0 %v8356
    %8460 = vmatpush1.bf16.msra.mxu0 %v8355
    %8461 = vmatprep.subr.bf16.mxu0 %v8361
    %8462 = vmatpush1.bf16.msra.mxu0 %v8360
    %8463 = vmatprep.subr.bf16.mxu0 %v8366
    %8464 = vmatpush1.bf16.msra.mxu0 %v8365
    %8465 = vmatprep.subr.bf16.mxu0 %v8371
    %8466 = vmatpush1.bf16.msra.mxu0 %v8370
    %8467 = vmatprep.subr.bf16.mxu0 %v8376
    %8468 = vmatpush1.bf16.msra.mxu0 %v8375
    %8469 = vmatprep.subr.bf16.mxu0 %v8381
    %8470 = vmatpush1.bf16.msra.mxu0 %v8380
    %8471 = vmatprep.subr.bf16.mxu0 %v8386
    %8472 = vmatpush1.bf16.msra.mxu0 %v8385
    %8473 = vmatprep.subr.bf16.mxu0 %v8391
    %8474 = vmatpush1.bf16.msra.mxu0 %v8390
    %8475 = vmatprep.subr.bf16.mxu0 %v8396
    %8476 = vmatpush1.bf16.msra.mxu0 %v8395
    %8477 = vmatprep.subr.bf16.mxu0 %v8401
    %8478 = vmatpush1.bf16.msra.mxu0 %v8400
    %8479 = vmatprep.subr.bf16.mxu0 %v8406
    %8480 = vmatpush1.bf16.msra.mxu0 %v8405
    %8481 = vmatprep.subr.bf16.mxu0 %v8411
    %8482 = vmatpush1.bf16.msra.mxu0 %v8410
    %8483 = vmatprep.subr.bf16.mxu0 %v8416
    %8484 = vmatpush1.bf16.msra.mxu0 %v8415
    %8485 = vmatprep.subr.bf16.mxu0 %v8421
    %8486 = vmatpush1.bf16.msra.mxu0 %v8420
    %8487 = vmatprep.subr.bf16.mxu0 %v8426
    %8488 = vmatpush1.bf16.msra.mxu0 %v8425
    %8489 = vmatprep.mubr.bf16.mxu0 %v8349
    %8490 = vmatmul.mubr.bf16.gmra.mrb[0].mxu0 %v8348
    %v8491 = vpop.f32.mrb[0].mxu0
    %v8492 = vadd.f32 %v8435, %v8491
    %v8493 = vpop.f32.mrb[0].mxu0
    %v8494 = vadd.f32 %v8439, %v8493
    %v8495 = vpop.f32.mrb[0].mxu0
    %v8496 = vpop.f32.mrb[0].mxu0
    %8497 = vdwg.mxu0
    %8498 = vmatprep.subr.bf16.mxu0 %v8353
    %8499 = vmatpush1.bf16.msra.mxu0 %v8352
    %8500 = vmatprep.subr.bf16.mxu0 %v8358
    %8501 = vmatpush1.bf16.msra.mxu0 %v8357
    %8502 = vmatprep.subr.bf16.mxu0 %v8363
    %8503 = vmatpush1.bf16.msra.mxu0 %v8362
    %8504 = vmatprep.subr.bf16.mxu0 %v8368
    %8505 = vmatpush1.bf16.msra.mxu0 %v8367
    %8506 = vmatprep.subr.bf16.mxu0 %v8373
    %8507 = vmatpush1.bf16.msra.mxu0 %v8372
    %8508 = vmatprep.subr.bf16.mxu0 %v8378
    %8509 = vmatpush1.bf16.msra.mxu0 %v8377
    %8510 = vmatprep.subr.bf16.mxu0 %v8383
    %8511 = vmatpush1.bf16.msra.mxu0 %v8382
    %8512 = vmatprep.subr.bf16.mxu0 %v8388
    %8513 = vmatpush1.bf16.msra.mxu0 %v8387
    %8514 = vmatprep.subr.bf16.mxu0 %v8393
    %8515 = vmatpush1.bf16.msra.mxu0 %v8392
    %8516 = vmatprep.subr.bf16.mxu0 %v8398
    %8517 = vmatpush1.bf16.msra.mxu0 %v8397
    %8518 = vmatprep.subr.bf16.mxu0 %v8403
    %8519 = vmatpush1.bf16.msra.mxu0 %v8402
    %8520 = vmatprep.subr.bf16.mxu0 %v8408
    %8521 = vmatpush1.bf16.msra.mxu0 %v8407
    %8522 = vmatprep.subr.bf16.mxu0 %v8413
    %8523 = vmatpush1.bf16.msra.mxu0 %v8412
    %8524 = vmatprep.subr.bf16.mxu0 %v8418
    %8525 = vmatpush1.bf16.msra.mxu0 %v8417
    %8526 = vmatprep.subr.bf16.mxu0 %v8423
    %8527 = vmatpush1.bf16.msra.mxu0 %v8422
    %8528 = vmatprep.subr.bf16.mxu0 %v8428
    %8529 = vmatpush1.bf16.msra.mxu0 %v8427
    %8530 = vmatprep.mubr.bf16.mxu0 %v8349
    %8531 = vmatmul.mubr.bf16.gmra.mrb[0].mxu0 %v8348
    %v8532 = vpop.f32.mrb[0].mxu0
    %v8533 = vadd.f32 %v8443, %v8532
    %v8534 = vpop.f32.mrb[0].mxu0
    %v8535 = vadd.f32 %v8447, %v8534
    %v8536 = vpop.f32.mrb[0].mxu0
    %v8537 = vpop.f32.mrb[0].mxu0
    %8538 = vdwg.mxu0
    %8539 = vmatprep.subr.bf16.mxu0 0
    %8540 = vmatpush1.bf16.msra.mxu0 %v8354
    %8541 = vmatprep.subr.bf16.mxu0 0
    %8542 = vmatpush1.bf16.msra.mxu0 %v8359
    %8543 = vmatprep.subr.bf16.mxu0 0
    %8544 = vmatpush1.bf16.msra.mxu0 %v8364
    %8545 = vmatprep.subr.bf16.mxu0 0
    %8546 = vmatpush1.bf16.msra.mxu0 %v8369
    %8547 = vmatprep.subr.bf16.mxu0 0
    %8548 = vmatpush1.bf16.msra.mxu0 %v8374
    %8549 = vmatprep.subr.bf16.mxu0 0
    %8550 = vmatpush1.bf16.msra.mxu0 %v8379
    %8551 = vmatprep.subr.bf16.mxu0 0
    %8552 = vmatpush1.bf16.msra.mxu0 %v8384
    %8553 = vmatprep.subr.bf16.mxu0 0
    %8554 = vmatpush1.bf16.msra.mxu0 %v8389
    %8555 = vmatprep.subr.bf16.mxu0 0
    %8556 = vmatpush1.bf16.msra.mxu0 %v8394
    %8557 = vmatprep.subr.bf16.mxu0 0
    %8558 = vmatpush1.bf16.msra.mxu0 %v8399
    %8559 = vmatprep.subr.bf16.mxu0 0
    %8560 = vmatpush1.bf16.msra.mxu0 %v8404
    %8561 = vmatprep.subr.bf16.mxu0 0
    %8562 = vmatpush1.bf16.msra.mxu0 %v8409
    %8563 = vmatprep.subr.bf16.mxu0 0
    %8564 = vmatpush1.bf16.msra.mxu0 %v8414
    %8565 = vmatprep.subr.bf16.mxu0 0
    %8566 = vmatpush1.bf16.msra.mxu0 %v8419
    %8567 = vmatprep.subr.bf16.mxu0 0
    %8568 = vmatpush1.bf16.msra.mxu0 %v8424
    %8569 = vmatprep.subr.bf16.mxu0 0
    %8570 = vmatpush1.bf16.msra.mxu0 %v8429
    %8571 = vmatprep.mubr.bf16.mxu0 %v8349
    %8572 = vmatmul.mubr.bf16.gmra.mrb[0].mxu0 %v8348
    %v8573 = vpop.f32.mrb[0].mxu0
    %v8574 = vadd.f32 %v8451, %v8573
    %v8575 = vpop.f32.mrb[0].mxu0
    %v8576 = vpop.f32.mrb[0].mxu0
    %v8577 = vpop.f32.mrb[0].mxu0
    %8578 = vdwg.mxu0
    %v8579 = vmax.f32 %v8492, 0.0
    %v8580 = vmax.f32 %v8494, 0.0
    %v8581 = vmax.f32 %v8533, 0.0
    %v8582 = vmax.f32 %v8535, 0.0
    %v8583 = vmax.f32 %v8574, 0.0
    %v8584 = vpack.c.bf16 %v8579, %v8579
    %v8585 = vpack.c.bf16 %v8580, %v8580
    %v8586 = vpack.c.bf16 %v8581, %v8581
    %v8587 = vpack.c.bf16 %v8582, %v8582
    %v8588 = vpack.c.bf16 %v8583, %v8583
    %v8589 = vld [vmem:[#allocation5] sm:$0xff]
    %v8590 = vld [vmem:[#allocation5 + $0x8] sm:$0xff]
    %v8591 = vld [vmem:[#allocation5 + $0x10] sm:$0xff]
    %v8592 = vld [vmem:[#allocation5 + $0x18] sm:$0xff]
    %v8593 = vld [vmem:[#allocation5 + $0x20] sm:$0xff]
    %v8594 = vld [vmem:[#allocation5 + $0x28] sm:$0xff]
    %v8595 = vld [vmem:[#allocation5 + $0x30] sm:$0xff]
    %v8596 = vld [vmem:[#allocation5 + $0x38] sm:$0xff]
    %v8597 = vld [vmem:[#allocation5 + $0x40] sm:$0xff]
    %v8598 = vld [vmem:[#allocation5 + $0x48] sm:$0xff]
    %v8599 = vld [vmem:[#allocation5 + $0x50] sm:$0xff]
    %v8600 = vld [vmem:[#allocation5 + $0x58] sm:$0xff]
    %v8601 = vld [vmem:[#allocation5 + $0x60] sm:$0xff]
    %v8602 = vld [vmem:[#allocation5 + $0x68] sm:$0xff]
    %v8603 = vld [vmem:[#allocation5 + $0x70] sm:$0xff]
    %v8604 = vld [vmem:[#allocation5 + $0x78] sm:$0xff]
    %v8605 = vld [vmem:[#allocation5 + $0x80] sm:$0xff]
    %v8606 = vld [vmem:[#allocation5 + $0x88] sm:$0xff]
    %v8607 = vld [vmem:[#allocation5 + $0x90] sm:$0xff]
    %v8608 = vld [vmem:[#allocation5 + $0x98] sm:$0xff]
    %v8609 = vld [vmem:[#allocation5 + $0xa0] sm:$0xff]
    %v8610 = vld [vmem:[#allocation5 + $0xa8] sm:$0xff]
    %v8611 = vld [vmem:[#allocation5 + $0xb0] sm:$0xff]
    %v8612 = vld [vmem:[#allocation5 + $0xb8] sm:$0xff]
    %v8613 = vld [vmem:[#allocation5 + $0xc0] sm:$0xff]
    %v8614 = vld [vmem:[#allocation5 + $0xc8] sm:$0xff]
    %v8615 = vld [vmem:[#allocation5 + $0xd0] sm:$0xff]
    %v8616 = vld [vmem:[#allocation5 + $0xd8] sm:$0xff]
    %v8617 = vld [vmem:[#allocation5 + $0xe0] sm:$0xff]
    %v8618 = vld [vmem:[#allocation5 + $0xe8] sm:$0xff]
    %v8619 = vld [vmem:[#allocation5 + $0xf0] sm:$0xff]
    %v8620 = vld [vmem:[#allocation5 + $0xf8] sm:$0xff]
    %v8621 = vld [vmem:[#allocation5 + $0x100] sm:$0xff]
    %v8622 = vld [vmem:[#allocation5 + $0x108] sm:$0xff]
    %v8623 = vld [vmem:[#allocation5 + $0x110] sm:$0xff]
    %v8624 = vld [vmem:[#allocation5 + $0x118] sm:$0xff]
    %v8625 = vld [vmem:[#allocation5 + $0x120] sm:$0xff]
    %v8626 = vld [vmem:[#allocation5 + $0x128] sm:$0xff]
    %v8627 = vld [vmem:[#allocation5 + $0x130] sm:$0xff]
    %v8628 = vld [vmem:[#allocation5 + $0x138] sm:$0xff]
    %v8629 = vld [vmem:[%s12] sm:$0x1]
    %v8631 = vlaneseq
    %v8632 = vshrl.u32 %v8631, 7
    %v8633 = vsub.s32 0, %v8632
    %v8634 = vrot.slane %v8629, %v8633
    %8636 = vmatprep.subr.bf16.mxu0 0
    %8637 = vmatpush1.bf16.msra.mxu0 %v8589
    %8638 = vmatprep.subr.bf16.mxu0 0
    %8639 = vmatpush1.bf16.msra.mxu0 %v8590
    %8640 = vmatprep.subr.bf16.mxu0 0
    %8641 = vmatpush1.bf16.msra.mxu0 %v8591
    %8642 = vmatprep.subr.bf16.mxu0 0
    %8643 = vmatpush1.bf16.msra.mxu0 %v8592
    %8644 = vmatprep.subr.bf16.mxu0 0
    %8645 = vmatpush1.bf16.msra.mxu0 %v8593
    %8646 = vmatprep.subr.bf16.mxu0 0
    %8647 = vmatpush1.bf16.msra.mxu0 %v8594
    %8648 = vmatprep.subr.bf16.mxu0 0
    %8649 = vmatpush1.bf16.msra.mxu0 %v8595
    %8650 = vmatprep.subr.bf16.mxu0 0
    %8651 = vmatpush1.bf16.msra.mxu0 %v8596
    %8652 = vmatprep.subr.bf16.mxu0 0
    %8653 = vmatpush1.bf16.msra.mxu0 %v8597
    %8654 = vmatprep.subr.bf16.mxu0 0
    %8655 = vmatpush1.bf16.msra.mxu0 %v8598
    %8656 = vmatprep.subr.bf16.mxu0 0
    %8657 = vmatpush1.bf16.msra.mxu0 %v8599
    %8658 = vmatprep.subr.bf16.mxu0 0
    %8659 = vmatpush1.bf16.msra.mxu0 %v8600
    %8660 = vmatprep.subr.bf16.mxu0 0
    %8661 = vmatpush1.bf16.msra.mxu0 %v8601
    %8662 = vmatprep.subr.bf16.mxu0 0
    %8663 = vmatpush1.bf16.msra.mxu0 %v8602
    %8664 = vmatprep.subr.bf16.mxu0 0
    %8665 = vmatpush1.bf16.msra.mxu0 %v8603
    %8666 = vmatprep.subr.bf16.mxu0 0
    %8667 = vmatpush1.bf16.msra.mxu0 %v8604
    %8668 = vmatprep.mubr.bf16.mxu0 %v8585
    %8669 = vmatmul.mubr.bf16.gmra.mrb[0].mxu0 %v8584
    %v8670 = vpop.f32.mrb[0].mxu0
    %v8671 = vadd.f32 %v8634, %v8670
    %v8672 = vpop.f32.mrb[0].mxu0
    %v8673 = vpop.f32.mrb[0].mxu0
    %v8674 = vpop.f32.mrb[0].mxu0
    %8675 = vdwg.mxu0
    %8676 = vmatprep.subr.bf16.mxu0 0
    %8677 = vmatpush1.bf16.msra.mxu0 %v8605
    %8678 = vmatprep.subr.bf16.mxu0 0
    %8679 = vmatpush1.bf16.msra.mxu0 %v8606
    %8680 = vmatprep.subr.bf16.mxu0 0
    %8681 = vmatpush1.bf16.msra.mxu0 %v8607
    %8682 = vmatprep.subr.bf16.mxu0 0
    %8683 = vmatpush1.bf16.msra.mxu0 %v8608
    %8684 = vmatprep.subr.bf16.mxu0 0
    %8685 = vmatpush1.bf16.msra.mxu0 %v8609
    %8686 = vmatprep.subr.bf16.mxu0 0
    %8687 = vmatpush1.bf16.msra.mxu0 %v8610
    %8688 = vmatprep.subr.bf16.mxu0 0
    %8689 = vmatpush1.bf16.msra.mxu0 %v8611
    %8690 = vmatprep.subr.bf16.mxu0 0
    %8691 = vmatpush1.bf16.msra.mxu0 %v8612
    %8692 = vmatprep.subr.bf16.mxu0 0
    %8693 = vmatpush1.bf16.msra.mxu0 %v8613
    %8694 = vmatprep.subr.bf16.mxu0 0
    %8695 = vmatpush1.bf16.msra.mxu0 %v8614
    %8696 = vmatprep.subr.bf16.mxu0 0
    %8697 = vmatpush1.bf16.msra.mxu0 %v8615
    %8698 = vmatprep.subr.bf16.mxu0 0
    %8699 = vmatpush1.bf16.msra.mxu0 %v8616
    %8700 = vmatprep.subr.bf16.mxu0 0
    %8701 = vmatpush1.bf16.msra.mxu0 %v8617
    %8702 = vmatprep.subr.bf16.mxu0 0
    %8703 = vmatpush1.bf16.msra.mxu0 %v8618
    %8704 = vmatprep.subr.bf16.mxu0 0
    %8705 = vmatpush1.bf16.msra.mxu0 %v8619
    %8706 = vmatprep.subr.bf16.mxu0 0
    %8707 = vmatpush1.bf16.msra.mxu0 %v8620
    %8708 = vmatprep.mubr.bf16.mxu0 %v8587
    %8709 = vmatmul.mubr.bf16.gmra.mrb[0].mxu0 %v8586
    %v8710 = vpop.f32.mrb[0].mxu0
    %v8711 = vadd.f32 %v8671, %v8710
    %v8712 = vpop.f32.mrb[0].mxu0
    %v8713 = vpop.f32.mrb[0].mxu0
    %v8714 = vpop.f32.mrb[0].mxu0
    %8715 = vdwg.mxu0
    %8716 = vmatprep.subr.bf16.mxu0 0
    %8717 = vmatpush1.bf16.msra.mxu0 %v8621
    %8718 = vmatprep.subr.bf16.mxu0 0
    %8719 = vmatpush1.bf16.msra.mxu0 %v8622
    %8720 = vmatprep.subr.bf16.mxu0 0
    %8721 = vmatpush1.bf16.msra.mxu0 %v8623
    %8722 = vmatprep.subr.bf16.mxu0 0
    %8723 = vmatpush1.bf16.msra.mxu0 %v8624
    %8724 = vmatprep.subr.bf16.mxu0 0
    %8725 = vmatpush1.bf16.msra.mxu0 %v8625
    %8726 = vmatprep.subr.bf16.mxu0 0
    %8727 = vmatpush1.bf16.msra.mxu0 %v8626
    %8728 = vmatprep.subr.bf16.mxu0 0
    %8729 = vmatpush1.bf16.msra.mxu0 %v8627
    %8730 = vmatprep.subr.bf16.mxu0 0
    %8731 = vmatpush1.bf16.msra.mxu0 %v8628
    %8732 = vmatprep.subr.bf16.mxu0 0
    %8733 = vmatpush1.bf16.msra.mxu0 0
    %8734 = vmatprep.subr.bf16.mxu0 0
    %8735 = vmatpush1.bf16.msra.mxu0 0
    %8736 = vmatprep.subr.bf16.mxu0 0
    %8737 = vmatpush1.bf16.msra.mxu0 0
    %8738 = vmatprep.subr.bf16.mxu0 0
    %8739 = vmatpush1.bf16.msra.mxu0 0
    %8740 = vmatprep.subr.bf16.mxu0 0
    %8741 = vmatpush1.bf16.msra.mxu0 0
    %8742 = vmatprep.subr.bf16.mxu0 0
    %8743 = vmatpush1.bf16.msra.mxu0 0
    %8744 = vmatprep.subr.bf16.mxu0 0
    %8745 = vmatpush1.bf16.msra.mxu0 0
    %8746 = vmatprep.subr.bf16.mxu0 0
    %8747 = vmatpush1.bf16.msra.mxu0 0
    %8748 = vmatprep.mubr.bf16.mxu0 0
    %8749 = vmatmul.mubr.bf16.gmra.mrb[0].mxu0 %v8588
    %v8750 = vpop.f32.mrb[0].mxu0
    %v8751 = vadd.f32 %v8711, %v8750
    %v8752 = vpop.f32.mrb[0].mxu0
    %v8753 = vpop.f32.mrb[0].mxu0
    %v8754 = vpop.f32.mrb[0].mxu0
    %8755 = vdwg.mxu0
    %8756 = vst [vmem:[%s13] sm:$0xff] %v8751
    // Predicated region
    $region46: #{model_forward.1} parent=1 // pred_check
      _
    $region47: #{model_forward.1} parent=1 // pred_check_branch
      %8758 = sbr.rel (0) target = $region49
    $region48: #{model_forward.1} parent=1 // pred_region
      _
    $region49: #{model_forward.1} parent=1 // pred_fallthru
      _
    // Predicated region
    $region50: #{model_forward.1} parent=1 // pred_check
      _
    $region51: #{model_forward.1} parent=1 // pred_check_branch
      %8760 = sbr.rel (0) target = $region53
    $region52: #{model_forward.1} parent=1 // pred_region
      _
    $region53: #{model_forward.1} parent=1 // pred_fallthru
      _
    %8761 = vsyncpa [#allocation9], 1
  %8762 = vsyncmov [#allocation7]
  %s8763 = vpop.sfrf %8762
  %p8764 = scmp.eq.s32.totalorder %s8763, 0
  %p8765 = pneg %p8764
  %8767 = shalt.err (%p8765)
  %s8768 = scalar_lea.sflag [#allocation7], 1
  %8769 = vsyncmov %s8768
  %s8770 = vpop.sfrf %8769
  %p8771 = scmp.eq.s32.totalorder %s8770, 0
  %p8772 = pneg %p8771
  %8774 = shalt.err (%p8772)
  %s8775 = scalar_lea.sflag [#allocation7], 2
  %8776 = vsyncmov %s8775
  %s8777 = vpop.sfrf %8776
  %p8778 = scmp.eq.s32.totalorder %s8777, 0
  %p8779 = pneg %p8778
  %8781 = shalt.err (%p8779)
  %s8782 = scalar_lea.sflag [#allocation7], 3
  %8783 = vsyncmov %s8782
  %s8784 = vpop.sfrf %8783
  %p8785 = scmp.eq.s32.totalorder %s8784, 0
  %p8786 = pneg %p8785
  %8788 = shalt.err (%p8786)

</llo_original>
